<compile_context>
chip_gen: v7x
topology: tpu7x:2x2x1
jax: 0.10.0
libtpu: 0.0.40
codegen_flags: <defaults>
</compile_context>

<pallas_src>
import functools
import math

import jax
import jax.numpy as jnp
from jax.experimental import pallas as pl
from jax.experimental.pallas import tpu as pltpu


# ----------------------------------- kernel -------------------------------------------

def _decoder_kernel(trg_ref, src_ref, wh_ref, wp_ref, w_ow2_ref, b_ref,
                    label_ref, attn_ref,
                    *, offs_wh, offs_wp, offs_b, n_layers: int, n_heads: int, eps: float):
    Bb, S_t, H = trg_ref.shape
    _, S_s, _ = src_ref.shape
    nh = n_heads
    hd = H // nh
    Mt = Bb * S_t
    Ms = Bb * S_s
    inv_scale = 1.0 / math.sqrt(float(hd))
    f32 = jnp.float32

    # static-offset views into the packed slabs (all offsets are Python ints)
    def WH(name):
        off, r, c = offs_wh[name]
        return wh_ref[0:r, off:off + c]

    def WP(name):
        off, r, c = offs_wp[name]
        return wp_ref[0:r, off:off + c]

    def BV(name):
        off, c = offs_b[name]
        return b_ref[:, off:off + c]          # (1, c), broadcasts against (M, c)

    def layer_norm(x2, gamma, beta):
        # torch LayerNorm in models_v4: unbiased std (N-1), eps added to std (not variance).
        # sum(x) and sum(x*x) issued together -> both XLU reductions overlap.
        s1 = jnp.sum(x2, axis=-1, keepdims=True)
        s2 = jnp.sum(x2 * x2, axis=-1, keepdims=True)
        mean = s1 * (1.0 / H)
        var = jnp.maximum((s2 - mean * s1) * (1.0 / (H - 1)), 0.0)
        std = jnp.sqrt(var)
        return gamma * ((x2 - mean) / (std + eps)) + beta

    def mha(Q2, K2, V2, wo, bo, S_q, S_k, want_attn):
        # Q2: (Bb*S_q, H); K2/V2: (Bb*S_k, H); wo: (H, H); bo: (1, H)
        Q3 = Q2.reshape(Bb, S_q, H)
        K3 = K2.reshape(Bb, S_k, H)
        V3 = V2.reshape(Bb, S_k, H)
        # head-major stacks: (nh*Bb, S, hd); static lane slices + major-dim concat
        Qh = jnp.concatenate([Q3[:, :, h * hd:(h + 1) * hd] for h in range(nh)], axis=0)
        Kh = jnp.concatenate([K3[:, :, h * hd:(h + 1) * hd] for h in range(nh)], axis=0)
        Vh = jnp.concatenate([V3[:, :, h * hd:(h + 1) * hd] for h in range(nh)], axis=0)
        # one batched score einsum + ONE softmax chain for all heads
        e = jnp.einsum("nqd,nkd->nqk", Qh, Kh, preferred_element_type=f32) * inv_scale
        e = e - jnp.max(e, axis=-1, keepdims=True)
        p = jnp.exp(e)
        p = p / jnp.sum(p, axis=-1, keepdims=True)   # exact divide: fp32 parity w/ reference
        ctx = jnp.einsum("nqk,nkd->nqd", p, Vh, preferred_element_type=f32)  # (nh*Bb,S_q,hd)
        # reassemble (Bb*S_q, H) and do a single full-K output projection
        ctx_cat = jnp.concatenate([ctx[h * Bb:(h + 1) * Bb] for h in range(nh)], axis=-1)
        out2 = jnp.dot(ctx_cat.reshape(Bb * S_q, H), wo, preferred_element_type=f32) + bo
        if want_attn:
            attn_mean = jnp.mean(p.reshape(nh, Bb, S_q, S_k), axis=0)   # head mean
            return out2, attn_mean
        return out2

    trg2 = trg_ref[...].reshape(Mt, H).astype(f32)
    src2 = src_ref[...].reshape(Ms, H).astype(f32)

    # initial linear (ft)
    x2 = jnp.dot(trg2, WH("ft_w"), preferred_element_type=f32) + BV("ft_b")

    # layer-invariant cross-attention K/V projection, all layers fused in one matmul
    kv_all = jnp.dot(src2, WH("ea_wkv_all"), preferred_element_type=f32) + BV("ea_bkv_all")

    attn_mean = None
    for l in range(n_layers):             # n_layers is small & static -> unrolled
        # ---- self attention + residual + ln1 (fused Q|K|V projection) ----
        qkv = jnp.dot(x2, WH(f"sa_wqkv{l}"), preferred_element_type=f32) + BV(f"sa_bqkv{l}")
        sa_out = mha(qkv[:, 0:H], qkv[:, H:2 * H], qkv[:, 2 * H:3 * H],
                     WH(f"sa_wo{l}"), BV(f"sa_bo{l}"), S_t, S_t, want_attn=False)
        x2 = layer_norm(x2 + sa_out, BV(f"ln1_g{l}"), BV(f"ln1_b{l}"))

        # ---- cross ("encoder") attention + residual + ln2 (K/V hoisted above) ----
        q2 = jnp.dot(x2, WH(f"ea_wq{l}"), preferred_element_type=f32) + BV(f"ea_bq{l}")
        k2 = kv_all[:, 2 * H * l: 2 * H * l + H]
        v2 = kv_all[:, 2 * H * l + H: 2 * H * (l + 1)]
        if l == n_layers - 1:             # only the last layer's attention map is used
            ea_out, attn_mean = mha(q2, k2, v2, WH(f"ea_wo{l}"), BV(f"ea_bo{l}"),
                                    S_t, S_s, want_attn=True)
        else:
            ea_out = mha(q2, k2, v2, WH(f"ea_wo{l}"), BV(f"ea_bo{l}"),
                         S_t, S_s, want_attn=False)
        x2 = layer_norm(x2 + ea_out, BV(f"ln2_g{l}"), BV(f"ln2_b{l}"))

        # ---- positionwise FFN (Conv1d k=1 == per-position linear) + residual + ln3 ----
        h1 = jnp.maximum(jnp.dot(x2, WH(f"pf_w1{l}"), preferred_element_type=f32)
                         + BV(f"pf_b1{l}"), 0.0)
        ff = jnp.dot(h1, WP(f"pf_w2{l}"), preferred_element_type=f32) + BV(f"pf_b2{l}")
        x2 = layer_norm(x2 + ff, BV(f"ln3_g{l}"), BV(f"ln3_b{l}"))

    # ---- attention-pooling head (last layer's cross-attention, head-mean) ----
    attn_ref[...] = attn_mean.reshape(Bb, 1, S_t, S_s).astype(attn_ref.dtype)
    feat_k = jnp.max(attn_mean, axis=1)                        # torch.max(dim=2) -> (Bb, S_s)
    feat_q = jnp.max(attn_mean, axis=2)                        # torch.max(dim=3) -> (Bb, S_t)
    feat = jnp.concatenate([feat_k, feat_q], axis=-1)          # (Bb, S_s + S_t)

    hm = jnp.maximum(jnp.dot(feat, WH("ow1"), preferred_element_type=f32) + BV("ob1"), 0.0)
    hm = jnp.maximum(jnp.dot(hm, w_ow2_ref[...], preferred_element_type=f32) + BV("ob2"), 0.0)
    hm = jnp.maximum(jnp.dot(hm, WP("ow3"), preferred_element_type=f32) + BV("ob3"), 0.0)
    label = jnp.dot(hm, WH("ow4"), preferred_element_type=f32) + BV("ob4")   # (Bb, 1)
    label_ref[...] = label.reshape(Bb, 1, 1).astype(label_ref.dtype)


# ----------------------------------- wrapper ------------------------------------------

def _const_index_map(ndim):
    zeros = (0,) * ndim
    return lambda i: zeros


def decoder_forward(trg, src, packed, *, n_heads: int, n_layers: int,
                    batch_parallel: bool = False):
    """trg: (B, S_t, H), src: (B, S_s, H). Returns (label (B,1,1), attention (B,1,S_t,S_s)).

    batch_parallel=True splits the batch over grid=(B,) with "parallel" semantics
    (use on v7x, which has 2 TensorCores/chip); default grid=(1,) is best on v5e/v6e.
    """
    B, S_t, H = trg.shape
    _, S_s, _ = src.shape
    F = S_s + S_t
    PF = packed["pf_dim"]

    kernel = functools.partial(_decoder_kernel,
                               offs_wh=packed["offs_wh"], offs_wp=packed["offs_wp"],
                               offs_b=packed["offs_b"],
                               n_layers=n_layers, n_heads=n_heads, eps=1e-12)

    args = (trg, src, packed["wh"], packed["wp"], packed["ow2"], packed["b"])
    out_shape = (jax.ShapeDtypeStruct((B, 1, 1), jnp.float32),
                 jax.ShapeDtypeStruct((B, 1, S_t, S_s), jnp.float32))

    if batch_parallel:
        grid = (B,)
        in_specs = [
            pl.BlockSpec((1, S_t, H), lambda b: (b, 0, 0)),
            pl.BlockSpec((1, S_s, H), lambda b: (b, 0, 0)),
            pl.BlockSpec(packed["wh"].shape, lambda b: (0, 0)),
            pl.BlockSpec(packed["wp"].shape, lambda b: (0, 0)),
            pl.BlockSpec(packed["ow2"].shape, lambda b: (0, 0)),
            pl.BlockSpec(packed["b"].shape, lambda b: (0, 0)),
        ]
        out_specs = (pl.BlockSpec((1, 1, 1), lambda b: (b, 0, 0)),
                     pl.BlockSpec((1, 1, S_t, S_s), lambda b: (b, 0, 0, 0)))
        dim_sem = ("parallel",)
    else:
        grid = (1,)
        in_specs = [pl.BlockSpec(a.shape, _const_index_map(a.ndim)) for a in args]
        out_specs = (pl.BlockSpec((B, 1, 1), _const_index_map(3)),
                     pl.BlockSpec((B, 1, S_t, S_s), _const_index_map(4)))
        dim_sem = ("arbitrary",)

    # rough cost hint for XLA's scheduler
    Mt, Ms = B * S_t, B * S_s
    layer_flops = (2 * Mt * H * 3 * H                            # fused QKV
                   + 4 * B * S_t * S_t * H + 2 * Mt * H * H      # self-attn + out proj
                   + 2 * Mt * H * H                              # cross q proj
                   + 4 * B * S_t * S_s * H + 2 * Mt * H * H      # cross-attn + out proj
                   + 4 * Mt * H * PF)                            # FFN
    flops = (2 * Mt * H * H + 2 * Ms * H * (2 * H * n_layers) + n_layers * layer_flops
             + 2 * B * (F * 256 + 256 * 64 + 64 * 32 + 32))
    transcendentals = n_layers * n_heads * (B * S_t * S_t + B * S_t * S_s)
    bytes_accessed = (sum(int(a.size) * a.dtype.itemsize for a in args)
                      + (B + B * S_t * S_s) * 4)

    label, attn = pl.pallas_call(
        kernel,
        out_shape=out_shape,
        grid=grid,
        in_specs=in_specs,
        out_specs=out_specs,
        # whole problem (~0.5 MB of params + tiny activations) fits VMEM comfortably on
        # every generation; revisit (stream per-layer weights over a grid axis) if
        # H/PF/S/n_layers grow toward v7x's 64 MiB VMEM.
        compiler_params=pltpu.CompilerParams(dimension_semantics=dim_sem),
        cost_estimate=pl.CostEstimate(flops=int(flops),
                                      transcendentals=int(transcendentals),
                                      bytes_accessed=int(bytes_accessed)),
    )(*args)
    return label, attn


# ----------------------------- parameter packing --------------------------------------

def _align128(c):
    return ((c + 127) // 128) * 128


def _pack_row_slab(entries, rows):
    """entries: [(name, 2D array)]. Packs column blocks at 128-aligned offsets."""
    offs, col = {}, 0
    for name, a in entries:
        r, c = a.shape
        assert r <= rows, (name, r, rows)
        offs[name] = (col, r, c)
        col += _align128(c)
    slab = jnp.zeros((rows, col), jnp.float32)
    for name, a in entries:
        off, r, c = offs[name]
        slab = slab.at[0:r, off:off + c].set(a.astype(jnp.float32))
    return slab, offs


def _pack_vec_slab(entries):
    """entries: [(name, 1D array)]. Packs into a single (1, C) row at 128-aligned offsets."""
    offs, col = {}, 0
    for name, a in entries:
        (c,) = a.shape
        offs[name] = (col, c)
        col += _align128(c)
    slab = jnp.zeros((1, col), jnp.float32)
    for name, a in entries:
        off, c = offs[name]
        slab = slab.at[0, off:off + c].set(a.astype(jnp.float32))
    return slab, offs


def _pack_params(raw, *, n_heads, H, PF, F, n_layers):
    """Pack raw per-layer params into 4 refs: two weight slabs, ow2, and one bias slab."""
    # ---- slab of weights whose contraction dim fits in max(H, F, 32) rows ----
    wh_entries = [("ft_w", raw["ft_w"])]
    for l, L in enumerate(raw["layers"]):
        wh_entries += [
            (f"sa_wqkv{l}", jnp.concatenate([L["sa_wq"], L["sa_wk"], L["sa_wv"]], axis=1)),
            (f"sa_wo{l}", L["sa_wo"]),
            (f"ea_wq{l}", L["ea_wq"]),
            (f"ea_wo{l}", L["ea_wo"]),
            (f"pf_w1{l}", L["pf_w1"]),
        ]
    ea_wkv_all = jnp.concatenate(
        [jnp.concatenate([L["ea_wk"], L["ea_wv"]], axis=1) for L in raw["layers"]], axis=1)
    wh_entries += [("ea_wkv_all", ea_wkv_all), ("ow1", raw["ow1"]), ("ow4", raw["ow4"])]
    rows_h = max(H, F, raw["ow4"].shape[0])
    wh, offs_wh = _pack_row_slab(wh_entries, rows_h)

    # ---- slab of weights whose contraction dim fits in max(PF, 64) rows ----
    wp_entries = [(f"pf_w2{l}", raw["layers"][l]["pf_w2"]) for l in range(n_layers)]
    wp_entries.append(("ow3", raw["ow3"]))
    rows_p = max(PF, raw["ow3"].shape[0])
    wp, offs_wp = _pack_row_slab(wp_entries, rows_p)

    # ---- all 1-D biases / LayerNorm params in one row slab ----
    b_entries = [("ft_b", raw["ft_b"])]
    for l, L in enumerate(raw["layers"]):
        b_entries += [
            (f"sa_bqkv{l}", jnp.concatenate([L["sa_bq"], L["sa_bk"], L["sa_bv"]])),
            (f"sa_bo{l}", L["sa_bo"]),
            (f"ea_bq{l}", L["ea_bq"]),
            (f"ea_bo{l}", L["ea_bo"]),
            (f"pf_b1{l}", L["pf_b1"]), (f"pf_b2{l}", L["pf_b2"]),
            (f"ln1_g{l}", L["ln1_g"]), (f"ln1_b{l}", L["ln1_b"]),
            (f"ln2_g{l}", L["ln2_g"]), (f"ln2_b{l}", L["ln2_b"]),
            (f"ln3_g{l}", L["ln3_g"]), (f"ln3_b{l}", L["ln3_b"]),
        ]
    ea_bkv_all = jnp.concatenate(
        [jnp.concatenate([L["ea_bk"], L["ea_bv"]]) for L in raw["layers"]])
    b_entries += [("ea_bkv_all", ea_bkv_all),
                  ("ob1", raw["ob1"]), ("ob2", raw["ob2"]),
                  ("ob3", raw["ob3"]), ("ob4", raw["ob4"])]
    bvec, offs_b = _pack_vec_slab(b_entries)

    return {"wh": wh, "offs_wh": offs_wh,
            "wp": wp, "offs_wp": offs_wp,
            "ow2": raw["ow2"].astype(jnp.float32),
            "b": bvec, "offs_b": offs_b,
            "pf_dim": PF}


# ----------------------------- raw parameter construction -----------------------------

def _init_raw_params(key, *, H, PF, flatten_dim, n_layers):
    def u(k, shape, scale):
        return jax.random.uniform(k, shape, jnp.float32, -scale, scale)

    keys = iter(jax.random.split(key, 16 + n_layers * 32))
    bH = 1.0 / math.sqrt(H)
    raw = {
        "ft_w": u(next(keys), (H, H), bH), "ft_b": u(next(keys), (H,), bH),
        "ow1": u(next(keys), (flatten_dim, 256), 1.0 / math.sqrt(flatten_dim)),
        "ob1": u(next(keys), (256,), 1.0 / math.sqrt(flatten_dim)),
        "ow2": u(next(keys), (256, 64), 1.0 / math.sqrt(256)),
        "ob2": u(next(keys), (64,), 1.0 / math.sqrt(256)),
        "ow3": u(next(keys), (64, 32), 1.0 / math.sqrt(64)),
        "ob3": u(next(keys), (32,), 1.0 / math.sqrt(64)),
        "ow4": u(next(keys), (32, 1), 1.0 / math.sqrt(32)),
        "ob4": u(next(keys), (1,), 1.0 / math.sqrt(32)),
        "layers": [],
    }
    bPF = 1.0 / math.sqrt(PF)
    for _ in range(n_layers):
        L = {}
        for name in ("sa_wq", "sa_wk", "sa_wv", "sa_wo", "ea_wq", "ea_wk", "ea_wv", "ea_wo"):
            L[name] = u(next(keys), (H, H), bH)
        for name in ("sa_bq", "sa_bk", "sa_bv", "sa_bo", "ea_bq", "ea_bk", "ea_bv", "ea_bo"):
            L[name] = u(next(keys), (H,), bH)
        for name in ("ln1_g", "ln2_g", "ln3_g"):
            L[name] = 1.0 + u(next(keys), (H,), 0.1)
        for name in ("ln1_b", "ln2_b", "ln3_b"):
            L[name] = u(next(keys), (H,), 0.1)
        L["pf_w1"] = u(next(keys), (H, PF), bH)
        L["pf_b1"] = u(next(keys), (PF,), bH)
        L["pf_w2"] = u(next(keys), (PF, H), bPF)
        L["pf_b2"] = u(next(keys), (H,), bPF)
        raw["layers"].append(L)
    return raw


# ----------------------------- plain-JAX reference (mirrors PyTorch) -------------------

def _reference_decoder(trg, src, raw, *, n_heads):
    B, S_t, H = trg.shape
    hd = H // n_heads
    scale = math.sqrt(float(hd))

    def lin(x, w, b):
        return x @ w + b

    def layer_norm(x, g, b, eps=1e-12):
        mean = jnp.mean(x, axis=-1, keepdims=True)
        var = jnp.sum((x - mean) ** 2, axis=-1, keepdims=True) / (x.shape[-1] - 1)
        std = jnp.sqrt(var)
        return g * ((x - mean) / (std + eps)) + b

    def mha(q, k, v, wq, bq, wk, bk, wv, bv, wo, bo):
        Q = lin(q, wq, bq).reshape(B, -1, n_heads, hd).transpose(0, 2, 1, 3)
        K = lin(k, wk, bk).reshape(B, -1, n_heads, hd).transpose(0, 2, 1, 3)
        V = lin(v, wv, bv).reshape(B, -1, n_heads, hd).transpose(0, 2, 1, 3)
        e = jnp.einsum("bhqd,bhkd->bhqk", Q, K) / scale
        a = jax.nn.softmax(e, axis=-1)
        x = jnp.einsum("bhqk,bhkd->bhqd", a, V).transpose(0, 2, 1, 3).reshape(B, -1, H)
        return lin(x, wo, bo), a

    x = lin(trg, raw["ft_w"], raw["ft_b"])
    attention = None
    for lp in raw["layers"]:
        sa_out, _ = mha(x, x, x, lp["sa_wq"], lp["sa_bq"], lp["sa_wk"], lp["sa_bk"],
                        lp["sa_wv"], lp["sa_bv"], lp["sa_wo"], lp["sa_bo"])
        x = layer_norm(x + sa_out, lp["ln1_g"], lp["ln1_b"])
        ea_out, attention = mha(x, src, src, lp["ea_wq"], lp["ea_bq"], lp["ea_wk"], lp["ea_bk"],
                                lp["ea_wv"], lp["ea_bv"], lp["ea_wo"], lp["ea_bo"])
        x = layer_norm(x + ea_out, lp["ln2_g"], lp["ln2_b"])
        ff = lin(jnp.maximum(lin(x, lp["pf_w1"], lp["pf_b1"]), 0.0), lp["pf_w2"], lp["pf_b2"])
        x = layer_norm(x + ff, lp["ln3_g"], lp["ln3_b"])

    attention = jnp.mean(attention, axis=1, keepdims=True)      # (B,1,S_t,S_s)
    xm = jnp.max(attention, axis=2)                             # (B,1,S_s)
    ym = jnp.max(attention, axis=3)                             # (B,1,S_t)
    feat = jnp.concatenate([xm, ym], axis=2)                    # (B,1,F)
    h = jnp.maximum(feat @ raw["ow1"] + raw["ob1"], 0.0)
    h = jnp.maximum(h @ raw["ow2"] + raw["ob2"], 0.0)
    h = jnp.maximum(h @ raw["ow3"] + raw["ob3"], 0.0)
    label = h @ raw["ow4"] + raw["ob4"]                         # (B,1,1)
    return label, attention


if __name__ == "__main__":
    # batch=2, seq=8 (trg & src), hid_dim=32, n_heads=4, pf_dim=64, n_layers=2
    B, S_T, S_S, H, NH, PF, NL = 2, 8, 8, 32, 4, 64, 2
    FLAT = S_T + S_S   # flatten_dim implied by Decoder.forward's attention pooling

    root = jax.random.PRNGKey(0)
    k_p, k_t, k_s = jax.random.split(root, 3)
    raw = _init_raw_params(k_p, H=H, PF=PF, flatten_dim=FLAT, n_layers=NL)
    packed = _pack_params(raw, n_heads=NH, H=H, PF=PF, F=FLAT, n_layers=NL)

    trg = jax.random.normal(k_t, (B, S_T, H), jnp.float32)
    src = jax.random.normal(k_s, (B, S_S, H), jnp.float32)

    ref_label, ref_attn = _reference_decoder(trg, src, raw, n_heads=NH)

    # default config: single grid step, whole model resident in VMEM (best on v5e / v6e)
    label, attn = decoder_forward(trg, src, packed, n_heads=NH, n_layers=NL)
    label = jax.block_until_ready(label)
    attn = jax.block_until_ready(attn)

    assert label.shape == (B, 1, 1), label.shape
    assert attn.shape == (B, 1, S_T, S_S), attn.shape
    assert jnp.allclose(attn, ref_attn, atol=2e-4, rtol=1e-3), "attention mismatch vs reference"
    assert jnp.allclose(label, ref_label, atol=5e-4, rtol=2e-3), "label mismatch vs reference"

    # v7x config: batch split across the two TensorCores (verified for correctness here too)
    label2, attn2 = decoder_forward(trg, src, packed, n_heads=NH, n_layers=NL,
                                    batch_parallel=True)
    label2 = jax.block_until_ready(label2)
    attn2 = jax.block_until_ready(attn2)
    assert jnp.allclose(attn2, ref_attn, atol=2e-4, rtol=1e-3), "attention mismatch (parallel)"
    assert jnp.allclose(label2, ref_label, atol=5e-4, rtol=2e-3), "label mismatch (parallel)"

    print("KERNEL_OK")
</pallas_src>

<mosaic_0001>
module attributes {stable_mosaic.version = 11 : i64} {
  func.func @_decoder_kernel(%arg0: i32, %arg1: memref<2x8x32xf32, #tpu.memory_space<vmem>>, %arg2: memref<2x8x32xf32, #tpu.memory_space<vmem>>, %arg3: memref<32x1920xf32, #tpu.memory_space<vmem>>, %arg4: memref<64x384xf32, #tpu.memory_space<vmem>>, %arg5: memref<256x64xf32, #tpu.memory_space<vmem>>, %arg6: memref<1x3968xf32, #tpu.memory_space<vmem>>, %arg7: memref<2x1x1xf32, #tpu.memory_space<vmem>>, %arg8: memref<2x1x8x8xf32, #tpu.memory_space<vmem>>) attributes {dimension_semantics = [#tpu.dimension_semantics<arbitrary>], iteration_bounds = array<i64: 1>, scalar_prefetch = 0 : i64, scratch_operands = 0 : i64, tpu.core_type = #tpu.core_type<tc>, window_params = [{pipeline_mode = #tpu.pipeline_mode<synchronous>, transform_indices = @transform_0, window_bounds = array<i64: 2, 8, 32>}, {pipeline_mode = #tpu.pipeline_mode<synchronous>, transform_indices = @transform_1, window_bounds = array<i64: 2, 8, 32>}, {pipeline_mode = #tpu.pipeline_mode<synchronous>, transform_indices = @transform_2, window_bounds = array<i64: 32, 1920>}, {pipeline_mode = #tpu.pipeline_mode<synchronous>, transform_indices = @transform_3, window_bounds = array<i64: 64, 384>}, {pipeline_mode = #tpu.pipeline_mode<synchronous>, transform_indices = @transform_4, window_bounds = array<i64: 256, 64>}, {pipeline_mode = #tpu.pipeline_mode<synchronous>, transform_indices = @transform_5, window_bounds = array<i64: 1, 3968>}, {pipeline_mode = #tpu.pipeline_mode<synchronous>, transform_indices = @transform_6, window_bounds = array<i64: 2, 1, 1>}, {pipeline_mode = #tpu.pipeline_mode<synchronous>, transform_indices = @transform_7, window_bounds = array<i64: 2, 1, 8, 8>}]} {
    %c0 = arith.constant 0 : index
    %c0_0 = arith.constant 0 : index
    %c0_1 = arith.constant 0 : index
    %0 = vector.load %arg1[%c0, %c0_0, %c0_1] : memref<2x8x32xf32, #tpu.memory_space<vmem>>, vector<2x8x32xf32>
    %1 = vector.shape_cast %0 : vector<2x8x32xf32> to vector<16x32xf32>
    %c0_2 = arith.constant 0 : index
    %c0_3 = arith.constant 0 : index
    %c0_4 = arith.constant 0 : index
    %2 = vector.load %arg2[%c0_2, %c0_3, %c0_4] : memref<2x8x32xf32, #tpu.memory_space<vmem>>, vector<2x8x32xf32>
    %3 = vector.shape_cast %2 : vector<2x8x32xf32> to vector<16x32xf32>
    %c0_5 = arith.constant 0 : index
    %c0_6 = arith.constant 0 : index
    %4 = vector.load %arg3[%c0_5, %c0_6] : memref<32x1920xf32, #tpu.memory_space<vmem>>, vector<32x32xf32>
    %cst = arith.constant dense<0.000000e+00> : vector<16x32xf32>
    %5 = tpu.matmul %1, %4, %cst {dimension_numbers = #tpu.dot_dimension_numbers<[1], [0], [0], [1], [0, 0, 1, 1], [], []>} : vector<16x32xf32>, vector<32x32xf32>, vector<16x32xf32> -> vector<16x32xf32>
    %c0_7 = arith.constant 0 : index
    %c0_8 = arith.constant 0 : index
    %6 = vector.load %arg6[%c0_7, %c0_8] : memref<1x3968xf32, #tpu.memory_space<vmem>>, vector<1x32xf32>
    %7 = vector.broadcast %6 : vector<1x32xf32> to vector<16x32xf32>
    %8 = arith.addf %5, %7 : vector<16x32xf32>
    %c0_9 = arith.constant 0 : index
    %c1408 = arith.constant 1408 : index
    %9 = vector.load %arg3[%c0_9, %c1408] : memref<32x1920xf32, #tpu.memory_space<vmem>>, vector<32x128xf32>
    %cst_10 = arith.constant dense<0.000000e+00> : vector<16x128xf32>
    %10 = tpu.matmul %3, %9, %cst_10 {dimension_numbers = #tpu.dot_dimension_numbers<[1], [0], [0], [1], [0, 0, 1, 1], [], []>} : vector<16x32xf32>, vector<32x128xf32>, vector<16x128xf32> -> vector<16x128xf32>
    %c0_11 = arith.constant 0 : index
    %c3200 = arith.constant 3200 : index
    %11 = vector.load %arg6[%c0_11, %c3200] : memref<1x3968xf32, #tpu.memory_space<vmem>>, vector<1x128xf32>
    %12 = vector.broadcast %11 : vector<1x128xf32> to vector<16x128xf32>
    %13 = arith.addf %10, %12 : vector<16x128xf32>
    %c0_12 = arith.constant 0 : index
    %c128 = arith.constant 128 : index
    %14 = vector.load %arg3[%c0_12, %c128] : memref<32x1920xf32, #tpu.memory_space<vmem>>, vector<32x96xf32>
    %cst_13 = arith.constant dense<0.000000e+00> : vector<16x96xf32>
    %15 = tpu.matmul %8, %14, %cst_13 {dimension_numbers = #tpu.dot_dimension_numbers<[1], [0], [0], [1], [0, 0, 1, 1], [], []>} : vector<16x32xf32>, vector<32x96xf32>, vector<16x96xf32> -> vector<16x96xf32>
    %c0_14 = arith.constant 0 : index
    %c128_15 = arith.constant 128 : index
    %16 = vector.load %arg6[%c0_14, %c128_15] : memref<1x3968xf32, #tpu.memory_space<vmem>>, vector<1x96xf32>
    %17 = vector.broadcast %16 : vector<1x96xf32> to vector<16x96xf32>
    %18 = arith.addf %15, %17 : vector<16x96xf32>
    %19 = vector.extract_strided_slice %18 {offsets = [0, 0], sizes = [16, 32], strides = [1, 1]} : vector<16x96xf32> to vector<16x32xf32>
    %20 = vector.extract_strided_slice %18 {offsets = [0, 32], sizes = [16, 32], strides = [1, 1]} : vector<16x96xf32> to vector<16x32xf32>
    %21 = vector.extract_strided_slice %18 {offsets = [0, 64], sizes = [16, 32], strides = [1, 1]} : vector<16x96xf32> to vector<16x32xf32>
    %c0_16 = arith.constant 0 : index
    %c256 = arith.constant 256 : index
    %22 = vector.load %arg3[%c0_16, %c256] : memref<32x1920xf32, #tpu.memory_space<vmem>>, vector<32x32xf32>
    %c0_17 = arith.constant 0 : index
    %c256_18 = arith.constant 256 : index
    %23 = vector.load %arg6[%c0_17, %c256_18] : memref<1x3968xf32, #tpu.memory_space<vmem>>, vector<1x32xf32>
    %24 = vector.shape_cast %19 : vector<16x32xf32> to vector<2x8x32xf32>
    %25 = vector.shape_cast %20 : vector<16x32xf32> to vector<2x8x32xf32>
    %26 = vector.shape_cast %21 : vector<16x32xf32> to vector<2x8x32xf32>
    %27 = vector.extract_strided_slice %24 {offsets = [0, 0, 0], sizes = [2, 8, 8], strides = [1, 1, 1]} : vector<2x8x32xf32> to vector<2x8x8xf32>
    %28 = vector.extract_strided_slice %24 {offsets = [0, 0, 8], sizes = [2, 8, 8], strides = [1, 1, 1]} : vector<2x8x32xf32> to vector<2x8x8xf32>
    %29 = vector.extract_strided_slice %24 {offsets = [0, 0, 16], sizes = [2, 8, 8], strides = [1, 1, 1]} : vector<2x8x32xf32> to vector<2x8x8xf32>
    %30 = vector.extract_strided_slice %24 {offsets = [0, 0, 24], sizes = [2, 8, 8], strides = [1, 1, 1]} : vector<2x8x32xf32> to vector<2x8x8xf32>
    %31 = tpu.concatenate %27, %28, %29, %30 in 0 : vector<2x8x8xf32>, vector<2x8x8xf32>, vector<2x8x8xf32>, vector<2x8x8xf32> -> vector<8x8x8xf32>
    %32 = vector.extract_strided_slice %25 {offsets = [0, 0, 0], sizes = [2, 8, 8], strides = [1, 1, 1]} : vector<2x8x32xf32> to vector<2x8x8xf32>
    %33 = vector.extract_strided_slice %25 {offsets = [0, 0, 8], sizes = [2, 8, 8], strides = [1, 1, 1]} : vector<2x8x32xf32> to vector<2x8x8xf32>
    %34 = vector.extract_strided_slice %25 {offsets = [0, 0, 16], sizes = [2, 8, 8], strides = [1, 1, 1]} : vector<2x8x32xf32> to vector<2x8x8xf32>
    %35 = vector.extract_strided_slice %25 {offsets = [0, 0, 24], sizes = [2, 8, 8], strides = [1, 1, 1]} : vector<2x8x32xf32> to vector<2x8x8xf32>
    %36 = tpu.concatenate %32, %33, %34, %35 in 0 : vector<2x8x8xf32>, vector<2x8x8xf32>, vector<2x8x8xf32>, vector<2x8x8xf32> -> vector<8x8x8xf32>
    %37 = vector.extract_strided_slice %26 {offsets = [0, 0, 0], sizes = [2, 8, 8], strides = [1, 1, 1]} : vector<2x8x32xf32> to vector<2x8x8xf32>
    %38 = vector.extract_strided_slice %26 {offsets = [0, 0, 8], sizes = [2, 8, 8], strides = [1, 1, 1]} : vector<2x8x32xf32> to vector<2x8x8xf32>
    %39 = vector.extract_strided_slice %26 {offsets = [0, 0, 16], sizes = [2, 8, 8], strides = [1, 1, 1]} : vector<2x8x32xf32> to vector<2x8x8xf32>
    %40 = vector.extract_strided_slice %26 {offsets = [0, 0, 24], sizes = [2, 8, 8], strides = [1, 1, 1]} : vector<2x8x32xf32> to vector<2x8x8xf32>
    %41 = tpu.concatenate %37, %38, %39, %40 in 0 : vector<2x8x8xf32>, vector<2x8x8xf32>, vector<2x8x8xf32>, vector<2x8x8xf32> -> vector<8x8x8xf32>
    "tpu.trace_start"() <{level = 10 : i32, message = "nqd,nkd->nqk"}> : () -> ()
    %cst_19 = arith.constant dense<0.000000e+00> : vector<8x8x8xf32>
    %42 = tpu.matmul %31, %36, %cst_19 {dimension_numbers = #tpu.dot_dimension_numbers<[2], [2], [1], [1], [0, 0, 0, 1, 1, 1], [0], [0]>} : vector<8x8x8xf32>, vector<8x8x8xf32>, vector<8x8x8xf32> -> vector<8x8x8xf32>
    "tpu.trace_stop"() : () -> ()
    %cst_20 = arith.constant 0.353553385 : f32
    %43 = vector.broadcast %cst_20 : f32 to vector<8x8x8xf32>
    %44 = arith.mulf %42, %43 : vector<8x8x8xf32>
    %cst_21 = arith.constant dense<0xFF800000> : vector<8x8xf32>
    %45 = vector.multi_reduction <maximumf>, %44, %cst_21 [2] : vector<8x8x8xf32> to vector<8x8xf32>
    %46 = vector.shape_cast %45 : vector<8x8xf32> to vector<8x8x1xf32>
    %47 = vector.broadcast %46 : vector<8x8x1xf32> to vector<8x8x8xf32>
    %48 = arith.subf %44, %47 : vector<8x8x8xf32>
    %49 = math.exp %48 : vector<8x8x8xf32>
    %cst_22 = arith.constant dense<0.000000e+00> : vector<8x8xf32>
    %50 = vector.multi_reduction <add>, %49, %cst_22 [2] : vector<8x8x8xf32> to vector<8x8xf32>
    %51 = vector.shape_cast %50 : vector<8x8xf32> to vector<8x8x1xf32>
    %52 = vector.broadcast %51 : vector<8x8x1xf32> to vector<8x8x8xf32>
    %53 = arith.divf %49, %52 : vector<8x8x8xf32>
    "tpu.trace_start"() <{level = 10 : i32, message = "nqk,nkd->nqd"}> : () -> ()
    %cst_23 = arith.constant dense<0.000000e+00> : vector<8x8x8xf32>
    %54 = tpu.matmul %53, %41, %cst_23 {dimension_numbers = #tpu.dot_dimension_numbers<[2], [1], [1], [2], [0, 0, 0, 1, 1, 2], [0], [0]>} : vector<8x8x8xf32>, vector<8x8x8xf32>, vector<8x8x8xf32> -> vector<8x8x8xf32>
    "tpu.trace_stop"() : () -> ()
    %55 = vector.extract_strided_slice %54 {offsets = [0, 0, 0], sizes = [2, 8, 8], strides = [1, 1, 1]} : vector<8x8x8xf32> to vector<2x8x8xf32>
    %56 = vector.extract_strided_slice %54 {offsets = [2, 0, 0], sizes = [2, 8, 8], strides = [1, 1, 1]} : vector<8x8x8xf32> to vector<2x8x8xf32>
    %57 = vector.extract_strided_slice %54 {offsets = [4, 0, 0], sizes = [2, 8, 8], strides = [1, 1, 1]} : vector<8x8x8xf32> to vector<2x8x8xf32>
    %58 = vector.extract_strided_slice %54 {offsets = [6, 0, 0], sizes = [2, 8, 8], strides = [1, 1, 1]} : vector<8x8x8xf32> to vector<2x8x8xf32>
    %59 = tpu.concatenate %55, %56, %57, %58 in 2 : vector<2x8x8xf32>, vector<2x8x8xf32>, vector<2x8x8xf32>, vector<2x8x8xf32> -> vector<2x8x32xf32>
    %60 = vector.shape_cast %59 : vector<2x8x32xf32> to vector<16x32xf32>
    %cst_24 = arith.constant dense<0.000000e+00> : vector<16x32xf32>
    %61 = tpu.matmul %60, %22, %cst_24 {dimension_numbers = #tpu.dot_dimension_numbers<[1], [0], [0], [1], [0, 0, 1, 1], [], []>} : vector<16x32xf32>, vector<32x32xf32>, vector<16x32xf32> -> vector<16x32xf32>
    %62 = vector.broadcast %23 : vector<1x32xf32> to vector<16x32xf32>
    %63 = arith.addf %61, %62 : vector<16x32xf32>
    %64 = arith.addf %8, %63 : vector<16x32xf32>
    %c0_25 = arith.constant 0 : index
    %c896 = arith.constant 896 : index
    %65 = vector.load %arg6[%c0_25, %c896] : memref<1x3968xf32, #tpu.memory_space<vmem>>, vector<1x32xf32>
    %c0_26 = arith.constant 0 : index
    %c1024 = arith.constant 1024 : index
    %66 = vector.load %arg6[%c0_26, %c1024] : memref<1x3968xf32, #tpu.memory_space<vmem>>, vector<1x32xf32>
    %cst_27 = arith.constant dense<0.000000e+00> : vector<16xf32>
    %67 = vector.multi_reduction <add>, %64, %cst_27 [1] : vector<16x32xf32> to vector<16xf32>
    %68 = vector.shape_cast %67 : vector<16xf32> to vector<16x1xf32>
    %69 = arith.mulf %64, %64 : vector<16x32xf32>
    %cst_28 = arith.constant dense<0.000000e+00> : vector<16xf32>
    %70 = vector.multi_reduction <add>, %69, %cst_28 [1] : vector<16x32xf32> to vector<16xf32>
    %71 = vector.shape_cast %70 : vector<16xf32> to vector<16x1xf32>
    %cst_29 = arith.constant 3.125000e-02 : f32
    %72 = vector.broadcast %cst_29 : f32 to vector<16x1xf32>
    %73 = arith.mulf %68, %72 : vector<16x1xf32>
    %74 = arith.mulf %73, %68 : vector<16x1xf32>
    %75 = arith.subf %71, %74 : vector<16x1xf32>
    %cst_30 = arith.constant 0.0322580636 : f32
    %76 = vector.broadcast %cst_30 : f32 to vector<16x1xf32>
    %77 = arith.mulf %75, %76 : vector<16x1xf32>
    %cst_31 = arith.constant 0.000000e+00 : f32
    %78 = vector.broadcast %cst_31 : f32 to vector<16x1xf32>
    %79 = arith.maximumf %77, %78 : vector<16x1xf32>
    %80 = math.sqrt %79 : vector<16x1xf32>
    %81 = vector.broadcast %73 : vector<16x1xf32> to vector<16x32xf32>
    %82 = arith.subf %64, %81 : vector<16x32xf32>
    %cst_32 = arith.constant 9.99999996E-13 : f32
    %83 = vector.broadcast %cst_32 : f32 to vector<16x1xf32>
    %84 = arith.addf %80, %83 : vector<16x1xf32>
    %85 = vector.broadcast %84 : vector<16x1xf32> to vector<16x32xf32>
    %86 = arith.divf %82, %85 : vector<16x32xf32>
    %87 = vector.broadcast %65 : vector<1x32xf32> to vector<16x32xf32>
    %88 = arith.mulf %87, %86 : vector<16x32xf32>
    %89 = vector.broadcast %66 : vector<1x32xf32> to vector<16x32xf32>
    %90 = arith.addf %88, %89 : vector<16x32xf32>
    %c0_33 = arith.constant 0 : index
    %c384 = arith.constant 384 : index
    %91 = vector.load %arg3[%c0_33, %c384] : memref<32x1920xf32, #tpu.memory_space<vmem>>, vector<32x32xf32>
    %cst_34 = arith.constant dense<0.000000e+00> : vector<16x32xf32>
    %92 = tpu.matmul %90, %91, %cst_34 {dimension_numbers = #tpu.dot_dimension_numbers<[1], [0], [0], [1], [0, 0, 1, 1], [], []>} : vector<16x32xf32>, vector<32x32xf32>, vector<16x32xf32> -> vector<16x32xf32>
    %c0_35 = arith.constant 0 : index
    %c384_36 = arith.constant 384 : index
    %93 = vector.load %arg6[%c0_35, %c384_36] : memref<1x3968xf32, #tpu.memory_space<vmem>>, vector<1x32xf32>
    %94 = vector.broadcast %93 : vector<1x32xf32> to vector<16x32xf32>
    %95 = arith.addf %92, %94 : vector<16x32xf32>
    %96 = vector.extract_strided_slice %13 {offsets = [0, 0], sizes = [16, 32], strides = [1, 1]} : vector<16x128xf32> to vector<16x32xf32>
    %97 = vector.extract_strided_slice %13 {offsets = [0, 32], sizes = [16, 32], strides = [1, 1]} : vector<16x128xf32> to vector<16x32xf32>
    %c0_37 = arith.constant 0 : index
    %c512 = arith.constant 512 : index
    %98 = vector.load %arg3[%c0_37, %c512] : memref<32x1920xf32, #tpu.memory_space<vmem>>, vector<32x32xf32>
    %c0_38 = arith.constant 0 : index
    %c512_39 = arith.constant 512 : index
    %99 = vector.load %arg6[%c0_38, %c512_39] : memref<1x3968xf32, #tpu.memory_space<vmem>>, vector<1x32xf32>
    %100 = vector.shape_cast %95 : vector<16x32xf32> to vector<2x8x32xf32>
    %101 = vector.shape_cast %96 : vector<16x32xf32> to vector<2x8x32xf32>
    %102 = vector.shape_cast %97 : vector<16x32xf32> to vector<2x8x32xf32>
    %103 = vector.extract_strided_slice %100 {offsets = [0, 0, 0], sizes = [2, 8, 8], strides = [1, 1, 1]} : vector<2x8x32xf32> to vector<2x8x8xf32>
    %104 = vector.extract_strided_slice %100 {offsets = [0, 0, 8], sizes = [2, 8, 8], strides = [1, 1, 1]} : vector<2x8x32xf32> to vector<2x8x8xf32>
    %105 = vector.extract_strided_slice %100 {offsets = [0, 0, 16], sizes = [2, 8, 8], strides = [1, 1, 1]} : vector<2x8x32xf32> to vector<2x8x8xf32>
    %106 = vector.extract_strided_slice %100 {offsets = [0, 0, 24], sizes = [2, 8, 8], strides = [1, 1, 1]} : vector<2x8x32xf32> to vector<2x8x8xf32>
    %107 = tpu.concatenate %103, %104, %105, %106 in 0 : vector<2x8x8xf32>, vector<2x8x8xf32>, vector<2x8x8xf32>, vector<2x8x8xf32> -> vector<8x8x8xf32>
    %108 = vector.extract_strided_slice %101 {offsets = [0, 0, 0], sizes = [2, 8, 8], strides = [1, 1, 1]} : vector<2x8x32xf32> to vector<2x8x8xf32>
    %109 = vector.extract_strided_slice %101 {offsets = [0, 0, 8], sizes = [2, 8, 8], strides = [1, 1, 1]} : vector<2x8x32xf32> to vector<2x8x8xf32>
    %110 = vector.extract_strided_slice %101 {offsets = [0, 0, 16], sizes = [2, 8, 8], strides = [1, 1, 1]} : vector<2x8x32xf32> to vector<2x8x8xf32>
    %111 = vector.extract_strided_slice %101 {offsets = [0, 0, 24], sizes = [2, 8, 8], strides = [1, 1, 1]} : vector<2x8x32xf32> to vector<2x8x8xf32>
    %112 = tpu.concatenate %108, %109, %110, %111 in 0 : vector<2x8x8xf32>, vector<2x8x8xf32>, vector<2x8x8xf32>, vector<2x8x8xf32> -> vector<8x8x8xf32>
    %113 = vector.extract_strided_slice %102 {offsets = [0, 0, 0], sizes = [2, 8, 8], strides = [1, 1, 1]} : vector<2x8x32xf32> to vector<2x8x8xf32>
    %114 = vector.extract_strided_slice %102 {offsets = [0, 0, 8], sizes = [2, 8, 8], strides = [1, 1, 1]} : vector<2x8x32xf32> to vector<2x8x8xf32>
    %115 = vector.extract_strided_slice %102 {offsets = [0, 0, 16], sizes = [2, 8, 8], strides = [1, 1, 1]} : vector<2x8x32xf32> to vector<2x8x8xf32>
    %116 = vector.extract_strided_slice %102 {offsets = [0, 0, 24], sizes = [2, 8, 8], strides = [1, 1, 1]} : vector<2x8x32xf32> to vector<2x8x8xf32>
    %117 = tpu.concatenate %113, %114, %115, %116 in 0 : vector<2x8x8xf32>, vector<2x8x8xf32>, vector<2x8x8xf32>, vector<2x8x8xf32> -> vector<8x8x8xf32>
    "tpu.trace_start"() <{level = 10 : i32, message = "nqd,nkd->nqk"}> : () -> ()
    %cst_40 = arith.constant dense<0.000000e+00> : vector<8x8x8xf32>
    %118 = tpu.matmul %107, %112, %cst_40 {dimension_numbers = #tpu.dot_dimension_numbers<[2], [2], [1], [1], [0, 0, 0, 1, 1, 1], [0], [0]>} : vector<8x8x8xf32>, vector<8x8x8xf32>, vector<8x8x8xf32> -> vector<8x8x8xf32>
    "tpu.trace_stop"() : () -> ()
    %cst_41 = arith.constant 0.353553385 : f32
    %119 = vector.broadcast %cst_41 : f32 to vector<8x8x8xf32>
    %120 = arith.mulf %118, %119 : vector<8x8x8xf32>
    %cst_42 = arith.constant dense<0xFF800000> : vector<8x8xf32>
    %121 = vector.multi_reduction <maximumf>, %120, %cst_42 [2] : vector<8x8x8xf32> to vector<8x8xf32>
    %122 = vector.shape_cast %121 : vector<8x8xf32> to vector<8x8x1xf32>
    %123 = vector.broadcast %122 : vector<8x8x1xf32> to vector<8x8x8xf32>
    %124 = arith.subf %120, %123 : vector<8x8x8xf32>
    %125 = math.exp %124 : vector<8x8x8xf32>
    %cst_43 = arith.constant dense<0.000000e+00> : vector<8x8xf32>
    %126 = vector.multi_reduction <add>, %125, %cst_43 [2] : vector<8x8x8xf32> to vector<8x8xf32>
    %127 = vector.shape_cast %126 : vector<8x8xf32> to vector<8x8x1xf32>
    %128 = vector.broadcast %127 : vector<8x8x1xf32> to vector<8x8x8xf32>
    %129 = arith.divf %125, %128 : vector<8x8x8xf32>
    "tpu.trace_start"() <{level = 10 : i32, message = "nqk,nkd->nqd"}> : () -> ()
    %cst_44 = arith.constant dense<0.000000e+00> : vector<8x8x8xf32>
    %130 = tpu.matmul %129, %117, %cst_44 {dimension_numbers = #tpu.dot_dimension_numbers<[2], [1], [1], [2], [0, 0, 0, 1, 1, 2], [0], [0]>} : vector<8x8x8xf32>, vector<8x8x8xf32>, vector<8x8x8xf32> -> vector<8x8x8xf32>
    "tpu.trace_stop"() : () -> ()
    %131 = vector.extract_strided_slice %130 {offsets = [0, 0, 0], sizes = [2, 8, 8], strides = [1, 1, 1]} : vector<8x8x8xf32> to vector<2x8x8xf32>
    %132 = vector.extract_strided_slice %130 {offsets = [2, 0, 0], sizes = [2, 8, 8], strides = [1, 1, 1]} : vector<8x8x8xf32> to vector<2x8x8xf32>
    %133 = vector.extract_strided_slice %130 {offsets = [4, 0, 0], sizes = [2, 8, 8], strides = [1, 1, 1]} : vector<8x8x8xf32> to vector<2x8x8xf32>
    %134 = vector.extract_strided_slice %130 {offsets = [6, 0, 0], sizes = [2, 8, 8], strides = [1, 1, 1]} : vector<8x8x8xf32> to vector<2x8x8xf32>
    %135 = tpu.concatenate %131, %132, %133, %134 in 2 : vector<2x8x8xf32>, vector<2x8x8xf32>, vector<2x8x8xf32>, vector<2x8x8xf32> -> vector<2x8x32xf32>
    %136 = vector.shape_cast %135 : vector<2x8x32xf32> to vector<16x32xf32>
    %cst_45 = arith.constant dense<0.000000e+00> : vector<16x32xf32>
    %137 = tpu.matmul %136, %98, %cst_45 {dimension_numbers = #tpu.dot_dimension_numbers<[1], [0], [0], [1], [0, 0, 1, 1], [], []>} : vector<16x32xf32>, vector<32x32xf32>, vector<16x32xf32> -> vector<16x32xf32>
    %138 = vector.broadcast %99 : vector<1x32xf32> to vector<16x32xf32>
    %139 = arith.addf %137, %138 : vector<16x32xf32>
    %140 = arith.addf %90, %139 : vector<16x32xf32>
    %c0_46 = arith.constant 0 : index
    %c1152 = arith.constant 1152 : index
    %141 = vector.load %arg6[%c0_46, %c1152] : memref<1x3968xf32, #tpu.memory_space<vmem>>, vector<1x32xf32>
    %c0_47 = arith.constant 0 : index
    %c1280 = arith.constant 1280 : index
    %142 = vector.load %arg6[%c0_47, %c1280] : memref<1x3968xf32, #tpu.memory_space<vmem>>, vector<1x32xf32>
    %cst_48 = arith.constant dense<0.000000e+00> : vector<16xf32>
    %143 = vector.multi_reduction <add>, %140, %cst_48 [1] : vector<16x32xf32> to vector<16xf32>
    %144 = vector.shape_cast %143 : vector<16xf32> to vector<16x1xf32>
    %145 = arith.mulf %140, %140 : vector<16x32xf32>
    %cst_49 = arith.constant dense<0.000000e+00> : vector<16xf32>
    %146 = vector.multi_reduction <add>, %145, %cst_49 [1] : vector<16x32xf32> to vector<16xf32>
    %147 = vector.shape_cast %146 : vector<16xf32> to vector<16x1xf32>
    %cst_50 = arith.constant 3.125000e-02 : f32
    %148 = vector.broadcast %cst_50 : f32 to vector<16x1xf32>
    %149 = arith.mulf %144, %148 : vector<16x1xf32>
    %150 = arith.mulf %149, %144 : vector<16x1xf32>
    %151 = arith.subf %147, %150 : vector<16x1xf32>
    %cst_51 = arith.constant 0.0322580636 : f32
    %152 = vector.broadcast %cst_51 : f32 to vector<16x1xf32>
    %153 = arith.mulf %151, %152 : vector<16x1xf32>
    %cst_52 = arith.constant 0.000000e+00 : f32
    %154 = vector.broadcast %cst_52 : f32 to vector<16x1xf32>
    %155 = arith.maximumf %153, %154 : vector<16x1xf32>
    %156 = math.sqrt %155 : vector<16x1xf32>
    %157 = vector.broadcast %149 : vector<16x1xf32> to vector<16x32xf32>
    %158 = arith.subf %140, %157 : vector<16x32xf32>
    %cst_53 = arith.constant 9.99999996E-13 : f32
    %159 = vector.broadcast %cst_53 : f32 to vector<16x1xf32>
    %160 = arith.addf %156, %159 : vector<16x1xf32>
    %161 = vector.broadcast %160 : vector<16x1xf32> to vector<16x32xf32>
    %162 = arith.divf %158, %161 : vector<16x32xf32>
    %163 = vector.broadcast %141 : vector<1x32xf32> to vector<16x32xf32>
    %164 = arith.mulf %163, %162 : vector<16x32xf32>
    %165 = vector.broadcast %142 : vector<1x32xf32> to vector<16x32xf32>
    %166 = arith.addf %164, %165 : vector<16x32xf32>
    %c0_54 = arith.constant 0 : index
    %c640 = arith.constant 640 : index
    %167 = vector.load %arg3[%c0_54, %c640] : memref<32x1920xf32, #tpu.memory_space<vmem>>, vector<32x64xf32>
    %cst_55 = arith.constant dense<0.000000e+00> : vector<16x64xf32>
    %168 = tpu.matmul %166, %167, %cst_55 {dimension_numbers = #tpu.dot_dimension_numbers<[1], [0], [0], [1], [0, 0, 1, 1], [], []>} : vector<16x32xf32>, vector<32x64xf32>, vector<16x64xf32> -> vector<16x64xf32>
    %c0_56 = arith.constant 0 : index
    %c640_57 = arith.constant 640 : index
    %169 = vector.load %arg6[%c0_56, %c640_57] : memref<1x3968xf32, #tpu.memory_space<vmem>>, vector<1x64xf32>
    %170 = vector.broadcast %169 : vector<1x64xf32> to vector<16x64xf32>
    %171 = arith.addf %168, %170 : vector<16x64xf32>
    %cst_58 = arith.constant 0.000000e+00 : f32
    %172 = vector.broadcast %cst_58 : f32 to vector<16x64xf32>
    %173 = arith.maximumf %171, %172 : vector<16x64xf32>
    %c0_59 = arith.constant 0 : index
    %c0_60 = arith.constant 0 : index
    %174 = vector.load %arg4[%c0_59, %c0_60] : memref<64x384xf32, #tpu.memory_space<vmem>>, vector<64x32xf32>
    %cst_61 = arith.constant dense<0.000000e+00> : vector<16x32xf32>
    %175 = tpu.matmul %173, %174, %cst_61 {dimension_numbers = #tpu.dot_dimension_numbers<[1], [0], [0], [1], [0, 0, 1, 1], [], []>} : vector<16x64xf32>, vector<64x32xf32>, vector<16x32xf32> -> vector<16x32xf32>
    %c0_62 = arith.constant 0 : index
    %c768 = arith.constant 768 : index
    %176 = vector.load %arg6[%c0_62, %c768] : memref<1x3968xf32, #tpu.memory_space<vmem>>, vector<1x32xf32>
    %177 = vector.broadcast %176 : vector<1x32xf32> to vector<16x32xf32>
    %178 = arith.addf %175, %177 : vector<16x32xf32>
    %179 = arith.addf %166, %178 : vector<16x32xf32>
    %c0_63 = arith.constant 0 : index
    %c1408_64 = arith.constant 1408 : index
    %180 = vector.load %arg6[%c0_63, %c1408_64] : memref<1x3968xf32, #tpu.memory_space<vmem>>, vector<1x32xf32>
    %c0_65 = arith.constant 0 : index
    %c1536 = arith.constant 1536 : index
    %181 = vector.load %arg6[%c0_65, %c1536] : memref<1x3968xf32, #tpu.memory_space<vmem>>, vector<1x32xf32>
    %cst_66 = arith.constant dense<0.000000e+00> : vector<16xf32>
    %182 = vector.multi_reduction <add>, %179, %cst_66 [1] : vector<16x32xf32> to vector<16xf32>
    %183 = vector.shape_cast %182 : vector<16xf32> to vector<16x1xf32>
    %184 = arith.mulf %179, %179 : vector<16x32xf32>
    %cst_67 = arith.constant dense<0.000000e+00> : vector<16xf32>
    %185 = vector.multi_reduction <add>, %184, %cst_67 [1] : vector<16x32xf32> to vector<16xf32>
    %186 = vector.shape_cast %185 : vector<16xf32> to vector<16x1xf32>
    %cst_68 = arith.constant 3.125000e-02 : f32
    %187 = vector.broadcast %cst_68 : f32 to vector<16x1xf32>
    %188 = arith.mulf %183, %187 : vector<16x1xf32>
    %189 = arith.mulf %188, %183 : vector<16x1xf32>
    %190 = arith.subf %186, %189 : vector<16x1xf32>
    %cst_69 = arith.constant 0.0322580636 : f32
    %191 = vector.broadcast %cst_69 : f32 to vector<16x1xf32>
    %192 = arith.mulf %190, %191 : vector<16x1xf32>
    %cst_70 = arith.constant 0.000000e+00 : f32
    %193 = vector.broadcast %cst_70 : f32 to vector<16x1xf32>
    %194 = arith.maximumf %192, %193 : vector<16x1xf32>
    %195 = math.sqrt %194 : vector<16x1xf32>
    %196 = vector.broadcast %188 : vector<16x1xf32> to vector<16x32xf32>
    %197 = arith.subf %179, %196 : vector<16x32xf32>
    %cst_71 = arith.constant 9.99999996E-13 : f32
    %198 = vector.broadcast %cst_71 : f32 to vector<16x1xf32>
    %199 = arith.addf %195, %198 : vector<16x1xf32>
    %200 = vector.broadcast %199 : vector<16x1xf32> to vector<16x32xf32>
    %201 = arith.divf %197, %200 : vector<16x32xf32>
    %202 = vector.broadcast %180 : vector<1x32xf32> to vector<16x32xf32>
    %203 = arith.mulf %202, %201 : vector<16x32xf32>
    %204 = vector.broadcast %181 : vector<1x32xf32> to vector<16x32xf32>
    %205 = arith.addf %203, %204 : vector<16x32xf32>
    %c0_72 = arith.constant 0 : index
    %c768_73 = arith.constant 768 : index
    %206 = vector.load %arg3[%c0_72, %c768_73] : memref<32x1920xf32, #tpu.memory_space<vmem>>, vector<32x96xf32>
    %cst_74 = arith.constant dense<0.000000e+00> : vector<16x96xf32>
    %207 = tpu.matmul %205, %206, %cst_74 {dimension_numbers = #tpu.dot_dimension_numbers<[1], [0], [0], [1], [0, 0, 1, 1], [], []>} : vector<16x32xf32>, vector<32x96xf32>, vector<16x96xf32> -> vector<16x96xf32>
    %c0_75 = arith.constant 0 : index
    %c1664 = arith.constant 1664 : index
    %208 = vector.load %arg6[%c0_75, %c1664] : memref<1x3968xf32, #tpu.memory_space<vmem>>, vector<1x96xf32>
    %209 = vector.broadcast %208 : vector<1x96xf32> to vector<16x96xf32>
    %210 = arith.addf %207, %209 : vector<16x96xf32>
    %211 = vector.extract_strided_slice %210 {offsets = [0, 0], sizes = [16, 32], strides = [1, 1]} : vector<16x96xf32> to vector<16x32xf32>
    %212 = vector.extract_strided_slice %210 {offsets = [0, 32], sizes = [16, 32], strides = [1, 1]} : vector<16x96xf32> to vector<16x32xf32>
    %213 = vector.extract_strided_slice %210 {offsets = [0, 64], sizes = [16, 32], strides = [1, 1]} : vector<16x96xf32> to vector<16x32xf32>
    %c0_76 = arith.constant 0 : index
    %c896_77 = arith.constant 896 : index
    %214 = vector.load %arg3[%c0_76, %c896_77] : memref<32x1920xf32, #tpu.memory_space<vmem>>, vector<32x32xf32>
    %c0_78 = arith.constant 0 : index
    %c1792 = arith.constant 1792 : index
    %215 = vector.load %arg6[%c0_78, %c1792] : memref<1x3968xf32, #tpu.memory_space<vmem>>, vector<1x32xf32>
    %216 = vector.shape_cast %211 : vector<16x32xf32> to vector<2x8x32xf32>
    %217 = vector.shape_cast %212 : vector<16x32xf32> to vector<2x8x32xf32>
    %218 = vector.shape_cast %213 : vector<16x32xf32> to vector<2x8x32xf32>
    %219 = vector.extract_strided_slice %216 {offsets = [0, 0, 0], sizes = [2, 8, 8], strides = [1, 1, 1]} : vector<2x8x32xf32> to vector<2x8x8xf32>
    %220 = vector.extract_strided_slice %216 {offsets = [0, 0, 8], sizes = [2, 8, 8], strides = [1, 1, 1]} : vector<2x8x32xf32> to vector<2x8x8xf32>
    %221 = vector.extract_strided_slice %216 {offsets = [0, 0, 16], sizes = [2, 8, 8], strides = [1, 1, 1]} : vector<2x8x32xf32> to vector<2x8x8xf32>
    %222 = vector.extract_strided_slice %216 {offsets = [0, 0, 24], sizes = [2, 8, 8], strides = [1, 1, 1]} : vector<2x8x32xf32> to vector<2x8x8xf32>
    %223 = tpu.concatenate %219, %220, %221, %222 in 0 : vector<2x8x8xf32>, vector<2x8x8xf32>, vector<2x8x8xf32>, vector<2x8x8xf32> -> vector<8x8x8xf32>
    %224 = vector.extract_strided_slice %217 {offsets = [0, 0, 0], sizes = [2, 8, 8], strides = [1, 1, 1]} : vector<2x8x32xf32> to vector<2x8x8xf32>
    %225 = vector.extract_strided_slice %217 {offsets = [0, 0, 8], sizes = [2, 8, 8], strides = [1, 1, 1]} : vector<2x8x32xf32> to vector<2x8x8xf32>
    %226 = vector.extract_strided_slice %217 {offsets = [0, 0, 16], sizes = [2, 8, 8], strides = [1, 1, 1]} : vector<2x8x32xf32> to vector<2x8x8xf32>
    %227 = vector.extract_strided_slice %217 {offsets = [0, 0, 24], sizes = [2, 8, 8], strides = [1, 1, 1]} : vector<2x8x32xf32> to vector<2x8x8xf32>
    %228 = tpu.concatenate %224, %225, %226, %227 in 0 : vector<2x8x8xf32>, vector<2x8x8xf32>, vector<2x8x8xf32>, vector<2x8x8xf32> -> vector<8x8x8xf32>
    %229 = vector.extract_strided_slice %218 {offsets = [0, 0, 0], sizes = [2, 8, 8], strides = [1, 1, 1]} : vector<2x8x32xf32> to vector<2x8x8xf32>
    %230 = vector.extract_strided_slice %218 {offsets = [0, 0, 8], sizes = [2, 8, 8], strides = [1, 1, 1]} : vector<2x8x32xf32> to vector<2x8x8xf32>
    %231 = vector.extract_strided_slice %218 {offsets = [0, 0, 16], sizes = [2, 8, 8], strides = [1, 1, 1]} : vector<2x8x32xf32> to vector<2x8x8xf32>
    %232 = vector.extract_strided_slice %218 {offsets = [0, 0, 24], sizes = [2, 8, 8], strides = [1, 1, 1]} : vector<2x8x32xf32> to vector<2x8x8xf32>
    %233 = tpu.concatenate %229, %230, %231, %232 in 0 : vector<2x8x8xf32>, vector<2x8x8xf32>, vector<2x8x8xf32>, vector<2x8x8xf32> -> vector<8x8x8xf32>
    "tpu.trace_start"() <{level = 10 : i32, message = "nqd,nkd->nqk"}> : () -> ()
    %cst_79 = arith.constant dense<0.000000e+00> : vector<8x8x8xf32>
    %234 = tpu.matmul %223, %228, %cst_79 {dimension_numbers = #tpu.dot_dimension_numbers<[2], [2], [1], [1], [0, 0, 0, 1, 1, 1], [0], [0]>} : vector<8x8x8xf32>, vector<8x8x8xf32>, vector<8x8x8xf32> -> vector<8x8x8xf32>
    "tpu.trace_stop"() : () -> ()
    %cst_80 = arith.constant 0.353553385 : f32
    %235 = vector.broadcast %cst_80 : f32 to vector<8x8x8xf32>
    %236 = arith.mulf %234, %235 : vector<8x8x8xf32>
    %cst_81 = arith.constant dense<0xFF800000> : vector<8x8xf32>
    %237 = vector.multi_reduction <maximumf>, %236, %cst_81 [2] : vector<8x8x8xf32> to vector<8x8xf32>
    %238 = vector.shape_cast %237 : vector<8x8xf32> to vector<8x8x1xf32>
    %239 = vector.broadcast %238 : vector<8x8x1xf32> to vector<8x8x8xf32>
    %240 = arith.subf %236, %239 : vector<8x8x8xf32>
    %241 = math.exp %240 : vector<8x8x8xf32>
    %cst_82 = arith.constant dense<0.000000e+00> : vector<8x8xf32>
    %242 = vector.multi_reduction <add>, %241, %cst_82 [2] : vector<8x8x8xf32> to vector<8x8xf32>
    %243 = vector.shape_cast %242 : vector<8x8xf32> to vector<8x8x1xf32>
    %244 = vector.broadcast %243 : vector<8x8x1xf32> to vector<8x8x8xf32>
    %245 = arith.divf %241, %244 : vector<8x8x8xf32>
    "tpu.trace_start"() <{level = 10 : i32, message = "nqk,nkd->nqd"}> : () -> ()
    %cst_83 = arith.constant dense<0.000000e+00> : vector<8x8x8xf32>
    %246 = tpu.matmul %245, %233, %cst_83 {dimension_numbers = #tpu.dot_dimension_numbers<[2], [1], [1], [2], [0, 0, 0, 1, 1, 2], [0], [0]>} : vector<8x8x8xf32>, vector<8x8x8xf32>, vector<8x8x8xf32> -> vector<8x8x8xf32>
    "tpu.trace_stop"() : () -> ()
    %247 = vector.extract_strided_slice %246 {offsets = [0, 0, 0], sizes = [2, 8, 8], strides = [1, 1, 1]} : vector<8x8x8xf32> to vector<2x8x8xf32>
    %248 = vector.extract_strided_slice %246 {offsets = [2, 0, 0], sizes = [2, 8, 8], strides = [1, 1, 1]} : vector<8x8x8xf32> to vector<2x8x8xf32>
    %249 = vector.extract_strided_slice %246 {offsets = [4, 0, 0], sizes = [2, 8, 8], strides = [1, 1, 1]} : vector<8x8x8xf32> to vector<2x8x8xf32>
    %250 = vector.extract_strided_slice %246 {offsets = [6, 0, 0], sizes = [2, 8, 8], strides = [1, 1, 1]} : vector<8x8x8xf32> to vector<2x8x8xf32>
    %251 = tpu.concatenate %247, %248, %249, %250 in 2 : vector<2x8x8xf32>, vector<2x8x8xf32>, vector<2x8x8xf32>, vector<2x8x8xf32> -> vector<2x8x32xf32>
    %252 = vector.shape_cast %251 : vector<2x8x32xf32> to vector<16x32xf32>
    %cst_84 = arith.constant dense<0.000000e+00> : vector<16x32xf32>
    %253 = tpu.matmul %252, %214, %cst_84 {dimension_numbers = #tpu.dot_dimension_numbers<[1], [0], [0], [1], [0, 0, 1, 1], [], []>} : vector<16x32xf32>, vector<32x32xf32>, vector<16x32xf32> -> vector<16x32xf32>
    %254 = vector.broadcast %215 : vector<1x32xf32> to vector<16x32xf32>
    %255 = arith.addf %253, %254 : vector<16x32xf32>
    %256 = arith.addf %205, %255 : vector<16x32xf32>
    %c0_85 = arith.constant 0 : index
    %c2432 = arith.constant 2432 : index
    %257 = vector.load %arg6[%c0_85, %c2432] : memref<1x3968xf32, #tpu.memory_space<vmem>>, vector<1x32xf32>
    %c0_86 = arith.constant 0 : index
    %c2560 = arith.constant 2560 : index
    %258 = vector.load %arg6[%c0_86, %c2560] : memref<1x3968xf32, #tpu.memory_space<vmem>>, vector<1x32xf32>
    %cst_87 = arith.constant dense<0.000000e+00> : vector<16xf32>
    %259 = vector.multi_reduction <add>, %256, %cst_87 [1] : vector<16x32xf32> to vector<16xf32>
    %260 = vector.shape_cast %259 : vector<16xf32> to vector<16x1xf32>
    %261 = arith.mulf %256, %256 : vector<16x32xf32>
    %cst_88 = arith.constant dense<0.000000e+00> : vector<16xf32>
    %262 = vector.multi_reduction <add>, %261, %cst_88 [1] : vector<16x32xf32> to vector<16xf32>
    %263 = vector.shape_cast %262 : vector<16xf32> to vector<16x1xf32>
    %cst_89 = arith.constant 3.125000e-02 : f32
    %264 = vector.broadcast %cst_89 : f32 to vector<16x1xf32>
    %265 = arith.mulf %260, %264 : vector<16x1xf32>
    %266 = arith.mulf %265, %260 : vector<16x1xf32>
    %267 = arith.subf %263, %266 : vector<16x1xf32>
    %cst_90 = arith.constant 0.0322580636 : f32
    %268 = vector.broadcast %cst_90 : f32 to vector<16x1xf32>
    %269 = arith.mulf %267, %268 : vector<16x1xf32>
    %cst_91 = arith.constant 0.000000e+00 : f32
    %270 = vector.broadcast %cst_91 : f32 to vector<16x1xf32>
    %271 = arith.maximumf %269, %270 : vector<16x1xf32>
    %272 = math.sqrt %271 : vector<16x1xf32>
    %273 = vector.broadcast %265 : vector<16x1xf32> to vector<16x32xf32>
    %274 = arith.subf %256, %273 : vector<16x32xf32>
    %cst_92 = arith.constant 9.99999996E-13 : f32
    %275 = vector.broadcast %cst_92 : f32 to vector<16x1xf32>
    %276 = arith.addf %272, %275 : vector<16x1xf32>
    %277 = vector.broadcast %276 : vector<16x1xf32> to vector<16x32xf32>
    %278 = arith.divf %274, %277 : vector<16x32xf32>
    %279 = vector.broadcast %257 : vector<1x32xf32> to vector<16x32xf32>
    %280 = arith.mulf %279, %278 : vector<16x32xf32>
    %281 = vector.broadcast %258 : vector<1x32xf32> to vector<16x32xf32>
    %282 = arith.addf %280, %281 : vector<16x32xf32>
    %c0_93 = arith.constant 0 : index
    %c1024_94 = arith.constant 1024 : index
    %283 = vector.load %arg3[%c0_93, %c1024_94] : memref<32x1920xf32, #tpu.memory_space<vmem>>, vector<32x32xf32>
    %cst_95 = arith.constant dense<0.000000e+00> : vector<16x32xf32>
    %284 = tpu.matmul %282, %283, %cst_95 {dimension_numbers = #tpu.dot_dimension_numbers<[1], [0], [0], [1], [0, 0, 1, 1], [], []>} : vector<16x32xf32>, vector<32x32xf32>, vector<16x32xf32> -> vector<16x32xf32>
    %c0_96 = arith.constant 0 : index
    %c1920 = arith.constant 1920 : index
    %285 = vector.load %arg6[%c0_96, %c1920] : memref<1x3968xf32, #tpu.memory_space<vmem>>, vector<1x32xf32>
    %286 = vector.broadcast %285 : vector<1x32xf32> to vector<16x32xf32>
    %287 = arith.addf %284, %286 : vector<16x32xf32>
    %288 = vector.extract_strided_slice %13 {offsets = [0, 64], sizes = [16, 32], strides = [1, 1]} : vector<16x128xf32> to vector<16x32xf32>
    %289 = vector.shape_cast %287 : vector<16x32xf32> to vector<2x8x32xf32>
    %290 = vector.shape_cast %288 : vector<16x32xf32> to vector<2x8x32xf32>
    %291 = vector.extract_strided_slice %289 {offsets = [0, 0, 0], sizes = [2, 8, 8], strides = [1, 1, 1]} : vector<2x8x32xf32> to vector<2x8x8xf32>
    %292 = vector.extract_strided_slice %289 {offsets = [0, 0, 8], sizes = [2, 8, 8], strides = [1, 1, 1]} : vector<2x8x32xf32> to vector<2x8x8xf32>
    %293 = vector.extract_strided_slice %289 {offsets = [0, 0, 16], sizes = [2, 8, 8], strides = [1, 1, 1]} : vector<2x8x32xf32> to vector<2x8x8xf32>
    %294 = vector.extract_strided_slice %289 {offsets = [0, 0, 24], sizes = [2, 8, 8], strides = [1, 1, 1]} : vector<2x8x32xf32> to vector<2x8x8xf32>
    %295 = tpu.concatenate %291, %292, %293, %294 in 0 : vector<2x8x8xf32>, vector<2x8x8xf32>, vector<2x8x8xf32>, vector<2x8x8xf32> -> vector<8x8x8xf32>
    %296 = vector.extract_strided_slice %290 {offsets = [0, 0, 0], sizes = [2, 8, 8], strides = [1, 1, 1]} : vector<2x8x32xf32> to vector<2x8x8xf32>
    %297 = vector.extract_strided_slice %290 {offsets = [0, 0, 8], sizes = [2, 8, 8], strides = [1, 1, 1]} : vector<2x8x32xf32> to vector<2x8x8xf32>
    %298 = vector.extract_strided_slice %290 {offsets = [0, 0, 16], sizes = [2, 8, 8], strides = [1, 1, 1]} : vector<2x8x32xf32> to vector<2x8x8xf32>
    %299 = vector.extract_strided_slice %290 {offsets = [0, 0, 24], sizes = [2, 8, 8], strides = [1, 1, 1]} : vector<2x8x32xf32> to vector<2x8x8xf32>
    %300 = tpu.concatenate %296, %297, %298, %299 in 0 : vector<2x8x8xf32>, vector<2x8x8xf32>, vector<2x8x8xf32>, vector<2x8x8xf32> -> vector<8x8x8xf32>
    "tpu.trace_start"() <{level = 10 : i32, message = "nqd,nkd->nqk"}> : () -> ()
    %cst_97 = arith.constant dense<0.000000e+00> : vector<8x8x8xf32>
    %301 = tpu.matmul %295, %300, %cst_97 {dimension_numbers = #tpu.dot_dimension_numbers<[2], [2], [1], [1], [0, 0, 0, 1, 1, 1], [0], [0]>} : vector<8x8x8xf32>, vector<8x8x8xf32>, vector<8x8x8xf32> -> vector<8x8x8xf32>
    "tpu.trace_stop"() : () -> ()
    %cst_98 = arith.constant 0.353553385 : f32
    %302 = vector.broadcast %cst_98 : f32 to vector<8x8x8xf32>
    %303 = arith.mulf %301, %302 : vector<8x8x8xf32>
    %cst_99 = arith.constant dense<0xFF800000> : vector<8x8xf32>
    %304 = vector.multi_reduction <maximumf>, %303, %cst_99 [2] : vector<8x8x8xf32> to vector<8x8xf32>
    %305 = vector.shape_cast %304 : vector<8x8xf32> to vector<8x8x1xf32>
    %306 = vector.broadcast %305 : vector<8x8x1xf32> to vector<8x8x8xf32>
    %307 = arith.subf %303, %306 : vector<8x8x8xf32>
    %308 = math.exp %307 : vector<8x8x8xf32>
    %cst_100 = arith.constant dense<0.000000e+00> : vector<8x8xf32>
    %309 = vector.multi_reduction <add>, %308, %cst_100 [2] : vector<8x8x8xf32> to vector<8x8xf32>
    %310 = vector.shape_cast %309 : vector<8x8xf32> to vector<8x8x1xf32>
    %311 = vector.broadcast %310 : vector<8x8x1xf32> to vector<8x8x8xf32>
    %312 = arith.divf %308, %311 : vector<8x8x8xf32>
    %313 = vector.shape_cast %312 : vector<8x8x8xf32> to vector<4x2x8x8xf32>
    %cst_101 = arith.constant dense<0.000000e+00> : vector<2x8x8xf32>
    %314 = vector.multi_reduction <add>, %313, %cst_101 [0] : vector<4x2x8x8xf32> to vector<2x8x8xf32>
    %cst_102 = arith.constant 4.000000e+00 : f32
    %315 = vector.broadcast %cst_102 : f32 to vector<2x8x8xf32>
    %316 = arith.divf %314, %315 : vector<2x8x8xf32>
    %317 = vector.shape_cast %316 : vector<2x8x8xf32> to vector<2x1x8x8xf32>
    %c0_103 = arith.constant 0 : index
    %c0_104 = arith.constant 0 : index
    %c0_105 = arith.constant 0 : index
    %c0_106 = arith.constant 0 : index
    %318 = vector.load %arg8[%c0_103, %c0_104, %c0_105, %c0_106] : memref<2x1x8x8xf32, #tpu.memory_space<vmem>>, vector<2x1x8x8xf32>
    tpu.vector_store %arg8[%c0_103, %c0_104, %c0_105, %c0_106], %317 {strides = array<i32>} : memref<2x1x8x8xf32, #tpu.memory_space<vmem>>, vector<2x1x8x8xf32>,
    %cst_107 = arith.constant dense<0xFF800000> : vector<2x8xf32>
    %319 = vector.multi_reduction <maximumf>, %316, %cst_107 [1] : vector<2x8x8xf32> to vector<2x8xf32>
    %cst_108 = arith.constant dense<0xFF800000> : vector<2x8xf32>
    %320 = vector.multi_reduction <maximumf>, %316, %cst_108 [2] : vector<2x8x8xf32> to vector<2x8xf32>
    %321 = tpu.concatenate %319, %320 in 1 : vector<2x8xf32>, vector<2x8xf32> -> vector<2x16xf32>
    %c0_109 = arith.constant 0 : index
    %c1536_110 = arith.constant 1536 : index
    %322 = vector.load %arg3[%c0_109, %c1536_110] : memref<32x1920xf32, #tpu.memory_space<vmem>>, vector<16x256xf32>
    %cst_111 = arith.constant dense<0.000000e+00> : vector<2x256xf32>
    %323 = tpu.matmul %321, %322, %cst_111 {dimension_numbers = #tpu.dot_dimension_numbers<[1], [0], [0], [1], [0, 0, 1, 1], [], []>} : vector<2x16xf32>, vector<16x256xf32>, vector<2x256xf32> -> vector<2x256xf32>
    %c0_112 = arith.constant 0 : index
    %c3328 = arith.constant 3328 : index
    %324 = vector.load %arg6[%c0_112, %c3328] : memref<1x3968xf32, #tpu.memory_space<vmem>>, vector<1x256xf32>
    %325 = vector.broadcast %324 : vector<1x256xf32> to vector<2x256xf32>
    %326 = arith.addf %323, %325 : vector<2x256xf32>
    %cst_113 = arith.constant 0.000000e+00 : f32
    %327 = vector.broadcast %cst_113 : f32 to vector<2x256xf32>
    %328 = arith.maximumf %326, %327 : vector<2x256xf32>
    %c0_114 = arith.constant 0 : index
    %c0_115 = arith.constant 0 : index
    %329 = vector.load %arg5[%c0_114, %c0_115] : memref<256x64xf32, #tpu.memory_space<vmem>>, vector<256x64xf32>
    %cst_116 = arith.constant dense<0.000000e+00> : vector<2x64xf32>
    %330 = tpu.matmul %328, %329, %cst_116 {dimension_numbers = #tpu.dot_dimension_numbers<[1], [0], [0], [1], [0, 0, 1, 1], [], []>} : vector<2x256xf32>, vector<256x64xf32>, vector<2x64xf32> -> vector<2x64xf32>
    %c0_117 = arith.constant 0 : index
    %c3584 = arith.constant 3584 : index
    %331 = vector.load %arg6[%c0_117, %c3584] : memref<1x3968xf32, #tpu.memory_space<vmem>>, vector<1x64xf32>
    %332 = vector.broadcast %331 : vector<1x64xf32> to vector<2x64xf32>
    %333 = arith.addf %330, %332 : vector<2x64xf32>
    %cst_118 = arith.constant 0.000000e+00 : f32
    %334 = vector.broadcast %cst_118 : f32 to vector<2x64xf32>
    %335 = arith.maximumf %333, %334 : vector<2x64xf32>
    %c0_119 = arith.constant 0 : index
    %c256_120 = arith.constant 256 : index
    %336 = vector.load %arg4[%c0_119, %c256_120] : memref<64x384xf32, #tpu.memory_space<vmem>>, vector<64x32xf32>
    %cst_121 = arith.constant dense<0.000000e+00> : vector<2x32xf32>
    %337 = tpu.matmul %335, %336, %cst_121 {dimension_numbers = #tpu.dot_dimension_numbers<[1], [0], [0], [1], [0, 0, 1, 1], [], []>} : vector<2x64xf32>, vector<64x32xf32>, vector<2x32xf32> -> vector<2x32xf32>
    %c0_122 = arith.constant 0 : index
    %c3712 = arith.constant 3712 : index
    %338 = vector.load %arg6[%c0_122, %c3712] : memref<1x3968xf32, #tpu.memory_space<vmem>>, vector<1x32xf32>
    %339 = vector.broadcast %338 : vector<1x32xf32> to vector<2x32xf32>
    %340 = arith.addf %337, %339 : vector<2x32xf32>
    %cst_123 = arith.constant 0.000000e+00 : f32
    %341 = vector.broadcast %cst_123 : f32 to vector<2x32xf32>
    %342 = arith.maximumf %340, %341 : vector<2x32xf32>
    %c0_124 = arith.constant 0 : index
    %c1792_125 = arith.constant 1792 : index
    %343 = vector.load %arg3[%c0_124, %c1792_125] : memref<32x1920xf32, #tpu.memory_space<vmem>>, vector<32x1xf32>
    %cst_126 = arith.constant dense<0.000000e+00> : vector<2x1xf32>
    %344 = tpu.matmul %342, %343, %cst_126 {dimension_numbers = #tpu.dot_dimension_numbers<[1], [0], [0], [1], [0, 0, 1, 1], [], []>} : vector<2x32xf32>, vector<32x1xf32>, vector<2x1xf32> -> vector<2x1xf32>
    %c0_127 = arith.constant 0 : index
    %c3840 = arith.constant 3840 : index
    %345 = vector.load %arg6[%c0_127, %c3840] : memref<1x3968xf32, #tpu.memory_space<vmem>>, vector<1x1xf32>
    %346 = vector.broadcast %345 : vector<1x1xf32> to vector<2x1xf32>
    %347 = arith.addf %344, %346 : vector<2x1xf32>
    %348 = vector.shape_cast %347 : vector<2x1xf32> to vector<2x1x1xf32>
    %c0_128 = arith.constant 0 : index
    %c0_129 = arith.constant 0 : index
    %c0_130 = arith.constant 0 : index
    %349 = vector.load %arg7[%c0_128, %c0_129, %c0_130] : memref<2x1x1xf32, #tpu.memory_space<vmem>>, vector<2x1x1xf32>
    tpu.vector_store %arg7[%c0_128, %c0_129, %c0_130], %348 {strides = array<i32>} : memref<2x1x1xf32, #tpu.memory_space<vmem>>, vector<2x1x1xf32>,
    return
  }
  func.func @transform_0(%arg0: i32) -> (i32, i32, i32) {
    %c0_i32 = arith.constant 0 : i32
    %c0_i32_0 = arith.constant 0 : i32
    %c0_i32_1 = arith.constant 0 : i32
    %c0_i32_2 = arith.constant 0 : i32
    return %c0_i32, %c0_i32_0, %c0_i32_1 : i32, i32, i32
  }
  func.func @transform_1(%arg0: i32) -> (i32, i32, i32) {
    %c0_i32 = arith.constant 0 : i32
    %c0_i32_0 = arith.constant 0 : i32
    %c0_i32_1 = arith.constant 0 : i32
    %c0_i32_2 = arith.constant 0 : i32
    return %c0_i32, %c0_i32_0, %c0_i32_1 : i32, i32, i32
  }
  func.func @transform_2(%arg0: i32) -> (i32, i32) {
    %c0_i32 = arith.constant 0 : i32
    %c0_i32_0 = arith.constant 0 : i32
    %c0_i32_1 = arith.constant 0 : i32
    return %c0_i32, %c0_i32_0 : i32, i32
  }
  func.func @transform_3(%arg0: i32) -> (i32, i32) {
    %c0_i32 = arith.constant 0 : i32
    %c0_i32_0 = arith.constant 0 : i32
    %c0_i32_1 = arith.constant 0 : i32
    return %c0_i32, %c0_i32_0 : i32, i32
  }
  func.func @transform_4(%arg0: i32) -> (i32, i32) {
    %c0_i32 = arith.constant 0 : i32
    %c0_i32_0 = arith.constant 0 : i32
    %c0_i32_1 = arith.constant 0 : i32
    return %c0_i32, %c0_i32_0 : i32, i32
  }
  func.func @transform_5(%arg0: i32) -> (i32, i32) {
    %c0_i32 = arith.constant 0 : i32
    %c0_i32_0 = arith.constant 0 : i32
    %c0_i32_1 = arith.constant 0 : i32
    return %c0_i32, %c0_i32_0 : i32, i32
  }
  func.func @transform_6(%arg0: i32) -> (i32, i32, i32) {
    %c0_i32 = arith.constant 0 : i32
    %c0_i32_0 = arith.constant 0 : i32
    %c0_i32_1 = arith.constant 0 : i32
    %c0_i32_2 = arith.constant 0 : i32
    return %c0_i32, %c0_i32_0, %c0_i32_1 : i32, i32, i32
  }
  func.func @transform_7(%arg0: i32) -> (i32, i32, i32, i32) {
    %c0_i32 = arith.constant 0 : i32
    %c0_i32_0 = arith.constant 0 : i32
    %c0_i32_1 = arith.constant 0 : i32
    %c0_i32_2 = arith.constant 0 : i32
    %c0_i32_3 = arith.constant 0 : i32
    return %c0_i32, %c0_i32_0, %c0_i32_1, %c0_i32_2 : i32, i32, i32, i32
  }
}

</mosaic_0001>

<llo_original>
// kernel: tpu_custom_call.1
$region0: #{tpu_custom_call.1}
  #allocation0 [shape = 'u32[]', space=smem, size = 0x4, offset = 0x4, fixed_abs, tag = 'smem constant byte address 0x4 - core index']
  #allocation1 [shape = 'u32[144,128]{1,0:T(1,128)}', space=vmem, size = 0x12000, scoped, tag = 'internal scratch']
  %s0 = inlined_call_operand.vmem [shape: f32[2,8,32], index: 0, kind: input, shape index: {}]
  %s1 = inlined_call_operand.vmem [shape: f32[2,8,32], index: 1, kind: input, shape index: {}]
  %s2 = inlined_call_operand.hbm [shape: f32[32,1920], index: 2, kind: input, shape index: {}]
  %s3 = inlined_call_operand.vmem [shape: f32[64,384], index: 3, kind: input, shape index: {}]
  %s4 = inlined_call_operand.vmem [shape: f32[256,64], index: 4, kind: input, shape index: {}]
  %s5 = inlined_call_operand.vmem [shape: f32[1,3968], index: 5, kind: input, shape index: {}]
  %s6 = inlined_call_operand.vmem [shape: f32[2,1,1], index: 6, kind: output, shape index: {0}]
  %s7 = inlined_call_operand.hbm [shape: f32[2,1,8,8], index: 7, kind: output, shape index: {1}]
  %8 = xla_tuple %s6, %s7
  %s9 = sld [smem:[#allocation0]]
  $region46: #{tpu_custom_call.1} parent=0
    _
  %s11 = ssub.s32 1, %s9
  %s12 = scalar_select 0, %s11, %s9
  $region1: #{tpu_custom_call.1} parent=0
    #allocation2 [shape = 'u8[245760]{0}', space=vmem, size = 0x3c000, scoped, tag = 'input window, operand 2, single buffered']
    #allocation3 [shape = 's32[1]{0}', space=sflag, size = 0x4, scoped, tag = 'scoped memory for tpu_custom_call.1']
    #allocation4 [shape = 's32[1]{0}', space=sflag, size = 0x4, scoped, tag = 'scoped memory for tpu_custom_call.1']
    #allocation5 [shape = 'u8[8192]{0}', space=vmem, size = 0x2000, scoped, tag = 'output window, operand 1, single buffered']
    %13 = vsyncpa [#allocation3], 0
    %14 = vsyncpa [#allocation4], 0
    // Predicated region
    $region2: #{tpu_custom_call.1} parent=1 // pred_check
      _
    $region3: #{tpu_custom_call.1} parent=1 // pred_check_branch
      %16 = sbr.rel (0) target = $region5
    $region4: #{tpu_custom_call.1} parent=1 // pred_region
      _
    $region5: #{tpu_custom_call.1} parent=1 // pred_fallthru
      _
    // Predicated region
    $region6: #{tpu_custom_call.1} parent=1 // pred_check
      _
    $region7: #{tpu_custom_call.1} parent=1 // pred_check_branch
      %18 = sbr.rel (0) target = $region9
    $region8: #{tpu_custom_call.1} parent=1 // pred_region
      _
    $region9: #{tpu_custom_call.1} parent=1 // pred_fallthru
      _
    // Predicated region
    $region10: #{tpu_custom_call.1} parent=1 // pred_check
      _
    $region11: #{tpu_custom_call.1} parent=1 // pred_check_branch
      %20 = sbr.rel (0) target = $region13
    $region12: #{tpu_custom_call.1} parent=1 // pred_region
      %s22 = ssub.s32 7680, 7680
      %23 = vsyncadd [#allocation3], %s22
      %s24 = sshll.u32 [#allocation2], 4
      %s25 = int_to_ptr.vmem [resolvable:$true] %s24
      %30 = dma.hbm_to_vmem [thread:$0]  %s2, 7680, %s25, [#allocation3], 1920, 1920, 120
    $region13: #{tpu_custom_call.1} parent=1 // pred_fallthru
      _
    // Predicated region
    $region14: #{tpu_custom_call.1} parent=1 // pred_check
      _
    $region15: #{tpu_custom_call.1} parent=1 // pred_check_branch
      %32 = sbr.rel (0) target = $region17
    $region16: #{tpu_custom_call.1} parent=1 // pred_region
      _
    $region17: #{tpu_custom_call.1} parent=1 // pred_fallthru
      _
    // Predicated region
    $region18: #{tpu_custom_call.1} parent=1 // pred_check
      _
    $region19: #{tpu_custom_call.1} parent=1 // pred_check_branch
      %34 = sbr.rel (0) target = $region21
    $region20: #{tpu_custom_call.1} parent=1 // pred_region
      _
    $region21: #{tpu_custom_call.1} parent=1 // pred_fallthru
      _
    // Predicated region
    $region22: #{tpu_custom_call.1} parent=1 // pred_check
      _
    $region23: #{tpu_custom_call.1} parent=1 // pred_check_branch
      %36 = sbr.rel (0) target = $region25
    $region24: #{tpu_custom_call.1} parent=1 // pred_region
      _
    $region25: #{tpu_custom_call.1} parent=1 // pred_fallthru
      _
    // Predicated region
    $region26: #{tpu_custom_call.1} parent=1 // pred_check
      _
    $region27: #{tpu_custom_call.1} parent=1 // pred_check_branch
      %38 = sbr.rel (0) target = $region29
    $region28: #{tpu_custom_call.1} parent=1 // pred_region
      %39 = dma.done [#allocation3], 7680
    $region29: #{tpu_custom_call.1} parent=1 // pred_fallthru
      _
    %v40 = vld [vmem:[%s0] sm:$0xff]
    %v41 = vld [vmem:[%s0 + $0x8] sm:$0xff]
    %v42 = vld [vmem:[%s1] sm:$0xff]
    %v43 = vld [vmem:[%s1 + $0x8] sm:$0xff]
    %v44 = vld [vmem:[#allocation2] sm:$0xff]
    %v45 = vld [vmem:[#allocation2 + $0x78] sm:$0xff]
    %v46 = vld [vmem:[#allocation2 + $0xf0] sm:$0xff]
    %v47 = vld [vmem:[#allocation2 + $0x168] sm:$0xff]
    %v48 = vld [vmem:[%s5] sm:$0x1]
    %v50 = vlaneseq
    %v51 = vshrl.u32 %v50, 7
    %v52 = vsub.s32 0, %v51
    %v53 = vrot.slane %v48, %v52
    %vm55 = vcmask 261120
    %v57 = vsel %vm55, %v40, 0
    %v60 = vsel %vm55, %v41, 0
    %62 = vmatprep.subr.mxu0 0.0
    %63 = vmatpush1.msra.mxu0 %v44
    %64 = vmatprep.subr.mxu0 0.0
    %65 = vmatpush1.msra.mxu0 %v45
    %66 = vmatprep.subr.mxu0 0.0
    %67 = vmatpush1.msra.mxu0 %v46
    %68 = vmatprep.subr.mxu0 0.0
    %69 = vmatpush1.msra.mxu0 %v47
    %70 = vmatprep.subr.mxu0 0.0
    %71 = vmatpush1.msra.mxu0 0.0
    %72 = vmatprep.subr.mxu0 0.0
    %73 = vmatpush1.msra.mxu0 0.0
    %74 = vmatprep.subr.mxu0 0.0
    %75 = vmatpush1.msra.mxu0 0.0
    %76 = vmatprep.subr.mxu0 0.0
    %77 = vmatpush1.msra.mxu0 0.0
    %78 = vmatprep.subr.mxu0 0.0
    %79 = vmatpush1.msra.mxu0 0.0
    %80 = vmatprep.subr.mxu0 0.0
    %81 = vmatpush1.msra.mxu0 0.0
    %82 = vmatprep.subr.mxu0 0.0
    %83 = vmatpush1.msra.mxu0 0.0
    %84 = vmatprep.subr.mxu0 0.0
    %85 = vmatpush1.msra.mxu0 0.0
    %86 = vmatprep.subr.mxu0 0.0
    %87 = vmatpush1.msra.mxu0 0.0
    %88 = vmatprep.subr.mxu0 0.0
    %89 = vmatpush1.msra.mxu0 0.0
    %90 = vmatprep.subr.mxu0 0.0
    %91 = vmatpush1.msra.mxu0 0.0
    %92 = vmatprep.subr.mxu0 0.0
    %93 = vmatpush1.msra.mxu0 0.0
    %94 = vmatprep.subr.mxu0 0.0
    %95 = vmatpush1.msra.mxu0 0.0
    %96 = vmatprep.subr.mxu0 0.0
    %97 = vmatpush1.msra.mxu0 0.0
    %98 = vmatprep.subr.mxu0 0.0
    %99 = vmatpush1.msra.mxu0 0.0
    %100 = vmatprep.subr.mxu0 0.0
    %101 = vmatpush1.msra.mxu0 0.0
    %102 = vmatprep.subr.mxu0 0.0
    %103 = vmatpush1.msra.mxu0 0.0
    %104 = vmatprep.subr.mxu0 0.0
    %105 = vmatpush1.msra.mxu0 0.0
    %106 = vmatprep.subr.mxu0 0.0
    %107 = vmatpush1.msra.mxu0 0.0
    %108 = vmatprep.subr.mxu0 0.0
    %109 = vmatpush1.msra.mxu0 0.0
    %110 = vmatprep.subr.mxu0 0.0
    %111 = vmatpush1.msra.mxu0 0.0
    %112 = vmatprep.subr.mxu0 0.0
    %113 = vmatpush1.msra.mxu0 0.0
    %114 = vmatprep.subr.mxu0 0.0
    %115 = vmatpush1.msra.mxu0 0.0
    %116 = vmatprep.subr.mxu0 0.0
    %117 = vmatpush1.msra.mxu0 0.0
    %118 = vmatprep.subr.mxu0 0.0
    %119 = vmatpush1.msra.mxu0 0.0
    %120 = vmatprep.subr.mxu0 0.0
    %121 = vmatpush1.msra.mxu0 0.0
    %122 = vmatprep.subr.mxu0 0.0
    %123 = vmatpush1.msra.mxu0 0.0
    %124 = vmatprep.subr.mxu0 0.0
    %125 = vmatpush1.msra.mxu0 0.0
    %126 = vmatprep.mubr.f32.mxu0 0.0
    %127 = vmatmul.mubr.f32.gmra.mrb[0].mxu0 %v57
    %v128 = vpop.f32.mrb[0].mxu0
    %v129 = vadd.f32 %v53, %v128
    %v130 = vpop.f32.mrb[0].mxu0
    %131 = vmatprep.mubr.f32.mxu0 0.0
    %132 = vmatmul.mubr.f32.gmra.mrb[0].mxu0 %v60
    %v133 = vpop.f32.mrb[0].mxu0
    %v134 = vadd.f32 %v53, %v133
    %v135 = vpop.f32.mrb[0].mxu0
    %136 = vdwg.mxu0
    %v137 = vld [vmem:[#allocation2 + $0x58] sm:$0xff]
    %v138 = vld [vmem:[#allocation2 + $0xd0] sm:$0xff]
    %v139 = vld [vmem:[#allocation2 + $0x148] sm:$0xff]
    %v140 = vld [vmem:[#allocation2 + $0x1c0] sm:$0xff]
    %v141 = vld [vmem:[%s5 + $0x19] sm:$0x1]
    %v143 = vlaneseq
    %v144 = vshrl.u32 %v143, 7
    %v145 = vsub.s32 0, %v144
    %v146 = vrot.slane %v141, %v145
    %v149 = vsel %vm55, %v42, 0
    %v152 = vsel %vm55, %v43, 0
    %154 = vmatprep.subr.mxu0 0.0
    %155 = vmatpush1.msra.mxu0 %v137
    %156 = vmatprep.subr.mxu0 0.0
    %157 = vmatpush1.msra.mxu0 %v138
    %158 = vmatprep.subr.mxu0 0.0
    %159 = vmatpush1.msra.mxu0 %v139
    %160 = vmatprep.subr.mxu0 0.0
    %161 = vmatpush1.msra.mxu0 %v140
    %162 = vmatprep.subr.mxu0 0.0
    %163 = vmatpush1.msra.mxu0 0.0
    %164 = vmatprep.subr.mxu0 0.0
    %165 = vmatpush1.msra.mxu0 0.0
    %166 = vmatprep.subr.mxu0 0.0
    %167 = vmatpush1.msra.mxu0 0.0
    %168 = vmatprep.subr.mxu0 0.0
    %169 = vmatpush1.msra.mxu0 0.0
    %170 = vmatprep.subr.mxu0 0.0
    %171 = vmatpush1.msra.mxu0 0.0
    %172 = vmatprep.subr.mxu0 0.0
    %173 = vmatpush1.msra.mxu0 0.0
    %174 = vmatprep.subr.mxu0 0.0
    %175 = vmatpush1.msra.mxu0 0.0
    %176 = vmatprep.subr.mxu0 0.0
    %177 = vmatpush1.msra.mxu0 0.0
    %178 = vmatprep.subr.mxu0 0.0
    %179 = vmatpush1.msra.mxu0 0.0
    %180 = vmatprep.subr.mxu0 0.0
    %181 = vmatpush1.msra.mxu0 0.0
    %182 = vmatprep.subr.mxu0 0.0
    %183 = vmatpush1.msra.mxu0 0.0
    %184 = vmatprep.subr.mxu0 0.0
    %185 = vmatpush1.msra.mxu0 0.0
    %186 = vmatprep.subr.mxu0 0.0
    %187 = vmatpush1.msra.mxu0 0.0
    %188 = vmatprep.subr.mxu0 0.0
    %189 = vmatpush1.msra.mxu0 0.0
    %190 = vmatprep.subr.mxu0 0.0
    %191 = vmatpush1.msra.mxu0 0.0
    %192 = vmatprep.subr.mxu0 0.0
    %193 = vmatpush1.msra.mxu0 0.0
    %194 = vmatprep.subr.mxu0 0.0
    %195 = vmatpush1.msra.mxu0 0.0
    %196 = vmatprep.subr.mxu0 0.0
    %197 = vmatpush1.msra.mxu0 0.0
    %198 = vmatprep.subr.mxu0 0.0
    %199 = vmatpush1.msra.mxu0 0.0
    %200 = vmatprep.subr.mxu0 0.0
    %201 = vmatpush1.msra.mxu0 0.0
    %202 = vmatprep.subr.mxu0 0.0
    %203 = vmatpush1.msra.mxu0 0.0
    %204 = vmatprep.subr.mxu0 0.0
    %205 = vmatpush1.msra.mxu0 0.0
    %206 = vmatprep.subr.mxu0 0.0
    %207 = vmatpush1.msra.mxu0 0.0
    %208 = vmatprep.subr.mxu0 0.0
    %209 = vmatpush1.msra.mxu0 0.0
    %210 = vmatprep.subr.mxu0 0.0
    %211 = vmatpush1.msra.mxu0 0.0
    %212 = vmatprep.subr.mxu0 0.0
    %213 = vmatpush1.msra.mxu0 0.0
    %214 = vmatprep.subr.mxu0 0.0
    %215 = vmatpush1.msra.mxu0 0.0
    %216 = vmatprep.subr.mxu0 0.0
    %217 = vmatpush1.msra.mxu0 0.0
    %218 = vmatprep.mubr.f32.mxu0 0.0
    %219 = vmatmul.mubr.f32.gmra.mrb[0].mxu0 %v149
    %v220 = vpop.f32.mrb[0].mxu0
    %v221 = vadd.f32 %v146, %v220
    %v222 = vpop.f32.mrb[0].mxu0
    %223 = vmatprep.mubr.f32.mxu0 0.0
    %224 = vmatmul.mubr.f32.gmra.mrb[0].mxu0 %v152
    %v225 = vpop.f32.mrb[0].mxu0
    %v226 = vadd.f32 %v146, %v225
    %v227 = vpop.f32.mrb[0].mxu0
    %228 = vdwg.mxu0
    %v229 = vld [vmem:[#allocation2 + $0x8] sm:$0xff]
    %v230 = vld [vmem:[#allocation2 + $0x80] sm:$0xff]
    %v231 = vld [vmem:[#allocation2 + $0xf8] sm:$0xff]
    %v232 = vld [vmem:[#allocation2 + $0x170] sm:$0xff]
    %v233 = vld [vmem:[%s5 + $0x1] sm:$0x1]
    %v235 = vlaneseq
    %v236 = vshrl.u32 %v235, 7
    %v237 = vsub.s32 0, %v236
    %v238 = vrot.slane %v233, %v237
    %v241 = vsel %vm55, %v129, 0
    %v244 = vsel %vm55, %v134, 0
    %246 = vmatprep.subr.mxu0 0.0
    %247 = vmatpush1.msra.mxu0 %v229
    %248 = vmatprep.subr.mxu0 0.0
    %249 = vmatpush1.msra.mxu0 %v230
    %250 = vmatprep.subr.mxu0 0.0
    %251 = vmatpush1.msra.mxu0 %v231
    %252 = vmatprep.subr.mxu0 0.0
    %253 = vmatpush1.msra.mxu0 %v232
    %254 = vmatprep.subr.mxu0 0.0
    %255 = vmatpush1.msra.mxu0 0.0
    %256 = vmatprep.subr.mxu0 0.0
    %257 = vmatpush1.msra.mxu0 0.0
    %258 = vmatprep.subr.mxu0 0.0
    %259 = vmatpush1.msra.mxu0 0.0
    %260 = vmatprep.subr.mxu0 0.0
    %261 = vmatpush1.msra.mxu0 0.0
    %262 = vmatprep.subr.mxu0 0.0
    %263 = vmatpush1.msra.mxu0 0.0
    %264 = vmatprep.subr.mxu0 0.0
    %265 = vmatpush1.msra.mxu0 0.0
    %266 = vmatprep.subr.mxu0 0.0
    %267 = vmatpush1.msra.mxu0 0.0
    %268 = vmatprep.subr.mxu0 0.0
    %269 = vmatpush1.msra.mxu0 0.0
    %270 = vmatprep.subr.mxu0 0.0
    %271 = vmatpush1.msra.mxu0 0.0
    %272 = vmatprep.subr.mxu0 0.0
    %273 = vmatpush1.msra.mxu0 0.0
    %274 = vmatprep.subr.mxu0 0.0
    %275 = vmatpush1.msra.mxu0 0.0
    %276 = vmatprep.subr.mxu0 0.0
    %277 = vmatpush1.msra.mxu0 0.0
    %278 = vmatprep.subr.mxu0 0.0
    %279 = vmatpush1.msra.mxu0 0.0
    %280 = vmatprep.subr.mxu0 0.0
    %281 = vmatpush1.msra.mxu0 0.0
    %282 = vmatprep.subr.mxu0 0.0
    %283 = vmatpush1.msra.mxu0 0.0
    %284 = vmatprep.subr.mxu0 0.0
    %285 = vmatpush1.msra.mxu0 0.0
    %286 = vmatprep.subr.mxu0 0.0
    %287 = vmatpush1.msra.mxu0 0.0
    %288 = vmatprep.subr.mxu0 0.0
    %289 = vmatpush1.msra.mxu0 0.0
    %290 = vmatprep.subr.mxu0 0.0
    %291 = vmatpush1.msra.mxu0 0.0
    %292 = vmatprep.subr.mxu0 0.0
    %293 = vmatpush1.msra.mxu0 0.0
    %294 = vmatprep.subr.mxu0 0.0
    %295 = vmatpush1.msra.mxu0 0.0
    %296 = vmatprep.subr.mxu0 0.0
    %297 = vmatpush1.msra.mxu0 0.0
    %298 = vmatprep.subr.mxu0 0.0
    %299 = vmatpush1.msra.mxu0 0.0
    %300 = vmatprep.subr.mxu0 0.0
    %301 = vmatpush1.msra.mxu0 0.0
    %302 = vmatprep.subr.mxu0 0.0
    %303 = vmatpush1.msra.mxu0 0.0
    %304 = vmatprep.subr.mxu0 0.0
    %305 = vmatpush1.msra.mxu0 0.0
    %306 = vmatprep.subr.mxu0 0.0
    %307 = vmatpush1.msra.mxu0 0.0
    %308 = vmatprep.subr.mxu0 0.0
    %309 = vmatpush1.msra.mxu0 0.0
    %310 = vmatprep.mubr.f32.mxu0 0.0
    %311 = vmatmul.mubr.f32.gmra.mrb[0].mxu0 %v241
    %v312 = vpop.f32.mrb[0].mxu0
    %v313 = vadd.f32 %v238, %v312
    %v314 = vpop.f32.mrb[0].mxu0
    %315 = vmatprep.mubr.f32.mxu0 0.0
    %316 = vmatmul.mubr.f32.gmra.mrb[0].mxu0 %v244
    %v317 = vpop.f32.mrb[0].mxu0
    %v318 = vadd.f32 %v238, %v317
    %v319 = vpop.f32.mrb[0].mxu0
    %320 = vdwg.mxu0
    %v321 = vld [vmem:[#allocation2 + $0x10] sm:$0xff]
    %v322 = vld [vmem:[#allocation2 + $0x88] sm:$0xff]
    %v323 = vld [vmem:[#allocation2 + $0x100] sm:$0xff]
    %v324 = vld [vmem:[#allocation2 + $0x178] sm:$0xff]
    %v325 = vld [vmem:[%s5 + $0x2] sm:$0x1]
    %328 = vrot.lane.b32.xlu0 %v313, 120
    %v329 = vpop.permute.xlu0 %328
    %330 = vrot.lane.b32.xlu0 %v318, 120
    %v331 = vpop.permute.xlu0 %330
    %332 = vrot.lane.b32.xlu0 %v313, 112
    %v333 = vpop.permute.xlu0 %332
    %334 = vrot.lane.b32.xlu0 %v318, 112
    %v335 = vpop.permute.xlu0 %334
    %336 = vrot.lane.b32.xlu0 %v313, 104
    %v337 = vpop.permute.xlu0 %336
    %338 = vrot.lane.b32.xlu0 %v318, 104
    %v339 = vpop.permute.xlu0 %338
    %340 = vrot.lane.b32.xlu0 %v313, 96
    %v341 = vpop.permute.xlu0 %340
    %vm342 = vcmask 64512
    %v343 = vsel %vm342, %v313, 0
    %v345 = vsel %vm342, %v341, 0
    %347 = vmatprep.subr.mxu0 0.0
    %348 = vmatpush1.xpose.msra.mxu0 %v345
    %349 = vmatprep.subr.mxu0 0.0
    %350 = vmatpush1.xpose.msra.mxu0 0.0
    %351 = vmatprep.subr.mxu0 0.0
    %352 = vmatpush1.xpose.msra.mxu0 0.0
    %353 = vmatprep.subr.mxu0 0.0
    %354 = vmatpush1.xpose.msra.mxu0 0.0
    %355 = vmatprep.subr.mxu0 0.0
    %356 = vmatpush1.xpose.msra.mxu0 0.0
    %357 = vmatprep.subr.mxu0 0.0
    %358 = vmatpush1.xpose.msra.mxu0 0.0
    %359 = vmatprep.subr.mxu0 0.0
    %360 = vmatpush1.xpose.msra.mxu0 0.0
    %361 = vmatprep.subr.mxu0 0.0
    %362 = vmatpush1.xpose.msra.mxu0 0.0
    %363 = vmatprep.subr.mxu0 0.0
    %364 = vmatpush1.xpose.msra.mxu0 0.0
    %365 = vmatprep.subr.mxu0 0.0
    %366 = vmatpush1.xpose.msra.mxu0 0.0
    %367 = vmatprep.subr.mxu0 0.0
    %368 = vmatpush1.xpose.msra.mxu0 0.0
    %369 = vmatprep.subr.mxu0 0.0
    %370 = vmatpush1.xpose.msra.mxu0 0.0
    %371 = vmatprep.subr.mxu0 0.0
    %372 = vmatpush1.xpose.msra.mxu0 0.0
    %373 = vmatprep.subr.mxu0 0.0
    %374 = vmatpush1.xpose.msra.mxu0 0.0
    %375 = vmatprep.subr.mxu0 0.0
    %376 = vmatpush1.xpose.msra.mxu0 0.0
    %377 = vmatprep.subr.mxu0 0.0
    %378 = vmatpush1.xpose.msra.mxu0 0.0
    %379 = vmatprep.subr.mxu0 0.0
    %380 = vmatpush1.xpose.msra.mxu0 0.0
    %381 = vmatprep.subr.mxu0 0.0
    %382 = vmatpush1.xpose.msra.mxu0 0.0
    %383 = vmatprep.subr.mxu0 0.0
    %384 = vmatpush1.xpose.msra.mxu0 0.0
    %385 = vmatprep.subr.mxu0 0.0
    %386 = vmatpush1.xpose.msra.mxu0 0.0
    %387 = vmatprep.subr.mxu0 0.0
    %388 = vmatpush1.xpose.msra.mxu0 0.0
    %389 = vmatprep.subr.mxu0 0.0
    %390 = vmatpush1.xpose.msra.mxu0 0.0
    %391 = vmatprep.subr.mxu0 0.0
    %392 = vmatpush1.xpose.msra.mxu0 0.0
    %393 = vmatprep.subr.mxu0 0.0
    %394 = vmatpush1.xpose.msra.mxu0 0.0
    %395 = vmatprep.subr.mxu0 0.0
    %396 = vmatpush1.xpose.msra.mxu0 0.0
    %397 = vmatprep.subr.mxu0 0.0
    %398 = vmatpush1.xpose.msra.mxu0 0.0
    %399 = vmatprep.subr.mxu0 0.0
    %400 = vmatpush1.xpose.msra.mxu0 0.0
    %401 = vmatprep.subr.mxu0 0.0
    %402 = vmatpush1.xpose.msra.mxu0 0.0
    %403 = vmatprep.subr.mxu0 0.0
    %404 = vmatpush1.xpose.msra.mxu0 0.0
    %405 = vmatprep.subr.mxu0 0.0
    %406 = vmatpush1.xpose.msra.mxu0 0.0
    %407 = vmatprep.subr.mxu0 0.0
    %408 = vmatpush1.xpose.msra.mxu0 0.0
    %409 = vmatprep.subr.mxu0 0.0
    %410 = vmatpush1.xpose.msra.mxu0 0.0
    %411 = vmatprep.mubr.f32.mxu0 0.0
    %412 = vmatmul.mubr.f32.gmra.mrb[0].mxu0 %v343
    %v413 = vpop.f32.mrb[0].mxu0
    %v414 = vadd.f32 0.0, %v413
    %v415 = vpop.f32.mrb[0].mxu0
    %416 = vdwg.mxu0
    %417 = vrot.lane.b32.xlu0 %v318, 96
    %v418 = vpop.permute.xlu0 %417
    %v419 = vsel %vm342, %v318, 0
    %v421 = vsel %vm342, %v418, 0
    %423 = vmatprep.subr.mxu0 0.0
    %424 = vmatpush1.xpose.msra.mxu0 %v421
    %425 = vmatprep.subr.mxu0 0.0
    %426 = vmatpush1.xpose.msra.mxu0 0.0
    %427 = vmatprep.subr.mxu0 0.0
    %428 = vmatpush1.xpose.msra.mxu0 0.0
    %429 = vmatprep.subr.mxu0 0.0
    %430 = vmatpush1.xpose.msra.mxu0 0.0
    %431 = vmatprep.subr.mxu0 0.0
    %432 = vmatpush1.xpose.msra.mxu0 0.0
    %433 = vmatprep.subr.mxu0 0.0
    %434 = vmatpush1.xpose.msra.mxu0 0.0
    %435 = vmatprep.subr.mxu0 0.0
    %436 = vmatpush1.xpose.msra.mxu0 0.0
    %437 = vmatprep.subr.mxu0 0.0
    %438 = vmatpush1.xpose.msra.mxu0 0.0
    %439 = vmatprep.subr.mxu0 0.0
    %440 = vmatpush1.xpose.msra.mxu0 0.0
    %441 = vmatprep.subr.mxu0 0.0
    %442 = vmatpush1.xpose.msra.mxu0 0.0
    %443 = vmatprep.subr.mxu0 0.0
    %444 = vmatpush1.xpose.msra.mxu0 0.0
    %445 = vmatprep.subr.mxu0 0.0
    %446 = vmatpush1.xpose.msra.mxu0 0.0
    %447 = vmatprep.subr.mxu0 0.0
    %448 = vmatpush1.xpose.msra.mxu0 0.0
    %449 = vmatprep.subr.mxu0 0.0
    %450 = vmatpush1.xpose.msra.mxu0 0.0
    %451 = vmatprep.subr.mxu0 0.0
    %452 = vmatpush1.xpose.msra.mxu0 0.0
    %453 = vmatprep.subr.mxu0 0.0
    %454 = vmatpush1.xpose.msra.mxu0 0.0
    %455 = vmatprep.subr.mxu0 0.0
    %456 = vmatpush1.xpose.msra.mxu0 0.0
    %457 = vmatprep.subr.mxu0 0.0
    %458 = vmatpush1.xpose.msra.mxu0 0.0
    %459 = vmatprep.subr.mxu0 0.0
    %460 = vmatpush1.xpose.msra.mxu0 0.0
    %461 = vmatprep.subr.mxu0 0.0
    %462 = vmatpush1.xpose.msra.mxu0 0.0
    %463 = vmatprep.subr.mxu0 0.0
    %464 = vmatpush1.xpose.msra.mxu0 0.0
    %465 = vmatprep.subr.mxu0 0.0
    %466 = vmatpush1.xpose.msra.mxu0 0.0
    %467 = vmatprep.subr.mxu0 0.0
    %468 = vmatpush1.xpose.msra.mxu0 0.0
    %469 = vmatprep.subr.mxu0 0.0
    %470 = vmatpush1.xpose.msra.mxu0 0.0
    %471 = vmatprep.subr.mxu0 0.0
    %472 = vmatpush1.xpose.msra.mxu0 0.0
    %473 = vmatprep.subr.mxu0 0.0
    %474 = vmatpush1.xpose.msra.mxu0 0.0
    %475 = vmatprep.subr.mxu0 0.0
    %476 = vmatpush1.xpose.msra.mxu0 0.0
    %477 = vmatprep.subr.mxu0 0.0
    %478 = vmatpush1.xpose.msra.mxu0 0.0
    %479 = vmatprep.subr.mxu0 0.0
    %480 = vmatpush1.xpose.msra.mxu0 0.0
    %481 = vmatprep.subr.mxu0 0.0
    %482 = vmatpush1.xpose.msra.mxu0 0.0
    %483 = vmatprep.subr.mxu0 0.0
    %484 = vmatpush1.xpose.msra.mxu0 0.0
    %485 = vmatprep.subr.mxu0 0.0
    %486 = vmatpush1.xpose.msra.mxu0 0.0
    %487 = vmatprep.mubr.f32.mxu0 0.0
    %488 = vmatmul.mubr.f32.gmra.mrb[0].mxu0 %v419
    %v489 = vpop.f32.mrb[0].mxu0
    %v490 = vadd.f32 0.0, %v489
    %v491 = vpop.f32.mrb[0].mxu0
    %492 = vdwg.mxu0
    %493 = vrot.lane.b32.xlu0 %v329, 96
    %v494 = vpop.permute.xlu0 %493
    %v495 = vsel %vm342, %v329, 0
    %v497 = vsel %vm342, %v494, 0
    %499 = vmatprep.subr.mxu0 0.0
    %500 = vmatpush1.xpose.msra.mxu0 %v497
    %501 = vmatprep.subr.mxu0 0.0
    %502 = vmatpush1.xpose.msra.mxu0 0.0
    %503 = vmatprep.subr.mxu0 0.0
    %504 = vmatpush1.xpose.msra.mxu0 0.0
    %505 = vmatprep.subr.mxu0 0.0
    %506 = vmatpush1.xpose.msra.mxu0 0.0
    %507 = vmatprep.subr.mxu0 0.0
    %508 = vmatpush1.xpose.msra.mxu0 0.0
    %509 = vmatprep.subr.mxu0 0.0
    %510 = vmatpush1.xpose.msra.mxu0 0.0
    %511 = vmatprep.subr.mxu0 0.0
    %512 = vmatpush1.xpose.msra.mxu0 0.0
    %513 = vmatprep.subr.mxu0 0.0
    %514 = vmatpush1.xpose.msra.mxu0 0.0
    %515 = vmatprep.subr.mxu0 0.0
    %516 = vmatpush1.xpose.msra.mxu0 0.0
    %517 = vmatprep.subr.mxu0 0.0
    %518 = vmatpush1.xpose.msra.mxu0 0.0
    %519 = vmatprep.subr.mxu0 0.0
    %520 = vmatpush1.xpose.msra.mxu0 0.0
    %521 = vmatprep.subr.mxu0 0.0
    %522 = vmatpush1.xpose.msra.mxu0 0.0
    %523 = vmatprep.subr.mxu0 0.0
    %524 = vmatpush1.xpose.msra.mxu0 0.0
    %525 = vmatprep.subr.mxu0 0.0
    %526 = vmatpush1.xpose.msra.mxu0 0.0
    %527 = vmatprep.subr.mxu0 0.0
    %528 = vmatpush1.xpose.msra.mxu0 0.0
    %529 = vmatprep.subr.mxu0 0.0
    %530 = vmatpush1.xpose.msra.mxu0 0.0
    %531 = vmatprep.subr.mxu0 0.0
    %532 = vmatpush1.xpose.msra.mxu0 0.0
    %533 = vmatprep.subr.mxu0 0.0
    %534 = vmatpush1.xpose.msra.mxu0 0.0
    %535 = vmatprep.subr.mxu0 0.0
    %536 = vmatpush1.xpose.msra.mxu0 0.0
    %537 = vmatprep.subr.mxu0 0.0
    %538 = vmatpush1.xpose.msra.mxu0 0.0
    %539 = vmatprep.subr.mxu0 0.0
    %540 = vmatpush1.xpose.msra.mxu0 0.0
    %541 = vmatprep.subr.mxu0 0.0
    %542 = vmatpush1.xpose.msra.mxu0 0.0
    %543 = vmatprep.subr.mxu0 0.0
    %544 = vmatpush1.xpose.msra.mxu0 0.0
    %545 = vmatprep.subr.mxu0 0.0
    %546 = vmatpush1.xpose.msra.mxu0 0.0
    %547 = vmatprep.subr.mxu0 0.0
    %548 = vmatpush1.xpose.msra.mxu0 0.0
    %549 = vmatprep.subr.mxu0 0.0
    %550 = vmatpush1.xpose.msra.mxu0 0.0
    %551 = vmatprep.subr.mxu0 0.0
    %552 = vmatpush1.xpose.msra.mxu0 0.0
    %553 = vmatprep.subr.mxu0 0.0
    %554 = vmatpush1.xpose.msra.mxu0 0.0
    %555 = vmatprep.subr.mxu0 0.0
    %556 = vmatpush1.xpose.msra.mxu0 0.0
    %557 = vmatprep.subr.mxu0 0.0
    %558 = vmatpush1.xpose.msra.mxu0 0.0
    %559 = vmatprep.subr.mxu0 0.0
    %560 = vmatpush1.xpose.msra.mxu0 0.0
    %561 = vmatprep.subr.mxu0 0.0
    %562 = vmatpush1.xpose.msra.mxu0 0.0
    %563 = vmatprep.mubr.f32.mxu0 0.0
    %564 = vmatmul.mubr.f32.gmra.mrb[0].mxu0 %v495
    %v565 = vpop.f32.mrb[0].mxu0
    %v566 = vadd.f32 0.0, %v565
    %v567 = vpop.f32.mrb[0].mxu0
    %568 = vdwg.mxu0
    %569 = vrot.lane.b32.xlu0 %v331, 96
    %v570 = vpop.permute.xlu0 %569
    %v571 = vsel %vm342, %v331, 0
    %v573 = vsel %vm342, %v570, 0
    %575 = vmatprep.subr.mxu0 0.0
    %576 = vmatpush1.xpose.msra.mxu0 %v573
    %577 = vmatprep.subr.mxu0 0.0
    %578 = vmatpush1.xpose.msra.mxu0 0.0
    %579 = vmatprep.subr.mxu0 0.0
    %580 = vmatpush1.xpose.msra.mxu0 0.0
    %581 = vmatprep.subr.mxu0 0.0
    %582 = vmatpush1.xpose.msra.mxu0 0.0
    %583 = vmatprep.subr.mxu0 0.0
    %584 = vmatpush1.xpose.msra.mxu0 0.0
    %585 = vmatprep.subr.mxu0 0.0
    %586 = vmatpush1.xpose.msra.mxu0 0.0
    %587 = vmatprep.subr.mxu0 0.0
    %588 = vmatpush1.xpose.msra.mxu0 0.0
    %589 = vmatprep.subr.mxu0 0.0
    %590 = vmatpush1.xpose.msra.mxu0 0.0
    %591 = vmatprep.subr.mxu0 0.0
    %592 = vmatpush1.xpose.msra.mxu0 0.0
    %593 = vmatprep.subr.mxu0 0.0
    %594 = vmatpush1.xpose.msra.mxu0 0.0
    %595 = vmatprep.subr.mxu0 0.0
    %596 = vmatpush1.xpose.msra.mxu0 0.0
    %597 = vmatprep.subr.mxu0 0.0
    %598 = vmatpush1.xpose.msra.mxu0 0.0
    %599 = vmatprep.subr.mxu0 0.0
    %600 = vmatpush1.xpose.msra.mxu0 0.0
    %601 = vmatprep.subr.mxu0 0.0
    %602 = vmatpush1.xpose.msra.mxu0 0.0
    %603 = vmatprep.subr.mxu0 0.0
    %604 = vmatpush1.xpose.msra.mxu0 0.0
    %605 = vmatprep.subr.mxu0 0.0
    %606 = vmatpush1.xpose.msra.mxu0 0.0
    %607 = vmatprep.subr.mxu0 0.0
    %608 = vmatpush1.xpose.msra.mxu0 0.0
    %609 = vmatprep.subr.mxu0 0.0
    %610 = vmatpush1.xpose.msra.mxu0 0.0
    %611 = vmatprep.subr.mxu0 0.0
    %612 = vmatpush1.xpose.msra.mxu0 0.0
    %613 = vmatprep.subr.mxu0 0.0
    %614 = vmatpush1.xpose.msra.mxu0 0.0
    %615 = vmatprep.subr.mxu0 0.0
    %616 = vmatpush1.xpose.msra.mxu0 0.0
    %617 = vmatprep.subr.mxu0 0.0
    %618 = vmatpush1.xpose.msra.mxu0 0.0
    %619 = vmatprep.subr.mxu0 0.0
    %620 = vmatpush1.xpose.msra.mxu0 0.0
    %621 = vmatprep.subr.mxu0 0.0
    %622 = vmatpush1.xpose.msra.mxu0 0.0
    %623 = vmatprep.subr.mxu0 0.0
    %624 = vmatpush1.xpose.msra.mxu0 0.0
    %625 = vmatprep.subr.mxu0 0.0
    %626 = vmatpush1.xpose.msra.mxu0 0.0
    %627 = vmatprep.subr.mxu0 0.0
    %628 = vmatpush1.xpose.msra.mxu0 0.0
    %629 = vmatprep.subr.mxu0 0.0
    %630 = vmatpush1.xpose.msra.mxu0 0.0
    %631 = vmatprep.subr.mxu0 0.0
    %632 = vmatpush1.xpose.msra.mxu0 0.0
    %633 = vmatprep.subr.mxu0 0.0
    %634 = vmatpush1.xpose.msra.mxu0 0.0
    %635 = vmatprep.subr.mxu0 0.0
    %636 = vmatpush1.xpose.msra.mxu0 0.0
    %637 = vmatprep.subr.mxu0 0.0
    %638 = vmatpush1.xpose.msra.mxu0 0.0
    %639 = vmatprep.mubr.f32.mxu0 0.0
    %640 = vmatmul.mubr.f32.gmra.mrb[0].mxu0 %v571
    %v641 = vpop.f32.mrb[0].mxu0
    %v642 = vadd.f32 0.0, %v641
    %v643 = vpop.f32.mrb[0].mxu0
    %644 = vdwg.mxu0
    %645 = vrot.lane.b32.xlu0 %v333, 96
    %v646 = vpop.permute.xlu0 %645
    %v647 = vsel %vm342, %v333, 0
    %v649 = vsel %vm342, %v646, 0
    %651 = vmatprep.subr.mxu0 0.0
    %652 = vmatpush1.xpose.msra.mxu0 %v649
    %653 = vmatprep.subr.mxu0 0.0
    %654 = vmatpush1.xpose.msra.mxu0 0.0
    %655 = vmatprep.subr.mxu0 0.0
    %656 = vmatpush1.xpose.msra.mxu0 0.0
    %657 = vmatprep.subr.mxu0 0.0
    %658 = vmatpush1.xpose.msra.mxu0 0.0
    %659 = vmatprep.subr.mxu0 0.0
    %660 = vmatpush1.xpose.msra.mxu0 0.0
    %661 = vmatprep.subr.mxu0 0.0
    %662 = vmatpush1.xpose.msra.mxu0 0.0
    %663 = vmatprep.subr.mxu0 0.0
    %664 = vmatpush1.xpose.msra.mxu0 0.0
    %665 = vmatprep.subr.mxu0 0.0
    %666 = vmatpush1.xpose.msra.mxu0 0.0
    %667 = vmatprep.subr.mxu0 0.0
    %668 = vmatpush1.xpose.msra.mxu0 0.0
    %669 = vmatprep.subr.mxu0 0.0
    %670 = vmatpush1.xpose.msra.mxu0 0.0
    %671 = vmatprep.subr.mxu0 0.0
    %672 = vmatpush1.xpose.msra.mxu0 0.0
    %673 = vmatprep.subr.mxu0 0.0
    %674 = vmatpush1.xpose.msra.mxu0 0.0
    %675 = vmatprep.subr.mxu0 0.0
    %676 = vmatpush1.xpose.msra.mxu0 0.0
    %677 = vmatprep.subr.mxu0 0.0
    %678 = vmatpush1.xpose.msra.mxu0 0.0
    %679 = vmatprep.subr.mxu0 0.0
    %680 = vmatpush1.xpose.msra.mxu0 0.0
    %681 = vmatprep.subr.mxu0 0.0
    %682 = vmatpush1.xpose.msra.mxu0 0.0
    %683 = vmatprep.subr.mxu0 0.0
    %684 = vmatpush1.xpose.msra.mxu0 0.0
    %685 = vmatprep.subr.mxu0 0.0
    %686 = vmatpush1.xpose.msra.mxu0 0.0
    %687 = vmatprep.subr.mxu0 0.0
    %688 = vmatpush1.xpose.msra.mxu0 0.0
    %689 = vmatprep.subr.mxu0 0.0
    %690 = vmatpush1.xpose.msra.mxu0 0.0
    %691 = vmatprep.subr.mxu0 0.0
    %692 = vmatpush1.xpose.msra.mxu0 0.0
    %693 = vmatprep.subr.mxu0 0.0
    %694 = vmatpush1.xpose.msra.mxu0 0.0
    %695 = vmatprep.subr.mxu0 0.0
    %696 = vmatpush1.xpose.msra.mxu0 0.0
    %697 = vmatprep.subr.mxu0 0.0
    %698 = vmatpush1.xpose.msra.mxu0 0.0
    %699 = vmatprep.subr.mxu0 0.0
    %700 = vmatpush1.xpose.msra.mxu0 0.0
    %701 = vmatprep.subr.mxu0 0.0
    %702 = vmatpush1.xpose.msra.mxu0 0.0
    %703 = vmatprep.subr.mxu0 0.0
    %704 = vmatpush1.xpose.msra.mxu0 0.0
    %705 = vmatprep.subr.mxu0 0.0
    %706 = vmatpush1.xpose.msra.mxu0 0.0
    %707 = vmatprep.subr.mxu0 0.0
    %708 = vmatpush1.xpose.msra.mxu0 0.0
    %709 = vmatprep.subr.mxu0 0.0
    %710 = vmatpush1.xpose.msra.mxu0 0.0
    %711 = vmatprep.subr.mxu0 0.0
    %712 = vmatpush1.xpose.msra.mxu0 0.0
    %713 = vmatprep.subr.mxu0 0.0
    %714 = vmatpush1.xpose.msra.mxu0 0.0
    %715 = vmatprep.mubr.f32.mxu0 0.0
    %716 = vmatmul.mubr.f32.gmra.mrb[0].mxu0 %v647
    %v717 = vpop.f32.mrb[0].mxu0
    %v718 = vadd.f32 0.0, %v717
    %v719 = vpop.f32.mrb[0].mxu0
    %720 = vdwg.mxu0
    %721 = vrot.lane.b32.xlu0 %v335, 96
    %v722 = vpop.permute.xlu0 %721
    %v723 = vsel %vm342, %v335, 0
    %v725 = vsel %vm342, %v722, 0
    %727 = vmatprep.subr.mxu0 0.0
    %728 = vmatpush1.xpose.msra.mxu0 %v725
    %729 = vmatprep.subr.mxu0 0.0
    %730 = vmatpush1.xpose.msra.mxu0 0.0
    %731 = vmatprep.subr.mxu0 0.0
    %732 = vmatpush1.xpose.msra.mxu0 0.0
    %733 = vmatprep.subr.mxu0 0.0
    %734 = vmatpush1.xpose.msra.mxu0 0.0
    %735 = vmatprep.subr.mxu0 0.0
    %736 = vmatpush1.xpose.msra.mxu0 0.0
    %737 = vmatprep.subr.mxu0 0.0
    %738 = vmatpush1.xpose.msra.mxu0 0.0
    %739 = vmatprep.subr.mxu0 0.0
    %740 = vmatpush1.xpose.msra.mxu0 0.0
    %741 = vmatprep.subr.mxu0 0.0
    %742 = vmatpush1.xpose.msra.mxu0 0.0
    %743 = vmatprep.subr.mxu0 0.0
    %744 = vmatpush1.xpose.msra.mxu0 0.0
    %745 = vmatprep.subr.mxu0 0.0
    %746 = vmatpush1.xpose.msra.mxu0 0.0
    %747 = vmatprep.subr.mxu0 0.0
    %748 = vmatpush1.xpose.msra.mxu0 0.0
    %749 = vmatprep.subr.mxu0 0.0
    %750 = vmatpush1.xpose.msra.mxu0 0.0
    %751 = vmatprep.subr.mxu0 0.0
    %752 = vmatpush1.xpose.msra.mxu0 0.0
    %753 = vmatprep.subr.mxu0 0.0
    %754 = vmatpush1.xpose.msra.mxu0 0.0
    %755 = vmatprep.subr.mxu0 0.0
    %756 = vmatpush1.xpose.msra.mxu0 0.0
    %757 = vmatprep.subr.mxu0 0.0
    %758 = vmatpush1.xpose.msra.mxu0 0.0
    %759 = vmatprep.subr.mxu0 0.0
    %760 = vmatpush1.xpose.msra.mxu0 0.0
    %761 = vmatprep.subr.mxu0 0.0
    %762 = vmatpush1.xpose.msra.mxu0 0.0
    %763 = vmatprep.subr.mxu0 0.0
    %764 = vmatpush1.xpose.msra.mxu0 0.0
    %765 = vmatprep.subr.mxu0 0.0
    %766 = vmatpush1.xpose.msra.mxu0 0.0
    %767 = vmatprep.subr.mxu0 0.0
    %768 = vmatpush1.xpose.msra.mxu0 0.0
    %769 = vmatprep.subr.mxu0 0.0
    %770 = vmatpush1.xpose.msra.mxu0 0.0
    %771 = vmatprep.subr.mxu0 0.0
    %772 = vmatpush1.xpose.msra.mxu0 0.0
    %773 = vmatprep.subr.mxu0 0.0
    %774 = vmatpush1.xpose.msra.mxu0 0.0
    %775 = vmatprep.subr.mxu0 0.0
    %776 = vmatpush1.xpose.msra.mxu0 0.0
    %777 = vmatprep.subr.mxu0 0.0
    %778 = vmatpush1.xpose.msra.mxu0 0.0
    %779 = vmatprep.subr.mxu0 0.0
    %780 = vmatpush1.xpose.msra.mxu0 0.0
    %781 = vmatprep.subr.mxu0 0.0
    %782 = vmatpush1.xpose.msra.mxu0 0.0
    %783 = vmatprep.subr.mxu0 0.0
    %784 = vmatpush1.xpose.msra.mxu0 0.0
    %785 = vmatprep.subr.mxu0 0.0
    %786 = vmatpush1.xpose.msra.mxu0 0.0
    %787 = vmatprep.subr.mxu0 0.0
    %788 = vmatpush1.xpose.msra.mxu0 0.0
    %789 = vmatprep.subr.mxu0 0.0
    %790 = vmatpush1.xpose.msra.mxu0 0.0
    %791 = vmatprep.mubr.f32.mxu0 0.0
    %792 = vmatmul.mubr.f32.gmra.mrb[0].mxu0 %v723
    %v793 = vpop.f32.mrb[0].mxu0
    %v794 = vadd.f32 0.0, %v793
    %v795 = vpop.f32.mrb[0].mxu0
    %796 = vdwg.mxu0
    %797 = vrot.lane.b32.xlu0 %v337, 96
    %v798 = vpop.permute.xlu0 %797
    %v799 = vsel %vm342, %v337, 0
    %v801 = vsel %vm342, %v798, 0
    %803 = vmatprep.subr.mxu0 0.0
    %804 = vmatpush1.xpose.msra.mxu0 %v801
    %805 = vmatprep.subr.mxu0 0.0
    %806 = vmatpush1.xpose.msra.mxu0 0.0
    %807 = vmatprep.subr.mxu0 0.0
    %808 = vmatpush1.xpose.msra.mxu0 0.0
    %809 = vmatprep.subr.mxu0 0.0
    %810 = vmatpush1.xpose.msra.mxu0 0.0
    %811 = vmatprep.subr.mxu0 0.0
    %812 = vmatpush1.xpose.msra.mxu0 0.0
    %813 = vmatprep.subr.mxu0 0.0
    %814 = vmatpush1.xpose.msra.mxu0 0.0
    %815 = vmatprep.subr.mxu0 0.0
    %816 = vmatpush1.xpose.msra.mxu0 0.0
    %817 = vmatprep.subr.mxu0 0.0
    %818 = vmatpush1.xpose.msra.mxu0 0.0
    %819 = vmatprep.subr.mxu0 0.0
    %820 = vmatpush1.xpose.msra.mxu0 0.0
    %821 = vmatprep.subr.mxu0 0.0
    %822 = vmatpush1.xpose.msra.mxu0 0.0
    %823 = vmatprep.subr.mxu0 0.0
    %824 = vmatpush1.xpose.msra.mxu0 0.0
    %825 = vmatprep.subr.mxu0 0.0
    %826 = vmatpush1.xpose.msra.mxu0 0.0
    %827 = vmatprep.subr.mxu0 0.0
    %828 = vmatpush1.xpose.msra.mxu0 0.0
    %829 = vmatprep.subr.mxu0 0.0
    %830 = vmatpush1.xpose.msra.mxu0 0.0
    %831 = vmatprep.subr.mxu0 0.0
    %832 = vmatpush1.xpose.msra.mxu0 0.0
    %833 = vmatprep.subr.mxu0 0.0
    %834 = vmatpush1.xpose.msra.mxu0 0.0
    %835 = vmatprep.subr.mxu0 0.0
    %836 = vmatpush1.xpose.msra.mxu0 0.0
    %837 = vmatprep.subr.mxu0 0.0
    %838 = vmatpush1.xpose.msra.mxu0 0.0
    %839 = vmatprep.subr.mxu0 0.0
    %840 = vmatpush1.xpose.msra.mxu0 0.0
    %841 = vmatprep.subr.mxu0 0.0
    %842 = vmatpush1.xpose.msra.mxu0 0.0
    %843 = vmatprep.subr.mxu0 0.0
    %844 = vmatpush1.xpose.msra.mxu0 0.0
    %845 = vmatprep.subr.mxu0 0.0
    %846 = vmatpush1.xpose.msra.mxu0 0.0
    %847 = vmatprep.subr.mxu0 0.0
    %848 = vmatpush1.xpose.msra.mxu0 0.0
    %849 = vmatprep.subr.mxu0 0.0
    %850 = vmatpush1.xpose.msra.mxu0 0.0
    %851 = vmatprep.subr.mxu0 0.0
    %852 = vmatpush1.xpose.msra.mxu0 0.0
    %853 = vmatprep.subr.mxu0 0.0
    %854 = vmatpush1.xpose.msra.mxu0 0.0
    %855 = vmatprep.subr.mxu0 0.0
    %856 = vmatpush1.xpose.msra.mxu0 0.0
    %857 = vmatprep.subr.mxu0 0.0
    %858 = vmatpush1.xpose.msra.mxu0 0.0
    %859 = vmatprep.subr.mxu0 0.0
    %860 = vmatpush1.xpose.msra.mxu0 0.0
    %861 = vmatprep.subr.mxu0 0.0
    %862 = vmatpush1.xpose.msra.mxu0 0.0
    %863 = vmatprep.subr.mxu0 0.0
    %864 = vmatpush1.xpose.msra.mxu0 0.0
    %865 = vmatprep.subr.mxu0 0.0
    %866 = vmatpush1.xpose.msra.mxu0 0.0
    %867 = vmatprep.mubr.f32.mxu0 0.0
    %868 = vmatmul.mubr.f32.gmra.mrb[0].mxu0 %v799
    %v869 = vpop.f32.mrb[0].mxu0
    %v870 = vadd.f32 0.0, %v869
    %v871 = vpop.f32.mrb[0].mxu0
    %872 = vdwg.mxu0
    %873 = vrot.lane.b32.xlu0 %v339, 96
    %v874 = vpop.permute.xlu0 %873
    %v875 = vsel %vm342, %v339, 0
    %v877 = vsel %vm342, %v874, 0
    %879 = vmatprep.subr.mxu0 0.0
    %880 = vmatpush1.xpose.msra.mxu0 %v877
    %881 = vmatprep.subr.mxu0 0.0
    %882 = vmatpush1.xpose.msra.mxu0 0.0
    %883 = vmatprep.subr.mxu0 0.0
    %884 = vmatpush1.xpose.msra.mxu0 0.0
    %885 = vmatprep.subr.mxu0 0.0
    %886 = vmatpush1.xpose.msra.mxu0 0.0
    %887 = vmatprep.subr.mxu0 0.0
    %888 = vmatpush1.xpose.msra.mxu0 0.0
    %889 = vmatprep.subr.mxu0 0.0
    %890 = vmatpush1.xpose.msra.mxu0 0.0
    %891 = vmatprep.subr.mxu0 0.0
    %892 = vmatpush1.xpose.msra.mxu0 0.0
    %893 = vmatprep.subr.mxu0 0.0
    %894 = vmatpush1.xpose.msra.mxu0 0.0
    %895 = vmatprep.subr.mxu0 0.0
    %896 = vmatpush1.xpose.msra.mxu0 0.0
    %897 = vmatprep.subr.mxu0 0.0
    %898 = vmatpush1.xpose.msra.mxu0 0.0
    %899 = vmatprep.subr.mxu0 0.0
    %900 = vmatpush1.xpose.msra.mxu0 0.0
    %901 = vmatprep.subr.mxu0 0.0
    %902 = vmatpush1.xpose.msra.mxu0 0.0
    %903 = vmatprep.subr.mxu0 0.0
    %904 = vmatpush1.xpose.msra.mxu0 0.0
    %905 = vmatprep.subr.mxu0 0.0
    %906 = vmatpush1.xpose.msra.mxu0 0.0
    %907 = vmatprep.subr.mxu0 0.0
    %908 = vmatpush1.xpose.msra.mxu0 0.0
    %909 = vmatprep.subr.mxu0 0.0
    %910 = vmatpush1.xpose.msra.mxu0 0.0
    %911 = vmatprep.subr.mxu0 0.0
    %912 = vmatpush1.xpose.msra.mxu0 0.0
    %913 = vmatprep.subr.mxu0 0.0
    %914 = vmatpush1.xpose.msra.mxu0 0.0
    %915 = vmatprep.subr.mxu0 0.0
    %916 = vmatpush1.xpose.msra.mxu0 0.0
    %917 = vmatprep.subr.mxu0 0.0
    %918 = vmatpush1.xpose.msra.mxu0 0.0
    %919 = vmatprep.subr.mxu0 0.0
    %920 = vmatpush1.xpose.msra.mxu0 0.0
    %921 = vmatprep.subr.mxu0 0.0
    %922 = vmatpush1.xpose.msra.mxu0 0.0
    %923 = vmatprep.subr.mxu0 0.0
    %924 = vmatpush1.xpose.msra.mxu0 0.0
    %925 = vmatprep.subr.mxu0 0.0
    %926 = vmatpush1.xpose.msra.mxu0 0.0
    %927 = vmatprep.subr.mxu0 0.0
    %928 = vmatpush1.xpose.msra.mxu0 0.0
    %929 = vmatprep.subr.mxu0 0.0
    %930 = vmatpush1.xpose.msra.mxu0 0.0
    %931 = vmatprep.subr.mxu0 0.0
    %932 = vmatpush1.xpose.msra.mxu0 0.0
    %933 = vmatprep.subr.mxu0 0.0
    %934 = vmatpush1.xpose.msra.mxu0 0.0
    %935 = vmatprep.subr.mxu0 0.0
    %936 = vmatpush1.xpose.msra.mxu0 0.0
    %937 = vmatprep.subr.mxu0 0.0
    %938 = vmatpush1.xpose.msra.mxu0 0.0
    %939 = vmatprep.subr.mxu0 0.0
    %940 = vmatpush1.xpose.msra.mxu0 0.0
    %941 = vmatprep.subr.mxu0 0.0
    %942 = vmatpush1.xpose.msra.mxu0 0.0
    %943 = vmatprep.mubr.f32.mxu0 0.0
    %944 = vmatmul.mubr.f32.gmra.mrb[0].mxu0 %v875
    %v945 = vpop.f32.mrb[0].mxu0
    %v946 = vadd.f32 0.0, %v945
    %v947 = vpop.f32.mrb[0].mxu0
    %948 = vdwg.mxu0
    %v949 = vmul.f32 %v414, 0.35355338
    %v950 = vmul.f32 %v490, 0.35355338
    %v951 = vmul.f32 %v566, 0.35355338
    %v952 = vmul.f32 %v642, 0.35355338
    %v953 = vmul.f32 %v718, 0.35355338
    %v954 = vmul.f32 %v794, 0.35355338
    %v955 = vmul.f32 %v870, 0.35355338
    %v956 = vmul.f32 %v946, 0.35355338
    %v957 = vsel %vm342, %v949, -inf
    %958 = vmax.xlane.f32.xlu0 %v957
    %v959 = vpop.xlane.xlu0 %958
    %v960 = vsel %vm342, %v950, -inf
    %961 = vmax.xlane.f32.xlu0 %v960
    %v962 = vpop.xlane.xlu0 %961
    %v963 = vsel %vm342, %v951, -inf
    %964 = vmax.xlane.f32.xlu0 %v963
    %v965 = vpop.xlane.xlu0 %964
    %v966 = vsel %vm342, %v952, -inf
    %967 = vmax.xlane.f32.xlu0 %v966
    %v968 = vpop.xlane.xlu0 %967
    %v969 = vsel %vm342, %v953, -inf
    %970 = vmax.xlane.f32.xlu0 %v969
    %v971 = vpop.xlane.xlu0 %970
    %v972 = vsel %vm342, %v954, -inf
    %973 = vmax.xlane.f32.xlu0 %v972
    %v974 = vpop.xlane.xlu0 %973
    %v975 = vsel %vm342, %v955, -inf
    %976 = vmax.xlane.f32.xlu0 %v975
    %v977 = vpop.xlane.xlu0 %976
    %v978 = vsel %vm342, %v956, -inf
    %979 = vmax.xlane.f32.xlu0 %v978
    %v980 = vpop.xlane.xlu0 %979
    %v981 = vsub.f32 %v949, %v959
    %v982 = vsub.f32 %v950, %v962
    %v983 = vsub.f32 %v951, %v965
    %v984 = vsub.f32 %v952, %v968
    %v985 = vsub.f32 %v953, %v971
    %v986 = vsub.f32 %v954, %v974
    %v987 = vsub.f32 %v955, %v977
    %v988 = vsub.f32 %v956, %v980
    %v989 = vmul.f32 %v981, 1.442695
    %v990 = vpow.pop %v989
    %v991 = vmul.f32 %v982, 1.442695
    %v992 = vpow.pop %v991
    %v993 = vmul.f32 %v983, 1.442695
    %v994 = vpow.pop %v993
    %v995 = vmul.f32 %v984, 1.442695
    %v996 = vpow.pop %v995
    %v997 = vmul.f32 %v985, 1.442695
    %v998 = vpow.pop %v997
    %v999 = vmul.f32 %v986, 1.442695
    %v1000 = vpow.pop %v999
    %v1001 = vmul.f32 %v987, 1.442695
    %v1002 = vpow.pop %v1001
    %v1003 = vmul.f32 %v988, 1.442695
    %v1004 = vpow.pop %v1003
    %v1005 = vsel %vm342, %v990, 0.0
    %1006 = vadd.xlane.f32.xlu0 %v1005
    %v1007 = vpop.xlane.xlu0 %1006
    %v1008 = vsel %vm342, %v992, 0.0
    %1009 = vadd.xlane.f32.xlu0 %v1008
    %v1010 = vpop.xlane.xlu0 %1009
    %v1011 = vsel %vm342, %v994, 0.0
    %1012 = vadd.xlane.f32.xlu0 %v1011
    %v1013 = vpop.xlane.xlu0 %1012
    %v1014 = vsel %vm342, %v996, 0.0
    %1015 = vadd.xlane.f32.xlu0 %v1014
    %v1016 = vpop.xlane.xlu0 %1015
    %v1017 = vsel %vm342, %v998, 0.0
    %1018 = vadd.xlane.f32.xlu0 %v1017
    %v1019 = vpop.xlane.xlu0 %1018
    %v1020 = vsel %vm342, %v1000, 0.0
    %1021 = vadd.xlane.f32.xlu0 %v1020
    %v1022 = vpop.xlane.xlu0 %1021
    %v1023 = vsel %vm342, %v1002, 0.0
    %1024 = vadd.xlane.f32.xlu0 %v1023
    %v1025 = vpop.xlane.xlu0 %1024
    %v1026 = vsel %vm342, %v1004, 0.0
    %1027 = vadd.xlane.f32.xlu0 %v1026
    %v1028 = vpop.xlane.xlu0 %1027
    %v1029 = vrcp.pop %v1007
    %v1030 = vmul.f32 %v990, %v1029
    %v1031 = vrcp.pop %v1010
    %v1032 = vmul.f32 %v992, %v1031
    %v1033 = vrcp.pop %v1013
    %v1034 = vmul.f32 %v994, %v1033
    %v1035 = vrcp.pop %v1016
    %v1036 = vmul.f32 %v996, %v1035
    %v1037 = vrcp.pop %v1019
    %v1038 = vmul.f32 %v998, %v1037
    %v1039 = vrcp.pop %v1022
    %v1040 = vmul.f32 %v1000, %v1039
    %v1041 = vrcp.pop %v1025
    %v1042 = vmul.f32 %v1002, %v1041
    %v1043 = vrcp.pop %v1028
    %v1044 = vmul.f32 %v1004, %v1043
    %1045 = vrot.lane.b32.xlu0 %v313, 64
    %v1046 = vpop.permute.xlu0 %1045
    %v1049 = vsel %vm342, %v1030, 0
    %1051 = vmatprep.subr.mxu0 0.0
    %1052 = vmatpush1.msra.mxu0 %v1046
    %1053 = vmatprep.subr.mxu0 0.0
    %1054 = vmatpush1.msra.mxu0 0.0
    %1055 = vmatprep.subr.mxu0 0.0
    %1056 = vmatpush1.msra.mxu0 0.0
    %1057 = vmatprep.subr.mxu0 0.0
    %1058 = vmatpush1.msra.mxu0 0.0
    %1059 = vmatprep.subr.mxu0 0.0
    %1060 = vmatpush1.msra.mxu0 0.0
    %1061 = vmatprep.subr.mxu0 0.0
    %1062 = vmatpush1.msra.mxu0 0.0
    %1063 = vmatprep.subr.mxu0 0.0
    %1064 = vmatpush1.msra.mxu0 0.0
    %1065 = vmatprep.subr.mxu0 0.0
    %1066 = vmatpush1.msra.mxu0 0.0
    %1067 = vmatprep.subr.mxu0 0.0
    %1068 = vmatpush1.msra.mxu0 0.0
    %1069 = vmatprep.subr.mxu0 0.0
    %1070 = vmatpush1.msra.mxu0 0.0
    %1071 = vmatprep.subr.mxu0 0.0
    %1072 = vmatpush1.msra.mxu0 0.0
    %1073 = vmatprep.subr.mxu0 0.0
    %1074 = vmatpush1.msra.mxu0 0.0
    %1075 = vmatprep.subr.mxu0 0.0
    %1076 = vmatpush1.msra.mxu0 0.0
    %1077 = vmatprep.subr.mxu0 0.0
    %1078 = vmatpush1.msra.mxu0 0.0
    %1079 = vmatprep.subr.mxu0 0.0
    %1080 = vmatpush1.msra.mxu0 0.0
    %1081 = vmatprep.subr.mxu0 0.0
    %1082 = vmatpush1.msra.mxu0 0.0
    %1083 = vmatprep.subr.mxu0 0.0
    %1084 = vmatpush1.msra.mxu0 0.0
    %1085 = vmatprep.subr.mxu0 0.0
    %1086 = vmatpush1.msra.mxu0 0.0
    %1087 = vmatprep.subr.mxu0 0.0
    %1088 = vmatpush1.msra.mxu0 0.0
    %1089 = vmatprep.subr.mxu0 0.0
    %1090 = vmatpush1.msra.mxu0 0.0
    %1091 = vmatprep.subr.mxu0 0.0
    %1092 = vmatpush1.msra.mxu0 0.0
    %1093 = vmatprep.subr.mxu0 0.0
    %1094 = vmatpush1.msra.mxu0 0.0
    %1095 = vmatprep.subr.mxu0 0.0
    %1096 = vmatpush1.msra.mxu0 0.0
    %1097 = vmatprep.subr.mxu0 0.0
    %1098 = vmatpush1.msra.mxu0 0.0
    %1099 = vmatprep.subr.mxu0 0.0
    %1100 = vmatpush1.msra.mxu0 0.0
    %1101 = vmatprep.subr.mxu0 0.0
    %1102 = vmatpush1.msra.mxu0 0.0
    %1103 = vmatprep.subr.mxu0 0.0
    %1104 = vmatpush1.msra.mxu0 0.0
    %1105 = vmatprep.subr.mxu0 0.0
    %1106 = vmatpush1.msra.mxu0 0.0
    %1107 = vmatprep.subr.mxu0 0.0
    %1108 = vmatpush1.msra.mxu0 0.0
    %1109 = vmatprep.subr.mxu0 0.0
    %1110 = vmatpush1.msra.mxu0 0.0
    %1111 = vmatprep.subr.mxu0 0.0
    %1112 = vmatpush1.msra.mxu0 0.0
    %1113 = vmatprep.subr.mxu0 0.0
    %1114 = vmatpush1.msra.mxu0 0.0
    %1115 = vmatprep.mubr.f32.mxu0 0.0
    %1116 = vmatmul.mubr.f32.gmra.mrb[0].mxu0 %v1049
    %v1117 = vpop.f32.mrb[0].mxu0
    %v1118 = vadd.f32 0.0, %v1117
    %v1119 = vpop.f32.mrb[0].mxu0
    %1120 = vdwg.mxu0
    %1121 = vrot.lane.b32.xlu0 %v318, 64
    %v1122 = vpop.permute.xlu0 %1121
    %v1125 = vsel %vm342, %v1032, 0
    %1127 = vmatprep.subr.mxu0 0.0
    %1128 = vmatpush1.msra.mxu0 %v1122
    %1129 = vmatprep.subr.mxu0 0.0
    %1130 = vmatpush1.msra.mxu0 0.0
    %1131 = vmatprep.subr.mxu0 0.0
    %1132 = vmatpush1.msra.mxu0 0.0
    %1133 = vmatprep.subr.mxu0 0.0
    %1134 = vmatpush1.msra.mxu0 0.0
    %1135 = vmatprep.subr.mxu0 0.0
    %1136 = vmatpush1.msra.mxu0 0.0
    %1137 = vmatprep.subr.mxu0 0.0
    %1138 = vmatpush1.msra.mxu0 0.0
    %1139 = vmatprep.subr.mxu0 0.0
    %1140 = vmatpush1.msra.mxu0 0.0
    %1141 = vmatprep.subr.mxu0 0.0
    %1142 = vmatpush1.msra.mxu0 0.0
    %1143 = vmatprep.subr.mxu0 0.0
    %1144 = vmatpush1.msra.mxu0 0.0
    %1145 = vmatprep.subr.mxu0 0.0
    %1146 = vmatpush1.msra.mxu0 0.0
    %1147 = vmatprep.subr.mxu0 0.0
    %1148 = vmatpush1.msra.mxu0 0.0
    %1149 = vmatprep.subr.mxu0 0.0
    %1150 = vmatpush1.msra.mxu0 0.0
    %1151 = vmatprep.subr.mxu0 0.0
    %1152 = vmatpush1.msra.mxu0 0.0
    %1153 = vmatprep.subr.mxu0 0.0
    %1154 = vmatpush1.msra.mxu0 0.0
    %1155 = vmatprep.subr.mxu0 0.0
    %1156 = vmatpush1.msra.mxu0 0.0
    %1157 = vmatprep.subr.mxu0 0.0
    %1158 = vmatpush1.msra.mxu0 0.0
    %1159 = vmatprep.subr.mxu0 0.0
    %1160 = vmatpush1.msra.mxu0 0.0
    %1161 = vmatprep.subr.mxu0 0.0
    %1162 = vmatpush1.msra.mxu0 0.0
    %1163 = vmatprep.subr.mxu0 0.0
    %1164 = vmatpush1.msra.mxu0 0.0
    %1165 = vmatprep.subr.mxu0 0.0
    %1166 = vmatpush1.msra.mxu0 0.0
    %1167 = vmatprep.subr.mxu0 0.0
    %1168 = vmatpush1.msra.mxu0 0.0
    %1169 = vmatprep.subr.mxu0 0.0
    %1170 = vmatpush1.msra.mxu0 0.0
    %1171 = vmatprep.subr.mxu0 0.0
    %1172 = vmatpush1.msra.mxu0 0.0
    %1173 = vmatprep.subr.mxu0 0.0
    %1174 = vmatpush1.msra.mxu0 0.0
    %1175 = vmatprep.subr.mxu0 0.0
    %1176 = vmatpush1.msra.mxu0 0.0
    %1177 = vmatprep.subr.mxu0 0.0
    %1178 = vmatpush1.msra.mxu0 0.0
    %1179 = vmatprep.subr.mxu0 0.0
    %1180 = vmatpush1.msra.mxu0 0.0
    %1181 = vmatprep.subr.mxu0 0.0
    %1182 = vmatpush1.msra.mxu0 0.0
    %1183 = vmatprep.subr.mxu0 0.0
    %1184 = vmatpush1.msra.mxu0 0.0
    %1185 = vmatprep.subr.mxu0 0.0
    %1186 = vmatpush1.msra.mxu0 0.0
    %1187 = vmatprep.subr.mxu0 0.0
    %1188 = vmatpush1.msra.mxu0 0.0
    %1189 = vmatprep.subr.mxu0 0.0
    %1190 = vmatpush1.msra.mxu0 0.0
    %1191 = vmatprep.mubr.f32.mxu0 0.0
    %1192 = vmatmul.mubr.f32.gmra.mrb[0].mxu0 %v1125
    %v1193 = vpop.f32.mrb[0].mxu0
    %v1194 = vadd.f32 0.0, %v1193
    %v1195 = vpop.f32.mrb[0].mxu0
    %1196 = vdwg.mxu0
    %1197 = vrot.lane.b32.xlu0 %v329, 64
    %v1198 = vpop.permute.xlu0 %1197
    %v1201 = vsel %vm342, %v1034, 0
    %1203 = vmatprep.subr.mxu0 0.0
    %1204 = vmatpush1.msra.mxu0 %v1198
    %1205 = vmatprep.subr.mxu0 0.0
    %1206 = vmatpush1.msra.mxu0 0.0
    %1207 = vmatprep.subr.mxu0 0.0
    %1208 = vmatpush1.msra.mxu0 0.0
    %1209 = vmatprep.subr.mxu0 0.0
    %1210 = vmatpush1.msra.mxu0 0.0
    %1211 = vmatprep.subr.mxu0 0.0
    %1212 = vmatpush1.msra.mxu0 0.0
    %1213 = vmatprep.subr.mxu0 0.0
    %1214 = vmatpush1.msra.mxu0 0.0
    %1215 = vmatprep.subr.mxu0 0.0
    %1216 = vmatpush1.msra.mxu0 0.0
    %1217 = vmatprep.subr.mxu0 0.0
    %1218 = vmatpush1.msra.mxu0 0.0
    %1219 = vmatprep.subr.mxu0 0.0
    %1220 = vmatpush1.msra.mxu0 0.0
    %1221 = vmatprep.subr.mxu0 0.0
    %1222 = vmatpush1.msra.mxu0 0.0
    %1223 = vmatprep.subr.mxu0 0.0
    %1224 = vmatpush1.msra.mxu0 0.0
    %1225 = vmatprep.subr.mxu0 0.0
    %1226 = vmatpush1.msra.mxu0 0.0
    %1227 = vmatprep.subr.mxu0 0.0
    %1228 = vmatpush1.msra.mxu0 0.0
    %1229 = vmatprep.subr.mxu0 0.0
    %1230 = vmatpush1.msra.mxu0 0.0
    %1231 = vmatprep.subr.mxu0 0.0
    %1232 = vmatpush1.msra.mxu0 0.0
    %1233 = vmatprep.subr.mxu0 0.0
    %1234 = vmatpush1.msra.mxu0 0.0
    %1235 = vmatprep.subr.mxu0 0.0
    %1236 = vmatpush1.msra.mxu0 0.0
    %1237 = vmatprep.subr.mxu0 0.0
    %1238 = vmatpush1.msra.mxu0 0.0
    %1239 = vmatprep.subr.mxu0 0.0
    %1240 = vmatpush1.msra.mxu0 0.0
    %1241 = vmatprep.subr.mxu0 0.0
    %1242 = vmatpush1.msra.mxu0 0.0
    %1243 = vmatprep.subr.mxu0 0.0
    %1244 = vmatpush1.msra.mxu0 0.0
    %1245 = vmatprep.subr.mxu0 0.0
    %1246 = vmatpush1.msra.mxu0 0.0
    %1247 = vmatprep.subr.mxu0 0.0
    %1248 = vmatpush1.msra.mxu0 0.0
    %1249 = vmatprep.subr.mxu0 0.0
    %1250 = vmatpush1.msra.mxu0 0.0
    %1251 = vmatprep.subr.mxu0 0.0
    %1252 = vmatpush1.msra.mxu0 0.0
    %1253 = vmatprep.subr.mxu0 0.0
    %1254 = vmatpush1.msra.mxu0 0.0
    %1255 = vmatprep.subr.mxu0 0.0
    %1256 = vmatpush1.msra.mxu0 0.0
    %1257 = vmatprep.subr.mxu0 0.0
    %1258 = vmatpush1.msra.mxu0 0.0
    %1259 = vmatprep.subr.mxu0 0.0
    %1260 = vmatpush1.msra.mxu0 0.0
    %1261 = vmatprep.subr.mxu0 0.0
    %1262 = vmatpush1.msra.mxu0 0.0
    %1263 = vmatprep.subr.mxu0 0.0
    %1264 = vmatpush1.msra.mxu0 0.0
    %1265 = vmatprep.subr.mxu0 0.0
    %1266 = vmatpush1.msra.mxu0 0.0
    %1267 = vmatprep.mubr.f32.mxu0 0.0
    %1268 = vmatmul.mubr.f32.gmra.mrb[0].mxu0 %v1201
    %v1269 = vpop.f32.mrb[0].mxu0
    %v1270 = vadd.f32 0.0, %v1269
    %v1271 = vpop.f32.mrb[0].mxu0
    %1272 = vdwg.mxu0
    %1273 = vrot.lane.b32.xlu0 %v331, 64
    %v1274 = vpop.permute.xlu0 %1273
    %v1277 = vsel %vm342, %v1036, 0
    %1279 = vmatprep.subr.mxu0 0.0
    %1280 = vmatpush1.msra.mxu0 %v1274
    %1281 = vmatprep.subr.mxu0 0.0
    %1282 = vmatpush1.msra.mxu0 0.0
    %1283 = vmatprep.subr.mxu0 0.0
    %1284 = vmatpush1.msra.mxu0 0.0
    %1285 = vmatprep.subr.mxu0 0.0
    %1286 = vmatpush1.msra.mxu0 0.0
    %1287 = vmatprep.subr.mxu0 0.0
    %1288 = vmatpush1.msra.mxu0 0.0
    %1289 = vmatprep.subr.mxu0 0.0
    %1290 = vmatpush1.msra.mxu0 0.0
    %1291 = vmatprep.subr.mxu0 0.0
    %1292 = vmatpush1.msra.mxu0 0.0
    %1293 = vmatprep.subr.mxu0 0.0
    %1294 = vmatpush1.msra.mxu0 0.0
    %1295 = vmatprep.subr.mxu0 0.0
    %1296 = vmatpush1.msra.mxu0 0.0
    %1297 = vmatprep.subr.mxu0 0.0
    %1298 = vmatpush1.msra.mxu0 0.0
    %1299 = vmatprep.subr.mxu0 0.0
    %1300 = vmatpush1.msra.mxu0 0.0
    %1301 = vmatprep.subr.mxu0 0.0
    %1302 = vmatpush1.msra.mxu0 0.0
    %1303 = vmatprep.subr.mxu0 0.0
    %1304 = vmatpush1.msra.mxu0 0.0
    %1305 = vmatprep.subr.mxu0 0.0
    %1306 = vmatpush1.msra.mxu0 0.0
    %1307 = vmatprep.subr.mxu0 0.0
    %1308 = vmatpush1.msra.mxu0 0.0
    %1309 = vmatprep.subr.mxu0 0.0
    %1310 = vmatpush1.msra.mxu0 0.0
    %1311 = vmatprep.subr.mxu0 0.0
    %1312 = vmatpush1.msra.mxu0 0.0
    %1313 = vmatprep.subr.mxu0 0.0
    %1314 = vmatpush1.msra.mxu0 0.0
    %1315 = vmatprep.subr.mxu0 0.0
    %1316 = vmatpush1.msra.mxu0 0.0
    %1317 = vmatprep.subr.mxu0 0.0
    %1318 = vmatpush1.msra.mxu0 0.0
    %1319 = vmatprep.subr.mxu0 0.0
    %1320 = vmatpush1.msra.mxu0 0.0
    %1321 = vmatprep.subr.mxu0 0.0
    %1322 = vmatpush1.msra.mxu0 0.0
    %1323 = vmatprep.subr.mxu0 0.0
    %1324 = vmatpush1.msra.mxu0 0.0
    %1325 = vmatprep.subr.mxu0 0.0
    %1326 = vmatpush1.msra.mxu0 0.0
    %1327 = vmatprep.subr.mxu0 0.0
    %1328 = vmatpush1.msra.mxu0 0.0
    %1329 = vmatprep.subr.mxu0 0.0
    %1330 = vmatpush1.msra.mxu0 0.0
    %1331 = vmatprep.subr.mxu0 0.0
    %1332 = vmatpush1.msra.mxu0 0.0
    %1333 = vmatprep.subr.mxu0 0.0
    %1334 = vmatpush1.msra.mxu0 0.0
    %1335 = vmatprep.subr.mxu0 0.0
    %1336 = vmatpush1.msra.mxu0 0.0
    %1337 = vmatprep.subr.mxu0 0.0
    %1338 = vmatpush1.msra.mxu0 0.0
    %1339 = vmatprep.subr.mxu0 0.0
    %1340 = vmatpush1.msra.mxu0 0.0
    %1341 = vmatprep.subr.mxu0 0.0
    %1342 = vmatpush1.msra.mxu0 0.0
    %1343 = vmatprep.mubr.f32.mxu0 0.0
    %1344 = vmatmul.mubr.f32.gmra.mrb[0].mxu0 %v1277
    %v1345 = vpop.f32.mrb[0].mxu0
    %v1346 = vadd.f32 0.0, %v1345
    %v1347 = vpop.f32.mrb[0].mxu0
    %1348 = vdwg.mxu0
    %1349 = vrot.lane.b32.xlu0 %v333, 64
    %v1350 = vpop.permute.xlu0 %1349
    %v1353 = vsel %vm342, %v1038, 0
    %1355 = vmatprep.subr.mxu0 0.0
    %1356 = vmatpush1.msra.mxu0 %v1350
    %1357 = vmatprep.subr.mxu0 0.0
    %1358 = vmatpush1.msra.mxu0 0.0
    %1359 = vmatprep.subr.mxu0 0.0
    %1360 = vmatpush1.msra.mxu0 0.0
    %1361 = vmatprep.subr.mxu0 0.0
    %1362 = vmatpush1.msra.mxu0 0.0
    %1363 = vmatprep.subr.mxu0 0.0
    %1364 = vmatpush1.msra.mxu0 0.0
    %1365 = vmatprep.subr.mxu0 0.0
    %1366 = vmatpush1.msra.mxu0 0.0
    %1367 = vmatprep.subr.mxu0 0.0
    %1368 = vmatpush1.msra.mxu0 0.0
    %1369 = vmatprep.subr.mxu0 0.0
    %1370 = vmatpush1.msra.mxu0 0.0
    %1371 = vmatprep.subr.mxu0 0.0
    %1372 = vmatpush1.msra.mxu0 0.0
    %1373 = vmatprep.subr.mxu0 0.0
    %1374 = vmatpush1.msra.mxu0 0.0
    %1375 = vmatprep.subr.mxu0 0.0
    %1376 = vmatpush1.msra.mxu0 0.0
    %1377 = vmatprep.subr.mxu0 0.0
    %1378 = vmatpush1.msra.mxu0 0.0
    %1379 = vmatprep.subr.mxu0 0.0
    %1380 = vmatpush1.msra.mxu0 0.0
    %1381 = vmatprep.subr.mxu0 0.0
    %1382 = vmatpush1.msra.mxu0 0.0
    %1383 = vmatprep.subr.mxu0 0.0
    %1384 = vmatpush1.msra.mxu0 0.0
    %1385 = vmatprep.subr.mxu0 0.0
    %1386 = vmatpush1.msra.mxu0 0.0
    %1387 = vmatprep.subr.mxu0 0.0
    %1388 = vmatpush1.msra.mxu0 0.0
    %1389 = vmatprep.subr.mxu0 0.0
    %1390 = vmatpush1.msra.mxu0 0.0
    %1391 = vmatprep.subr.mxu0 0.0
    %1392 = vmatpush1.msra.mxu0 0.0
    %1393 = vmatprep.subr.mxu0 0.0
    %1394 = vmatpush1.msra.mxu0 0.0
    %1395 = vmatprep.subr.mxu0 0.0
    %1396 = vmatpush1.msra.mxu0 0.0
    %1397 = vmatprep.subr.mxu0 0.0
    %1398 = vmatpush1.msra.mxu0 0.0
    %1399 = vmatprep.subr.mxu0 0.0
    %1400 = vmatpush1.msra.mxu0 0.0
    %1401 = vmatprep.subr.mxu0 0.0
    %1402 = vmatpush1.msra.mxu0 0.0
    %1403 = vmatprep.subr.mxu0 0.0
    %1404 = vmatpush1.msra.mxu0 0.0
    %1405 = vmatprep.subr.mxu0 0.0
    %1406 = vmatpush1.msra.mxu0 0.0
    %1407 = vmatprep.subr.mxu0 0.0
    %1408 = vmatpush1.msra.mxu0 0.0
    %1409 = vmatprep.subr.mxu0 0.0
    %1410 = vmatpush1.msra.mxu0 0.0
    %1411 = vmatprep.subr.mxu0 0.0
    %1412 = vmatpush1.msra.mxu0 0.0
    %1413 = vmatprep.subr.mxu0 0.0
    %1414 = vmatpush1.msra.mxu0 0.0
    %1415 = vmatprep.subr.mxu0 0.0
    %1416 = vmatpush1.msra.mxu0 0.0
    %1417 = vmatprep.subr.mxu0 0.0
    %1418 = vmatpush1.msra.mxu0 0.0
    %1419 = vmatprep.mubr.f32.mxu0 0.0
    %1420 = vmatmul.mubr.f32.gmra.mrb[0].mxu0 %v1353
    %v1421 = vpop.f32.mrb[0].mxu0
    %v1422 = vadd.f32 0.0, %v1421
    %v1423 = vpop.f32.mrb[0].mxu0
    %1424 = vdwg.mxu0
    %1425 = vrot.lane.b32.xlu0 %v335, 64
    %v1426 = vpop.permute.xlu0 %1425
    %v1429 = vsel %vm342, %v1040, 0
    %1431 = vmatprep.subr.mxu0 0.0
    %1432 = vmatpush1.msra.mxu0 %v1426
    %1433 = vmatprep.subr.mxu0 0.0
    %1434 = vmatpush1.msra.mxu0 0.0
    %1435 = vmatprep.subr.mxu0 0.0
    %1436 = vmatpush1.msra.mxu0 0.0
    %1437 = vmatprep.subr.mxu0 0.0
    %1438 = vmatpush1.msra.mxu0 0.0
    %1439 = vmatprep.subr.mxu0 0.0
    %1440 = vmatpush1.msra.mxu0 0.0
    %1441 = vmatprep.subr.mxu0 0.0
    %1442 = vmatpush1.msra.mxu0 0.0
    %1443 = vmatprep.subr.mxu0 0.0
    %1444 = vmatpush1.msra.mxu0 0.0
    %1445 = vmatprep.subr.mxu0 0.0
    %1446 = vmatpush1.msra.mxu0 0.0
    %1447 = vmatprep.subr.mxu0 0.0
    %1448 = vmatpush1.msra.mxu0 0.0
    %1449 = vmatprep.subr.mxu0 0.0
    %1450 = vmatpush1.msra.mxu0 0.0
    %1451 = vmatprep.subr.mxu0 0.0
    %1452 = vmatpush1.msra.mxu0 0.0
    %1453 = vmatprep.subr.mxu0 0.0
    %1454 = vmatpush1.msra.mxu0 0.0
    %1455 = vmatprep.subr.mxu0 0.0
    %1456 = vmatpush1.msra.mxu0 0.0
    %1457 = vmatprep.subr.mxu0 0.0
    %1458 = vmatpush1.msra.mxu0 0.0
    %1459 = vmatprep.subr.mxu0 0.0
    %1460 = vmatpush1.msra.mxu0 0.0
    %1461 = vmatprep.subr.mxu0 0.0
    %1462 = vmatpush1.msra.mxu0 0.0
    %1463 = vmatprep.subr.mxu0 0.0
    %1464 = vmatpush1.msra.mxu0 0.0
    %1465 = vmatprep.subr.mxu0 0.0
    %1466 = vmatpush1.msra.mxu0 0.0
    %1467 = vmatprep.subr.mxu0 0.0
    %1468 = vmatpush1.msra.mxu0 0.0
    %1469 = vmatprep.subr.mxu0 0.0
    %1470 = vmatpush1.msra.mxu0 0.0
    %1471 = vmatprep.subr.mxu0 0.0
    %1472 = vmatpush1.msra.mxu0 0.0
    %1473 = vmatprep.subr.mxu0 0.0
    %1474 = vmatpush1.msra.mxu0 0.0
    %1475 = vmatprep.subr.mxu0 0.0
    %1476 = vmatpush1.msra.mxu0 0.0
    %1477 = vmatprep.subr.mxu0 0.0
    %1478 = vmatpush1.msra.mxu0 0.0
    %1479 = vmatprep.subr.mxu0 0.0
    %1480 = vmatpush1.msra.mxu0 0.0
    %1481 = vmatprep.subr.mxu0 0.0
    %1482 = vmatpush1.msra.mxu0 0.0
    %1483 = vmatprep.subr.mxu0 0.0
    %1484 = vmatpush1.msra.mxu0 0.0
    %1485 = vmatprep.subr.mxu0 0.0
    %1486 = vmatpush1.msra.mxu0 0.0
    %1487 = vmatprep.subr.mxu0 0.0
    %1488 = vmatpush1.msra.mxu0 0.0
    %1489 = vmatprep.subr.mxu0 0.0
    %1490 = vmatpush1.msra.mxu0 0.0
    %1491 = vmatprep.subr.mxu0 0.0
    %1492 = vmatpush1.msra.mxu0 0.0
    %1493 = vmatprep.subr.mxu0 0.0
    %1494 = vmatpush1.msra.mxu0 0.0
    %1495 = vmatprep.mubr.f32.mxu0 0.0
    %1496 = vmatmul.mubr.f32.gmra.mrb[0].mxu0 %v1429
    %v1497 = vpop.f32.mrb[0].mxu0
    %v1498 = vadd.f32 0.0, %v1497
    %v1499 = vpop.f32.mrb[0].mxu0
    %1500 = vdwg.mxu0
    %1501 = vrot.lane.b32.xlu0 %v337, 64
    %v1502 = vpop.permute.xlu0 %1501
    %v1505 = vsel %vm342, %v1042, 0
    %1507 = vmatprep.subr.mxu0 0.0
    %1508 = vmatpush1.msra.mxu0 %v1502
    %1509 = vmatprep.subr.mxu0 0.0
    %1510 = vmatpush1.msra.mxu0 0.0
    %1511 = vmatprep.subr.mxu0 0.0
    %1512 = vmatpush1.msra.mxu0 0.0
    %1513 = vmatprep.subr.mxu0 0.0
    %1514 = vmatpush1.msra.mxu0 0.0
    %1515 = vmatprep.subr.mxu0 0.0
    %1516 = vmatpush1.msra.mxu0 0.0
    %1517 = vmatprep.subr.mxu0 0.0
    %1518 = vmatpush1.msra.mxu0 0.0
    %1519 = vmatprep.subr.mxu0 0.0
    %1520 = vmatpush1.msra.mxu0 0.0
    %1521 = vmatprep.subr.mxu0 0.0
    %1522 = vmatpush1.msra.mxu0 0.0
    %1523 = vmatprep.subr.mxu0 0.0
    %1524 = vmatpush1.msra.mxu0 0.0
    %1525 = vmatprep.subr.mxu0 0.0
    %1526 = vmatpush1.msra.mxu0 0.0
    %1527 = vmatprep.subr.mxu0 0.0
    %1528 = vmatpush1.msra.mxu0 0.0
    %1529 = vmatprep.subr.mxu0 0.0
    %1530 = vmatpush1.msra.mxu0 0.0
    %1531 = vmatprep.subr.mxu0 0.0
    %1532 = vmatpush1.msra.mxu0 0.0
    %1533 = vmatprep.subr.mxu0 0.0
    %1534 = vmatpush1.msra.mxu0 0.0
    %1535 = vmatprep.subr.mxu0 0.0
    %1536 = vmatpush1.msra.mxu0 0.0
    %1537 = vmatprep.subr.mxu0 0.0
    %1538 = vmatpush1.msra.mxu0 0.0
    %1539 = vmatprep.subr.mxu0 0.0
    %1540 = vmatpush1.msra.mxu0 0.0
    %1541 = vmatprep.subr.mxu0 0.0
    %1542 = vmatpush1.msra.mxu0 0.0
    %1543 = vmatprep.subr.mxu0 0.0
    %1544 = vmatpush1.msra.mxu0 0.0
    %1545 = vmatprep.subr.mxu0 0.0
    %1546 = vmatpush1.msra.mxu0 0.0
    %1547 = vmatprep.subr.mxu0 0.0
    %1548 = vmatpush1.msra.mxu0 0.0
    %1549 = vmatprep.subr.mxu0 0.0
    %1550 = vmatpush1.msra.mxu0 0.0
    %1551 = vmatprep.subr.mxu0 0.0
    %1552 = vmatpush1.msra.mxu0 0.0
    %1553 = vmatprep.subr.mxu0 0.0
    %1554 = vmatpush1.msra.mxu0 0.0
    %1555 = vmatprep.subr.mxu0 0.0
    %1556 = vmatpush1.msra.mxu0 0.0
    %1557 = vmatprep.subr.mxu0 0.0
    %1558 = vmatpush1.msra.mxu0 0.0
    %1559 = vmatprep.subr.mxu0 0.0
    %1560 = vmatpush1.msra.mxu0 0.0
    %1561 = vmatprep.subr.mxu0 0.0
    %1562 = vmatpush1.msra.mxu0 0.0
    %1563 = vmatprep.subr.mxu0 0.0
    %1564 = vmatpush1.msra.mxu0 0.0
    %1565 = vmatprep.subr.mxu0 0.0
    %1566 = vmatpush1.msra.mxu0 0.0
    %1567 = vmatprep.subr.mxu0 0.0
    %1568 = vmatpush1.msra.mxu0 0.0
    %1569 = vmatprep.subr.mxu0 0.0
    %1570 = vmatpush1.msra.mxu0 0.0
    %1571 = vmatprep.mubr.f32.mxu0 0.0
    %1572 = vmatmul.mubr.f32.gmra.mrb[0].mxu0 %v1505
    %v1573 = vpop.f32.mrb[0].mxu0
    %v1574 = vadd.f32 0.0, %v1573
    %v1575 = vpop.f32.mrb[0].mxu0
    %1576 = vdwg.mxu0
    %1577 = vrot.lane.b32.xlu0 %v339, 64
    %v1578 = vpop.permute.xlu0 %1577
    %v1581 = vsel %vm342, %v1044, 0
    %1583 = vmatprep.subr.mxu0 0.0
    %1584 = vmatpush1.msra.mxu0 %v1578
    %1585 = vmatprep.subr.mxu0 0.0
    %1586 = vmatpush1.msra.mxu0 0.0
    %1587 = vmatprep.subr.mxu0 0.0
    %1588 = vmatpush1.msra.mxu0 0.0
    %1589 = vmatprep.subr.mxu0 0.0
    %1590 = vmatpush1.msra.mxu0 0.0
    %1591 = vmatprep.subr.mxu0 0.0
    %1592 = vmatpush1.msra.mxu0 0.0
    %1593 = vmatprep.subr.mxu0 0.0
    %1594 = vmatpush1.msra.mxu0 0.0
    %1595 = vmatprep.subr.mxu0 0.0
    %1596 = vmatpush1.msra.mxu0 0.0
    %1597 = vmatprep.subr.mxu0 0.0
    %1598 = vmatpush1.msra.mxu0 0.0
    %1599 = vmatprep.subr.mxu0 0.0
    %1600 = vmatpush1.msra.mxu0 0.0
    %1601 = vmatprep.subr.mxu0 0.0
    %1602 = vmatpush1.msra.mxu0 0.0
    %1603 = vmatprep.subr.mxu0 0.0
    %1604 = vmatpush1.msra.mxu0 0.0
    %1605 = vmatprep.subr.mxu0 0.0
    %1606 = vmatpush1.msra.mxu0 0.0
    %1607 = vmatprep.subr.mxu0 0.0
    %1608 = vmatpush1.msra.mxu0 0.0
    %1609 = vmatprep.subr.mxu0 0.0
    %1610 = vmatpush1.msra.mxu0 0.0
    %1611 = vmatprep.subr.mxu0 0.0
    %1612 = vmatpush1.msra.mxu0 0.0
    %1613 = vmatprep.subr.mxu0 0.0
    %1614 = vmatpush1.msra.mxu0 0.0
    %1615 = vmatprep.subr.mxu0 0.0
    %1616 = vmatpush1.msra.mxu0 0.0
    %1617 = vmatprep.subr.mxu0 0.0
    %1618 = vmatpush1.msra.mxu0 0.0
    %1619 = vmatprep.subr.mxu0 0.0
    %1620 = vmatpush1.msra.mxu0 0.0
    %1621 = vmatprep.subr.mxu0 0.0
    %1622 = vmatpush1.msra.mxu0 0.0
    %1623 = vmatprep.subr.mxu0 0.0
    %1624 = vmatpush1.msra.mxu0 0.0
    %1625 = vmatprep.subr.mxu0 0.0
    %1626 = vmatpush1.msra.mxu0 0.0
    %1627 = vmatprep.subr.mxu0 0.0
    %1628 = vmatpush1.msra.mxu0 0.0
    %1629 = vmatprep.subr.mxu0 0.0
    %1630 = vmatpush1.msra.mxu0 0.0
    %1631 = vmatprep.subr.mxu0 0.0
    %1632 = vmatpush1.msra.mxu0 0.0
    %1633 = vmatprep.subr.mxu0 0.0
    %1634 = vmatpush1.msra.mxu0 0.0
    %1635 = vmatprep.subr.mxu0 0.0
    %1636 = vmatpush1.msra.mxu0 0.0
    %1637 = vmatprep.subr.mxu0 0.0
    %1638 = vmatpush1.msra.mxu0 0.0
    %1639 = vmatprep.subr.mxu0 0.0
    %1640 = vmatpush1.msra.mxu0 0.0
    %1641 = vmatprep.subr.mxu0 0.0
    %1642 = vmatpush1.msra.mxu0 0.0
    %1643 = vmatprep.subr.mxu0 0.0
    %1644 = vmatpush1.msra.mxu0 0.0
    %1645 = vmatprep.subr.mxu0 0.0
    %1646 = vmatpush1.msra.mxu0 0.0
    %1647 = vmatprep.mubr.f32.mxu0 0.0
    %1648 = vmatmul.mubr.f32.gmra.mrb[0].mxu0 %v1581
    %v1649 = vpop.f32.mrb[0].mxu0
    %v1650 = vadd.f32 0.0, %v1649
    %v1651 = vpop.f32.mrb[0].mxu0
    %1652 = vdwg.mxu0
    %1655 = vrot.lane.b32.xlu0 %v1270, 8
    %v1656 = vpop.permute.xlu0 %1655
    %1657 = vrot.lane.b32.xlu0 %v1346, 8
    %v1658 = vpop.permute.xlu0 %1657
    %1663 = vrot.lane.b32.xlu0 %v1422, 16
    %v1664 = vpop.permute.xlu0 %1663
    %1665 = vrot.lane.b32.xlu0 %v1498, 16
    %v1666 = vpop.permute.xlu0 %1665
    %1671 = vrot.lane.b32.xlu0 %v1574, 24
    %v1672 = vpop.permute.xlu0 %1671
    %1673 = vrot.lane.b32.xlu0 %v1650, 24
    %v1674 = vpop.permute.xlu0 %1673
    %v1677 = vsel %vm342, %v1118, %v1656
    %v1678 = vsel %vm342, %v1194, %v1658
    %vm1679 = vcmask 130048
    %v1680 = vsel %vm1679, %v1677, %v1664
    %v1681 = vsel %vm1679, %v1678, %v1666
    %vm1682 = vcmask 195584
    %v1683 = vsel %vm1682, %v1680, %v1672
    %v1684 = vsel %vm1682, %v1681, %v1674
    %v1686 = vlaneseq
    %v1687 = vshrl.u32 %v1686, 7
    %v1688 = vsub.s32 0, %v1687
    %v1689 = vrot.slane %v325, %v1688
    %v1692 = vsel %vm55, %v1683, 0
    %v1695 = vsel %vm55, %v1684, 0
    %1697 = vmatprep.subr.mxu0 0.0
    %1698 = vmatpush1.msra.mxu0 %v321
    %1699 = vmatprep.subr.mxu0 0.0
    %1700 = vmatpush1.msra.mxu0 %v322
    %1701 = vmatprep.subr.mxu0 0.0
    %1702 = vmatpush1.msra.mxu0 %v323
    %1703 = vmatprep.subr.mxu0 0.0
    %1704 = vmatpush1.msra.mxu0 %v324
    %1705 = vmatprep.subr.mxu0 0.0
    %1706 = vmatpush1.msra.mxu0 0.0
    %1707 = vmatprep.subr.mxu0 0.0
    %1708 = vmatpush1.msra.mxu0 0.0
    %1709 = vmatprep.subr.mxu0 0.0
    %1710 = vmatpush1.msra.mxu0 0.0
    %1711 = vmatprep.subr.mxu0 0.0
    %1712 = vmatpush1.msra.mxu0 0.0
    %1713 = vmatprep.subr.mxu0 0.0
    %1714 = vmatpush1.msra.mxu0 0.0
    %1715 = vmatprep.subr.mxu0 0.0
    %1716 = vmatpush1.msra.mxu0 0.0
    %1717 = vmatprep.subr.mxu0 0.0
    %1718 = vmatpush1.msra.mxu0 0.0
    %1719 = vmatprep.subr.mxu0 0.0
    %1720 = vmatpush1.msra.mxu0 0.0
    %1721 = vmatprep.subr.mxu0 0.0
    %1722 = vmatpush1.msra.mxu0 0.0
    %1723 = vmatprep.subr.mxu0 0.0
    %1724 = vmatpush1.msra.mxu0 0.0
    %1725 = vmatprep.subr.mxu0 0.0
    %1726 = vmatpush1.msra.mxu0 0.0
    %1727 = vmatprep.subr.mxu0 0.0
    %1728 = vmatpush1.msra.mxu0 0.0
    %1729 = vmatprep.subr.mxu0 0.0
    %1730 = vmatpush1.msra.mxu0 0.0
    %1731 = vmatprep.subr.mxu0 0.0
    %1732 = vmatpush1.msra.mxu0 0.0
    %1733 = vmatprep.subr.mxu0 0.0
    %1734 = vmatpush1.msra.mxu0 0.0
    %1735 = vmatprep.subr.mxu0 0.0
    %1736 = vmatpush1.msra.mxu0 0.0
    %1737 = vmatprep.subr.mxu0 0.0
    %1738 = vmatpush1.msra.mxu0 0.0
    %1739 = vmatprep.subr.mxu0 0.0
    %1740 = vmatpush1.msra.mxu0 0.0
    %1741 = vmatprep.subr.mxu0 0.0
    %1742 = vmatpush1.msra.mxu0 0.0
    %1743 = vmatprep.subr.mxu0 0.0
    %1744 = vmatpush1.msra.mxu0 0.0
    %1745 = vmatprep.subr.mxu0 0.0
    %1746 = vmatpush1.msra.mxu0 0.0
    %1747 = vmatprep.subr.mxu0 0.0
    %1748 = vmatpush1.msra.mxu0 0.0
    %1749 = vmatprep.subr.mxu0 0.0
    %1750 = vmatpush1.msra.mxu0 0.0
    %1751 = vmatprep.subr.mxu0 0.0
    %1752 = vmatpush1.msra.mxu0 0.0
    %1753 = vmatprep.subr.mxu0 0.0
    %1754 = vmatpush1.msra.mxu0 0.0
    %1755 = vmatprep.subr.mxu0 0.0
    %1756 = vmatpush1.msra.mxu0 0.0
    %1757 = vmatprep.subr.mxu0 0.0
    %1758 = vmatpush1.msra.mxu0 0.0
    %1759 = vmatprep.subr.mxu0 0.0
    %1760 = vmatpush1.msra.mxu0 0.0
    %1761 = vmatprep.mubr.f32.mxu0 0.0
    %1762 = vmatmul.mubr.f32.gmra.mrb[0].mxu0 %v1692
    %v1763 = vpop.f32.mrb[0].mxu0
    %v1764 = vadd.f32 %v1689, %v1763
    %v1765 = vpop.f32.mrb[0].mxu0
    %1766 = vmatprep.mubr.f32.mxu0 0.0
    %1767 = vmatmul.mubr.f32.gmra.mrb[0].mxu0 %v1695
    %v1768 = vpop.f32.mrb[0].mxu0
    %v1769 = vadd.f32 %v1689, %v1768
    %v1770 = vpop.f32.mrb[0].mxu0
    %1771 = vdwg.mxu0
    %v1772 = vadd.f32 %v129, %v1764
    %v1773 = vadd.f32 %v134, %v1769
    %v1774 = vld [vmem:[%s5 + $0x7] sm:$0x1]
    %v1775 = vld [vmem:[%s5 + $0x8] sm:$0x1]
    %v1776 = vsel %vm55, %v1772, 0.0
    %1777 = vadd.xlane.f32.xlu0 %v1776
    %v1778 = vpop.xlane.xlu0 %1777
    %v1779 = vsel %vm55, %v1773, 0.0
    %1780 = vadd.xlane.f32.xlu0 %v1779
    %v1781 = vpop.xlane.xlu0 %1780
    %v1782 = vmul.f32 %v1772, %v1772
    %v1783 = vmul.f32 %v1773, %v1773
    %v1784 = vsel %vm55, %v1782, 0.0
    %1785 = vadd.xlane.f32.xlu0 %v1784
    %v1786 = vpop.xlane.xlu0 %1785
    %v1787 = vsel %vm55, %v1783, 0.0
    %1788 = vadd.xlane.f32.xlu0 %v1787
    %v1789 = vpop.xlane.xlu0 %1788
    %v1790 = vmul.f32 %v1778, 0.03125
    %v1791 = vmul.f32 %v1781, 0.03125
    %v1792 = vmul.f32 %v1790, %v1778
    %v1793 = vmul.f32 %v1791, %v1781
    %v1794 = vsub.f32 %v1786, %v1792
    %v1795 = vsub.f32 %v1789, %v1793
    %v1796 = vmul.f32 %v1794, 0.032258064
    %v1797 = vmul.f32 %v1795, 0.032258064
    %v1798 = vmax.f32 %v1796, 0.0
    %v1799 = vmax.f32 %v1797, 0.0
    %v1800 = vrsqrt.pop %v1798
    %v1801 = vmul.f32 %v1798, %v1800
    %vm1802 = vcmp.eq.f32.partialorder %v1798, inf
    %v1803 = vsel %vm1802, %v1798, %v1801
    %vm1804 = vcmp.eq.f32.partialorder %v1798, 0.0
    %v1805 = vand.u32 %v1798, 2147483648
    %v1806 = vsel %vm1804, %v1805, %v1803
    %v1807 = vrsqrt.pop %v1799
    %v1808 = vmul.f32 %v1799, %v1807
    %vm1809 = vcmp.eq.f32.partialorder %v1799, inf
    %v1810 = vsel %vm1809, %v1799, %v1808
    %vm1811 = vcmp.eq.f32.partialorder %v1799, 0.0
    %v1812 = vand.u32 %v1799, 2147483648
    %v1813 = vsel %vm1811, %v1812, %v1810
    %v1814 = vsub.f32 %v1772, %v1790
    %v1815 = vsub.f32 %v1773, %v1791
    %v1816 = vadd.f32 %v1806, 1e-12
    %v1817 = vadd.f32 %v1813, 1e-12
    %v1818 = vrcp.pop %v1816
    %v1819 = vmul.f32 %v1814, %v1818
    %v1820 = vrcp.pop %v1817
    %v1821 = vmul.f32 %v1815, %v1820
    %v1823 = vlaneseq
    %v1824 = vshrl.u32 %v1823, 7
    %v1825 = vsub.s32 0, %v1824
    %v1826 = vrot.slane %v1774, %v1825
    %v1828 = vmul.f32 %v1826, %v1819
    %v1829 = vmul.f32 %v1826, %v1821
    %v1831 = vlaneseq
    %v1832 = vshrl.u32 %v1831, 7
    %v1833 = vsub.s32 0, %v1832
    %v1834 = vrot.slane %v1775, %v1833
    %v1836 = vadd.f32 %v1828, %v1834
    %v1837 = vadd.f32 %v1829, %v1834
    %v1838 = vld [vmem:[#allocation2 + $0x18] sm:$0xff]
    %v1839 = vld [vmem:[#allocation2 + $0x90] sm:$0xff]
    %v1840 = vld [vmem:[#allocation2 + $0x108] sm:$0xff]
    %v1841 = vld [vmem:[#allocation2 + $0x180] sm:$0xff]
    %v1842 = vld [vmem:[%s5 + $0x3] sm:$0x1]
    %v1844 = vlaneseq
    %v1845 = vshrl.u32 %v1844, 7
    %v1846 = vsub.s32 0, %v1845
    %v1847 = vrot.slane %v1842, %v1846
    %v1850 = vsel %vm55, %v1836, 0
    %v1853 = vsel %vm55, %v1837, 0
    %1855 = vmatprep.subr.mxu0 0.0
    %1856 = vmatpush1.msra.mxu0 %v1838
    %1857 = vmatprep.subr.mxu0 0.0
    %1858 = vmatpush1.msra.mxu0 %v1839
    %1859 = vmatprep.subr.mxu0 0.0
    %1860 = vmatpush1.msra.mxu0 %v1840
    %1861 = vmatprep.subr.mxu0 0.0
    %1862 = vmatpush1.msra.mxu0 %v1841
    %1863 = vmatprep.subr.mxu0 0.0
    %1864 = vmatpush1.msra.mxu0 0.0
    %1865 = vmatprep.subr.mxu0 0.0
    %1866 = vmatpush1.msra.mxu0 0.0
    %1867 = vmatprep.subr.mxu0 0.0
    %1868 = vmatpush1.msra.mxu0 0.0
    %1869 = vmatprep.subr.mxu0 0.0
    %1870 = vmatpush1.msra.mxu0 0.0
    %1871 = vmatprep.subr.mxu0 0.0
    %1872 = vmatpush1.msra.mxu0 0.0
    %1873 = vmatprep.subr.mxu0 0.0
    %1874 = vmatpush1.msra.mxu0 0.0
    %1875 = vmatprep.subr.mxu0 0.0
    %1876 = vmatpush1.msra.mxu0 0.0
    %1877 = vmatprep.subr.mxu0 0.0
    %1878 = vmatpush1.msra.mxu0 0.0
    %1879 = vmatprep.subr.mxu0 0.0
    %1880 = vmatpush1.msra.mxu0 0.0
    %1881 = vmatprep.subr.mxu0 0.0
    %1882 = vmatpush1.msra.mxu0 0.0
    %1883 = vmatprep.subr.mxu0 0.0
    %1884 = vmatpush1.msra.mxu0 0.0
    %1885 = vmatprep.subr.mxu0 0.0
    %1886 = vmatpush1.msra.mxu0 0.0
    %1887 = vmatprep.subr.mxu0 0.0
    %1888 = vmatpush1.msra.mxu0 0.0
    %1889 = vmatprep.subr.mxu0 0.0
    %1890 = vmatpush1.msra.mxu0 0.0
    %1891 = vmatprep.subr.mxu0 0.0
    %1892 = vmatpush1.msra.mxu0 0.0
    %1893 = vmatprep.subr.mxu0 0.0
    %1894 = vmatpush1.msra.mxu0 0.0
    %1895 = vmatprep.subr.mxu0 0.0
    %1896 = vmatpush1.msra.mxu0 0.0
    %1897 = vmatprep.subr.mxu0 0.0
    %1898 = vmatpush1.msra.mxu0 0.0
    %1899 = vmatprep.subr.mxu0 0.0
    %1900 = vmatpush1.msra.mxu0 0.0
    %1901 = vmatprep.subr.mxu0 0.0
    %1902 = vmatpush1.msra.mxu0 0.0
    %1903 = vmatprep.subr.mxu0 0.0
    %1904 = vmatpush1.msra.mxu0 0.0
    %1905 = vmatprep.subr.mxu0 0.0
    %1906 = vmatpush1.msra.mxu0 0.0
    %1907 = vmatprep.subr.mxu0 0.0
    %1908 = vmatpush1.msra.mxu0 0.0
    %1909 = vmatprep.subr.mxu0 0.0
    %1910 = vmatpush1.msra.mxu0 0.0
    %1911 = vmatprep.subr.mxu0 0.0
    %1912 = vmatpush1.msra.mxu0 0.0
    %1913 = vmatprep.subr.mxu0 0.0
    %1914 = vmatpush1.msra.mxu0 0.0
    %1915 = vmatprep.subr.mxu0 0.0
    %1916 = vmatpush1.msra.mxu0 0.0
    %1917 = vmatprep.subr.mxu0 0.0
    %1918 = vmatpush1.msra.mxu0 0.0
    %1919 = vmatprep.mubr.f32.mxu0 0.0
    %1920 = vmatmul.mubr.f32.gmra.mrb[0].mxu0 %v1850
    %v1921 = vpop.f32.mrb[0].mxu0
    %v1922 = vadd.f32 %v1847, %v1921
    %v1923 = vpop.f32.mrb[0].mxu0
    %1924 = vmatprep.mubr.f32.mxu0 0.0
    %1925 = vmatmul.mubr.f32.gmra.mrb[0].mxu0 %v1853
    %v1926 = vpop.f32.mrb[0].mxu0
    %v1927 = vadd.f32 %v1847, %v1926
    %v1928 = vpop.f32.mrb[0].mxu0
    %1929 = vdwg.mxu0
    %v1930 = vld [vmem:[#allocation2 + $0x20] sm:$0xff]
    %v1931 = vld [vmem:[#allocation2 + $0x98] sm:$0xff]
    %v1932 = vld [vmem:[#allocation2 + $0x110] sm:$0xff]
    %v1933 = vld [vmem:[#allocation2 + $0x188] sm:$0xff]
    %v1934 = vld [vmem:[%s5 + $0x4] sm:$0x1]
    %1937 = vrot.lane.b32.xlu0 %v1922, 120
    %v1938 = vpop.permute.xlu0 %1937
    %1939 = vrot.lane.b32.xlu0 %v1927, 120
    %v1940 = vpop.permute.xlu0 %1939
    %1941 = vrot.lane.b32.xlu0 %v1922, 112
    %v1942 = vpop.permute.xlu0 %1941
    %1943 = vrot.lane.b32.xlu0 %v1927, 112
    %v1944 = vpop.permute.xlu0 %1943
    %1945 = vrot.lane.b32.xlu0 %v1922, 104
    %v1946 = vpop.permute.xlu0 %1945
    %1947 = vrot.lane.b32.xlu0 %v1927, 104
    %v1948 = vpop.permute.xlu0 %1947
    %1951 = vrot.lane.b32.xlu0 %v221, 120
    %v1952 = vpop.permute.xlu0 %1951
    %1953 = vrot.lane.b32.xlu0 %v226, 120
    %v1954 = vpop.permute.xlu0 %1953
    %1955 = vrot.lane.b32.xlu0 %v221, 112
    %v1956 = vpop.permute.xlu0 %1955
    %1957 = vrot.lane.b32.xlu0 %v226, 112
    %v1958 = vpop.permute.xlu0 %1957
    %1959 = vrot.lane.b32.xlu0 %v221, 104
    %v1960 = vpop.permute.xlu0 %1959
    %1961 = vrot.lane.b32.xlu0 %v226, 104
    %v1962 = vpop.permute.xlu0 %1961
    %v1963 = vsel %vm342, %v1922, 0
    %v1965 = vsel %vm342, %v221, 0
    %1967 = vmatprep.subr.mxu0 0.0
    %1968 = vmatpush1.xpose.msra.mxu0 %v1965
    %1969 = vmatprep.subr.mxu0 0.0
    %1970 = vmatpush1.xpose.msra.mxu0 0.0
    %1971 = vmatprep.subr.mxu0 0.0
    %1972 = vmatpush1.xpose.msra.mxu0 0.0
    %1973 = vmatprep.subr.mxu0 0.0
    %1974 = vmatpush1.xpose.msra.mxu0 0.0
    %1975 = vmatprep.subr.mxu0 0.0
    %1976 = vmatpush1.xpose.msra.mxu0 0.0
    %1977 = vmatprep.subr.mxu0 0.0
    %1978 = vmatpush1.xpose.msra.mxu0 0.0
    %1979 = vmatprep.subr.mxu0 0.0
    %1980 = vmatpush1.xpose.msra.mxu0 0.0
    %1981 = vmatprep.subr.mxu0 0.0
    %1982 = vmatpush1.xpose.msra.mxu0 0.0
    %1983 = vmatprep.subr.mxu0 0.0
    %1984 = vmatpush1.xpose.msra.mxu0 0.0
    %1985 = vmatprep.subr.mxu0 0.0
    %1986 = vmatpush1.xpose.msra.mxu0 0.0
    %1987 = vmatprep.subr.mxu0 0.0
    %1988 = vmatpush1.xpose.msra.mxu0 0.0
    %1989 = vmatprep.subr.mxu0 0.0
    %1990 = vmatpush1.xpose.msra.mxu0 0.0
    %1991 = vmatprep.subr.mxu0 0.0
    %1992 = vmatpush1.xpose.msra.mxu0 0.0
    %1993 = vmatprep.subr.mxu0 0.0
    %1994 = vmatpush1.xpose.msra.mxu0 0.0
    %1995 = vmatprep.subr.mxu0 0.0
    %1996 = vmatpush1.xpose.msra.mxu0 0.0
    %1997 = vmatprep.subr.mxu0 0.0
    %1998 = vmatpush1.xpose.msra.mxu0 0.0
    %1999 = vmatprep.subr.mxu0 0.0
    %2000 = vmatpush1.xpose.msra.mxu0 0.0
    %2001 = vmatprep.subr.mxu0 0.0
    %2002 = vmatpush1.xpose.msra.mxu0 0.0
    %2003 = vmatprep.subr.mxu0 0.0
    %2004 = vmatpush1.xpose.msra.mxu0 0.0
    %2005 = vmatprep.subr.mxu0 0.0
    %2006 = vmatpush1.xpose.msra.mxu0 0.0
    %2007 = vmatprep.subr.mxu0 0.0
    %2008 = vmatpush1.xpose.msra.mxu0 0.0
    %2009 = vmatprep.subr.mxu0 0.0
    %2010 = vmatpush1.xpose.msra.mxu0 0.0
    %2011 = vmatprep.subr.mxu0 0.0
    %2012 = vmatpush1.xpose.msra.mxu0 0.0
    %2013 = vmatprep.subr.mxu0 0.0
    %2014 = vmatpush1.xpose.msra.mxu0 0.0
    %2015 = vmatprep.subr.mxu0 0.0
    %2016 = vmatpush1.xpose.msra.mxu0 0.0
    %2017 = vmatprep.subr.mxu0 0.0
    %2018 = vmatpush1.xpose.msra.mxu0 0.0
    %2019 = vmatprep.subr.mxu0 0.0
    %2020 = vmatpush1.xpose.msra.mxu0 0.0
    %2021 = vmatprep.subr.mxu0 0.0
    %2022 = vmatpush1.xpose.msra.mxu0 0.0
    %2023 = vmatprep.subr.mxu0 0.0
    %2024 = vmatpush1.xpose.msra.mxu0 0.0
    %2025 = vmatprep.subr.mxu0 0.0
    %2026 = vmatpush1.xpose.msra.mxu0 0.0
    %2027 = vmatprep.subr.mxu0 0.0
    %2028 = vmatpush1.xpose.msra.mxu0 0.0
    %2029 = vmatprep.subr.mxu0 0.0
    %2030 = vmatpush1.xpose.msra.mxu0 0.0
    %2031 = vmatprep.mubr.f32.mxu0 0.0
    %2032 = vmatmul.mubr.f32.gmra.mrb[0].mxu0 %v1963
    %v2033 = vpop.f32.mrb[0].mxu0
    %v2034 = vadd.f32 0.0, %v2033
    %v2035 = vpop.f32.mrb[0].mxu0
    %2036 = vdwg.mxu0
    %v2037 = vsel %vm342, %v1927, 0
    %v2039 = vsel %vm342, %v226, 0
    %2041 = vmatprep.subr.mxu0 0.0
    %2042 = vmatpush1.xpose.msra.mxu0 %v2039
    %2043 = vmatprep.subr.mxu0 0.0
    %2044 = vmatpush1.xpose.msra.mxu0 0.0
    %2045 = vmatprep.subr.mxu0 0.0
    %2046 = vmatpush1.xpose.msra.mxu0 0.0
    %2047 = vmatprep.subr.mxu0 0.0
    %2048 = vmatpush1.xpose.msra.mxu0 0.0
    %2049 = vmatprep.subr.mxu0 0.0
    %2050 = vmatpush1.xpose.msra.mxu0 0.0
    %2051 = vmatprep.subr.mxu0 0.0
    %2052 = vmatpush1.xpose.msra.mxu0 0.0
    %2053 = vmatprep.subr.mxu0 0.0
    %2054 = vmatpush1.xpose.msra.mxu0 0.0
    %2055 = vmatprep.subr.mxu0 0.0
    %2056 = vmatpush1.xpose.msra.mxu0 0.0
    %2057 = vmatprep.subr.mxu0 0.0
    %2058 = vmatpush1.xpose.msra.mxu0 0.0
    %2059 = vmatprep.subr.mxu0 0.0
    %2060 = vmatpush1.xpose.msra.mxu0 0.0
    %2061 = vmatprep.subr.mxu0 0.0
    %2062 = vmatpush1.xpose.msra.mxu0 0.0
    %2063 = vmatprep.subr.mxu0 0.0
    %2064 = vmatpush1.xpose.msra.mxu0 0.0
    %2065 = vmatprep.subr.mxu0 0.0
    %2066 = vmatpush1.xpose.msra.mxu0 0.0
    %2067 = vmatprep.subr.mxu0 0.0
    %2068 = vmatpush1.xpose.msra.mxu0 0.0
    %2069 = vmatprep.subr.mxu0 0.0
    %2070 = vmatpush1.xpose.msra.mxu0 0.0
    %2071 = vmatprep.subr.mxu0 0.0
    %2072 = vmatpush1.xpose.msra.mxu0 0.0
    %2073 = vmatprep.subr.mxu0 0.0
    %2074 = vmatpush1.xpose.msra.mxu0 0.0
    %2075 = vmatprep.subr.mxu0 0.0
    %2076 = vmatpush1.xpose.msra.mxu0 0.0
    %2077 = vmatprep.subr.mxu0 0.0
    %2078 = vmatpush1.xpose.msra.mxu0 0.0
    %2079 = vmatprep.subr.mxu0 0.0
    %2080 = vmatpush1.xpose.msra.mxu0 0.0
    %2081 = vmatprep.subr.mxu0 0.0
    %2082 = vmatpush1.xpose.msra.mxu0 0.0
    %2083 = vmatprep.subr.mxu0 0.0
    %2084 = vmatpush1.xpose.msra.mxu0 0.0
    %2085 = vmatprep.subr.mxu0 0.0
    %2086 = vmatpush1.xpose.msra.mxu0 0.0
    %2087 = vmatprep.subr.mxu0 0.0
    %2088 = vmatpush1.xpose.msra.mxu0 0.0
    %2089 = vmatprep.subr.mxu0 0.0
    %2090 = vmatpush1.xpose.msra.mxu0 0.0
    %2091 = vmatprep.subr.mxu0 0.0
    %2092 = vmatpush1.xpose.msra.mxu0 0.0
    %2093 = vmatprep.subr.mxu0 0.0
    %2094 = vmatpush1.xpose.msra.mxu0 0.0
    %2095 = vmatprep.subr.mxu0 0.0
    %2096 = vmatpush1.xpose.msra.mxu0 0.0
    %2097 = vmatprep.subr.mxu0 0.0
    %2098 = vmatpush1.xpose.msra.mxu0 0.0
    %2099 = vmatprep.subr.mxu0 0.0
    %2100 = vmatpush1.xpose.msra.mxu0 0.0
    %2101 = vmatprep.subr.mxu0 0.0
    %2102 = vmatpush1.xpose.msra.mxu0 0.0
    %2103 = vmatprep.subr.mxu0 0.0
    %2104 = vmatpush1.xpose.msra.mxu0 0.0
    %2105 = vmatprep.mubr.f32.mxu0 0.0
    %2106 = vmatmul.mubr.f32.gmra.mrb[0].mxu0 %v2037
    %v2107 = vpop.f32.mrb[0].mxu0
    %v2108 = vadd.f32 0.0, %v2107
    %v2109 = vpop.f32.mrb[0].mxu0
    %2110 = vdwg.mxu0
    %v2111 = vsel %vm342, %v1938, 0
    %v2113 = vsel %vm342, %v1952, 0
    %2115 = vmatprep.subr.mxu0 0.0
    %2116 = vmatpush1.xpose.msra.mxu0 %v2113
    %2117 = vmatprep.subr.mxu0 0.0
    %2118 = vmatpush1.xpose.msra.mxu0 0.0
    %2119 = vmatprep.subr.mxu0 0.0
    %2120 = vmatpush1.xpose.msra.mxu0 0.0
    %2121 = vmatprep.subr.mxu0 0.0
    %2122 = vmatpush1.xpose.msra.mxu0 0.0
    %2123 = vmatprep.subr.mxu0 0.0
    %2124 = vmatpush1.xpose.msra.mxu0 0.0
    %2125 = vmatprep.subr.mxu0 0.0
    %2126 = vmatpush1.xpose.msra.mxu0 0.0
    %2127 = vmatprep.subr.mxu0 0.0
    %2128 = vmatpush1.xpose.msra.mxu0 0.0
    %2129 = vmatprep.subr.mxu0 0.0
    %2130 = vmatpush1.xpose.msra.mxu0 0.0
    %2131 = vmatprep.subr.mxu0 0.0
    %2132 = vmatpush1.xpose.msra.mxu0 0.0
    %2133 = vmatprep.subr.mxu0 0.0
    %2134 = vmatpush1.xpose.msra.mxu0 0.0
    %2135 = vmatprep.subr.mxu0 0.0
    %2136 = vmatpush1.xpose.msra.mxu0 0.0
    %2137 = vmatprep.subr.mxu0 0.0
    %2138 = vmatpush1.xpose.msra.mxu0 0.0
    %2139 = vmatprep.subr.mxu0 0.0
    %2140 = vmatpush1.xpose.msra.mxu0 0.0
    %2141 = vmatprep.subr.mxu0 0.0
    %2142 = vmatpush1.xpose.msra.mxu0 0.0
    %2143 = vmatprep.subr.mxu0 0.0
    %2144 = vmatpush1.xpose.msra.mxu0 0.0
    %2145 = vmatprep.subr.mxu0 0.0
    %2146 = vmatpush1.xpose.msra.mxu0 0.0
    %2147 = vmatprep.subr.mxu0 0.0
    %2148 = vmatpush1.xpose.msra.mxu0 0.0
    %2149 = vmatprep.subr.mxu0 0.0
    %2150 = vmatpush1.xpose.msra.mxu0 0.0
    %2151 = vmatprep.subr.mxu0 0.0
    %2152 = vmatpush1.xpose.msra.mxu0 0.0
    %2153 = vmatprep.subr.mxu0 0.0
    %2154 = vmatpush1.xpose.msra.mxu0 0.0
    %2155 = vmatprep.subr.mxu0 0.0
    %2156 = vmatpush1.xpose.msra.mxu0 0.0
    %2157 = vmatprep.subr.mxu0 0.0
    %2158 = vmatpush1.xpose.msra.mxu0 0.0
    %2159 = vmatprep.subr.mxu0 0.0
    %2160 = vmatpush1.xpose.msra.mxu0 0.0
    %2161 = vmatprep.subr.mxu0 0.0
    %2162 = vmatpush1.xpose.msra.mxu0 0.0
    %2163 = vmatprep.subr.mxu0 0.0
    %2164 = vmatpush1.xpose.msra.mxu0 0.0
    %2165 = vmatprep.subr.mxu0 0.0
    %2166 = vmatpush1.xpose.msra.mxu0 0.0
    %2167 = vmatprep.subr.mxu0 0.0
    %2168 = vmatpush1.xpose.msra.mxu0 0.0
    %2169 = vmatprep.subr.mxu0 0.0
    %2170 = vmatpush1.xpose.msra.mxu0 0.0
    %2171 = vmatprep.subr.mxu0 0.0
    %2172 = vmatpush1.xpose.msra.mxu0 0.0
    %2173 = vmatprep.subr.mxu0 0.0
    %2174 = vmatpush1.xpose.msra.mxu0 0.0
    %2175 = vmatprep.subr.mxu0 0.0
    %2176 = vmatpush1.xpose.msra.mxu0 0.0
    %2177 = vmatprep.subr.mxu0 0.0
    %2178 = vmatpush1.xpose.msra.mxu0 0.0
    %2179 = vmatprep.mubr.f32.mxu0 0.0
    %2180 = vmatmul.mubr.f32.gmra.mrb[0].mxu0 %v2111
    %v2181 = vpop.f32.mrb[0].mxu0
    %v2182 = vadd.f32 0.0, %v2181
    %v2183 = vpop.f32.mrb[0].mxu0
    %2184 = vdwg.mxu0
    %v2185 = vsel %vm342, %v1940, 0
    %v2187 = vsel %vm342, %v1954, 0
    %2189 = vmatprep.subr.mxu0 0.0
    %2190 = vmatpush1.xpose.msra.mxu0 %v2187
    %2191 = vmatprep.subr.mxu0 0.0
    %2192 = vmatpush1.xpose.msra.mxu0 0.0
    %2193 = vmatprep.subr.mxu0 0.0
    %2194 = vmatpush1.xpose.msra.mxu0 0.0
    %2195 = vmatprep.subr.mxu0 0.0
    %2196 = vmatpush1.xpose.msra.mxu0 0.0
    %2197 = vmatprep.subr.mxu0 0.0
    %2198 = vmatpush1.xpose.msra.mxu0 0.0
    %2199 = vmatprep.subr.mxu0 0.0
    %2200 = vmatpush1.xpose.msra.mxu0 0.0
    %2201 = vmatprep.subr.mxu0 0.0
    %2202 = vmatpush1.xpose.msra.mxu0 0.0
    %2203 = vmatprep.subr.mxu0 0.0
    %2204 = vmatpush1.xpose.msra.mxu0 0.0
    %2205 = vmatprep.subr.mxu0 0.0
    %2206 = vmatpush1.xpose.msra.mxu0 0.0
    %2207 = vmatprep.subr.mxu0 0.0
    %2208 = vmatpush1.xpose.msra.mxu0 0.0
    %2209 = vmatprep.subr.mxu0 0.0
    %2210 = vmatpush1.xpose.msra.mxu0 0.0
    %2211 = vmatprep.subr.mxu0 0.0
    %2212 = vmatpush1.xpose.msra.mxu0 0.0
    %2213 = vmatprep.subr.mxu0 0.0
    %2214 = vmatpush1.xpose.msra.mxu0 0.0
    %2215 = vmatprep.subr.mxu0 0.0
    %2216 = vmatpush1.xpose.msra.mxu0 0.0
    %2217 = vmatprep.subr.mxu0 0.0
    %2218 = vmatpush1.xpose.msra.mxu0 0.0
    %2219 = vmatprep.subr.mxu0 0.0
    %2220 = vmatpush1.xpose.msra.mxu0 0.0
    %2221 = vmatprep.subr.mxu0 0.0
    %2222 = vmatpush1.xpose.msra.mxu0 0.0
    %2223 = vmatprep.subr.mxu0 0.0
    %2224 = vmatpush1.xpose.msra.mxu0 0.0
    %2225 = vmatprep.subr.mxu0 0.0
    %2226 = vmatpush1.xpose.msra.mxu0 0.0
    %2227 = vmatprep.subr.mxu0 0.0
    %2228 = vmatpush1.xpose.msra.mxu0 0.0
    %2229 = vmatprep.subr.mxu0 0.0
    %2230 = vmatpush1.xpose.msra.mxu0 0.0
    %2231 = vmatprep.subr.mxu0 0.0
    %2232 = vmatpush1.xpose.msra.mxu0 0.0
    %2233 = vmatprep.subr.mxu0 0.0
    %2234 = vmatpush1.xpose.msra.mxu0 0.0
    %2235 = vmatprep.subr.mxu0 0.0
    %2236 = vmatpush1.xpose.msra.mxu0 0.0
    %2237 = vmatprep.subr.mxu0 0.0
    %2238 = vmatpush1.xpose.msra.mxu0 0.0
    %2239 = vmatprep.subr.mxu0 0.0
    %2240 = vmatpush1.xpose.msra.mxu0 0.0
    %2241 = vmatprep.subr.mxu0 0.0
    %2242 = vmatpush1.xpose.msra.mxu0 0.0
    %2243 = vmatprep.subr.mxu0 0.0
    %2244 = vmatpush1.xpose.msra.mxu0 0.0
    %2245 = vmatprep.subr.mxu0 0.0
    %2246 = vmatpush1.xpose.msra.mxu0 0.0
    %2247 = vmatprep.subr.mxu0 0.0
    %2248 = vmatpush1.xpose.msra.mxu0 0.0
    %2249 = vmatprep.subr.mxu0 0.0
    %2250 = vmatpush1.xpose.msra.mxu0 0.0
    %2251 = vmatprep.subr.mxu0 0.0
    %2252 = vmatpush1.xpose.msra.mxu0 0.0
    %2253 = vmatprep.mubr.f32.mxu0 0.0
    %2254 = vmatmul.mubr.f32.gmra.mrb[0].mxu0 %v2185
    %v2255 = vpop.f32.mrb[0].mxu0
    %v2256 = vadd.f32 0.0, %v2255
    %v2257 = vpop.f32.mrb[0].mxu0
    %2258 = vdwg.mxu0
    %v2259 = vsel %vm342, %v1942, 0
    %v2261 = vsel %vm342, %v1956, 0
    %2263 = vmatprep.subr.mxu0 0.0
    %2264 = vmatpush1.xpose.msra.mxu0 %v2261
    %2265 = vmatprep.subr.mxu0 0.0
    %2266 = vmatpush1.xpose.msra.mxu0 0.0
    %2267 = vmatprep.subr.mxu0 0.0
    %2268 = vmatpush1.xpose.msra.mxu0 0.0
    %2269 = vmatprep.subr.mxu0 0.0
    %2270 = vmatpush1.xpose.msra.mxu0 0.0
    %2271 = vmatprep.subr.mxu0 0.0
    %2272 = vmatpush1.xpose.msra.mxu0 0.0
    %2273 = vmatprep.subr.mxu0 0.0
    %2274 = vmatpush1.xpose.msra.mxu0 0.0
    %2275 = vmatprep.subr.mxu0 0.0
    %2276 = vmatpush1.xpose.msra.mxu0 0.0
    %2277 = vmatprep.subr.mxu0 0.0
    %2278 = vmatpush1.xpose.msra.mxu0 0.0
    %2279 = vmatprep.subr.mxu0 0.0
    %2280 = vmatpush1.xpose.msra.mxu0 0.0
    %2281 = vmatprep.subr.mxu0 0.0
    %2282 = vmatpush1.xpose.msra.mxu0 0.0
    %2283 = vmatprep.subr.mxu0 0.0
    %2284 = vmatpush1.xpose.msra.mxu0 0.0
    %2285 = vmatprep.subr.mxu0 0.0
    %2286 = vmatpush1.xpose.msra.mxu0 0.0
    %2287 = vmatprep.subr.mxu0 0.0
    %2288 = vmatpush1.xpose.msra.mxu0 0.0
    %2289 = vmatprep.subr.mxu0 0.0
    %2290 = vmatpush1.xpose.msra.mxu0 0.0
    %2291 = vmatprep.subr.mxu0 0.0
    %2292 = vmatpush1.xpose.msra.mxu0 0.0
    %2293 = vmatprep.subr.mxu0 0.0
    %2294 = vmatpush1.xpose.msra.mxu0 0.0
    %2295 = vmatprep.subr.mxu0 0.0
    %2296 = vmatpush1.xpose.msra.mxu0 0.0
    %2297 = vmatprep.subr.mxu0 0.0
    %2298 = vmatpush1.xpose.msra.mxu0 0.0
    %2299 = vmatprep.subr.mxu0 0.0
    %2300 = vmatpush1.xpose.msra.mxu0 0.0
    %2301 = vmatprep.subr.mxu0 0.0
    %2302 = vmatpush1.xpose.msra.mxu0 0.0
    %2303 = vmatprep.subr.mxu0 0.0
    %2304 = vmatpush1.xpose.msra.mxu0 0.0
    %2305 = vmatprep.subr.mxu0 0.0
    %2306 = vmatpush1.xpose.msra.mxu0 0.0
    %2307 = vmatprep.subr.mxu0 0.0
    %2308 = vmatpush1.xpose.msra.mxu0 0.0
    %2309 = vmatprep.subr.mxu0 0.0
    %2310 = vmatpush1.xpose.msra.mxu0 0.0
    %2311 = vmatprep.subr.mxu0 0.0
    %2312 = vmatpush1.xpose.msra.mxu0 0.0
    %2313 = vmatprep.subr.mxu0 0.0
    %2314 = vmatpush1.xpose.msra.mxu0 0.0
    %2315 = vmatprep.subr.mxu0 0.0
    %2316 = vmatpush1.xpose.msra.mxu0 0.0
    %2317 = vmatprep.subr.mxu0 0.0
    %2318 = vmatpush1.xpose.msra.mxu0 0.0
    %2319 = vmatprep.subr.mxu0 0.0
    %2320 = vmatpush1.xpose.msra.mxu0 0.0
    %2321 = vmatprep.subr.mxu0 0.0
    %2322 = vmatpush1.xpose.msra.mxu0 0.0
    %2323 = vmatprep.subr.mxu0 0.0
    %2324 = vmatpush1.xpose.msra.mxu0 0.0
    %2325 = vmatprep.subr.mxu0 0.0
    %2326 = vmatpush1.xpose.msra.mxu0 0.0
    %2327 = vmatprep.mubr.f32.mxu0 0.0
    %2328 = vmatmul.mubr.f32.gmra.mrb[0].mxu0 %v2259
    %v2329 = vpop.f32.mrb[0].mxu0
    %v2330 = vadd.f32 0.0, %v2329
    %v2331 = vpop.f32.mrb[0].mxu0
    %2332 = vdwg.mxu0
    %v2333 = vsel %vm342, %v1944, 0
    %v2335 = vsel %vm342, %v1958, 0
    %2337 = vmatprep.subr.mxu0 0.0
    %2338 = vmatpush1.xpose.msra.mxu0 %v2335
    %2339 = vmatprep.subr.mxu0 0.0
    %2340 = vmatpush1.xpose.msra.mxu0 0.0
    %2341 = vmatprep.subr.mxu0 0.0
    %2342 = vmatpush1.xpose.msra.mxu0 0.0
    %2343 = vmatprep.subr.mxu0 0.0
    %2344 = vmatpush1.xpose.msra.mxu0 0.0
    %2345 = vmatprep.subr.mxu0 0.0
    %2346 = vmatpush1.xpose.msra.mxu0 0.0
    %2347 = vmatprep.subr.mxu0 0.0
    %2348 = vmatpush1.xpose.msra.mxu0 0.0
    %2349 = vmatprep.subr.mxu0 0.0
    %2350 = vmatpush1.xpose.msra.mxu0 0.0
    %2351 = vmatprep.subr.mxu0 0.0
    %2352 = vmatpush1.xpose.msra.mxu0 0.0
    %2353 = vmatprep.subr.mxu0 0.0
    %2354 = vmatpush1.xpose.msra.mxu0 0.0
    %2355 = vmatprep.subr.mxu0 0.0
    %2356 = vmatpush1.xpose.msra.mxu0 0.0
    %2357 = vmatprep.subr.mxu0 0.0
    %2358 = vmatpush1.xpose.msra.mxu0 0.0
    %2359 = vmatprep.subr.mxu0 0.0
    %2360 = vmatpush1.xpose.msra.mxu0 0.0
    %2361 = vmatprep.subr.mxu0 0.0
    %2362 = vmatpush1.xpose.msra.mxu0 0.0
    %2363 = vmatprep.subr.mxu0 0.0
    %2364 = vmatpush1.xpose.msra.mxu0 0.0
    %2365 = vmatprep.subr.mxu0 0.0
    %2366 = vmatpush1.xpose.msra.mxu0 0.0
    %2367 = vmatprep.subr.mxu0 0.0
    %2368 = vmatpush1.xpose.msra.mxu0 0.0
    %2369 = vmatprep.subr.mxu0 0.0
    %2370 = vmatpush1.xpose.msra.mxu0 0.0
    %2371 = vmatprep.subr.mxu0 0.0
    %2372 = vmatpush1.xpose.msra.mxu0 0.0
    %2373 = vmatprep.subr.mxu0 0.0
    %2374 = vmatpush1.xpose.msra.mxu0 0.0
    %2375 = vmatprep.subr.mxu0 0.0
    %2376 = vmatpush1.xpose.msra.mxu0 0.0
    %2377 = vmatprep.subr.mxu0 0.0
    %2378 = vmatpush1.xpose.msra.mxu0 0.0
    %2379 = vmatprep.subr.mxu0 0.0
    %2380 = vmatpush1.xpose.msra.mxu0 0.0
    %2381 = vmatprep.subr.mxu0 0.0
    %2382 = vmatpush1.xpose.msra.mxu0 0.0
    %2383 = vmatprep.subr.mxu0 0.0
    %2384 = vmatpush1.xpose.msra.mxu0 0.0
    %2385 = vmatprep.subr.mxu0 0.0
    %2386 = vmatpush1.xpose.msra.mxu0 0.0
    %2387 = vmatprep.subr.mxu0 0.0
    %2388 = vmatpush1.xpose.msra.mxu0 0.0
    %2389 = vmatprep.subr.mxu0 0.0
    %2390 = vmatpush1.xpose.msra.mxu0 0.0
    %2391 = vmatprep.subr.mxu0 0.0
    %2392 = vmatpush1.xpose.msra.mxu0 0.0
    %2393 = vmatprep.subr.mxu0 0.0
    %2394 = vmatpush1.xpose.msra.mxu0 0.0
    %2395 = vmatprep.subr.mxu0 0.0
    %2396 = vmatpush1.xpose.msra.mxu0 0.0
    %2397 = vmatprep.subr.mxu0 0.0
    %2398 = vmatpush1.xpose.msra.mxu0 0.0
    %2399 = vmatprep.subr.mxu0 0.0
    %2400 = vmatpush1.xpose.msra.mxu0 0.0
    %2401 = vmatprep.mubr.f32.mxu0 0.0
    %2402 = vmatmul.mubr.f32.gmra.mrb[0].mxu0 %v2333
    %v2403 = vpop.f32.mrb[0].mxu0
    %v2404 = vadd.f32 0.0, %v2403
    %v2405 = vpop.f32.mrb[0].mxu0
    %2406 = vdwg.mxu0
    %v2407 = vsel %vm342, %v1946, 0
    %v2409 = vsel %vm342, %v1960, 0
    %2411 = vmatprep.subr.mxu0 0.0
    %2412 = vmatpush1.xpose.msra.mxu0 %v2409
    %2413 = vmatprep.subr.mxu0 0.0
    %2414 = vmatpush1.xpose.msra.mxu0 0.0
    %2415 = vmatprep.subr.mxu0 0.0
    %2416 = vmatpush1.xpose.msra.mxu0 0.0
    %2417 = vmatprep.subr.mxu0 0.0
    %2418 = vmatpush1.xpose.msra.mxu0 0.0
    %2419 = vmatprep.subr.mxu0 0.0
    %2420 = vmatpush1.xpose.msra.mxu0 0.0
    %2421 = vmatprep.subr.mxu0 0.0
    %2422 = vmatpush1.xpose.msra.mxu0 0.0
    %2423 = vmatprep.subr.mxu0 0.0
    %2424 = vmatpush1.xpose.msra.mxu0 0.0
    %2425 = vmatprep.subr.mxu0 0.0
    %2426 = vmatpush1.xpose.msra.mxu0 0.0
    %2427 = vmatprep.subr.mxu0 0.0
    %2428 = vmatpush1.xpose.msra.mxu0 0.0
    %2429 = vmatprep.subr.mxu0 0.0
    %2430 = vmatpush1.xpose.msra.mxu0 0.0
    %2431 = vmatprep.subr.mxu0 0.0
    %2432 = vmatpush1.xpose.msra.mxu0 0.0
    %2433 = vmatprep.subr.mxu0 0.0
    %2434 = vmatpush1.xpose.msra.mxu0 0.0
    %2435 = vmatprep.subr.mxu0 0.0
    %2436 = vmatpush1.xpose.msra.mxu0 0.0
    %2437 = vmatprep.subr.mxu0 0.0
    %2438 = vmatpush1.xpose.msra.mxu0 0.0
    %2439 = vmatprep.subr.mxu0 0.0
    %2440 = vmatpush1.xpose.msra.mxu0 0.0
    %2441 = vmatprep.subr.mxu0 0.0
    %2442 = vmatpush1.xpose.msra.mxu0 0.0
    %2443 = vmatprep.subr.mxu0 0.0
    %2444 = vmatpush1.xpose.msra.mxu0 0.0
    %2445 = vmatprep.subr.mxu0 0.0
    %2446 = vmatpush1.xpose.msra.mxu0 0.0
    %2447 = vmatprep.subr.mxu0 0.0
    %2448 = vmatpush1.xpose.msra.mxu0 0.0
    %2449 = vmatprep.subr.mxu0 0.0
    %2450 = vmatpush1.xpose.msra.mxu0 0.0
    %2451 = vmatprep.subr.mxu0 0.0
    %2452 = vmatpush1.xpose.msra.mxu0 0.0
    %2453 = vmatprep.subr.mxu0 0.0
    %2454 = vmatpush1.xpose.msra.mxu0 0.0
    %2455 = vmatprep.subr.mxu0 0.0
    %2456 = vmatpush1.xpose.msra.mxu0 0.0
    %2457 = vmatprep.subr.mxu0 0.0
    %2458 = vmatpush1.xpose.msra.mxu0 0.0
    %2459 = vmatprep.subr.mxu0 0.0
    %2460 = vmatpush1.xpose.msra.mxu0 0.0
    %2461 = vmatprep.subr.mxu0 0.0
    %2462 = vmatpush1.xpose.msra.mxu0 0.0
    %2463 = vmatprep.subr.mxu0 0.0
    %2464 = vmatpush1.xpose.msra.mxu0 0.0
    %2465 = vmatprep.subr.mxu0 0.0
    %2466 = vmatpush1.xpose.msra.mxu0 0.0
    %2467 = vmatprep.subr.mxu0 0.0
    %2468 = vmatpush1.xpose.msra.mxu0 0.0
    %2469 = vmatprep.subr.mxu0 0.0
    %2470 = vmatpush1.xpose.msra.mxu0 0.0
    %2471 = vmatprep.subr.mxu0 0.0
    %2472 = vmatpush1.xpose.msra.mxu0 0.0
    %2473 = vmatprep.subr.mxu0 0.0
    %2474 = vmatpush1.xpose.msra.mxu0 0.0
    %2475 = vmatprep.mubr.f32.mxu0 0.0
    %2476 = vmatmul.mubr.f32.gmra.mrb[0].mxu0 %v2407
    %v2477 = vpop.f32.mrb[0].mxu0
    %v2478 = vadd.f32 0.0, %v2477
    %v2479 = vpop.f32.mrb[0].mxu0
    %2480 = vdwg.mxu0
    %v2481 = vsel %vm342, %v1948, 0
    %v2483 = vsel %vm342, %v1962, 0
    %2485 = vmatprep.subr.mxu0 0.0
    %2486 = vmatpush1.xpose.msra.mxu0 %v2483
    %2487 = vmatprep.subr.mxu0 0.0
    %2488 = vmatpush1.xpose.msra.mxu0 0.0
    %2489 = vmatprep.subr.mxu0 0.0
    %2490 = vmatpush1.xpose.msra.mxu0 0.0
    %2491 = vmatprep.subr.mxu0 0.0
    %2492 = vmatpush1.xpose.msra.mxu0 0.0
    %2493 = vmatprep.subr.mxu0 0.0
    %2494 = vmatpush1.xpose.msra.mxu0 0.0
    %2495 = vmatprep.subr.mxu0 0.0
    %2496 = vmatpush1.xpose.msra.mxu0 0.0
    %2497 = vmatprep.subr.mxu0 0.0
    %2498 = vmatpush1.xpose.msra.mxu0 0.0
    %2499 = vmatprep.subr.mxu0 0.0
    %2500 = vmatpush1.xpose.msra.mxu0 0.0
    %2501 = vmatprep.subr.mxu0 0.0
    %2502 = vmatpush1.xpose.msra.mxu0 0.0
    %2503 = vmatprep.subr.mxu0 0.0
    %2504 = vmatpush1.xpose.msra.mxu0 0.0
    %2505 = vmatprep.subr.mxu0 0.0
    %2506 = vmatpush1.xpose.msra.mxu0 0.0
    %2507 = vmatprep.subr.mxu0 0.0
    %2508 = vmatpush1.xpose.msra.mxu0 0.0
    %2509 = vmatprep.subr.mxu0 0.0
    %2510 = vmatpush1.xpose.msra.mxu0 0.0
    %2511 = vmatprep.subr.mxu0 0.0
    %2512 = vmatpush1.xpose.msra.mxu0 0.0
    %2513 = vmatprep.subr.mxu0 0.0
    %2514 = vmatpush1.xpose.msra.mxu0 0.0
    %2515 = vmatprep.subr.mxu0 0.0
    %2516 = vmatpush1.xpose.msra.mxu0 0.0
    %2517 = vmatprep.subr.mxu0 0.0
    %2518 = vmatpush1.xpose.msra.mxu0 0.0
    %2519 = vmatprep.subr.mxu0 0.0
    %2520 = vmatpush1.xpose.msra.mxu0 0.0
    %2521 = vmatprep.subr.mxu0 0.0
    %2522 = vmatpush1.xpose.msra.mxu0 0.0
    %2523 = vmatprep.subr.mxu0 0.0
    %2524 = vmatpush1.xpose.msra.mxu0 0.0
    %2525 = vmatprep.subr.mxu0 0.0
    %2526 = vmatpush1.xpose.msra.mxu0 0.0
    %2527 = vmatprep.subr.mxu0 0.0
    %2528 = vmatpush1.xpose.msra.mxu0 0.0
    %2529 = vmatprep.subr.mxu0 0.0
    %2530 = vmatpush1.xpose.msra.mxu0 0.0
    %2531 = vmatprep.subr.mxu0 0.0
    %2532 = vmatpush1.xpose.msra.mxu0 0.0
    %2533 = vmatprep.subr.mxu0 0.0
    %2534 = vmatpush1.xpose.msra.mxu0 0.0
    %2535 = vmatprep.subr.mxu0 0.0
    %2536 = vmatpush1.xpose.msra.mxu0 0.0
    %2537 = vmatprep.subr.mxu0 0.0
    %2538 = vmatpush1.xpose.msra.mxu0 0.0
    %2539 = vmatprep.subr.mxu0 0.0
    %2540 = vmatpush1.xpose.msra.mxu0 0.0
    %2541 = vmatprep.subr.mxu0 0.0
    %2542 = vmatpush1.xpose.msra.mxu0 0.0
    %2543 = vmatprep.subr.mxu0 0.0
    %2544 = vmatpush1.xpose.msra.mxu0 0.0
    %2545 = vmatprep.subr.mxu0 0.0
    %2546 = vmatpush1.xpose.msra.mxu0 0.0
    %2547 = vmatprep.subr.mxu0 0.0
    %2548 = vmatpush1.xpose.msra.mxu0 0.0
    %2549 = vmatprep.mubr.f32.mxu0 0.0
    %2550 = vmatmul.mubr.f32.gmra.mrb[0].mxu0 %v2481
    %v2551 = vpop.f32.mrb[0].mxu0
    %v2552 = vadd.f32 0.0, %v2551
    %v2553 = vpop.f32.mrb[0].mxu0
    %2554 = vdwg.mxu0
    %v2555 = vmul.f32 %v2034, 0.35355338
    %v2556 = vmul.f32 %v2108, 0.35355338
    %v2557 = vmul.f32 %v2182, 0.35355338
    %v2558 = vmul.f32 %v2256, 0.35355338
    %v2559 = vmul.f32 %v2330, 0.35355338
    %v2560 = vmul.f32 %v2404, 0.35355338
    %v2561 = vmul.f32 %v2478, 0.35355338
    %v2562 = vmul.f32 %v2552, 0.35355338
    %v2563 = vsel %vm342, %v2555, -inf
    %2564 = vmax.xlane.f32.xlu0 %v2563
    %v2565 = vpop.xlane.xlu0 %2564
    %v2566 = vsel %vm342, %v2556, -inf
    %2567 = vmax.xlane.f32.xlu0 %v2566
    %v2568 = vpop.xlane.xlu0 %2567
    %v2569 = vsel %vm342, %v2557, -inf
    %2570 = vmax.xlane.f32.xlu0 %v2569
    %v2571 = vpop.xlane.xlu0 %2570
    %v2572 = vsel %vm342, %v2558, -inf
    %2573 = vmax.xlane.f32.xlu0 %v2572
    %v2574 = vpop.xlane.xlu0 %2573
    %v2575 = vsel %vm342, %v2559, -inf
    %2576 = vmax.xlane.f32.xlu0 %v2575
    %v2577 = vpop.xlane.xlu0 %2576
    %v2578 = vsel %vm342, %v2560, -inf
    %2579 = vmax.xlane.f32.xlu0 %v2578
    %v2580 = vpop.xlane.xlu0 %2579
    %v2581 = vsel %vm342, %v2561, -inf
    %2582 = vmax.xlane.f32.xlu0 %v2581
    %v2583 = vpop.xlane.xlu0 %2582
    %v2584 = vsel %vm342, %v2562, -inf
    %2585 = vmax.xlane.f32.xlu0 %v2584
    %v2586 = vpop.xlane.xlu0 %2585
    %v2587 = vsub.f32 %v2555, %v2565
    %v2588 = vsub.f32 %v2556, %v2568
    %v2589 = vsub.f32 %v2557, %v2571
    %v2590 = vsub.f32 %v2558, %v2574
    %v2591 = vsub.f32 %v2559, %v2577
    %v2592 = vsub.f32 %v2560, %v2580
    %v2593 = vsub.f32 %v2561, %v2583
    %v2594 = vsub.f32 %v2562, %v2586
    %v2595 = vmul.f32 %v2587, 1.442695
    %v2596 = vpow.pop %v2595
    %v2597 = vmul.f32 %v2588, 1.442695
    %v2598 = vpow.pop %v2597
    %v2599 = vmul.f32 %v2589, 1.442695
    %v2600 = vpow.pop %v2599
    %v2601 = vmul.f32 %v2590, 1.442695
    %v2602 = vpow.pop %v2601
    %v2603 = vmul.f32 %v2591, 1.442695
    %v2604 = vpow.pop %v2603
    %v2605 = vmul.f32 %v2592, 1.442695
    %v2606 = vpow.pop %v2605
    %v2607 = vmul.f32 %v2593, 1.442695
    %v2608 = vpow.pop %v2607
    %v2609 = vmul.f32 %v2594, 1.442695
    %v2610 = vpow.pop %v2609
    %v2611 = vsel %vm342, %v2596, 0.0
    %2612 = vadd.xlane.f32.xlu0 %v2611
    %v2613 = vpop.xlane.xlu0 %2612
    %v2614 = vsel %vm342, %v2598, 0.0
    %2615 = vadd.xlane.f32.xlu0 %v2614
    %v2616 = vpop.xlane.xlu0 %2615
    %v2617 = vsel %vm342, %v2600, 0.0
    %2618 = vadd.xlane.f32.xlu0 %v2617
    %v2619 = vpop.xlane.xlu0 %2618
    %v2620 = vsel %vm342, %v2602, 0.0
    %2621 = vadd.xlane.f32.xlu0 %v2620
    %v2622 = vpop.xlane.xlu0 %2621
    %v2623 = vsel %vm342, %v2604, 0.0
    %2624 = vadd.xlane.f32.xlu0 %v2623
    %v2625 = vpop.xlane.xlu0 %2624
    %v2626 = vsel %vm342, %v2606, 0.0
    %2627 = vadd.xlane.f32.xlu0 %v2626
    %v2628 = vpop.xlane.xlu0 %2627
    %v2629 = vsel %vm342, %v2608, 0.0
    %2630 = vadd.xlane.f32.xlu0 %v2629
    %v2631 = vpop.xlane.xlu0 %2630
    %v2632 = vsel %vm342, %v2610, 0.0
    %2633 = vadd.xlane.f32.xlu0 %v2632
    %v2634 = vpop.xlane.xlu0 %2633
    %v2635 = vrcp.pop %v2613
    %v2636 = vmul.f32 %v2596, %v2635
    %v2637 = vrcp.pop %v2616
    %v2638 = vmul.f32 %v2598, %v2637
    %v2639 = vrcp.pop %v2619
    %v2640 = vmul.f32 %v2600, %v2639
    %v2641 = vrcp.pop %v2622
    %v2642 = vmul.f32 %v2602, %v2641
    %v2643 = vrcp.pop %v2625
    %v2644 = vmul.f32 %v2604, %v2643
    %v2645 = vrcp.pop %v2628
    %v2646 = vmul.f32 %v2606, %v2645
    %v2647 = vrcp.pop %v2631
    %v2648 = vmul.f32 %v2608, %v2647
    %v2649 = vrcp.pop %v2634
    %v2650 = vmul.f32 %v2610, %v2649
    %2651 = vrot.lane.b32.xlu0 %v221, 96
    %v2652 = vpop.permute.xlu0 %2651
    %v2655 = vsel %vm342, %v2636, 0
    %2657 = vmatprep.subr.mxu0 0.0
    %2658 = vmatpush1.msra.mxu0 %v2652
    %2659 = vmatprep.subr.mxu0 0.0
    %2660 = vmatpush1.msra.mxu0 0.0
    %2661 = vmatprep.subr.mxu0 0.0
    %2662 = vmatpush1.msra.mxu0 0.0
    %2663 = vmatprep.subr.mxu0 0.0
    %2664 = vmatpush1.msra.mxu0 0.0
    %2665 = vmatprep.subr.mxu0 0.0
    %2666 = vmatpush1.msra.mxu0 0.0
    %2667 = vmatprep.subr.mxu0 0.0
    %2668 = vmatpush1.msra.mxu0 0.0
    %2669 = vmatprep.subr.mxu0 0.0
    %2670 = vmatpush1.msra.mxu0 0.0
    %2671 = vmatprep.subr.mxu0 0.0
    %2672 = vmatpush1.msra.mxu0 0.0
    %2673 = vmatprep.subr.mxu0 0.0
    %2674 = vmatpush1.msra.mxu0 0.0
    %2675 = vmatprep.subr.mxu0 0.0
    %2676 = vmatpush1.msra.mxu0 0.0
    %2677 = vmatprep.subr.mxu0 0.0
    %2678 = vmatpush1.msra.mxu0 0.0
    %2679 = vmatprep.subr.mxu0 0.0
    %2680 = vmatpush1.msra.mxu0 0.0
    %2681 = vmatprep.subr.mxu0 0.0
    %2682 = vmatpush1.msra.mxu0 0.0
    %2683 = vmatprep.subr.mxu0 0.0
    %2684 = vmatpush1.msra.mxu0 0.0
    %2685 = vmatprep.subr.mxu0 0.0
    %2686 = vmatpush1.msra.mxu0 0.0
    %2687 = vmatprep.subr.mxu0 0.0
    %2688 = vmatpush1.msra.mxu0 0.0
    %2689 = vmatprep.subr.mxu0 0.0
    %2690 = vmatpush1.msra.mxu0 0.0
    %2691 = vmatprep.subr.mxu0 0.0
    %2692 = vmatpush1.msra.mxu0 0.0
    %2693 = vmatprep.subr.mxu0 0.0
    %2694 = vmatpush1.msra.mxu0 0.0
    %2695 = vmatprep.subr.mxu0 0.0
    %2696 = vmatpush1.msra.mxu0 0.0
    %2697 = vmatprep.subr.mxu0 0.0
    %2698 = vmatpush1.msra.mxu0 0.0
    %2699 = vmatprep.subr.mxu0 0.0
    %2700 = vmatpush1.msra.mxu0 0.0
    %2701 = vmatprep.subr.mxu0 0.0
    %2702 = vmatpush1.msra.mxu0 0.0
    %2703 = vmatprep.subr.mxu0 0.0
    %2704 = vmatpush1.msra.mxu0 0.0
    %2705 = vmatprep.subr.mxu0 0.0
    %2706 = vmatpush1.msra.mxu0 0.0
    %2707 = vmatprep.subr.mxu0 0.0
    %2708 = vmatpush1.msra.mxu0 0.0
    %2709 = vmatprep.subr.mxu0 0.0
    %2710 = vmatpush1.msra.mxu0 0.0
    %2711 = vmatprep.subr.mxu0 0.0
    %2712 = vmatpush1.msra.mxu0 0.0
    %2713 = vmatprep.subr.mxu0 0.0
    %2714 = vmatpush1.msra.mxu0 0.0
    %2715 = vmatprep.subr.mxu0 0.0
    %2716 = vmatpush1.msra.mxu0 0.0
    %2717 = vmatprep.subr.mxu0 0.0
    %2718 = vmatpush1.msra.mxu0 0.0
    %2719 = vmatprep.subr.mxu0 0.0
    %2720 = vmatpush1.msra.mxu0 0.0
    %2721 = vmatprep.mubr.f32.mxu0 0.0
    %2722 = vmatmul.mubr.f32.gmra.mrb[0].mxu0 %v2655
    %v2723 = vpop.f32.mrb[0].mxu0
    %v2724 = vadd.f32 0.0, %v2723
    %v2725 = vpop.f32.mrb[0].mxu0
    %2726 = vdwg.mxu0
    %2727 = vrot.lane.b32.xlu0 %v226, 96
    %v2728 = vpop.permute.xlu0 %2727
    %v2731 = vsel %vm342, %v2638, 0
    %2733 = vmatprep.subr.mxu0 0.0
    %2734 = vmatpush1.msra.mxu0 %v2728
    %2735 = vmatprep.subr.mxu0 0.0
    %2736 = vmatpush1.msra.mxu0 0.0
    %2737 = vmatprep.subr.mxu0 0.0
    %2738 = vmatpush1.msra.mxu0 0.0
    %2739 = vmatprep.subr.mxu0 0.0
    %2740 = vmatpush1.msra.mxu0 0.0
    %2741 = vmatprep.subr.mxu0 0.0
    %2742 = vmatpush1.msra.mxu0 0.0
    %2743 = vmatprep.subr.mxu0 0.0
    %2744 = vmatpush1.msra.mxu0 0.0
    %2745 = vmatprep.subr.mxu0 0.0
    %2746 = vmatpush1.msra.mxu0 0.0
    %2747 = vmatprep.subr.mxu0 0.0
    %2748 = vmatpush1.msra.mxu0 0.0
    %2749 = vmatprep.subr.mxu0 0.0
    %2750 = vmatpush1.msra.mxu0 0.0
    %2751 = vmatprep.subr.mxu0 0.0
    %2752 = vmatpush1.msra.mxu0 0.0
    %2753 = vmatprep.subr.mxu0 0.0
    %2754 = vmatpush1.msra.mxu0 0.0
    %2755 = vmatprep.subr.mxu0 0.0
    %2756 = vmatpush1.msra.mxu0 0.0
    %2757 = vmatprep.subr.mxu0 0.0
    %2758 = vmatpush1.msra.mxu0 0.0
    %2759 = vmatprep.subr.mxu0 0.0
    %2760 = vmatpush1.msra.mxu0 0.0
    %2761 = vmatprep.subr.mxu0 0.0
    %2762 = vmatpush1.msra.mxu0 0.0
    %2763 = vmatprep.subr.mxu0 0.0
    %2764 = vmatpush1.msra.mxu0 0.0
    %2765 = vmatprep.subr.mxu0 0.0
    %2766 = vmatpush1.msra.mxu0 0.0
    %2767 = vmatprep.subr.mxu0 0.0
    %2768 = vmatpush1.msra.mxu0 0.0
    %2769 = vmatprep.subr.mxu0 0.0
    %2770 = vmatpush1.msra.mxu0 0.0
    %2771 = vmatprep.subr.mxu0 0.0
    %2772 = vmatpush1.msra.mxu0 0.0
    %2773 = vmatprep.subr.mxu0 0.0
    %2774 = vmatpush1.msra.mxu0 0.0
    %2775 = vmatprep.subr.mxu0 0.0
    %2776 = vmatpush1.msra.mxu0 0.0
    %2777 = vmatprep.subr.mxu0 0.0
    %2778 = vmatpush1.msra.mxu0 0.0
    %2779 = vmatprep.subr.mxu0 0.0
    %2780 = vmatpush1.msra.mxu0 0.0
    %2781 = vmatprep.subr.mxu0 0.0
    %2782 = vmatpush1.msra.mxu0 0.0
    %2783 = vmatprep.subr.mxu0 0.0
    %2784 = vmatpush1.msra.mxu0 0.0
    %2785 = vmatprep.subr.mxu0 0.0
    %2786 = vmatpush1.msra.mxu0 0.0
    %2787 = vmatprep.subr.mxu0 0.0
    %2788 = vmatpush1.msra.mxu0 0.0
    %2789 = vmatprep.subr.mxu0 0.0
    %2790 = vmatpush1.msra.mxu0 0.0
    %2791 = vmatprep.subr.mxu0 0.0
    %2792 = vmatpush1.msra.mxu0 0.0
    %2793 = vmatprep.subr.mxu0 0.0
    %2794 = vmatpush1.msra.mxu0 0.0
    %2795 = vmatprep.subr.mxu0 0.0
    %2796 = vmatpush1.msra.mxu0 0.0
    %2797 = vmatprep.mubr.f32.mxu0 0.0
    %2798 = vmatmul.mubr.f32.gmra.mrb[0].mxu0 %v2731
    %v2799 = vpop.f32.mrb[0].mxu0
    %v2800 = vadd.f32 0.0, %v2799
    %v2801 = vpop.f32.mrb[0].mxu0
    %2802 = vdwg.mxu0
    %2803 = vrot.lane.b32.xlu0 %v1952, 96
    %v2804 = vpop.permute.xlu0 %2803
    %v2807 = vsel %vm342, %v2640, 0
    %2809 = vmatprep.subr.mxu0 0.0
    %2810 = vmatpush1.msra.mxu0 %v2804
    %2811 = vmatprep.subr.mxu0 0.0
    %2812 = vmatpush1.msra.mxu0 0.0
    %2813 = vmatprep.subr.mxu0 0.0
    %2814 = vmatpush1.msra.mxu0 0.0
    %2815 = vmatprep.subr.mxu0 0.0
    %2816 = vmatpush1.msra.mxu0 0.0
    %2817 = vmatprep.subr.mxu0 0.0
    %2818 = vmatpush1.msra.mxu0 0.0
    %2819 = vmatprep.subr.mxu0 0.0
    %2820 = vmatpush1.msra.mxu0 0.0
    %2821 = vmatprep.subr.mxu0 0.0
    %2822 = vmatpush1.msra.mxu0 0.0
    %2823 = vmatprep.subr.mxu0 0.0
    %2824 = vmatpush1.msra.mxu0 0.0
    %2825 = vmatprep.subr.mxu0 0.0
    %2826 = vmatpush1.msra.mxu0 0.0
    %2827 = vmatprep.subr.mxu0 0.0
    %2828 = vmatpush1.msra.mxu0 0.0
    %2829 = vmatprep.subr.mxu0 0.0
    %2830 = vmatpush1.msra.mxu0 0.0
    %2831 = vmatprep.subr.mxu0 0.0
    %2832 = vmatpush1.msra.mxu0 0.0
    %2833 = vmatprep.subr.mxu0 0.0
    %2834 = vmatpush1.msra.mxu0 0.0
    %2835 = vmatprep.subr.mxu0 0.0
    %2836 = vmatpush1.msra.mxu0 0.0
    %2837 = vmatprep.subr.mxu0 0.0
    %2838 = vmatpush1.msra.mxu0 0.0
    %2839 = vmatprep.subr.mxu0 0.0
    %2840 = vmatpush1.msra.mxu0 0.0
    %2841 = vmatprep.subr.mxu0 0.0
    %2842 = vmatpush1.msra.mxu0 0.0
    %2843 = vmatprep.subr.mxu0 0.0
    %2844 = vmatpush1.msra.mxu0 0.0
    %2845 = vmatprep.subr.mxu0 0.0
    %2846 = vmatpush1.msra.mxu0 0.0
    %2847 = vmatprep.subr.mxu0 0.0
    %2848 = vmatpush1.msra.mxu0 0.0
    %2849 = vmatprep.subr.mxu0 0.0
    %2850 = vmatpush1.msra.mxu0 0.0
    %2851 = vmatprep.subr.mxu0 0.0
    %2852 = vmatpush1.msra.mxu0 0.0
    %2853 = vmatprep.subr.mxu0 0.0
    %2854 = vmatpush1.msra.mxu0 0.0
    %2855 = vmatprep.subr.mxu0 0.0
    %2856 = vmatpush1.msra.mxu0 0.0
    %2857 = vmatprep.subr.mxu0 0.0
    %2858 = vmatpush1.msra.mxu0 0.0
    %2859 = vmatprep.subr.mxu0 0.0
    %2860 = vmatpush1.msra.mxu0 0.0
    %2861 = vmatprep.subr.mxu0 0.0
    %2862 = vmatpush1.msra.mxu0 0.0
    %2863 = vmatprep.subr.mxu0 0.0
    %2864 = vmatpush1.msra.mxu0 0.0
    %2865 = vmatprep.subr.mxu0 0.0
    %2866 = vmatpush1.msra.mxu0 0.0
    %2867 = vmatprep.subr.mxu0 0.0
    %2868 = vmatpush1.msra.mxu0 0.0
    %2869 = vmatprep.subr.mxu0 0.0
    %2870 = vmatpush1.msra.mxu0 0.0
    %2871 = vmatprep.subr.mxu0 0.0
    %2872 = vmatpush1.msra.mxu0 0.0
    %2873 = vmatprep.mubr.f32.mxu0 0.0
    %2874 = vmatmul.mubr.f32.gmra.mrb[0].mxu0 %v2807
    %v2875 = vpop.f32.mrb[0].mxu0
    %v2876 = vadd.f32 0.0, %v2875
    %v2877 = vpop.f32.mrb[0].mxu0
    %2878 = vdwg.mxu0
    %2879 = vrot.lane.b32.xlu0 %v1954, 96
    %v2880 = vpop.permute.xlu0 %2879
    %v2883 = vsel %vm342, %v2642, 0
    %2885 = vmatprep.subr.mxu0 0.0
    %2886 = vmatpush1.msra.mxu0 %v2880
    %2887 = vmatprep.subr.mxu0 0.0
    %2888 = vmatpush1.msra.mxu0 0.0
    %2889 = vmatprep.subr.mxu0 0.0
    %2890 = vmatpush1.msra.mxu0 0.0
    %2891 = vmatprep.subr.mxu0 0.0
    %2892 = vmatpush1.msra.mxu0 0.0
    %2893 = vmatprep.subr.mxu0 0.0
    %2894 = vmatpush1.msra.mxu0 0.0
    %2895 = vmatprep.subr.mxu0 0.0
    %2896 = vmatpush1.msra.mxu0 0.0
    %2897 = vmatprep.subr.mxu0 0.0
    %2898 = vmatpush1.msra.mxu0 0.0
    %2899 = vmatprep.subr.mxu0 0.0
    %2900 = vmatpush1.msra.mxu0 0.0
    %2901 = vmatprep.subr.mxu0 0.0
    %2902 = vmatpush1.msra.mxu0 0.0
    %2903 = vmatprep.subr.mxu0 0.0
    %2904 = vmatpush1.msra.mxu0 0.0
    %2905 = vmatprep.subr.mxu0 0.0
    %2906 = vmatpush1.msra.mxu0 0.0
    %2907 = vmatprep.subr.mxu0 0.0
    %2908 = vmatpush1.msra.mxu0 0.0
    %2909 = vmatprep.subr.mxu0 0.0
    %2910 = vmatpush1.msra.mxu0 0.0
    %2911 = vmatprep.subr.mxu0 0.0
    %2912 = vmatpush1.msra.mxu0 0.0
    %2913 = vmatprep.subr.mxu0 0.0
    %2914 = vmatpush1.msra.mxu0 0.0
    %2915 = vmatprep.subr.mxu0 0.0
    %2916 = vmatpush1.msra.mxu0 0.0
    %2917 = vmatprep.subr.mxu0 0.0
    %2918 = vmatpush1.msra.mxu0 0.0
    %2919 = vmatprep.subr.mxu0 0.0
    %2920 = vmatpush1.msra.mxu0 0.0
    %2921 = vmatprep.subr.mxu0 0.0
    %2922 = vmatpush1.msra.mxu0 0.0
    %2923 = vmatprep.subr.mxu0 0.0
    %2924 = vmatpush1.msra.mxu0 0.0
    %2925 = vmatprep.subr.mxu0 0.0
    %2926 = vmatpush1.msra.mxu0 0.0
    %2927 = vmatprep.subr.mxu0 0.0
    %2928 = vmatpush1.msra.mxu0 0.0
    %2929 = vmatprep.subr.mxu0 0.0
    %2930 = vmatpush1.msra.mxu0 0.0
    %2931 = vmatprep.subr.mxu0 0.0
    %2932 = vmatpush1.msra.mxu0 0.0
    %2933 = vmatprep.subr.mxu0 0.0
    %2934 = vmatpush1.msra.mxu0 0.0
    %2935 = vmatprep.subr.mxu0 0.0
    %2936 = vmatpush1.msra.mxu0 0.0
    %2937 = vmatprep.subr.mxu0 0.0
    %2938 = vmatpush1.msra.mxu0 0.0
    %2939 = vmatprep.subr.mxu0 0.0
    %2940 = vmatpush1.msra.mxu0 0.0
    %2941 = vmatprep.subr.mxu0 0.0
    %2942 = vmatpush1.msra.mxu0 0.0
    %2943 = vmatprep.subr.mxu0 0.0
    %2944 = vmatpush1.msra.mxu0 0.0
    %2945 = vmatprep.subr.mxu0 0.0
    %2946 = vmatpush1.msra.mxu0 0.0
    %2947 = vmatprep.subr.mxu0 0.0
    %2948 = vmatpush1.msra.mxu0 0.0
    %2949 = vmatprep.mubr.f32.mxu0 0.0
    %2950 = vmatmul.mubr.f32.gmra.mrb[0].mxu0 %v2883
    %v2951 = vpop.f32.mrb[0].mxu0
    %v2952 = vadd.f32 0.0, %v2951
    %v2953 = vpop.f32.mrb[0].mxu0
    %2954 = vdwg.mxu0
    %2955 = vrot.lane.b32.xlu0 %v1956, 96
    %v2956 = vpop.permute.xlu0 %2955
    %v2959 = vsel %vm342, %v2644, 0
    %2961 = vmatprep.subr.mxu0 0.0
    %2962 = vmatpush1.msra.mxu0 %v2956
    %2963 = vmatprep.subr.mxu0 0.0
    %2964 = vmatpush1.msra.mxu0 0.0
    %2965 = vmatprep.subr.mxu0 0.0
    %2966 = vmatpush1.msra.mxu0 0.0
    %2967 = vmatprep.subr.mxu0 0.0
    %2968 = vmatpush1.msra.mxu0 0.0
    %2969 = vmatprep.subr.mxu0 0.0
    %2970 = vmatpush1.msra.mxu0 0.0
    %2971 = vmatprep.subr.mxu0 0.0
    %2972 = vmatpush1.msra.mxu0 0.0
    %2973 = vmatprep.subr.mxu0 0.0
    %2974 = vmatpush1.msra.mxu0 0.0
    %2975 = vmatprep.subr.mxu0 0.0
    %2976 = vmatpush1.msra.mxu0 0.0
    %2977 = vmatprep.subr.mxu0 0.0
    %2978 = vmatpush1.msra.mxu0 0.0
    %2979 = vmatprep.subr.mxu0 0.0
    %2980 = vmatpush1.msra.mxu0 0.0
    %2981 = vmatprep.subr.mxu0 0.0
    %2982 = vmatpush1.msra.mxu0 0.0
    %2983 = vmatprep.subr.mxu0 0.0
    %2984 = vmatpush1.msra.mxu0 0.0
    %2985 = vmatprep.subr.mxu0 0.0
    %2986 = vmatpush1.msra.mxu0 0.0
    %2987 = vmatprep.subr.mxu0 0.0
    %2988 = vmatpush1.msra.mxu0 0.0
    %2989 = vmatprep.subr.mxu0 0.0
    %2990 = vmatpush1.msra.mxu0 0.0
    %2991 = vmatprep.subr.mxu0 0.0
    %2992 = vmatpush1.msra.mxu0 0.0
    %2993 = vmatprep.subr.mxu0 0.0
    %2994 = vmatpush1.msra.mxu0 0.0
    %2995 = vmatprep.subr.mxu0 0.0
    %2996 = vmatpush1.msra.mxu0 0.0
    %2997 = vmatprep.subr.mxu0 0.0
    %2998 = vmatpush1.msra.mxu0 0.0
    %2999 = vmatprep.subr.mxu0 0.0
    %3000 = vmatpush1.msra.mxu0 0.0
    %3001 = vmatprep.subr.mxu0 0.0
    %3002 = vmatpush1.msra.mxu0 0.0
    %3003 = vmatprep.subr.mxu0 0.0
    %3004 = vmatpush1.msra.mxu0 0.0
    %3005 = vmatprep.subr.mxu0 0.0
    %3006 = vmatpush1.msra.mxu0 0.0
    %3007 = vmatprep.subr.mxu0 0.0
    %3008 = vmatpush1.msra.mxu0 0.0
    %3009 = vmatprep.subr.mxu0 0.0
    %3010 = vmatpush1.msra.mxu0 0.0
    %3011 = vmatprep.subr.mxu0 0.0
    %3012 = vmatpush1.msra.mxu0 0.0
    %3013 = vmatprep.subr.mxu0 0.0
    %3014 = vmatpush1.msra.mxu0 0.0
    %3015 = vmatprep.subr.mxu0 0.0
    %3016 = vmatpush1.msra.mxu0 0.0
    %3017 = vmatprep.subr.mxu0 0.0
    %3018 = vmatpush1.msra.mxu0 0.0
    %3019 = vmatprep.subr.mxu0 0.0
    %3020 = vmatpush1.msra.mxu0 0.0
    %3021 = vmatprep.subr.mxu0 0.0
    %3022 = vmatpush1.msra.mxu0 0.0
    %3023 = vmatprep.subr.mxu0 0.0
    %3024 = vmatpush1.msra.mxu0 0.0
    %3025 = vmatprep.mubr.f32.mxu0 0.0
    %3026 = vmatmul.mubr.f32.gmra.mrb[0].mxu0 %v2959
    %v3027 = vpop.f32.mrb[0].mxu0
    %v3028 = vadd.f32 0.0, %v3027
    %v3029 = vpop.f32.mrb[0].mxu0
    %3030 = vdwg.mxu0
    %3031 = vrot.lane.b32.xlu0 %v1958, 96
    %v3032 = vpop.permute.xlu0 %3031
    %v3035 = vsel %vm342, %v2646, 0
    %3037 = vmatprep.subr.mxu0 0.0
    %3038 = vmatpush1.msra.mxu0 %v3032
    %3039 = vmatprep.subr.mxu0 0.0
    %3040 = vmatpush1.msra.mxu0 0.0
    %3041 = vmatprep.subr.mxu0 0.0
    %3042 = vmatpush1.msra.mxu0 0.0
    %3043 = vmatprep.subr.mxu0 0.0
    %3044 = vmatpush1.msra.mxu0 0.0
    %3045 = vmatprep.subr.mxu0 0.0
    %3046 = vmatpush1.msra.mxu0 0.0
    %3047 = vmatprep.subr.mxu0 0.0
    %3048 = vmatpush1.msra.mxu0 0.0
    %3049 = vmatprep.subr.mxu0 0.0
    %3050 = vmatpush1.msra.mxu0 0.0
    %3051 = vmatprep.subr.mxu0 0.0
    %3052 = vmatpush1.msra.mxu0 0.0
    %3053 = vmatprep.subr.mxu0 0.0
    %3054 = vmatpush1.msra.mxu0 0.0
    %3055 = vmatprep.subr.mxu0 0.0
    %3056 = vmatpush1.msra.mxu0 0.0
    %3057 = vmatprep.subr.mxu0 0.0
    %3058 = vmatpush1.msra.mxu0 0.0
    %3059 = vmatprep.subr.mxu0 0.0
    %3060 = vmatpush1.msra.mxu0 0.0
    %3061 = vmatprep.subr.mxu0 0.0
    %3062 = vmatpush1.msra.mxu0 0.0
    %3063 = vmatprep.subr.mxu0 0.0
    %3064 = vmatpush1.msra.mxu0 0.0
    %3065 = vmatprep.subr.mxu0 0.0
    %3066 = vmatpush1.msra.mxu0 0.0
    %3067 = vmatprep.subr.mxu0 0.0
    %3068 = vmatpush1.msra.mxu0 0.0
    %3069 = vmatprep.subr.mxu0 0.0
    %3070 = vmatpush1.msra.mxu0 0.0
    %3071 = vmatprep.subr.mxu0 0.0
    %3072 = vmatpush1.msra.mxu0 0.0
    %3073 = vmatprep.subr.mxu0 0.0
    %3074 = vmatpush1.msra.mxu0 0.0
    %3075 = vmatprep.subr.mxu0 0.0
    %3076 = vmatpush1.msra.mxu0 0.0
    %3077 = vmatprep.subr.mxu0 0.0
    %3078 = vmatpush1.msra.mxu0 0.0
    %3079 = vmatprep.subr.mxu0 0.0
    %3080 = vmatpush1.msra.mxu0 0.0
    %3081 = vmatprep.subr.mxu0 0.0
    %3082 = vmatpush1.msra.mxu0 0.0
    %3083 = vmatprep.subr.mxu0 0.0
    %3084 = vmatpush1.msra.mxu0 0.0
    %3085 = vmatprep.subr.mxu0 0.0
    %3086 = vmatpush1.msra.mxu0 0.0
    %3087 = vmatprep.subr.mxu0 0.0
    %3088 = vmatpush1.msra.mxu0 0.0
    %3089 = vmatprep.subr.mxu0 0.0
    %3090 = vmatpush1.msra.mxu0 0.0
    %3091 = vmatprep.subr.mxu0 0.0
    %3092 = vmatpush1.msra.mxu0 0.0
    %3093 = vmatprep.subr.mxu0 0.0
    %3094 = vmatpush1.msra.mxu0 0.0
    %3095 = vmatprep.subr.mxu0 0.0
    %3096 = vmatpush1.msra.mxu0 0.0
    %3097 = vmatprep.subr.mxu0 0.0
    %3098 = vmatpush1.msra.mxu0 0.0
    %3099 = vmatprep.subr.mxu0 0.0
    %3100 = vmatpush1.msra.mxu0 0.0
    %3101 = vmatprep.mubr.f32.mxu0 0.0
    %3102 = vmatmul.mubr.f32.gmra.mrb[0].mxu0 %v3035
    %v3103 = vpop.f32.mrb[0].mxu0
    %v3104 = vadd.f32 0.0, %v3103
    %v3105 = vpop.f32.mrb[0].mxu0
    %3106 = vdwg.mxu0
    %3107 = vrot.lane.b32.xlu0 %v1960, 96
    %v3108 = vpop.permute.xlu0 %3107
    %v3111 = vsel %vm342, %v2648, 0
    %3113 = vmatprep.subr.mxu0 0.0
    %3114 = vmatpush1.msra.mxu0 %v3108
    %3115 = vmatprep.subr.mxu0 0.0
    %3116 = vmatpush1.msra.mxu0 0.0
    %3117 = vmatprep.subr.mxu0 0.0
    %3118 = vmatpush1.msra.mxu0 0.0
    %3119 = vmatprep.subr.mxu0 0.0
    %3120 = vmatpush1.msra.mxu0 0.0
    %3121 = vmatprep.subr.mxu0 0.0
    %3122 = vmatpush1.msra.mxu0 0.0
    %3123 = vmatprep.subr.mxu0 0.0
    %3124 = vmatpush1.msra.mxu0 0.0
    %3125 = vmatprep.subr.mxu0 0.0
    %3126 = vmatpush1.msra.mxu0 0.0
    %3127 = vmatprep.subr.mxu0 0.0
    %3128 = vmatpush1.msra.mxu0 0.0
    %3129 = vmatprep.subr.mxu0 0.0
    %3130 = vmatpush1.msra.mxu0 0.0
    %3131 = vmatprep.subr.mxu0 0.0
    %3132 = vmatpush1.msra.mxu0 0.0
    %3133 = vmatprep.subr.mxu0 0.0
    %3134 = vmatpush1.msra.mxu0 0.0
    %3135 = vmatprep.subr.mxu0 0.0
    %3136 = vmatpush1.msra.mxu0 0.0
    %3137 = vmatprep.subr.mxu0 0.0
    %3138 = vmatpush1.msra.mxu0 0.0
    %3139 = vmatprep.subr.mxu0 0.0
    %3140 = vmatpush1.msra.mxu0 0.0
    %3141 = vmatprep.subr.mxu0 0.0
    %3142 = vmatpush1.msra.mxu0 0.0
    %3143 = vmatprep.subr.mxu0 0.0
    %3144 = vmatpush1.msra.mxu0 0.0
    %3145 = vmatprep.subr.mxu0 0.0
    %3146 = vmatpush1.msra.mxu0 0.0
    %3147 = vmatprep.subr.mxu0 0.0
    %3148 = vmatpush1.msra.mxu0 0.0
    %3149 = vmatprep.subr.mxu0 0.0
    %3150 = vmatpush1.msra.mxu0 0.0
    %3151 = vmatprep.subr.mxu0 0.0
    %3152 = vmatpush1.msra.mxu0 0.0
    %3153 = vmatprep.subr.mxu0 0.0
    %3154 = vmatpush1.msra.mxu0 0.0
    %3155 = vmatprep.subr.mxu0 0.0
    %3156 = vmatpush1.msra.mxu0 0.0
    %3157 = vmatprep.subr.mxu0 0.0
    %3158 = vmatpush1.msra.mxu0 0.0
    %3159 = vmatprep.subr.mxu0 0.0
    %3160 = vmatpush1.msra.mxu0 0.0
    %3161 = vmatprep.subr.mxu0 0.0
    %3162 = vmatpush1.msra.mxu0 0.0
    %3163 = vmatprep.subr.mxu0 0.0
    %3164 = vmatpush1.msra.mxu0 0.0
    %3165 = vmatprep.subr.mxu0 0.0
    %3166 = vmatpush1.msra.mxu0 0.0
    %3167 = vmatprep.subr.mxu0 0.0
    %3168 = vmatpush1.msra.mxu0 0.0
    %3169 = vmatprep.subr.mxu0 0.0
    %3170 = vmatpush1.msra.mxu0 0.0
    %3171 = vmatprep.subr.mxu0 0.0
    %3172 = vmatpush1.msra.mxu0 0.0
    %3173 = vmatprep.subr.mxu0 0.0
    %3174 = vmatpush1.msra.mxu0 0.0
    %3175 = vmatprep.subr.mxu0 0.0
    %3176 = vmatpush1.msra.mxu0 0.0
    %3177 = vmatprep.mubr.f32.mxu0 0.0
    %3178 = vmatmul.mubr.f32.gmra.mrb[0].mxu0 %v3111
    %v3179 = vpop.f32.mrb[0].mxu0
    %v3180 = vadd.f32 0.0, %v3179
    %v3181 = vpop.f32.mrb[0].mxu0
    %3182 = vdwg.mxu0
    %3183 = vrot.lane.b32.xlu0 %v1962, 96
    %v3184 = vpop.permute.xlu0 %3183
    %v3187 = vsel %vm342, %v2650, 0
    %3189 = vmatprep.subr.mxu0 0.0
    %3190 = vmatpush1.msra.mxu0 %v3184
    %3191 = vmatprep.subr.mxu0 0.0
    %3192 = vmatpush1.msra.mxu0 0.0
    %3193 = vmatprep.subr.mxu0 0.0
    %3194 = vmatpush1.msra.mxu0 0.0
    %3195 = vmatprep.subr.mxu0 0.0
    %3196 = vmatpush1.msra.mxu0 0.0
    %3197 = vmatprep.subr.mxu0 0.0
    %3198 = vmatpush1.msra.mxu0 0.0
    %3199 = vmatprep.subr.mxu0 0.0
    %3200 = vmatpush1.msra.mxu0 0.0
    %3201 = vmatprep.subr.mxu0 0.0
    %3202 = vmatpush1.msra.mxu0 0.0
    %3203 = vmatprep.subr.mxu0 0.0
    %3204 = vmatpush1.msra.mxu0 0.0
    %3205 = vmatprep.subr.mxu0 0.0
    %3206 = vmatpush1.msra.mxu0 0.0
    %3207 = vmatprep.subr.mxu0 0.0
    %3208 = vmatpush1.msra.mxu0 0.0
    %3209 = vmatprep.subr.mxu0 0.0
    %3210 = vmatpush1.msra.mxu0 0.0
    %3211 = vmatprep.subr.mxu0 0.0
    %3212 = vmatpush1.msra.mxu0 0.0
    %3213 = vmatprep.subr.mxu0 0.0
    %3214 = vmatpush1.msra.mxu0 0.0
    %3215 = vmatprep.subr.mxu0 0.0
    %3216 = vmatpush1.msra.mxu0 0.0
    %3217 = vmatprep.subr.mxu0 0.0
    %3218 = vmatpush1.msra.mxu0 0.0
    %3219 = vmatprep.subr.mxu0 0.0
    %3220 = vmatpush1.msra.mxu0 0.0
    %3221 = vmatprep.subr.mxu0 0.0
    %3222 = vmatpush1.msra.mxu0 0.0
    %3223 = vmatprep.subr.mxu0 0.0
    %3224 = vmatpush1.msra.mxu0 0.0
    %3225 = vmatprep.subr.mxu0 0.0
    %3226 = vmatpush1.msra.mxu0 0.0
    %3227 = vmatprep.subr.mxu0 0.0
    %3228 = vmatpush1.msra.mxu0 0.0
    %3229 = vmatprep.subr.mxu0 0.0
    %3230 = vmatpush1.msra.mxu0 0.0
    %3231 = vmatprep.subr.mxu0 0.0
    %3232 = vmatpush1.msra.mxu0 0.0
    %3233 = vmatprep.subr.mxu0 0.0
    %3234 = vmatpush1.msra.mxu0 0.0
    %3235 = vmatprep.subr.mxu0 0.0
    %3236 = vmatpush1.msra.mxu0 0.0
    %3237 = vmatprep.subr.mxu0 0.0
    %3238 = vmatpush1.msra.mxu0 0.0
    %3239 = vmatprep.subr.mxu0 0.0
    %3240 = vmatpush1.msra.mxu0 0.0
    %3241 = vmatprep.subr.mxu0 0.0
    %3242 = vmatpush1.msra.mxu0 0.0
    %3243 = vmatprep.subr.mxu0 0.0
    %3244 = vmatpush1.msra.mxu0 0.0
    %3245 = vmatprep.subr.mxu0 0.0
    %3246 = vmatpush1.msra.mxu0 0.0
    %3247 = vmatprep.subr.mxu0 0.0
    %3248 = vmatpush1.msra.mxu0 0.0
    %3249 = vmatprep.subr.mxu0 0.0
    %3250 = vmatpush1.msra.mxu0 0.0
    %3251 = vmatprep.subr.mxu0 0.0
    %3252 = vmatpush1.msra.mxu0 0.0
    %3253 = vmatprep.mubr.f32.mxu0 0.0
    %3254 = vmatmul.mubr.f32.gmra.mrb[0].mxu0 %v3187
    %v3255 = vpop.f32.mrb[0].mxu0
    %v3256 = vadd.f32 0.0, %v3255
    %v3257 = vpop.f32.mrb[0].mxu0
    %3258 = vdwg.mxu0
    %3261 = vrot.lane.b32.xlu0 %v2876, 8
    %v3262 = vpop.permute.xlu0 %3261
    %3263 = vrot.lane.b32.xlu0 %v2952, 8
    %v3264 = vpop.permute.xlu0 %3263
    %3269 = vrot.lane.b32.xlu0 %v3028, 16
    %v3270 = vpop.permute.xlu0 %3269
    %3271 = vrot.lane.b32.xlu0 %v3104, 16
    %v3272 = vpop.permute.xlu0 %3271
    %3277 = vrot.lane.b32.xlu0 %v3180, 24
    %v3278 = vpop.permute.xlu0 %3277
    %3279 = vrot.lane.b32.xlu0 %v3256, 24
    %v3280 = vpop.permute.xlu0 %3279
    %v3283 = vsel %vm342, %v2724, %v3262
    %v3284 = vsel %vm342, %v2800, %v3264
    %v3285 = vsel %vm1679, %v3283, %v3270
    %v3286 = vsel %vm1679, %v3284, %v3272
    %v3287 = vsel %vm1682, %v3285, %v3278
    %v3288 = vsel %vm1682, %v3286, %v3280
    %v3290 = vlaneseq
    %v3291 = vshrl.u32 %v3290, 7
    %v3292 = vsub.s32 0, %v3291
    %v3293 = vrot.slane %v1934, %v3292
    %v3296 = vsel %vm55, %v3287, 0
    %v3299 = vsel %vm55, %v3288, 0
    %3301 = vmatprep.subr.mxu0 0.0
    %3302 = vmatpush1.msra.mxu0 %v1930
    %3303 = vmatprep.subr.mxu0 0.0
    %3304 = vmatpush1.msra.mxu0 %v1931
    %3305 = vmatprep.subr.mxu0 0.0
    %3306 = vmatpush1.msra.mxu0 %v1932
    %3307 = vmatprep.subr.mxu0 0.0
    %3308 = vmatpush1.msra.mxu0 %v1933
    %3309 = vmatprep.subr.mxu0 0.0
    %3310 = vmatpush1.msra.mxu0 0.0
    %3311 = vmatprep.subr.mxu0 0.0
    %3312 = vmatpush1.msra.mxu0 0.0
    %3313 = vmatprep.subr.mxu0 0.0
    %3314 = vmatpush1.msra.mxu0 0.0
    %3315 = vmatprep.subr.mxu0 0.0
    %3316 = vmatpush1.msra.mxu0 0.0
    %3317 = vmatprep.subr.mxu0 0.0
    %3318 = vmatpush1.msra.mxu0 0.0
    %3319 = vmatprep.subr.mxu0 0.0
    %3320 = vmatpush1.msra.mxu0 0.0
    %3321 = vmatprep.subr.mxu0 0.0
    %3322 = vmatpush1.msra.mxu0 0.0
    %3323 = vmatprep.subr.mxu0 0.0
    %3324 = vmatpush1.msra.mxu0 0.0
    %3325 = vmatprep.subr.mxu0 0.0
    %3326 = vmatpush1.msra.mxu0 0.0
    %3327 = vmatprep.subr.mxu0 0.0
    %3328 = vmatpush1.msra.mxu0 0.0
    %3329 = vmatprep.subr.mxu0 0.0
    %3330 = vmatpush1.msra.mxu0 0.0
    %3331 = vmatprep.subr.mxu0 0.0
    %3332 = vmatpush1.msra.mxu0 0.0
    %3333 = vmatprep.subr.mxu0 0.0
    %3334 = vmatpush1.msra.mxu0 0.0
    %3335 = vmatprep.subr.mxu0 0.0
    %3336 = vmatpush1.msra.mxu0 0.0
    %3337 = vmatprep.subr.mxu0 0.0
    %3338 = vmatpush1.msra.mxu0 0.0
    %3339 = vmatprep.subr.mxu0 0.0
    %3340 = vmatpush1.msra.mxu0 0.0
    %3341 = vmatprep.subr.mxu0 0.0
    %3342 = vmatpush1.msra.mxu0 0.0
    %3343 = vmatprep.subr.mxu0 0.0
    %3344 = vmatpush1.msra.mxu0 0.0
    %3345 = vmatprep.subr.mxu0 0.0
    %3346 = vmatpush1.msra.mxu0 0.0
    %3347 = vmatprep.subr.mxu0 0.0
    %3348 = vmatpush1.msra.mxu0 0.0
    %3349 = vmatprep.subr.mxu0 0.0
    %3350 = vmatpush1.msra.mxu0 0.0
    %3351 = vmatprep.subr.mxu0 0.0
    %3352 = vmatpush1.msra.mxu0 0.0
    %3353 = vmatprep.subr.mxu0 0.0
    %3354 = vmatpush1.msra.mxu0 0.0
    %3355 = vmatprep.subr.mxu0 0.0
    %3356 = vmatpush1.msra.mxu0 0.0
    %3357 = vmatprep.subr.mxu0 0.0
    %3358 = vmatpush1.msra.mxu0 0.0
    %3359 = vmatprep.subr.mxu0 0.0
    %3360 = vmatpush1.msra.mxu0 0.0
    %3361 = vmatprep.subr.mxu0 0.0
    %3362 = vmatpush1.msra.mxu0 0.0
    %3363 = vmatprep.subr.mxu0 0.0
    %3364 = vmatpush1.msra.mxu0 0.0
    %3365 = vmatprep.mubr.f32.mxu0 0.0
    %3366 = vmatmul.mubr.f32.gmra.mrb[0].mxu0 %v3296
    %v3367 = vpop.f32.mrb[0].mxu0
    %v3368 = vadd.f32 %v3293, %v3367
    %v3369 = vpop.f32.mrb[0].mxu0
    %3370 = vmatprep.mubr.f32.mxu0 0.0
    %3371 = vmatmul.mubr.f32.gmra.mrb[0].mxu0 %v3299
    %v3372 = vpop.f32.mrb[0].mxu0
    %v3373 = vadd.f32 %v3293, %v3372
    %v3374 = vpop.f32.mrb[0].mxu0
    %3375 = vdwg.mxu0
    %v3376 = vadd.f32 %v1836, %v3368
    %v3377 = vadd.f32 %v1837, %v3373
    %v3378 = vld [vmem:[%s5 + $0x9] sm:$0x1]
    %v3379 = vld [vmem:[%s5 + $0xa] sm:$0x1]
    %v3380 = vsel %vm55, %v3376, 0.0
    %3381 = vadd.xlane.f32.xlu0 %v3380
    %v3382 = vpop.xlane.xlu0 %3381
    %v3383 = vsel %vm55, %v3377, 0.0
    %3384 = vadd.xlane.f32.xlu0 %v3383
    %v3385 = vpop.xlane.xlu0 %3384
    %v3386 = vmul.f32 %v3376, %v3376
    %v3387 = vmul.f32 %v3377, %v3377
    %v3388 = vsel %vm55, %v3386, 0.0
    %3389 = vadd.xlane.f32.xlu0 %v3388
    %v3390 = vpop.xlane.xlu0 %3389
    %v3391 = vsel %vm55, %v3387, 0.0
    %3392 = vadd.xlane.f32.xlu0 %v3391
    %v3393 = vpop.xlane.xlu0 %3392
    %v3394 = vmul.f32 %v3382, 0.03125
    %v3395 = vmul.f32 %v3385, 0.03125
    %v3396 = vmul.f32 %v3394, %v3382
    %v3397 = vmul.f32 %v3395, %v3385
    %v3398 = vsub.f32 %v3390, %v3396
    %v3399 = vsub.f32 %v3393, %v3397
    %v3400 = vmul.f32 %v3398, 0.032258064
    %v3401 = vmul.f32 %v3399, 0.032258064
    %v3402 = vmax.f32 %v3400, 0.0
    %v3403 = vmax.f32 %v3401, 0.0
    %v3404 = vrsqrt.pop %v3402
    %v3405 = vmul.f32 %v3402, %v3404
    %vm3406 = vcmp.eq.f32.partialorder %v3402, inf
    %v3407 = vsel %vm3406, %v3402, %v3405
    %vm3408 = vcmp.eq.f32.partialorder %v3402, 0.0
    %v3409 = vand.u32 %v3402, 2147483648
    %v3410 = vsel %vm3408, %v3409, %v3407
    %v3411 = vrsqrt.pop %v3403
    %v3412 = vmul.f32 %v3403, %v3411
    %vm3413 = vcmp.eq.f32.partialorder %v3403, inf
    %v3414 = vsel %vm3413, %v3403, %v3412
    %vm3415 = vcmp.eq.f32.partialorder %v3403, 0.0
    %v3416 = vand.u32 %v3403, 2147483648
    %v3417 = vsel %vm3415, %v3416, %v3414
    %v3418 = vsub.f32 %v3376, %v3394
    %v3419 = vsub.f32 %v3377, %v3395
    %v3420 = vadd.f32 %v3410, 1e-12
    %v3421 = vadd.f32 %v3417, 1e-12
    %v3422 = vrcp.pop %v3420
    %v3423 = vmul.f32 %v3418, %v3422
    %v3424 = vrcp.pop %v3421
    %v3425 = vmul.f32 %v3419, %v3424
    %v3427 = vlaneseq
    %v3428 = vshrl.u32 %v3427, 7
    %v3429 = vsub.s32 0, %v3428
    %v3430 = vrot.slane %v3378, %v3429
    %v3432 = vmul.f32 %v3430, %v3423
    %v3433 = vmul.f32 %v3430, %v3425
    %v3435 = vlaneseq
    %v3436 = vshrl.u32 %v3435, 7
    %v3437 = vsub.s32 0, %v3436
    %v3438 = vrot.slane %v3379, %v3437
    %v3440 = vadd.f32 %v3432, %v3438
    %v3441 = vadd.f32 %v3433, %v3438
    %v3442 = vld [vmem:[#allocation2 + $0x28] sm:$0xff]
    %v3443 = vld [vmem:[#allocation2 + $0xa0] sm:$0xff]
    %v3444 = vld [vmem:[#allocation2 + $0x118] sm:$0xff]
    %v3445 = vld [vmem:[#allocation2 + $0x190] sm:$0xff]
    %v3446 = vld [vmem:[%s5 + $0x5] sm:$0x1]
    %v3448 = vlaneseq
    %v3449 = vshrl.u32 %v3448, 7
    %v3450 = vsub.s32 0, %v3449
    %v3451 = vrot.slane %v3446, %v3450
    %v3454 = vsel %vm55, %v3440, 0
    %v3457 = vsel %vm55, %v3441, 0
    %3459 = vmatprep.subr.mxu0 0.0
    %3460 = vmatpush1.msra.mxu0 %v3442
    %3461 = vmatprep.subr.mxu0 0.0
    %3462 = vmatpush1.msra.mxu0 %v3443
    %3463 = vmatprep.subr.mxu0 0.0
    %3464 = vmatpush1.msra.mxu0 %v3444
    %3465 = vmatprep.subr.mxu0 0.0
    %3466 = vmatpush1.msra.mxu0 %v3445
    %3467 = vmatprep.subr.mxu0 0.0
    %3468 = vmatpush1.msra.mxu0 0.0
    %3469 = vmatprep.subr.mxu0 0.0
    %3470 = vmatpush1.msra.mxu0 0.0
    %3471 = vmatprep.subr.mxu0 0.0
    %3472 = vmatpush1.msra.mxu0 0.0
    %3473 = vmatprep.subr.mxu0 0.0
    %3474 = vmatpush1.msra.mxu0 0.0
    %3475 = vmatprep.subr.mxu0 0.0
    %3476 = vmatpush1.msra.mxu0 0.0
    %3477 = vmatprep.subr.mxu0 0.0
    %3478 = vmatpush1.msra.mxu0 0.0
    %3479 = vmatprep.subr.mxu0 0.0
    %3480 = vmatpush1.msra.mxu0 0.0
    %3481 = vmatprep.subr.mxu0 0.0
    %3482 = vmatpush1.msra.mxu0 0.0
    %3483 = vmatprep.subr.mxu0 0.0
    %3484 = vmatpush1.msra.mxu0 0.0
    %3485 = vmatprep.subr.mxu0 0.0
    %3486 = vmatpush1.msra.mxu0 0.0
    %3487 = vmatprep.subr.mxu0 0.0
    %3488 = vmatpush1.msra.mxu0 0.0
    %3489 = vmatprep.subr.mxu0 0.0
    %3490 = vmatpush1.msra.mxu0 0.0
    %3491 = vmatprep.subr.mxu0 0.0
    %3492 = vmatpush1.msra.mxu0 0.0
    %3493 = vmatprep.subr.mxu0 0.0
    %3494 = vmatpush1.msra.mxu0 0.0
    %3495 = vmatprep.subr.mxu0 0.0
    %3496 = vmatpush1.msra.mxu0 0.0
    %3497 = vmatprep.subr.mxu0 0.0
    %3498 = vmatpush1.msra.mxu0 0.0
    %3499 = vmatprep.subr.mxu0 0.0
    %3500 = vmatpush1.msra.mxu0 0.0
    %3501 = vmatprep.subr.mxu0 0.0
    %3502 = vmatpush1.msra.mxu0 0.0
    %3503 = vmatprep.subr.mxu0 0.0
    %3504 = vmatpush1.msra.mxu0 0.0
    %3505 = vmatprep.subr.mxu0 0.0
    %3506 = vmatpush1.msra.mxu0 0.0
    %3507 = vmatprep.subr.mxu0 0.0
    %3508 = vmatpush1.msra.mxu0 0.0
    %3509 = vmatprep.subr.mxu0 0.0
    %3510 = vmatpush1.msra.mxu0 0.0
    %3511 = vmatprep.subr.mxu0 0.0
    %3512 = vmatpush1.msra.mxu0 0.0
    %3513 = vmatprep.subr.mxu0 0.0
    %3514 = vmatpush1.msra.mxu0 0.0
    %3515 = vmatprep.subr.mxu0 0.0
    %3516 = vmatpush1.msra.mxu0 0.0
    %3517 = vmatprep.subr.mxu0 0.0
    %3518 = vmatpush1.msra.mxu0 0.0
    %3519 = vmatprep.subr.mxu0 0.0
    %3520 = vmatpush1.msra.mxu0 0.0
    %3521 = vmatprep.subr.mxu0 0.0
    %3522 = vmatpush1.msra.mxu0 0.0
    %3523 = vmatprep.mubr.f32.mxu0 0.0
    %3524 = vmatmul.mubr.f32.gmra.mrb[0].mxu0 %v3454
    %v3525 = vpop.f32.mrb[0].mxu0
    %v3526 = vadd.f32 %v3451, %v3525
    %v3527 = vpop.f32.mrb[0].mxu0
    %3528 = vmatprep.mubr.f32.mxu0 0.0
    %3529 = vmatmul.mubr.f32.gmra.mrb[0].mxu0 %v3457
    %v3530 = vpop.f32.mrb[0].mxu0
    %v3531 = vadd.f32 %v3451, %v3530
    %v3532 = vpop.f32.mrb[0].mxu0
    %3533 = vdwg.mxu0
    %v3534 = vmax.f32 %v3526, 0.0
    %v3535 = vmax.f32 %v3531, 0.0
    %v3536 = vld [vmem:[%s3] sm:$0xff]
    %v3537 = vld [vmem:[%s3 + $0x18] sm:$0xff]
    %v3538 = vld [vmem:[%s3 + $0x30] sm:$0xff]
    %v3539 = vld [vmem:[%s3 + $0x48] sm:$0xff]
    %v3540 = vld [vmem:[%s3 + $0x60] sm:$0xff]
    %v3541 = vld [vmem:[%s3 + $0x78] sm:$0xff]
    %v3542 = vld [vmem:[%s3 + $0x90] sm:$0xff]
    %v3543 = vld [vmem:[%s3 + $0xa8] sm:$0xff]
    %v3544 = vld [vmem:[%s5 + $0x6] sm:$0x1]
    %v3546 = vlaneseq
    %v3547 = vshrl.u32 %v3546, 7
    %v3548 = vsub.s32 0, %v3547
    %v3549 = vrot.slane %v3544, %v3548
    %vm3551 = vcmask 523264
    %v3553 = vsel %vm3551, %v3534, 0
    %v3556 = vsel %vm3551, %v3535, 0
    %3558 = vmatprep.subr.mxu0 0.0
    %3559 = vmatpush1.msra.mxu0 %v3536
    %3560 = vmatprep.subr.mxu0 0.0
    %3561 = vmatpush1.msra.mxu0 %v3537
    %3562 = vmatprep.subr.mxu0 0.0
    %3563 = vmatpush1.msra.mxu0 %v3538
    %3564 = vmatprep.subr.mxu0 0.0
    %3565 = vmatpush1.msra.mxu0 %v3539
    %3566 = vmatprep.subr.mxu0 0.0
    %3567 = vmatpush1.msra.mxu0 %v3540
    %3568 = vmatprep.subr.mxu0 0.0
    %3569 = vmatpush1.msra.mxu0 %v3541
    %3570 = vmatprep.subr.mxu0 0.0
    %3571 = vmatpush1.msra.mxu0 %v3542
    %3572 = vmatprep.subr.mxu0 0.0
    %3573 = vmatpush1.msra.mxu0 %v3543
    %3574 = vmatprep.subr.mxu0 0.0
    %3575 = vmatpush1.msra.mxu0 0.0
    %3576 = vmatprep.subr.mxu0 0.0
    %3577 = vmatpush1.msra.mxu0 0.0
    %3578 = vmatprep.subr.mxu0 0.0
    %3579 = vmatpush1.msra.mxu0 0.0
    %3580 = vmatprep.subr.mxu0 0.0
    %3581 = vmatpush1.msra.mxu0 0.0
    %3582 = vmatprep.subr.mxu0 0.0
    %3583 = vmatpush1.msra.mxu0 0.0
    %3584 = vmatprep.subr.mxu0 0.0
    %3585 = vmatpush1.msra.mxu0 0.0
    %3586 = vmatprep.subr.mxu0 0.0
    %3587 = vmatpush1.msra.mxu0 0.0
    %3588 = vmatprep.subr.mxu0 0.0
    %3589 = vmatpush1.msra.mxu0 0.0
    %3590 = vmatprep.subr.mxu0 0.0
    %3591 = vmatpush1.msra.mxu0 0.0
    %3592 = vmatprep.subr.mxu0 0.0
    %3593 = vmatpush1.msra.mxu0 0.0
    %3594 = vmatprep.subr.mxu0 0.0
    %3595 = vmatpush1.msra.mxu0 0.0
    %3596 = vmatprep.subr.mxu0 0.0
    %3597 = vmatpush1.msra.mxu0 0.0
    %3598 = vmatprep.subr.mxu0 0.0
    %3599 = vmatpush1.msra.mxu0 0.0
    %3600 = vmatprep.subr.mxu0 0.0
    %3601 = vmatpush1.msra.mxu0 0.0
    %3602 = vmatprep.subr.mxu0 0.0
    %3603 = vmatpush1.msra.mxu0 0.0
    %3604 = vmatprep.subr.mxu0 0.0
    %3605 = vmatpush1.msra.mxu0 0.0
    %3606 = vmatprep.subr.mxu0 0.0
    %3607 = vmatpush1.msra.mxu0 0.0
    %3608 = vmatprep.subr.mxu0 0.0
    %3609 = vmatpush1.msra.mxu0 0.0
    %3610 = vmatprep.subr.mxu0 0.0
    %3611 = vmatpush1.msra.mxu0 0.0
    %3612 = vmatprep.subr.mxu0 0.0
    %3613 = vmatpush1.msra.mxu0 0.0
    %3614 = vmatprep.subr.mxu0 0.0
    %3615 = vmatpush1.msra.mxu0 0.0
    %3616 = vmatprep.subr.mxu0 0.0
    %3617 = vmatpush1.msra.mxu0 0.0
    %3618 = vmatprep.subr.mxu0 0.0
    %3619 = vmatpush1.msra.mxu0 0.0
    %3620 = vmatprep.subr.mxu0 0.0
    %3621 = vmatpush1.msra.mxu0 0.0
    %3622 = vmatprep.mubr.f32.mxu0 0.0
    %3623 = vmatmul.mubr.f32.gmra.mrb[0].mxu0 %v3553
    %v3624 = vpop.f32.mrb[0].mxu0
    %v3625 = vadd.f32 %v3549, %v3624
    %v3626 = vpop.f32.mrb[0].mxu0
    %3627 = vmatprep.mubr.f32.mxu0 0.0
    %3628 = vmatmul.mubr.f32.gmra.mrb[0].mxu0 %v3556
    %v3629 = vpop.f32.mrb[0].mxu0
    %v3630 = vadd.f32 %v3549, %v3629
    %v3631 = vpop.f32.mrb[0].mxu0
    %3632 = vdwg.mxu0
    %v3633 = vadd.f32 %v3440, %v3625
    %v3634 = vadd.f32 %v3441, %v3630
    %v3635 = vld [vmem:[%s5 + $0xb] sm:$0x1]
    %v3636 = vld [vmem:[%s5 + $0xc] sm:$0x1]
    %v3637 = vsel %vm55, %v3633, 0.0
    %3638 = vadd.xlane.f32.xlu0 %v3637
    %v3639 = vpop.xlane.xlu0 %3638
    %v3640 = vsel %vm55, %v3634, 0.0
    %3641 = vadd.xlane.f32.xlu0 %v3640
    %v3642 = vpop.xlane.xlu0 %3641
    %v3643 = vmul.f32 %v3633, %v3633
    %v3644 = vmul.f32 %v3634, %v3634
    %v3645 = vsel %vm55, %v3643, 0.0
    %3646 = vadd.xlane.f32.xlu0 %v3645
    %v3647 = vpop.xlane.xlu0 %3646
    %v3648 = vsel %vm55, %v3644, 0.0
    %3649 = vadd.xlane.f32.xlu0 %v3648
    %v3650 = vpop.xlane.xlu0 %3649
    %v3651 = vmul.f32 %v3639, 0.03125
    %v3652 = vmul.f32 %v3642, 0.03125
    %v3653 = vmul.f32 %v3651, %v3639
    %v3654 = vmul.f32 %v3652, %v3642
    %v3655 = vsub.f32 %v3647, %v3653
    %v3656 = vsub.f32 %v3650, %v3654
    %v3657 = vmul.f32 %v3655, 0.032258064
    %v3658 = vmul.f32 %v3656, 0.032258064
    %v3659 = vmax.f32 %v3657, 0.0
    %v3660 = vmax.f32 %v3658, 0.0
    %v3661 = vrsqrt.pop %v3659
    %v3662 = vmul.f32 %v3659, %v3661
    %vm3663 = vcmp.eq.f32.partialorder %v3659, inf
    %v3664 = vsel %vm3663, %v3659, %v3662
    %vm3665 = vcmp.eq.f32.partialorder %v3659, 0.0
    %v3666 = vand.u32 %v3659, 2147483648
    %v3667 = vsel %vm3665, %v3666, %v3664
    %v3668 = vrsqrt.pop %v3660
    %v3669 = vmul.f32 %v3660, %v3668
    %vm3670 = vcmp.eq.f32.partialorder %v3660, inf
    %v3671 = vsel %vm3670, %v3660, %v3669
    %vm3672 = vcmp.eq.f32.partialorder %v3660, 0.0
    %v3673 = vand.u32 %v3660, 2147483648
    %v3674 = vsel %vm3672, %v3673, %v3671
    %v3675 = vsub.f32 %v3633, %v3651
    %v3676 = vsub.f32 %v3634, %v3652
    %v3677 = vadd.f32 %v3667, 1e-12
    %v3678 = vadd.f32 %v3674, 1e-12
    %v3679 = vrcp.pop %v3677
    %v3680 = vmul.f32 %v3675, %v3679
    %v3681 = vrcp.pop %v3678
    %v3682 = vmul.f32 %v3676, %v3681
    %v3684 = vlaneseq
    %v3685 = vshrl.u32 %v3684, 7
    %v3686 = vsub.s32 0, %v3685
    %v3687 = vrot.slane %v3635, %v3686
    %v3689 = vmul.f32 %v3687, %v3680
    %v3690 = vmul.f32 %v3687, %v3682
    %v3692 = vlaneseq
    %v3693 = vshrl.u32 %v3692, 7
    %v3694 = vsub.s32 0, %v3693
    %v3695 = vrot.slane %v3636, %v3694
    %v3697 = vadd.f32 %v3689, %v3695
    %v3698 = vadd.f32 %v3690, %v3695
    %v3699 = vld [vmem:[#allocation2 + $0x30] sm:$0xff]
    %v3700 = vld [vmem:[#allocation2 + $0xa8] sm:$0xff]
    %v3701 = vld [vmem:[#allocation2 + $0x120] sm:$0xff]
    %v3702 = vld [vmem:[#allocation2 + $0x198] sm:$0xff]
    %v3703 = vld [vmem:[%s5 + $0xd] sm:$0x1]
    %v3705 = vlaneseq
    %v3706 = vshrl.u32 %v3705, 7
    %v3707 = vsub.s32 0, %v3706
    %v3708 = vrot.slane %v3703, %v3707
    %v3711 = vsel %vm55, %v3697, 0
    %v3714 = vsel %vm55, %v3698, 0
    %3716 = vmatprep.subr.mxu0 0.0
    %3717 = vmatpush1.msra.mxu0 %v3699
    %3718 = vmatprep.subr.mxu0 0.0
    %3719 = vmatpush1.msra.mxu0 %v3700
    %3720 = vmatprep.subr.mxu0 0.0
    %3721 = vmatpush1.msra.mxu0 %v3701
    %3722 = vmatprep.subr.mxu0 0.0
    %3723 = vmatpush1.msra.mxu0 %v3702
    %3724 = vmatprep.subr.mxu0 0.0
    %3725 = vmatpush1.msra.mxu0 0.0
    %3726 = vmatprep.subr.mxu0 0.0
    %3727 = vmatpush1.msra.mxu0 0.0
    %3728 = vmatprep.subr.mxu0 0.0
    %3729 = vmatpush1.msra.mxu0 0.0
    %3730 = vmatprep.subr.mxu0 0.0
    %3731 = vmatpush1.msra.mxu0 0.0
    %3732 = vmatprep.subr.mxu0 0.0
    %3733 = vmatpush1.msra.mxu0 0.0
    %3734 = vmatprep.subr.mxu0 0.0
    %3735 = vmatpush1.msra.mxu0 0.0
    %3736 = vmatprep.subr.mxu0 0.0
    %3737 = vmatpush1.msra.mxu0 0.0
    %3738 = vmatprep.subr.mxu0 0.0
    %3739 = vmatpush1.msra.mxu0 0.0
    %3740 = vmatprep.subr.mxu0 0.0
    %3741 = vmatpush1.msra.mxu0 0.0
    %3742 = vmatprep.subr.mxu0 0.0
    %3743 = vmatpush1.msra.mxu0 0.0
    %3744 = vmatprep.subr.mxu0 0.0
    %3745 = vmatpush1.msra.mxu0 0.0
    %3746 = vmatprep.subr.mxu0 0.0
    %3747 = vmatpush1.msra.mxu0 0.0
    %3748 = vmatprep.subr.mxu0 0.0
    %3749 = vmatpush1.msra.mxu0 0.0
    %3750 = vmatprep.subr.mxu0 0.0
    %3751 = vmatpush1.msra.mxu0 0.0
    %3752 = vmatprep.subr.mxu0 0.0
    %3753 = vmatpush1.msra.mxu0 0.0
    %3754 = vmatprep.subr.mxu0 0.0
    %3755 = vmatpush1.msra.mxu0 0.0
    %3756 = vmatprep.subr.mxu0 0.0
    %3757 = vmatpush1.msra.mxu0 0.0
    %3758 = vmatprep.subr.mxu0 0.0
    %3759 = vmatpush1.msra.mxu0 0.0
    %3760 = vmatprep.subr.mxu0 0.0
    %3761 = vmatpush1.msra.mxu0 0.0
    %3762 = vmatprep.subr.mxu0 0.0
    %3763 = vmatpush1.msra.mxu0 0.0
    %3764 = vmatprep.subr.mxu0 0.0
    %3765 = vmatpush1.msra.mxu0 0.0
    %3766 = vmatprep.subr.mxu0 0.0
    %3767 = vmatpush1.msra.mxu0 0.0
    %3768 = vmatprep.subr.mxu0 0.0
    %3769 = vmatpush1.msra.mxu0 0.0
    %3770 = vmatprep.subr.mxu0 0.0
    %3771 = vmatpush1.msra.mxu0 0.0
    %3772 = vmatprep.subr.mxu0 0.0
    %3773 = vmatpush1.msra.mxu0 0.0
    %3774 = vmatprep.subr.mxu0 0.0
    %3775 = vmatpush1.msra.mxu0 0.0
    %3776 = vmatprep.subr.mxu0 0.0
    %3777 = vmatpush1.msra.mxu0 0.0
    %3778 = vmatprep.subr.mxu0 0.0
    %3779 = vmatpush1.msra.mxu0 0.0
    %3780 = vmatprep.mubr.f32.mxu0 0.0
    %3781 = vmatmul.mubr.f32.gmra.mrb[0].mxu0 %v3711
    %v3782 = vpop.f32.mrb[0].mxu0
    %v3783 = vadd.f32 %v3708, %v3782
    %v3784 = vpop.f32.mrb[0].mxu0
    %3785 = vmatprep.mubr.f32.mxu0 0.0
    %3786 = vmatmul.mubr.f32.gmra.mrb[0].mxu0 %v3714
    %v3787 = vpop.f32.mrb[0].mxu0
    %v3788 = vadd.f32 %v3708, %v3787
    %v3789 = vpop.f32.mrb[0].mxu0
    %3790 = vdwg.mxu0
    %v3791 = vld [vmem:[#allocation2 + $0x38] sm:$0xff]
    %v3792 = vld [vmem:[#allocation2 + $0xb0] sm:$0xff]
    %v3793 = vld [vmem:[#allocation2 + $0x128] sm:$0xff]
    %v3794 = vld [vmem:[#allocation2 + $0x1a0] sm:$0xff]
    %v3795 = vld [vmem:[%s5 + $0xe] sm:$0x1]
    %3798 = vrot.lane.b32.xlu0 %v3783, 120
    %v3799 = vpop.permute.xlu0 %3798
    %3800 = vrot.lane.b32.xlu0 %v3788, 120
    %v3801 = vpop.permute.xlu0 %3800
    %3802 = vrot.lane.b32.xlu0 %v3783, 112
    %v3803 = vpop.permute.xlu0 %3802
    %3804 = vrot.lane.b32.xlu0 %v3788, 112
    %v3805 = vpop.permute.xlu0 %3804
    %3806 = vrot.lane.b32.xlu0 %v3783, 104
    %v3807 = vpop.permute.xlu0 %3806
    %3808 = vrot.lane.b32.xlu0 %v3788, 104
    %v3809 = vpop.permute.xlu0 %3808
    %3810 = vrot.lane.b32.xlu0 %v3783, 96
    %v3811 = vpop.permute.xlu0 %3810
    %v3812 = vsel %vm342, %v3783, 0
    %v3814 = vsel %vm342, %v3811, 0
    %3816 = vmatprep.subr.mxu0 0.0
    %3817 = vmatpush1.xpose.msra.mxu0 %v3814
    %3818 = vmatprep.subr.mxu0 0.0
    %3819 = vmatpush1.xpose.msra.mxu0 0.0
    %3820 = vmatprep.subr.mxu0 0.0
    %3821 = vmatpush1.xpose.msra.mxu0 0.0
    %3822 = vmatprep.subr.mxu0 0.0
    %3823 = vmatpush1.xpose.msra.mxu0 0.0
    %3824 = vmatprep.subr.mxu0 0.0
    %3825 = vmatpush1.xpose.msra.mxu0 0.0
    %3826 = vmatprep.subr.mxu0 0.0
    %3827 = vmatpush1.xpose.msra.mxu0 0.0
    %3828 = vmatprep.subr.mxu0 0.0
    %3829 = vmatpush1.xpose.msra.mxu0 0.0
    %3830 = vmatprep.subr.mxu0 0.0
    %3831 = vmatpush1.xpose.msra.mxu0 0.0
    %3832 = vmatprep.subr.mxu0 0.0
    %3833 = vmatpush1.xpose.msra.mxu0 0.0
    %3834 = vmatprep.subr.mxu0 0.0
    %3835 = vmatpush1.xpose.msra.mxu0 0.0
    %3836 = vmatprep.subr.mxu0 0.0
    %3837 = vmatpush1.xpose.msra.mxu0 0.0
    %3838 = vmatprep.subr.mxu0 0.0
    %3839 = vmatpush1.xpose.msra.mxu0 0.0
    %3840 = vmatprep.subr.mxu0 0.0
    %3841 = vmatpush1.xpose.msra.mxu0 0.0
    %3842 = vmatprep.subr.mxu0 0.0
    %3843 = vmatpush1.xpose.msra.mxu0 0.0
    %3844 = vmatprep.subr.mxu0 0.0
    %3845 = vmatpush1.xpose.msra.mxu0 0.0
    %3846 = vmatprep.subr.mxu0 0.0
    %3847 = vmatpush1.xpose.msra.mxu0 0.0
    %3848 = vmatprep.subr.mxu0 0.0
    %3849 = vmatpush1.xpose.msra.mxu0 0.0
    %3850 = vmatprep.subr.mxu0 0.0
    %3851 = vmatpush1.xpose.msra.mxu0 0.0
    %3852 = vmatprep.subr.mxu0 0.0
    %3853 = vmatpush1.xpose.msra.mxu0 0.0
    %3854 = vmatprep.subr.mxu0 0.0
    %3855 = vmatpush1.xpose.msra.mxu0 0.0
    %3856 = vmatprep.subr.mxu0 0.0
    %3857 = vmatpush1.xpose.msra.mxu0 0.0
    %3858 = vmatprep.subr.mxu0 0.0
    %3859 = vmatpush1.xpose.msra.mxu0 0.0
    %3860 = vmatprep.subr.mxu0 0.0
    %3861 = vmatpush1.xpose.msra.mxu0 0.0
    %3862 = vmatprep.subr.mxu0 0.0
    %3863 = vmatpush1.xpose.msra.mxu0 0.0
    %3864 = vmatprep.subr.mxu0 0.0
    %3865 = vmatpush1.xpose.msra.mxu0 0.0
    %3866 = vmatprep.subr.mxu0 0.0
    %3867 = vmatpush1.xpose.msra.mxu0 0.0
    %3868 = vmatprep.subr.mxu0 0.0
    %3869 = vmatpush1.xpose.msra.mxu0 0.0
    %3870 = vmatprep.subr.mxu0 0.0
    %3871 = vmatpush1.xpose.msra.mxu0 0.0
    %3872 = vmatprep.subr.mxu0 0.0
    %3873 = vmatpush1.xpose.msra.mxu0 0.0
    %3874 = vmatprep.subr.mxu0 0.0
    %3875 = vmatpush1.xpose.msra.mxu0 0.0
    %3876 = vmatprep.subr.mxu0 0.0
    %3877 = vmatpush1.xpose.msra.mxu0 0.0
    %3878 = vmatprep.subr.mxu0 0.0
    %3879 = vmatpush1.xpose.msra.mxu0 0.0
    %3880 = vmatprep.mubr.f32.mxu0 0.0
    %3881 = vmatmul.mubr.f32.gmra.mrb[0].mxu0 %v3812
    %v3882 = vpop.f32.mrb[0].mxu0
    %v3883 = vadd.f32 0.0, %v3882
    %v3884 = vpop.f32.mrb[0].mxu0
    %3885 = vdwg.mxu0
    %3886 = vrot.lane.b32.xlu0 %v3788, 96
    %v3887 = vpop.permute.xlu0 %3886
    %v3888 = vsel %vm342, %v3788, 0
    %v3890 = vsel %vm342, %v3887, 0
    %3892 = vmatprep.subr.mxu0 0.0
    %3893 = vmatpush1.xpose.msra.mxu0 %v3890
    %3894 = vmatprep.subr.mxu0 0.0
    %3895 = vmatpush1.xpose.msra.mxu0 0.0
    %3896 = vmatprep.subr.mxu0 0.0
    %3897 = vmatpush1.xpose.msra.mxu0 0.0
    %3898 = vmatprep.subr.mxu0 0.0
    %3899 = vmatpush1.xpose.msra.mxu0 0.0
    %3900 = vmatprep.subr.mxu0 0.0
    %3901 = vmatpush1.xpose.msra.mxu0 0.0
    %3902 = vmatprep.subr.mxu0 0.0
    %3903 = vmatpush1.xpose.msra.mxu0 0.0
    %3904 = vmatprep.subr.mxu0 0.0
    %3905 = vmatpush1.xpose.msra.mxu0 0.0
    %3906 = vmatprep.subr.mxu0 0.0
    %3907 = vmatpush1.xpose.msra.mxu0 0.0
    %3908 = vmatprep.subr.mxu0 0.0
    %3909 = vmatpush1.xpose.msra.mxu0 0.0
    %3910 = vmatprep.subr.mxu0 0.0
    %3911 = vmatpush1.xpose.msra.mxu0 0.0
    %3912 = vmatprep.subr.mxu0 0.0
    %3913 = vmatpush1.xpose.msra.mxu0 0.0
    %3914 = vmatprep.subr.mxu0 0.0
    %3915 = vmatpush1.xpose.msra.mxu0 0.0
    %3916 = vmatprep.subr.mxu0 0.0
    %3917 = vmatpush1.xpose.msra.mxu0 0.0
    %3918 = vmatprep.subr.mxu0 0.0
    %3919 = vmatpush1.xpose.msra.mxu0 0.0
    %3920 = vmatprep.subr.mxu0 0.0
    %3921 = vmatpush1.xpose.msra.mxu0 0.0
    %3922 = vmatprep.subr.mxu0 0.0
    %3923 = vmatpush1.xpose.msra.mxu0 0.0
    %3924 = vmatprep.subr.mxu0 0.0
    %3925 = vmatpush1.xpose.msra.mxu0 0.0
    %3926 = vmatprep.subr.mxu0 0.0
    %3927 = vmatpush1.xpose.msra.mxu0 0.0
    %3928 = vmatprep.subr.mxu0 0.0
    %3929 = vmatpush1.xpose.msra.mxu0 0.0
    %3930 = vmatprep.subr.mxu0 0.0
    %3931 = vmatpush1.xpose.msra.mxu0 0.0
    %3932 = vmatprep.subr.mxu0 0.0
    %3933 = vmatpush1.xpose.msra.mxu0 0.0
    %3934 = vmatprep.subr.mxu0 0.0
    %3935 = vmatpush1.xpose.msra.mxu0 0.0
    %3936 = vmatprep.subr.mxu0 0.0
    %3937 = vmatpush1.xpose.msra.mxu0 0.0
    %3938 = vmatprep.subr.mxu0 0.0
    %3939 = vmatpush1.xpose.msra.mxu0 0.0
    %3940 = vmatprep.subr.mxu0 0.0
    %3941 = vmatpush1.xpose.msra.mxu0 0.0
    %3942 = vmatprep.subr.mxu0 0.0
    %3943 = vmatpush1.xpose.msra.mxu0 0.0
    %3944 = vmatprep.subr.mxu0 0.0
    %3945 = vmatpush1.xpose.msra.mxu0 0.0
    %3946 = vmatprep.subr.mxu0 0.0
    %3947 = vmatpush1.xpose.msra.mxu0 0.0
    %3948 = vmatprep.subr.mxu0 0.0
    %3949 = vmatpush1.xpose.msra.mxu0 0.0
    %3950 = vmatprep.subr.mxu0 0.0
    %3951 = vmatpush1.xpose.msra.mxu0 0.0
    %3952 = vmatprep.subr.mxu0 0.0
    %3953 = vmatpush1.xpose.msra.mxu0 0.0
    %3954 = vmatprep.subr.mxu0 0.0
    %3955 = vmatpush1.xpose.msra.mxu0 0.0
    %3956 = vmatprep.mubr.f32.mxu0 0.0
    %3957 = vmatmul.mubr.f32.gmra.mrb[0].mxu0 %v3888
    %v3958 = vpop.f32.mrb[0].mxu0
    %v3959 = vadd.f32 0.0, %v3958
    %v3960 = vpop.f32.mrb[0].mxu0
    %3961 = vdwg.mxu0
    %3962 = vrot.lane.b32.xlu0 %v3799, 96
    %v3963 = vpop.permute.xlu0 %3962
    %v3964 = vsel %vm342, %v3799, 0
    %v3966 = vsel %vm342, %v3963, 0
    %3968 = vmatprep.subr.mxu0 0.0
    %3969 = vmatpush1.xpose.msra.mxu0 %v3966
    %3970 = vmatprep.subr.mxu0 0.0
    %3971 = vmatpush1.xpose.msra.mxu0 0.0
    %3972 = vmatprep.subr.mxu0 0.0
    %3973 = vmatpush1.xpose.msra.mxu0 0.0
    %3974 = vmatprep.subr.mxu0 0.0
    %3975 = vmatpush1.xpose.msra.mxu0 0.0
    %3976 = vmatprep.subr.mxu0 0.0
    %3977 = vmatpush1.xpose.msra.mxu0 0.0
    %3978 = vmatprep.subr.mxu0 0.0
    %3979 = vmatpush1.xpose.msra.mxu0 0.0
    %3980 = vmatprep.subr.mxu0 0.0
    %3981 = vmatpush1.xpose.msra.mxu0 0.0
    %3982 = vmatprep.subr.mxu0 0.0
    %3983 = vmatpush1.xpose.msra.mxu0 0.0
    %3984 = vmatprep.subr.mxu0 0.0
    %3985 = vmatpush1.xpose.msra.mxu0 0.0
    %3986 = vmatprep.subr.mxu0 0.0
    %3987 = vmatpush1.xpose.msra.mxu0 0.0
    %3988 = vmatprep.subr.mxu0 0.0
    %3989 = vmatpush1.xpose.msra.mxu0 0.0
    %3990 = vmatprep.subr.mxu0 0.0
    %3991 = vmatpush1.xpose.msra.mxu0 0.0
    %3992 = vmatprep.subr.mxu0 0.0
    %3993 = vmatpush1.xpose.msra.mxu0 0.0
    %3994 = vmatprep.subr.mxu0 0.0
    %3995 = vmatpush1.xpose.msra.mxu0 0.0
    %3996 = vmatprep.subr.mxu0 0.0
    %3997 = vmatpush1.xpose.msra.mxu0 0.0
    %3998 = vmatprep.subr.mxu0 0.0
    %3999 = vmatpush1.xpose.msra.mxu0 0.0
    %4000 = vmatprep.subr.mxu0 0.0
    %4001 = vmatpush1.xpose.msra.mxu0 0.0
    %4002 = vmatprep.subr.mxu0 0.0
    %4003 = vmatpush1.xpose.msra.mxu0 0.0
    %4004 = vmatprep.subr.mxu0 0.0
    %4005 = vmatpush1.xpose.msra.mxu0 0.0
    %4006 = vmatprep.subr.mxu0 0.0
    %4007 = vmatpush1.xpose.msra.mxu0 0.0
    %4008 = vmatprep.subr.mxu0 0.0
    %4009 = vmatpush1.xpose.msra.mxu0 0.0
    %4010 = vmatprep.subr.mxu0 0.0
    %4011 = vmatpush1.xpose.msra.mxu0 0.0
    %4012 = vmatprep.subr.mxu0 0.0
    %4013 = vmatpush1.xpose.msra.mxu0 0.0
    %4014 = vmatprep.subr.mxu0 0.0
    %4015 = vmatpush1.xpose.msra.mxu0 0.0
    %4016 = vmatprep.subr.mxu0 0.0
    %4017 = vmatpush1.xpose.msra.mxu0 0.0
    %4018 = vmatprep.subr.mxu0 0.0
    %4019 = vmatpush1.xpose.msra.mxu0 0.0
    %4020 = vmatprep.subr.mxu0 0.0
    %4021 = vmatpush1.xpose.msra.mxu0 0.0
    %4022 = vmatprep.subr.mxu0 0.0
    %4023 = vmatpush1.xpose.msra.mxu0 0.0
    %4024 = vmatprep.subr.mxu0 0.0
    %4025 = vmatpush1.xpose.msra.mxu0 0.0
    %4026 = vmatprep.subr.mxu0 0.0
    %4027 = vmatpush1.xpose.msra.mxu0 0.0
    %4028 = vmatprep.subr.mxu0 0.0
    %4029 = vmatpush1.xpose.msra.mxu0 0.0
    %4030 = vmatprep.subr.mxu0 0.0
    %4031 = vmatpush1.xpose.msra.mxu0 0.0
    %4032 = vmatprep.mubr.f32.mxu0 0.0
    %4033 = vmatmul.mubr.f32.gmra.mrb[0].mxu0 %v3964
    %v4034 = vpop.f32.mrb[0].mxu0
    %v4035 = vadd.f32 0.0, %v4034
    %v4036 = vpop.f32.mrb[0].mxu0
    %4037 = vdwg.mxu0
    %4038 = vrot.lane.b32.xlu0 %v3801, 96
    %v4039 = vpop.permute.xlu0 %4038
    %v4040 = vsel %vm342, %v3801, 0
    %v4042 = vsel %vm342, %v4039, 0
    %4044 = vmatprep.subr.mxu0 0.0
    %4045 = vmatpush1.xpose.msra.mxu0 %v4042
    %4046 = vmatprep.subr.mxu0 0.0
    %4047 = vmatpush1.xpose.msra.mxu0 0.0
    %4048 = vmatprep.subr.mxu0 0.0
    %4049 = vmatpush1.xpose.msra.mxu0 0.0
    %4050 = vmatprep.subr.mxu0 0.0
    %4051 = vmatpush1.xpose.msra.mxu0 0.0
    %4052 = vmatprep.subr.mxu0 0.0
    %4053 = vmatpush1.xpose.msra.mxu0 0.0
    %4054 = vmatprep.subr.mxu0 0.0
    %4055 = vmatpush1.xpose.msra.mxu0 0.0
    %4056 = vmatprep.subr.mxu0 0.0
    %4057 = vmatpush1.xpose.msra.mxu0 0.0
    %4058 = vmatprep.subr.mxu0 0.0
    %4059 = vmatpush1.xpose.msra.mxu0 0.0
    %4060 = vmatprep.subr.mxu0 0.0
    %4061 = vmatpush1.xpose.msra.mxu0 0.0
    %4062 = vmatprep.subr.mxu0 0.0
    %4063 = vmatpush1.xpose.msra.mxu0 0.0
    %4064 = vmatprep.subr.mxu0 0.0
    %4065 = vmatpush1.xpose.msra.mxu0 0.0
    %4066 = vmatprep.subr.mxu0 0.0
    %4067 = vmatpush1.xpose.msra.mxu0 0.0
    %4068 = vmatprep.subr.mxu0 0.0
    %4069 = vmatpush1.xpose.msra.mxu0 0.0
    %4070 = vmatprep.subr.mxu0 0.0
    %4071 = vmatpush1.xpose.msra.mxu0 0.0
    %4072 = vmatprep.subr.mxu0 0.0
    %4073 = vmatpush1.xpose.msra.mxu0 0.0
    %4074 = vmatprep.subr.mxu0 0.0
    %4075 = vmatpush1.xpose.msra.mxu0 0.0
    %4076 = vmatprep.subr.mxu0 0.0
    %4077 = vmatpush1.xpose.msra.mxu0 0.0
    %4078 = vmatprep.subr.mxu0 0.0
    %4079 = vmatpush1.xpose.msra.mxu0 0.0
    %4080 = vmatprep.subr.mxu0 0.0
    %4081 = vmatpush1.xpose.msra.mxu0 0.0
    %4082 = vmatprep.subr.mxu0 0.0
    %4083 = vmatpush1.xpose.msra.mxu0 0.0
    %4084 = vmatprep.subr.mxu0 0.0
    %4085 = vmatpush1.xpose.msra.mxu0 0.0
    %4086 = vmatprep.subr.mxu0 0.0
    %4087 = vmatpush1.xpose.msra.mxu0 0.0
    %4088 = vmatprep.subr.mxu0 0.0
    %4089 = vmatpush1.xpose.msra.mxu0 0.0
    %4090 = vmatprep.subr.mxu0 0.0
    %4091 = vmatpush1.xpose.msra.mxu0 0.0
    %4092 = vmatprep.subr.mxu0 0.0
    %4093 = vmatpush1.xpose.msra.mxu0 0.0
    %4094 = vmatprep.subr.mxu0 0.0
    %4095 = vmatpush1.xpose.msra.mxu0 0.0
    %4096 = vmatprep.subr.mxu0 0.0
    %4097 = vmatpush1.xpose.msra.mxu0 0.0
    %4098 = vmatprep.subr.mxu0 0.0
    %4099 = vmatpush1.xpose.msra.mxu0 0.0
    %4100 = vmatprep.subr.mxu0 0.0
    %4101 = vmatpush1.xpose.msra.mxu0 0.0
    %4102 = vmatprep.subr.mxu0 0.0
    %4103 = vmatpush1.xpose.msra.mxu0 0.0
    %4104 = vmatprep.subr.mxu0 0.0
    %4105 = vmatpush1.xpose.msra.mxu0 0.0
    %4106 = vmatprep.subr.mxu0 0.0
    %4107 = vmatpush1.xpose.msra.mxu0 0.0
    %4108 = vmatprep.mubr.f32.mxu0 0.0
    %4109 = vmatmul.mubr.f32.gmra.mrb[0].mxu0 %v4040
    %v4110 = vpop.f32.mrb[0].mxu0
    %v4111 = vadd.f32 0.0, %v4110
    %v4112 = vpop.f32.mrb[0].mxu0
    %4113 = vdwg.mxu0
    %4114 = vrot.lane.b32.xlu0 %v3803, 96
    %v4115 = vpop.permute.xlu0 %4114
    %v4116 = vsel %vm342, %v3803, 0
    %v4118 = vsel %vm342, %v4115, 0
    %4120 = vmatprep.subr.mxu0 0.0
    %4121 = vmatpush1.xpose.msra.mxu0 %v4118
    %4122 = vmatprep.subr.mxu0 0.0
    %4123 = vmatpush1.xpose.msra.mxu0 0.0
    %4124 = vmatprep.subr.mxu0 0.0
    %4125 = vmatpush1.xpose.msra.mxu0 0.0
    %4126 = vmatprep.subr.mxu0 0.0
    %4127 = vmatpush1.xpose.msra.mxu0 0.0
    %4128 = vmatprep.subr.mxu0 0.0
    %4129 = vmatpush1.xpose.msra.mxu0 0.0
    %4130 = vmatprep.subr.mxu0 0.0
    %4131 = vmatpush1.xpose.msra.mxu0 0.0
    %4132 = vmatprep.subr.mxu0 0.0
    %4133 = vmatpush1.xpose.msra.mxu0 0.0
    %4134 = vmatprep.subr.mxu0 0.0
    %4135 = vmatpush1.xpose.msra.mxu0 0.0
    %4136 = vmatprep.subr.mxu0 0.0
    %4137 = vmatpush1.xpose.msra.mxu0 0.0
    %4138 = vmatprep.subr.mxu0 0.0
    %4139 = vmatpush1.xpose.msra.mxu0 0.0
    %4140 = vmatprep.subr.mxu0 0.0
    %4141 = vmatpush1.xpose.msra.mxu0 0.0
    %4142 = vmatprep.subr.mxu0 0.0
    %4143 = vmatpush1.xpose.msra.mxu0 0.0
    %4144 = vmatprep.subr.mxu0 0.0
    %4145 = vmatpush1.xpose.msra.mxu0 0.0
    %4146 = vmatprep.subr.mxu0 0.0
    %4147 = vmatpush1.xpose.msra.mxu0 0.0
    %4148 = vmatprep.subr.mxu0 0.0
    %4149 = vmatpush1.xpose.msra.mxu0 0.0
    %4150 = vmatprep.subr.mxu0 0.0
    %4151 = vmatpush1.xpose.msra.mxu0 0.0
    %4152 = vmatprep.subr.mxu0 0.0
    %4153 = vmatpush1.xpose.msra.mxu0 0.0
    %4154 = vmatprep.subr.mxu0 0.0
    %4155 = vmatpush1.xpose.msra.mxu0 0.0
    %4156 = vmatprep.subr.mxu0 0.0
    %4157 = vmatpush1.xpose.msra.mxu0 0.0
    %4158 = vmatprep.subr.mxu0 0.0
    %4159 = vmatpush1.xpose.msra.mxu0 0.0
    %4160 = vmatprep.subr.mxu0 0.0
    %4161 = vmatpush1.xpose.msra.mxu0 0.0
    %4162 = vmatprep.subr.mxu0 0.0
    %4163 = vmatpush1.xpose.msra.mxu0 0.0
    %4164 = vmatprep.subr.mxu0 0.0
    %4165 = vmatpush1.xpose.msra.mxu0 0.0
    %4166 = vmatprep.subr.mxu0 0.0
    %4167 = vmatpush1.xpose.msra.mxu0 0.0
    %4168 = vmatprep.subr.mxu0 0.0
    %4169 = vmatpush1.xpose.msra.mxu0 0.0
    %4170 = vmatprep.subr.mxu0 0.0
    %4171 = vmatpush1.xpose.msra.mxu0 0.0
    %4172 = vmatprep.subr.mxu0 0.0
    %4173 = vmatpush1.xpose.msra.mxu0 0.0
    %4174 = vmatprep.subr.mxu0 0.0
    %4175 = vmatpush1.xpose.msra.mxu0 0.0
    %4176 = vmatprep.subr.mxu0 0.0
    %4177 = vmatpush1.xpose.msra.mxu0 0.0
    %4178 = vmatprep.subr.mxu0 0.0
    %4179 = vmatpush1.xpose.msra.mxu0 0.0
    %4180 = vmatprep.subr.mxu0 0.0
    %4181 = vmatpush1.xpose.msra.mxu0 0.0
    %4182 = vmatprep.subr.mxu0 0.0
    %4183 = vmatpush1.xpose.msra.mxu0 0.0
    %4184 = vmatprep.mubr.f32.mxu0 0.0
    %4185 = vmatmul.mubr.f32.gmra.mrb[0].mxu0 %v4116
    %v4186 = vpop.f32.mrb[0].mxu0
    %v4187 = vadd.f32 0.0, %v4186
    %v4188 = vpop.f32.mrb[0].mxu0
    %4189 = vdwg.mxu0
    %4190 = vrot.lane.b32.xlu0 %v3805, 96
    %v4191 = vpop.permute.xlu0 %4190
    %v4192 = vsel %vm342, %v3805, 0
    %v4194 = vsel %vm342, %v4191, 0
    %4196 = vmatprep.subr.mxu0 0.0
    %4197 = vmatpush1.xpose.msra.mxu0 %v4194
    %4198 = vmatprep.subr.mxu0 0.0
    %4199 = vmatpush1.xpose.msra.mxu0 0.0
    %4200 = vmatprep.subr.mxu0 0.0
    %4201 = vmatpush1.xpose.msra.mxu0 0.0
    %4202 = vmatprep.subr.mxu0 0.0
    %4203 = vmatpush1.xpose.msra.mxu0 0.0
    %4204 = vmatprep.subr.mxu0 0.0
    %4205 = vmatpush1.xpose.msra.mxu0 0.0
    %4206 = vmatprep.subr.mxu0 0.0
    %4207 = vmatpush1.xpose.msra.mxu0 0.0
    %4208 = vmatprep.subr.mxu0 0.0
    %4209 = vmatpush1.xpose.msra.mxu0 0.0
    %4210 = vmatprep.subr.mxu0 0.0
    %4211 = vmatpush1.xpose.msra.mxu0 0.0
    %4212 = vmatprep.subr.mxu0 0.0
    %4213 = vmatpush1.xpose.msra.mxu0 0.0
    %4214 = vmatprep.subr.mxu0 0.0
    %4215 = vmatpush1.xpose.msra.mxu0 0.0
    %4216 = vmatprep.subr.mxu0 0.0
    %4217 = vmatpush1.xpose.msra.mxu0 0.0
    %4218 = vmatprep.subr.mxu0 0.0
    %4219 = vmatpush1.xpose.msra.mxu0 0.0
    %4220 = vmatprep.subr.mxu0 0.0
    %4221 = vmatpush1.xpose.msra.mxu0 0.0
    %4222 = vmatprep.subr.mxu0 0.0
    %4223 = vmatpush1.xpose.msra.mxu0 0.0
    %4224 = vmatprep.subr.mxu0 0.0
    %4225 = vmatpush1.xpose.msra.mxu0 0.0
    %4226 = vmatprep.subr.mxu0 0.0
    %4227 = vmatpush1.xpose.msra.mxu0 0.0
    %4228 = vmatprep.subr.mxu0 0.0
    %4229 = vmatpush1.xpose.msra.mxu0 0.0
    %4230 = vmatprep.subr.mxu0 0.0
    %4231 = vmatpush1.xpose.msra.mxu0 0.0
    %4232 = vmatprep.subr.mxu0 0.0
    %4233 = vmatpush1.xpose.msra.mxu0 0.0
    %4234 = vmatprep.subr.mxu0 0.0
    %4235 = vmatpush1.xpose.msra.mxu0 0.0
    %4236 = vmatprep.subr.mxu0 0.0
    %4237 = vmatpush1.xpose.msra.mxu0 0.0
    %4238 = vmatprep.subr.mxu0 0.0
    %4239 = vmatpush1.xpose.msra.mxu0 0.0
    %4240 = vmatprep.subr.mxu0 0.0
    %4241 = vmatpush1.xpose.msra.mxu0 0.0
    %4242 = vmatprep.subr.mxu0 0.0
    %4243 = vmatpush1.xpose.msra.mxu0 0.0
    %4244 = vmatprep.subr.mxu0 0.0
    %4245 = vmatpush1.xpose.msra.mxu0 0.0
    %4246 = vmatprep.subr.mxu0 0.0
    %4247 = vmatpush1.xpose.msra.mxu0 0.0
    %4248 = vmatprep.subr.mxu0 0.0
    %4249 = vmatpush1.xpose.msra.mxu0 0.0
    %4250 = vmatprep.subr.mxu0 0.0
    %4251 = vmatpush1.xpose.msra.mxu0 0.0
    %4252 = vmatprep.subr.mxu0 0.0
    %4253 = vmatpush1.xpose.msra.mxu0 0.0
    %4254 = vmatprep.subr.mxu0 0.0
    %4255 = vmatpush1.xpose.msra.mxu0 0.0
    %4256 = vmatprep.subr.mxu0 0.0
    %4257 = vmatpush1.xpose.msra.mxu0 0.0
    %4258 = vmatprep.subr.mxu0 0.0
    %4259 = vmatpush1.xpose.msra.mxu0 0.0
    %4260 = vmatprep.mubr.f32.mxu0 0.0
    %4261 = vmatmul.mubr.f32.gmra.mrb[0].mxu0 %v4192
    %v4262 = vpop.f32.mrb[0].mxu0
    %v4263 = vadd.f32 0.0, %v4262
    %v4264 = vpop.f32.mrb[0].mxu0
    %4265 = vdwg.mxu0
    %4266 = vrot.lane.b32.xlu0 %v3807, 96
    %v4267 = vpop.permute.xlu0 %4266
    %v4268 = vsel %vm342, %v3807, 0
    %v4270 = vsel %vm342, %v4267, 0
    %4272 = vmatprep.subr.mxu0 0.0
    %4273 = vmatpush1.xpose.msra.mxu0 %v4270
    %4274 = vmatprep.subr.mxu0 0.0
    %4275 = vmatpush1.xpose.msra.mxu0 0.0
    %4276 = vmatprep.subr.mxu0 0.0
    %4277 = vmatpush1.xpose.msra.mxu0 0.0
    %4278 = vmatprep.subr.mxu0 0.0
    %4279 = vmatpush1.xpose.msra.mxu0 0.0
    %4280 = vmatprep.subr.mxu0 0.0
    %4281 = vmatpush1.xpose.msra.mxu0 0.0
    %4282 = vmatprep.subr.mxu0 0.0
    %4283 = vmatpush1.xpose.msra.mxu0 0.0
    %4284 = vmatprep.subr.mxu0 0.0
    %4285 = vmatpush1.xpose.msra.mxu0 0.0
    %4286 = vmatprep.subr.mxu0 0.0
    %4287 = vmatpush1.xpose.msra.mxu0 0.0
    %4288 = vmatprep.subr.mxu0 0.0
    %4289 = vmatpush1.xpose.msra.mxu0 0.0
    %4290 = vmatprep.subr.mxu0 0.0
    %4291 = vmatpush1.xpose.msra.mxu0 0.0
    %4292 = vmatprep.subr.mxu0 0.0
    %4293 = vmatpush1.xpose.msra.mxu0 0.0
    %4294 = vmatprep.subr.mxu0 0.0
    %4295 = vmatpush1.xpose.msra.mxu0 0.0
    %4296 = vmatprep.subr.mxu0 0.0
    %4297 = vmatpush1.xpose.msra.mxu0 0.0
    %4298 = vmatprep.subr.mxu0 0.0
    %4299 = vmatpush1.xpose.msra.mxu0 0.0
    %4300 = vmatprep.subr.mxu0 0.0
    %4301 = vmatpush1.xpose.msra.mxu0 0.0
    %4302 = vmatprep.subr.mxu0 0.0
    %4303 = vmatpush1.xpose.msra.mxu0 0.0
    %4304 = vmatprep.subr.mxu0 0.0
    %4305 = vmatpush1.xpose.msra.mxu0 0.0
    %4306 = vmatprep.subr.mxu0 0.0
    %4307 = vmatpush1.xpose.msra.mxu0 0.0
    %4308 = vmatprep.subr.mxu0 0.0
    %4309 = vmatpush1.xpose.msra.mxu0 0.0
    %4310 = vmatprep.subr.mxu0 0.0
    %4311 = vmatpush1.xpose.msra.mxu0 0.0
    %4312 = vmatprep.subr.mxu0 0.0
    %4313 = vmatpush1.xpose.msra.mxu0 0.0
    %4314 = vmatprep.subr.mxu0 0.0
    %4315 = vmatpush1.xpose.msra.mxu0 0.0
    %4316 = vmatprep.subr.mxu0 0.0
    %4317 = vmatpush1.xpose.msra.mxu0 0.0
    %4318 = vmatprep.subr.mxu0 0.0
    %4319 = vmatpush1.xpose.msra.mxu0 0.0
    %4320 = vmatprep.subr.mxu0 0.0
    %4321 = vmatpush1.xpose.msra.mxu0 0.0
    %4322 = vmatprep.subr.mxu0 0.0
    %4323 = vmatpush1.xpose.msra.mxu0 0.0
    %4324 = vmatprep.subr.mxu0 0.0
    %4325 = vmatpush1.xpose.msra.mxu0 0.0
    %4326 = vmatprep.subr.mxu0 0.0
    %4327 = vmatpush1.xpose.msra.mxu0 0.0
    %4328 = vmatprep.subr.mxu0 0.0
    %4329 = vmatpush1.xpose.msra.mxu0 0.0
    %4330 = vmatprep.subr.mxu0 0.0
    %4331 = vmatpush1.xpose.msra.mxu0 0.0
    %4332 = vmatprep.subr.mxu0 0.0
    %4333 = vmatpush1.xpose.msra.mxu0 0.0
    %4334 = vmatprep.subr.mxu0 0.0
    %4335 = vmatpush1.xpose.msra.mxu0 0.0
    %4336 = vmatprep.mubr.f32.mxu0 0.0
    %4337 = vmatmul.mubr.f32.gmra.mrb[0].mxu0 %v4268
    %v4338 = vpop.f32.mrb[0].mxu0
    %v4339 = vadd.f32 0.0, %v4338
    %v4340 = vpop.f32.mrb[0].mxu0
    %4341 = vdwg.mxu0
    %4342 = vrot.lane.b32.xlu0 %v3809, 96
    %v4343 = vpop.permute.xlu0 %4342
    %v4344 = vsel %vm342, %v3809, 0
    %v4346 = vsel %vm342, %v4343, 0
    %4348 = vmatprep.subr.mxu0 0.0
    %4349 = vmatpush1.xpose.msra.mxu0 %v4346
    %4350 = vmatprep.subr.mxu0 0.0
    %4351 = vmatpush1.xpose.msra.mxu0 0.0
    %4352 = vmatprep.subr.mxu0 0.0
    %4353 = vmatpush1.xpose.msra.mxu0 0.0
    %4354 = vmatprep.subr.mxu0 0.0
    %4355 = vmatpush1.xpose.msra.mxu0 0.0
    %4356 = vmatprep.subr.mxu0 0.0
    %4357 = vmatpush1.xpose.msra.mxu0 0.0
    %4358 = vmatprep.subr.mxu0 0.0
    %4359 = vmatpush1.xpose.msra.mxu0 0.0
    %4360 = vmatprep.subr.mxu0 0.0
    %4361 = vmatpush1.xpose.msra.mxu0 0.0
    %4362 = vmatprep.subr.mxu0 0.0
    %4363 = vmatpush1.xpose.msra.mxu0 0.0
    %4364 = vmatprep.subr.mxu0 0.0
    %4365 = vmatpush1.xpose.msra.mxu0 0.0
    %4366 = vmatprep.subr.mxu0 0.0
    %4367 = vmatpush1.xpose.msra.mxu0 0.0
    %4368 = vmatprep.subr.mxu0 0.0
    %4369 = vmatpush1.xpose.msra.mxu0 0.0
    %4370 = vmatprep.subr.mxu0 0.0
    %4371 = vmatpush1.xpose.msra.mxu0 0.0
    %4372 = vmatprep.subr.mxu0 0.0
    %4373 = vmatpush1.xpose.msra.mxu0 0.0
    %4374 = vmatprep.subr.mxu0 0.0
    %4375 = vmatpush1.xpose.msra.mxu0 0.0
    %4376 = vmatprep.subr.mxu0 0.0
    %4377 = vmatpush1.xpose.msra.mxu0 0.0
    %4378 = vmatprep.subr.mxu0 0.0
    %4379 = vmatpush1.xpose.msra.mxu0 0.0
    %4380 = vmatprep.subr.mxu0 0.0
    %4381 = vmatpush1.xpose.msra.mxu0 0.0
    %4382 = vmatprep.subr.mxu0 0.0
    %4383 = vmatpush1.xpose.msra.mxu0 0.0
    %4384 = vmatprep.subr.mxu0 0.0
    %4385 = vmatpush1.xpose.msra.mxu0 0.0
    %4386 = vmatprep.subr.mxu0 0.0
    %4387 = vmatpush1.xpose.msra.mxu0 0.0
    %4388 = vmatprep.subr.mxu0 0.0
    %4389 = vmatpush1.xpose.msra.mxu0 0.0
    %4390 = vmatprep.subr.mxu0 0.0
    %4391 = vmatpush1.xpose.msra.mxu0 0.0
    %4392 = vmatprep.subr.mxu0 0.0
    %4393 = vmatpush1.xpose.msra.mxu0 0.0
    %4394 = vmatprep.subr.mxu0 0.0
    %4395 = vmatpush1.xpose.msra.mxu0 0.0
    %4396 = vmatprep.subr.mxu0 0.0
    %4397 = vmatpush1.xpose.msra.mxu0 0.0
    %4398 = vmatprep.subr.mxu0 0.0
    %4399 = vmatpush1.xpose.msra.mxu0 0.0
    %4400 = vmatprep.subr.mxu0 0.0
    %4401 = vmatpush1.xpose.msra.mxu0 0.0
    %4402 = vmatprep.subr.mxu0 0.0
    %4403 = vmatpush1.xpose.msra.mxu0 0.0
    %4404 = vmatprep.subr.mxu0 0.0
    %4405 = vmatpush1.xpose.msra.mxu0 0.0
    %4406 = vmatprep.subr.mxu0 0.0
    %4407 = vmatpush1.xpose.msra.mxu0 0.0
    %4408 = vmatprep.subr.mxu0 0.0
    %4409 = vmatpush1.xpose.msra.mxu0 0.0
    %4410 = vmatprep.subr.mxu0 0.0
    %4411 = vmatpush1.xpose.msra.mxu0 0.0
    %4412 = vmatprep.mubr.f32.mxu0 0.0
    %4413 = vmatmul.mubr.f32.gmra.mrb[0].mxu0 %v4344
    %v4414 = vpop.f32.mrb[0].mxu0
    %v4415 = vadd.f32 0.0, %v4414
    %v4416 = vpop.f32.mrb[0].mxu0
    %4417 = vdwg.mxu0
    %v4418 = vmul.f32 %v3883, 0.35355338
    %v4419 = vmul.f32 %v3959, 0.35355338
    %v4420 = vmul.f32 %v4035, 0.35355338
    %v4421 = vmul.f32 %v4111, 0.35355338
    %v4422 = vmul.f32 %v4187, 0.35355338
    %v4423 = vmul.f32 %v4263, 0.35355338
    %v4424 = vmul.f32 %v4339, 0.35355338
    %v4425 = vmul.f32 %v4415, 0.35355338
    %v4426 = vsel %vm342, %v4418, -inf
    %4427 = vmax.xlane.f32.xlu0 %v4426
    %v4428 = vpop.xlane.xlu0 %4427
    %v4429 = vsel %vm342, %v4419, -inf
    %4430 = vmax.xlane.f32.xlu0 %v4429
    %v4431 = vpop.xlane.xlu0 %4430
    %v4432 = vsel %vm342, %v4420, -inf
    %4433 = vmax.xlane.f32.xlu0 %v4432
    %v4434 = vpop.xlane.xlu0 %4433
    %v4435 = vsel %vm342, %v4421, -inf
    %4436 = vmax.xlane.f32.xlu0 %v4435
    %v4437 = vpop.xlane.xlu0 %4436
    %v4438 = vsel %vm342, %v4422, -inf
    %4439 = vmax.xlane.f32.xlu0 %v4438
    %v4440 = vpop.xlane.xlu0 %4439
    %v4441 = vsel %vm342, %v4423, -inf
    %4442 = vmax.xlane.f32.xlu0 %v4441
    %v4443 = vpop.xlane.xlu0 %4442
    %v4444 = vsel %vm342, %v4424, -inf
    %4445 = vmax.xlane.f32.xlu0 %v4444
    %v4446 = vpop.xlane.xlu0 %4445
    %v4447 = vsel %vm342, %v4425, -inf
    %4448 = vmax.xlane.f32.xlu0 %v4447
    %v4449 = vpop.xlane.xlu0 %4448
    %v4450 = vsub.f32 %v4418, %v4428
    %v4451 = vsub.f32 %v4419, %v4431
    %v4452 = vsub.f32 %v4420, %v4434
    %v4453 = vsub.f32 %v4421, %v4437
    %v4454 = vsub.f32 %v4422, %v4440
    %v4455 = vsub.f32 %v4423, %v4443
    %v4456 = vsub.f32 %v4424, %v4446
    %v4457 = vsub.f32 %v4425, %v4449
    %v4458 = vmul.f32 %v4450, 1.442695
    %v4459 = vpow.pop %v4458
    %v4460 = vmul.f32 %v4451, 1.442695
    %v4461 = vpow.pop %v4460
    %v4462 = vmul.f32 %v4452, 1.442695
    %v4463 = vpow.pop %v4462
    %v4464 = vmul.f32 %v4453, 1.442695
    %v4465 = vpow.pop %v4464
    %v4466 = vmul.f32 %v4454, 1.442695
    %v4467 = vpow.pop %v4466
    %v4468 = vmul.f32 %v4455, 1.442695
    %v4469 = vpow.pop %v4468
    %v4470 = vmul.f32 %v4456, 1.442695
    %v4471 = vpow.pop %v4470
    %v4472 = vmul.f32 %v4457, 1.442695
    %v4473 = vpow.pop %v4472
    %v4474 = vsel %vm342, %v4459, 0.0
    %4475 = vadd.xlane.f32.xlu0 %v4474
    %v4476 = vpop.xlane.xlu0 %4475
    %v4477 = vsel %vm342, %v4461, 0.0
    %4478 = vadd.xlane.f32.xlu0 %v4477
    %v4479 = vpop.xlane.xlu0 %4478
    %v4480 = vsel %vm342, %v4463, 0.0
    %4481 = vadd.xlane.f32.xlu0 %v4480
    %v4482 = vpop.xlane.xlu0 %4481
    %v4483 = vsel %vm342, %v4465, 0.0
    %4484 = vadd.xlane.f32.xlu0 %v4483
    %v4485 = vpop.xlane.xlu0 %4484
    %v4486 = vsel %vm342, %v4467, 0.0
    %4487 = vadd.xlane.f32.xlu0 %v4486
    %v4488 = vpop.xlane.xlu0 %4487
    %v4489 = vsel %vm342, %v4469, 0.0
    %4490 = vadd.xlane.f32.xlu0 %v4489
    %v4491 = vpop.xlane.xlu0 %4490
    %v4492 = vsel %vm342, %v4471, 0.0
    %4493 = vadd.xlane.f32.xlu0 %v4492
    %v4494 = vpop.xlane.xlu0 %4493
    %v4495 = vsel %vm342, %v4473, 0.0
    %4496 = vadd.xlane.f32.xlu0 %v4495
    %v4497 = vpop.xlane.xlu0 %4496
    %v4498 = vrcp.pop %v4476
    %v4499 = vmul.f32 %v4459, %v4498
    %v4500 = vrcp.pop %v4479
    %v4501 = vmul.f32 %v4461, %v4500
    %v4502 = vrcp.pop %v4482
    %v4503 = vmul.f32 %v4463, %v4502
    %v4504 = vrcp.pop %v4485
    %v4505 = vmul.f32 %v4465, %v4504
    %v4506 = vrcp.pop %v4488
    %v4507 = vmul.f32 %v4467, %v4506
    %v4508 = vrcp.pop %v4491
    %v4509 = vmul.f32 %v4469, %v4508
    %v4510 = vrcp.pop %v4494
    %v4511 = vmul.f32 %v4471, %v4510
    %v4512 = vrcp.pop %v4497
    %v4513 = vmul.f32 %v4473, %v4512
    %4514 = vrot.lane.b32.xlu0 %v3783, 64
    %v4515 = vpop.permute.xlu0 %4514
    %v4518 = vsel %vm342, %v4499, 0
    %4520 = vmatprep.subr.mxu0 0.0
    %4521 = vmatpush1.msra.mxu0 %v4515
    %4522 = vmatprep.subr.mxu0 0.0
    %4523 = vmatpush1.msra.mxu0 0.0
    %4524 = vmatprep.subr.mxu0 0.0
    %4525 = vmatpush1.msra.mxu0 0.0
    %4526 = vmatprep.subr.mxu0 0.0
    %4527 = vmatpush1.msra.mxu0 0.0
    %4528 = vmatprep.subr.mxu0 0.0
    %4529 = vmatpush1.msra.mxu0 0.0
    %4530 = vmatprep.subr.mxu0 0.0
    %4531 = vmatpush1.msra.mxu0 0.0
    %4532 = vmatprep.subr.mxu0 0.0
    %4533 = vmatpush1.msra.mxu0 0.0
    %4534 = vmatprep.subr.mxu0 0.0
    %4535 = vmatpush1.msra.mxu0 0.0
    %4536 = vmatprep.subr.mxu0 0.0
    %4537 = vmatpush1.msra.mxu0 0.0
    %4538 = vmatprep.subr.mxu0 0.0
    %4539 = vmatpush1.msra.mxu0 0.0
    %4540 = vmatprep.subr.mxu0 0.0
    %4541 = vmatpush1.msra.mxu0 0.0
    %4542 = vmatprep.subr.mxu0 0.0
    %4543 = vmatpush1.msra.mxu0 0.0
    %4544 = vmatprep.subr.mxu0 0.0
    %4545 = vmatpush1.msra.mxu0 0.0
    %4546 = vmatprep.subr.mxu0 0.0
    %4547 = vmatpush1.msra.mxu0 0.0
    %4548 = vmatprep.subr.mxu0 0.0
    %4549 = vmatpush1.msra.mxu0 0.0
    %4550 = vmatprep.subr.mxu0 0.0
    %4551 = vmatpush1.msra.mxu0 0.0
    %4552 = vmatprep.subr.mxu0 0.0
    %4553 = vmatpush1.msra.mxu0 0.0
    %4554 = vmatprep.subr.mxu0 0.0
    %4555 = vmatpush1.msra.mxu0 0.0
    %4556 = vmatprep.subr.mxu0 0.0
    %4557 = vmatpush1.msra.mxu0 0.0
    %4558 = vmatprep.subr.mxu0 0.0
    %4559 = vmatpush1.msra.mxu0 0.0
    %4560 = vmatprep.subr.mxu0 0.0
    %4561 = vmatpush1.msra.mxu0 0.0
    %4562 = vmatprep.subr.mxu0 0.0
    %4563 = vmatpush1.msra.mxu0 0.0
    %4564 = vmatprep.subr.mxu0 0.0
    %4565 = vmatpush1.msra.mxu0 0.0
    %4566 = vmatprep.subr.mxu0 0.0
    %4567 = vmatpush1.msra.mxu0 0.0
    %4568 = vmatprep.subr.mxu0 0.0
    %4569 = vmatpush1.msra.mxu0 0.0
    %4570 = vmatprep.subr.mxu0 0.0
    %4571 = vmatpush1.msra.mxu0 0.0
    %4572 = vmatprep.subr.mxu0 0.0
    %4573 = vmatpush1.msra.mxu0 0.0
    %4574 = vmatprep.subr.mxu0 0.0
    %4575 = vmatpush1.msra.mxu0 0.0
    %4576 = vmatprep.subr.mxu0 0.0
    %4577 = vmatpush1.msra.mxu0 0.0
    %4578 = vmatprep.subr.mxu0 0.0
    %4579 = vmatpush1.msra.mxu0 0.0
    %4580 = vmatprep.subr.mxu0 0.0
    %4581 = vmatpush1.msra.mxu0 0.0
    %4582 = vmatprep.subr.mxu0 0.0
    %4583 = vmatpush1.msra.mxu0 0.0
    %4584 = vmatprep.mubr.f32.mxu0 0.0
    %4585 = vmatmul.mubr.f32.gmra.mrb[0].mxu0 %v4518
    %v4586 = vpop.f32.mrb[0].mxu0
    %v4587 = vadd.f32 0.0, %v4586
    %v4588 = vpop.f32.mrb[0].mxu0
    %4589 = vdwg.mxu0
    %4590 = vrot.lane.b32.xlu0 %v3788, 64
    %v4591 = vpop.permute.xlu0 %4590
    %v4594 = vsel %vm342, %v4501, 0
    %4596 = vmatprep.subr.mxu0 0.0
    %4597 = vmatpush1.msra.mxu0 %v4591
    %4598 = vmatprep.subr.mxu0 0.0
    %4599 = vmatpush1.msra.mxu0 0.0
    %4600 = vmatprep.subr.mxu0 0.0
    %4601 = vmatpush1.msra.mxu0 0.0
    %4602 = vmatprep.subr.mxu0 0.0
    %4603 = vmatpush1.msra.mxu0 0.0
    %4604 = vmatprep.subr.mxu0 0.0
    %4605 = vmatpush1.msra.mxu0 0.0
    %4606 = vmatprep.subr.mxu0 0.0
    %4607 = vmatpush1.msra.mxu0 0.0
    %4608 = vmatprep.subr.mxu0 0.0
    %4609 = vmatpush1.msra.mxu0 0.0
    %4610 = vmatprep.subr.mxu0 0.0
    %4611 = vmatpush1.msra.mxu0 0.0
    %4612 = vmatprep.subr.mxu0 0.0
    %4613 = vmatpush1.msra.mxu0 0.0
    %4614 = vmatprep.subr.mxu0 0.0
    %4615 = vmatpush1.msra.mxu0 0.0
    %4616 = vmatprep.subr.mxu0 0.0
    %4617 = vmatpush1.msra.mxu0 0.0
    %4618 = vmatprep.subr.mxu0 0.0
    %4619 = vmatpush1.msra.mxu0 0.0
    %4620 = vmatprep.subr.mxu0 0.0
    %4621 = vmatpush1.msra.mxu0 0.0
    %4622 = vmatprep.subr.mxu0 0.0
    %4623 = vmatpush1.msra.mxu0 0.0
    %4624 = vmatprep.subr.mxu0 0.0
    %4625 = vmatpush1.msra.mxu0 0.0
    %4626 = vmatprep.subr.mxu0 0.0
    %4627 = vmatpush1.msra.mxu0 0.0
    %4628 = vmatprep.subr.mxu0 0.0
    %4629 = vmatpush1.msra.mxu0 0.0
    %4630 = vmatprep.subr.mxu0 0.0
    %4631 = vmatpush1.msra.mxu0 0.0
    %4632 = vmatprep.subr.mxu0 0.0
    %4633 = vmatpush1.msra.mxu0 0.0
    %4634 = vmatprep.subr.mxu0 0.0
    %4635 = vmatpush1.msra.mxu0 0.0
    %4636 = vmatprep.subr.mxu0 0.0
    %4637 = vmatpush1.msra.mxu0 0.0
    %4638 = vmatprep.subr.mxu0 0.0
    %4639 = vmatpush1.msra.mxu0 0.0
    %4640 = vmatprep.subr.mxu0 0.0
    %4641 = vmatpush1.msra.mxu0 0.0
    %4642 = vmatprep.subr.mxu0 0.0
    %4643 = vmatpush1.msra.mxu0 0.0
    %4644 = vmatprep.subr.mxu0 0.0
    %4645 = vmatpush1.msra.mxu0 0.0
    %4646 = vmatprep.subr.mxu0 0.0
    %4647 = vmatpush1.msra.mxu0 0.0
    %4648 = vmatprep.subr.mxu0 0.0
    %4649 = vmatpush1.msra.mxu0 0.0
    %4650 = vmatprep.subr.mxu0 0.0
    %4651 = vmatpush1.msra.mxu0 0.0
    %4652 = vmatprep.subr.mxu0 0.0
    %4653 = vmatpush1.msra.mxu0 0.0
    %4654 = vmatprep.subr.mxu0 0.0
    %4655 = vmatpush1.msra.mxu0 0.0
    %4656 = vmatprep.subr.mxu0 0.0
    %4657 = vmatpush1.msra.mxu0 0.0
    %4658 = vmatprep.subr.mxu0 0.0
    %4659 = vmatpush1.msra.mxu0 0.0
    %4660 = vmatprep.mubr.f32.mxu0 0.0
    %4661 = vmatmul.mubr.f32.gmra.mrb[0].mxu0 %v4594
    %v4662 = vpop.f32.mrb[0].mxu0
    %v4663 = vadd.f32 0.0, %v4662
    %v4664 = vpop.f32.mrb[0].mxu0
    %4665 = vdwg.mxu0
    %4666 = vrot.lane.b32.xlu0 %v3799, 64
    %v4667 = vpop.permute.xlu0 %4666
    %v4670 = vsel %vm342, %v4503, 0
    %4672 = vmatprep.subr.mxu0 0.0
    %4673 = vmatpush1.msra.mxu0 %v4667
    %4674 = vmatprep.subr.mxu0 0.0
    %4675 = vmatpush1.msra.mxu0 0.0
    %4676 = vmatprep.subr.mxu0 0.0
    %4677 = vmatpush1.msra.mxu0 0.0
    %4678 = vmatprep.subr.mxu0 0.0
    %4679 = vmatpush1.msra.mxu0 0.0
    %4680 = vmatprep.subr.mxu0 0.0
    %4681 = vmatpush1.msra.mxu0 0.0
    %4682 = vmatprep.subr.mxu0 0.0
    %4683 = vmatpush1.msra.mxu0 0.0
    %4684 = vmatprep.subr.mxu0 0.0
    %4685 = vmatpush1.msra.mxu0 0.0
    %4686 = vmatprep.subr.mxu0 0.0
    %4687 = vmatpush1.msra.mxu0 0.0
    %4688 = vmatprep.subr.mxu0 0.0
    %4689 = vmatpush1.msra.mxu0 0.0
    %4690 = vmatprep.subr.mxu0 0.0
    %4691 = vmatpush1.msra.mxu0 0.0
    %4692 = vmatprep.subr.mxu0 0.0
    %4693 = vmatpush1.msra.mxu0 0.0
    %4694 = vmatprep.subr.mxu0 0.0
    %4695 = vmatpush1.msra.mxu0 0.0
    %4696 = vmatprep.subr.mxu0 0.0
    %4697 = vmatpush1.msra.mxu0 0.0
    %4698 = vmatprep.subr.mxu0 0.0
    %4699 = vmatpush1.msra.mxu0 0.0
    %4700 = vmatprep.subr.mxu0 0.0
    %4701 = vmatpush1.msra.mxu0 0.0
    %4702 = vmatprep.subr.mxu0 0.0
    %4703 = vmatpush1.msra.mxu0 0.0
    %4704 = vmatprep.subr.mxu0 0.0
    %4705 = vmatpush1.msra.mxu0 0.0
    %4706 = vmatprep.subr.mxu0 0.0
    %4707 = vmatpush1.msra.mxu0 0.0
    %4708 = vmatprep.subr.mxu0 0.0
    %4709 = vmatpush1.msra.mxu0 0.0
    %4710 = vmatprep.subr.mxu0 0.0
    %4711 = vmatpush1.msra.mxu0 0.0
    %4712 = vmatprep.subr.mxu0 0.0
    %4713 = vmatpush1.msra.mxu0 0.0
    %4714 = vmatprep.subr.mxu0 0.0
    %4715 = vmatpush1.msra.mxu0 0.0
    %4716 = vmatprep.subr.mxu0 0.0
    %4717 = vmatpush1.msra.mxu0 0.0
    %4718 = vmatprep.subr.mxu0 0.0
    %4719 = vmatpush1.msra.mxu0 0.0
    %4720 = vmatprep.subr.mxu0 0.0
    %4721 = vmatpush1.msra.mxu0 0.0
    %4722 = vmatprep.subr.mxu0 0.0
    %4723 = vmatpush1.msra.mxu0 0.0
    %4724 = vmatprep.subr.mxu0 0.0
    %4725 = vmatpush1.msra.mxu0 0.0
    %4726 = vmatprep.subr.mxu0 0.0
    %4727 = vmatpush1.msra.mxu0 0.0
    %4728 = vmatprep.subr.mxu0 0.0
    %4729 = vmatpush1.msra.mxu0 0.0
    %4730 = vmatprep.subr.mxu0 0.0
    %4731 = vmatpush1.msra.mxu0 0.0
    %4732 = vmatprep.subr.mxu0 0.0
    %4733 = vmatpush1.msra.mxu0 0.0
    %4734 = vmatprep.subr.mxu0 0.0
    %4735 = vmatpush1.msra.mxu0 0.0
    %4736 = vmatprep.mubr.f32.mxu0 0.0
    %4737 = vmatmul.mubr.f32.gmra.mrb[0].mxu0 %v4670
    %v4738 = vpop.f32.mrb[0].mxu0
    %v4739 = vadd.f32 0.0, %v4738
    %v4740 = vpop.f32.mrb[0].mxu0
    %4741 = vdwg.mxu0
    %4742 = vrot.lane.b32.xlu0 %v3801, 64
    %v4743 = vpop.permute.xlu0 %4742
    %v4746 = vsel %vm342, %v4505, 0
    %4748 = vmatprep.subr.mxu0 0.0
    %4749 = vmatpush1.msra.mxu0 %v4743
    %4750 = vmatprep.subr.mxu0 0.0
    %4751 = vmatpush1.msra.mxu0 0.0
    %4752 = vmatprep.subr.mxu0 0.0
    %4753 = vmatpush1.msra.mxu0 0.0
    %4754 = vmatprep.subr.mxu0 0.0
    %4755 = vmatpush1.msra.mxu0 0.0
    %4756 = vmatprep.subr.mxu0 0.0
    %4757 = vmatpush1.msra.mxu0 0.0
    %4758 = vmatprep.subr.mxu0 0.0
    %4759 = vmatpush1.msra.mxu0 0.0
    %4760 = vmatprep.subr.mxu0 0.0
    %4761 = vmatpush1.msra.mxu0 0.0
    %4762 = vmatprep.subr.mxu0 0.0
    %4763 = vmatpush1.msra.mxu0 0.0
    %4764 = vmatprep.subr.mxu0 0.0
    %4765 = vmatpush1.msra.mxu0 0.0
    %4766 = vmatprep.subr.mxu0 0.0
    %4767 = vmatpush1.msra.mxu0 0.0
    %4768 = vmatprep.subr.mxu0 0.0
    %4769 = vmatpush1.msra.mxu0 0.0
    %4770 = vmatprep.subr.mxu0 0.0
    %4771 = vmatpush1.msra.mxu0 0.0
    %4772 = vmatprep.subr.mxu0 0.0
    %4773 = vmatpush1.msra.mxu0 0.0
    %4774 = vmatprep.subr.mxu0 0.0
    %4775 = vmatpush1.msra.mxu0 0.0
    %4776 = vmatprep.subr.mxu0 0.0
    %4777 = vmatpush1.msra.mxu0 0.0
    %4778 = vmatprep.subr.mxu0 0.0
    %4779 = vmatpush1.msra.mxu0 0.0
    %4780 = vmatprep.subr.mxu0 0.0
    %4781 = vmatpush1.msra.mxu0 0.0
    %4782 = vmatprep.subr.mxu0 0.0
    %4783 = vmatpush1.msra.mxu0 0.0
    %4784 = vmatprep.subr.mxu0 0.0
    %4785 = vmatpush1.msra.mxu0 0.0
    %4786 = vmatprep.subr.mxu0 0.0
    %4787 = vmatpush1.msra.mxu0 0.0
    %4788 = vmatprep.subr.mxu0 0.0
    %4789 = vmatpush1.msra.mxu0 0.0
    %4790 = vmatprep.subr.mxu0 0.0
    %4791 = vmatpush1.msra.mxu0 0.0
    %4792 = vmatprep.subr.mxu0 0.0
    %4793 = vmatpush1.msra.mxu0 0.0
    %4794 = vmatprep.subr.mxu0 0.0
    %4795 = vmatpush1.msra.mxu0 0.0
    %4796 = vmatprep.subr.mxu0 0.0
    %4797 = vmatpush1.msra.mxu0 0.0
    %4798 = vmatprep.subr.mxu0 0.0
    %4799 = vmatpush1.msra.mxu0 0.0
    %4800 = vmatprep.subr.mxu0 0.0
    %4801 = vmatpush1.msra.mxu0 0.0
    %4802 = vmatprep.subr.mxu0 0.0
    %4803 = vmatpush1.msra.mxu0 0.0
    %4804 = vmatprep.subr.mxu0 0.0
    %4805 = vmatpush1.msra.mxu0 0.0
    %4806 = vmatprep.subr.mxu0 0.0
    %4807 = vmatpush1.msra.mxu0 0.0
    %4808 = vmatprep.subr.mxu0 0.0
    %4809 = vmatpush1.msra.mxu0 0.0
    %4810 = vmatprep.subr.mxu0 0.0
    %4811 = vmatpush1.msra.mxu0 0.0
    %4812 = vmatprep.mubr.f32.mxu0 0.0
    %4813 = vmatmul.mubr.f32.gmra.mrb[0].mxu0 %v4746
    %v4814 = vpop.f32.mrb[0].mxu0
    %v4815 = vadd.f32 0.0, %v4814
    %v4816 = vpop.f32.mrb[0].mxu0
    %4817 = vdwg.mxu0
    %4818 = vrot.lane.b32.xlu0 %v3803, 64
    %v4819 = vpop.permute.xlu0 %4818
    %v4822 = vsel %vm342, %v4507, 0
    %4824 = vmatprep.subr.mxu0 0.0
    %4825 = vmatpush1.msra.mxu0 %v4819
    %4826 = vmatprep.subr.mxu0 0.0
    %4827 = vmatpush1.msra.mxu0 0.0
    %4828 = vmatprep.subr.mxu0 0.0
    %4829 = vmatpush1.msra.mxu0 0.0
    %4830 = vmatprep.subr.mxu0 0.0
    %4831 = vmatpush1.msra.mxu0 0.0
    %4832 = vmatprep.subr.mxu0 0.0
    %4833 = vmatpush1.msra.mxu0 0.0
    %4834 = vmatprep.subr.mxu0 0.0
    %4835 = vmatpush1.msra.mxu0 0.0
    %4836 = vmatprep.subr.mxu0 0.0
    %4837 = vmatpush1.msra.mxu0 0.0
    %4838 = vmatprep.subr.mxu0 0.0
    %4839 = vmatpush1.msra.mxu0 0.0
    %4840 = vmatprep.subr.mxu0 0.0
    %4841 = vmatpush1.msra.mxu0 0.0
    %4842 = vmatprep.subr.mxu0 0.0
    %4843 = vmatpush1.msra.mxu0 0.0
    %4844 = vmatprep.subr.mxu0 0.0
    %4845 = vmatpush1.msra.mxu0 0.0
    %4846 = vmatprep.subr.mxu0 0.0
    %4847 = vmatpush1.msra.mxu0 0.0
    %4848 = vmatprep.subr.mxu0 0.0
    %4849 = vmatpush1.msra.mxu0 0.0
    %4850 = vmatprep.subr.mxu0 0.0
    %4851 = vmatpush1.msra.mxu0 0.0
    %4852 = vmatprep.subr.mxu0 0.0
    %4853 = vmatpush1.msra.mxu0 0.0
    %4854 = vmatprep.subr.mxu0 0.0
    %4855 = vmatpush1.msra.mxu0 0.0
    %4856 = vmatprep.subr.mxu0 0.0
    %4857 = vmatpush1.msra.mxu0 0.0
    %4858 = vmatprep.subr.mxu0 0.0
    %4859 = vmatpush1.msra.mxu0 0.0
    %4860 = vmatprep.subr.mxu0 0.0
    %4861 = vmatpush1.msra.mxu0 0.0
    %4862 = vmatprep.subr.mxu0 0.0
    %4863 = vmatpush1.msra.mxu0 0.0
    %4864 = vmatprep.subr.mxu0 0.0
    %4865 = vmatpush1.msra.mxu0 0.0
    %4866 = vmatprep.subr.mxu0 0.0
    %4867 = vmatpush1.msra.mxu0 0.0
    %4868 = vmatprep.subr.mxu0 0.0
    %4869 = vmatpush1.msra.mxu0 0.0
    %4870 = vmatprep.subr.mxu0 0.0
    %4871 = vmatpush1.msra.mxu0 0.0
    %4872 = vmatprep.subr.mxu0 0.0
    %4873 = vmatpush1.msra.mxu0 0.0
    %4874 = vmatprep.subr.mxu0 0.0
    %4875 = vmatpush1.msra.mxu0 0.0
    %4876 = vmatprep.subr.mxu0 0.0
    %4877 = vmatpush1.msra.mxu0 0.0
    %4878 = vmatprep.subr.mxu0 0.0
    %4879 = vmatpush1.msra.mxu0 0.0
    %4880 = vmatprep.subr.mxu0 0.0
    %4881 = vmatpush1.msra.mxu0 0.0
    %4882 = vmatprep.subr.mxu0 0.0
    %4883 = vmatpush1.msra.mxu0 0.0
    %4884 = vmatprep.subr.mxu0 0.0
    %4885 = vmatpush1.msra.mxu0 0.0
    %4886 = vmatprep.subr.mxu0 0.0
    %4887 = vmatpush1.msra.mxu0 0.0
    %4888 = vmatprep.mubr.f32.mxu0 0.0
    %4889 = vmatmul.mubr.f32.gmra.mrb[0].mxu0 %v4822
    %v4890 = vpop.f32.mrb[0].mxu0
    %v4891 = vadd.f32 0.0, %v4890
    %v4892 = vpop.f32.mrb[0].mxu0
    %4893 = vdwg.mxu0
    %4894 = vrot.lane.b32.xlu0 %v3805, 64
    %v4895 = vpop.permute.xlu0 %4894
    %v4898 = vsel %vm342, %v4509, 0
    %4900 = vmatprep.subr.mxu0 0.0
    %4901 = vmatpush1.msra.mxu0 %v4895
    %4902 = vmatprep.subr.mxu0 0.0
    %4903 = vmatpush1.msra.mxu0 0.0
    %4904 = vmatprep.subr.mxu0 0.0
    %4905 = vmatpush1.msra.mxu0 0.0
    %4906 = vmatprep.subr.mxu0 0.0
    %4907 = vmatpush1.msra.mxu0 0.0
    %4908 = vmatprep.subr.mxu0 0.0
    %4909 = vmatpush1.msra.mxu0 0.0
    %4910 = vmatprep.subr.mxu0 0.0
    %4911 = vmatpush1.msra.mxu0 0.0
    %4912 = vmatprep.subr.mxu0 0.0
    %4913 = vmatpush1.msra.mxu0 0.0
    %4914 = vmatprep.subr.mxu0 0.0
    %4915 = vmatpush1.msra.mxu0 0.0
    %4916 = vmatprep.subr.mxu0 0.0
    %4917 = vmatpush1.msra.mxu0 0.0
    %4918 = vmatprep.subr.mxu0 0.0
    %4919 = vmatpush1.msra.mxu0 0.0
    %4920 = vmatprep.subr.mxu0 0.0
    %4921 = vmatpush1.msra.mxu0 0.0
    %4922 = vmatprep.subr.mxu0 0.0
    %4923 = vmatpush1.msra.mxu0 0.0
    %4924 = vmatprep.subr.mxu0 0.0
    %4925 = vmatpush1.msra.mxu0 0.0
    %4926 = vmatprep.subr.mxu0 0.0
    %4927 = vmatpush1.msra.mxu0 0.0
    %4928 = vmatprep.subr.mxu0 0.0
    %4929 = vmatpush1.msra.mxu0 0.0
    %4930 = vmatprep.subr.mxu0 0.0
    %4931 = vmatpush1.msra.mxu0 0.0
    %4932 = vmatprep.subr.mxu0 0.0
    %4933 = vmatpush1.msra.mxu0 0.0
    %4934 = vmatprep.subr.mxu0 0.0
    %4935 = vmatpush1.msra.mxu0 0.0
    %4936 = vmatprep.subr.mxu0 0.0
    %4937 = vmatpush1.msra.mxu0 0.0
    %4938 = vmatprep.subr.mxu0 0.0
    %4939 = vmatpush1.msra.mxu0 0.0
    %4940 = vmatprep.subr.mxu0 0.0
    %4941 = vmatpush1.msra.mxu0 0.0
    %4942 = vmatprep.subr.mxu0 0.0
    %4943 = vmatpush1.msra.mxu0 0.0
    %4944 = vmatprep.subr.mxu0 0.0
    %4945 = vmatpush1.msra.mxu0 0.0
    %4946 = vmatprep.subr.mxu0 0.0
    %4947 = vmatpush1.msra.mxu0 0.0
    %4948 = vmatprep.subr.mxu0 0.0
    %4949 = vmatpush1.msra.mxu0 0.0
    %4950 = vmatprep.subr.mxu0 0.0
    %4951 = vmatpush1.msra.mxu0 0.0
    %4952 = vmatprep.subr.mxu0 0.0
    %4953 = vmatpush1.msra.mxu0 0.0
    %4954 = vmatprep.subr.mxu0 0.0
    %4955 = vmatpush1.msra.mxu0 0.0
    %4956 = vmatprep.subr.mxu0 0.0
    %4957 = vmatpush1.msra.mxu0 0.0
    %4958 = vmatprep.subr.mxu0 0.0
    %4959 = vmatpush1.msra.mxu0 0.0
    %4960 = vmatprep.subr.mxu0 0.0
    %4961 = vmatpush1.msra.mxu0 0.0
    %4962 = vmatprep.subr.mxu0 0.0
    %4963 = vmatpush1.msra.mxu0 0.0
    %4964 = vmatprep.mubr.f32.mxu0 0.0
    %4965 = vmatmul.mubr.f32.gmra.mrb[0].mxu0 %v4898
    %v4966 = vpop.f32.mrb[0].mxu0
    %v4967 = vadd.f32 0.0, %v4966
    %v4968 = vpop.f32.mrb[0].mxu0
    %4969 = vdwg.mxu0
    %4970 = vrot.lane.b32.xlu0 %v3807, 64
    %v4971 = vpop.permute.xlu0 %4970
    %v4974 = vsel %vm342, %v4511, 0
    %4976 = vmatprep.subr.mxu0 0.0
    %4977 = vmatpush1.msra.mxu0 %v4971
    %4978 = vmatprep.subr.mxu0 0.0
    %4979 = vmatpush1.msra.mxu0 0.0
    %4980 = vmatprep.subr.mxu0 0.0
    %4981 = vmatpush1.msra.mxu0 0.0
    %4982 = vmatprep.subr.mxu0 0.0
    %4983 = vmatpush1.msra.mxu0 0.0
    %4984 = vmatprep.subr.mxu0 0.0
    %4985 = vmatpush1.msra.mxu0 0.0
    %4986 = vmatprep.subr.mxu0 0.0
    %4987 = vmatpush1.msra.mxu0 0.0
    %4988 = vmatprep.subr.mxu0 0.0
    %4989 = vmatpush1.msra.mxu0 0.0
    %4990 = vmatprep.subr.mxu0 0.0
    %4991 = vmatpush1.msra.mxu0 0.0
    %4992 = vmatprep.subr.mxu0 0.0
    %4993 = vmatpush1.msra.mxu0 0.0
    %4994 = vmatprep.subr.mxu0 0.0
    %4995 = vmatpush1.msra.mxu0 0.0
    %4996 = vmatprep.subr.mxu0 0.0
    %4997 = vmatpush1.msra.mxu0 0.0
    %4998 = vmatprep.subr.mxu0 0.0
    %4999 = vmatpush1.msra.mxu0 0.0
    %5000 = vmatprep.subr.mxu0 0.0
    %5001 = vmatpush1.msra.mxu0 0.0
    %5002 = vmatprep.subr.mxu0 0.0
    %5003 = vmatpush1.msra.mxu0 0.0
    %5004 = vmatprep.subr.mxu0 0.0
    %5005 = vmatpush1.msra.mxu0 0.0
    %5006 = vmatprep.subr.mxu0 0.0
    %5007 = vmatpush1.msra.mxu0 0.0
    %5008 = vmatprep.subr.mxu0 0.0
    %5009 = vmatpush1.msra.mxu0 0.0
    %5010 = vmatprep.subr.mxu0 0.0
    %5011 = vmatpush1.msra.mxu0 0.0
    %5012 = vmatprep.subr.mxu0 0.0
    %5013 = vmatpush1.msra.mxu0 0.0
    %5014 = vmatprep.subr.mxu0 0.0
    %5015 = vmatpush1.msra.mxu0 0.0
    %5016 = vmatprep.subr.mxu0 0.0
    %5017 = vmatpush1.msra.mxu0 0.0
    %5018 = vmatprep.subr.mxu0 0.0
    %5019 = vmatpush1.msra.mxu0 0.0
    %5020 = vmatprep.subr.mxu0 0.0
    %5021 = vmatpush1.msra.mxu0 0.0
    %5022 = vmatprep.subr.mxu0 0.0
    %5023 = vmatpush1.msra.mxu0 0.0
    %5024 = vmatprep.subr.mxu0 0.0
    %5025 = vmatpush1.msra.mxu0 0.0
    %5026 = vmatprep.subr.mxu0 0.0
    %5027 = vmatpush1.msra.mxu0 0.0
    %5028 = vmatprep.subr.mxu0 0.0
    %5029 = vmatpush1.msra.mxu0 0.0
    %5030 = vmatprep.subr.mxu0 0.0
    %5031 = vmatpush1.msra.mxu0 0.0
    %5032 = vmatprep.subr.mxu0 0.0
    %5033 = vmatpush1.msra.mxu0 0.0
    %5034 = vmatprep.subr.mxu0 0.0
    %5035 = vmatpush1.msra.mxu0 0.0
    %5036 = vmatprep.subr.mxu0 0.0
    %5037 = vmatpush1.msra.mxu0 0.0
    %5038 = vmatprep.subr.mxu0 0.0
    %5039 = vmatpush1.msra.mxu0 0.0
    %5040 = vmatprep.mubr.f32.mxu0 0.0
    %5041 = vmatmul.mubr.f32.gmra.mrb[0].mxu0 %v4974
    %v5042 = vpop.f32.mrb[0].mxu0
    %v5043 = vadd.f32 0.0, %v5042
    %v5044 = vpop.f32.mrb[0].mxu0
    %5045 = vdwg.mxu0
    %5046 = vrot.lane.b32.xlu0 %v3809, 64
    %v5047 = vpop.permute.xlu0 %5046
    %v5050 = vsel %vm342, %v4513, 0
    %5052 = vmatprep.subr.mxu0 0.0
    %5053 = vmatpush1.msra.mxu0 %v5047
    %5054 = vmatprep.subr.mxu0 0.0
    %5055 = vmatpush1.msra.mxu0 0.0
    %5056 = vmatprep.subr.mxu0 0.0
    %5057 = vmatpush1.msra.mxu0 0.0
    %5058 = vmatprep.subr.mxu0 0.0
    %5059 = vmatpush1.msra.mxu0 0.0
    %5060 = vmatprep.subr.mxu0 0.0
    %5061 = vmatpush1.msra.mxu0 0.0
    %5062 = vmatprep.subr.mxu0 0.0
    %5063 = vmatpush1.msra.mxu0 0.0
    %5064 = vmatprep.subr.mxu0 0.0
    %5065 = vmatpush1.msra.mxu0 0.0
    %5066 = vmatprep.subr.mxu0 0.0
    %5067 = vmatpush1.msra.mxu0 0.0
    %5068 = vmatprep.subr.mxu0 0.0
    %5069 = vmatpush1.msra.mxu0 0.0
    %5070 = vmatprep.subr.mxu0 0.0
    %5071 = vmatpush1.msra.mxu0 0.0
    %5072 = vmatprep.subr.mxu0 0.0
    %5073 = vmatpush1.msra.mxu0 0.0
    %5074 = vmatprep.subr.mxu0 0.0
    %5075 = vmatpush1.msra.mxu0 0.0
    %5076 = vmatprep.subr.mxu0 0.0
    %5077 = vmatpush1.msra.mxu0 0.0
    %5078 = vmatprep.subr.mxu0 0.0
    %5079 = vmatpush1.msra.mxu0 0.0
    %5080 = vmatprep.subr.mxu0 0.0
    %5081 = vmatpush1.msra.mxu0 0.0
    %5082 = vmatprep.subr.mxu0 0.0
    %5083 = vmatpush1.msra.mxu0 0.0
    %5084 = vmatprep.subr.mxu0 0.0
    %5085 = vmatpush1.msra.mxu0 0.0
    %5086 = vmatprep.subr.mxu0 0.0
    %5087 = vmatpush1.msra.mxu0 0.0
    %5088 = vmatprep.subr.mxu0 0.0
    %5089 = vmatpush1.msra.mxu0 0.0
    %5090 = vmatprep.subr.mxu0 0.0
    %5091 = vmatpush1.msra.mxu0 0.0
    %5092 = vmatprep.subr.mxu0 0.0
    %5093 = vmatpush1.msra.mxu0 0.0
    %5094 = vmatprep.subr.mxu0 0.0
    %5095 = vmatpush1.msra.mxu0 0.0
    %5096 = vmatprep.subr.mxu0 0.0
    %5097 = vmatpush1.msra.mxu0 0.0
    %5098 = vmatprep.subr.mxu0 0.0
    %5099 = vmatpush1.msra.mxu0 0.0
    %5100 = vmatprep.subr.mxu0 0.0
    %5101 = vmatpush1.msra.mxu0 0.0
    %5102 = vmatprep.subr.mxu0 0.0
    %5103 = vmatpush1.msra.mxu0 0.0
    %5104 = vmatprep.subr.mxu0 0.0
    %5105 = vmatpush1.msra.mxu0 0.0
    %5106 = vmatprep.subr.mxu0 0.0
    %5107 = vmatpush1.msra.mxu0 0.0
    %5108 = vmatprep.subr.mxu0 0.0
    %5109 = vmatpush1.msra.mxu0 0.0
    %5110 = vmatprep.subr.mxu0 0.0
    %5111 = vmatpush1.msra.mxu0 0.0
    %5112 = vmatprep.subr.mxu0 0.0
    %5113 = vmatpush1.msra.mxu0 0.0
    %5114 = vmatprep.subr.mxu0 0.0
    %5115 = vmatpush1.msra.mxu0 0.0
    %5116 = vmatprep.mubr.f32.mxu0 0.0
    %5117 = vmatmul.mubr.f32.gmra.mrb[0].mxu0 %v5050
    %v5118 = vpop.f32.mrb[0].mxu0
    %v5119 = vadd.f32 0.0, %v5118
    %v5120 = vpop.f32.mrb[0].mxu0
    %5121 = vdwg.mxu0
    %5124 = vrot.lane.b32.xlu0 %v4739, 8
    %v5125 = vpop.permute.xlu0 %5124
    %5126 = vrot.lane.b32.xlu0 %v4815, 8
    %v5127 = vpop.permute.xlu0 %5126
    %5132 = vrot.lane.b32.xlu0 %v4891, 16
    %v5133 = vpop.permute.xlu0 %5132
    %5134 = vrot.lane.b32.xlu0 %v4967, 16
    %v5135 = vpop.permute.xlu0 %5134
    %5140 = vrot.lane.b32.xlu0 %v5043, 24
    %v5141 = vpop.permute.xlu0 %5140
    %5142 = vrot.lane.b32.xlu0 %v5119, 24
    %v5143 = vpop.permute.xlu0 %5142
    %v5146 = vsel %vm342, %v4587, %v5125
    %v5147 = vsel %vm342, %v4663, %v5127
    %v5148 = vsel %vm1679, %v5146, %v5133
    %v5149 = vsel %vm1679, %v5147, %v5135
    %v5150 = vsel %vm1682, %v5148, %v5141
    %v5151 = vsel %vm1682, %v5149, %v5143
    %v5153 = vlaneseq
    %v5154 = vshrl.u32 %v5153, 7
    %v5155 = vsub.s32 0, %v5154
    %v5156 = vrot.slane %v3795, %v5155
    %v5159 = vsel %vm55, %v5150, 0
    %v5162 = vsel %vm55, %v5151, 0
    %5164 = vmatprep.subr.mxu0 0.0
    %5165 = vmatpush1.msra.mxu0 %v3791
    %5166 = vmatprep.subr.mxu0 0.0
    %5167 = vmatpush1.msra.mxu0 %v3792
    %5168 = vmatprep.subr.mxu0 0.0
    %5169 = vmatpush1.msra.mxu0 %v3793
    %5170 = vmatprep.subr.mxu0 0.0
    %5171 = vmatpush1.msra.mxu0 %v3794
    %5172 = vmatprep.subr.mxu0 0.0
    %5173 = vmatpush1.msra.mxu0 0.0
    %5174 = vmatprep.subr.mxu0 0.0
    %5175 = vmatpush1.msra.mxu0 0.0
    %5176 = vmatprep.subr.mxu0 0.0
    %5177 = vmatpush1.msra.mxu0 0.0
    %5178 = vmatprep.subr.mxu0 0.0
    %5179 = vmatpush1.msra.mxu0 0.0
    %5180 = vmatprep.subr.mxu0 0.0
    %5181 = vmatpush1.msra.mxu0 0.0
    %5182 = vmatprep.subr.mxu0 0.0
    %5183 = vmatpush1.msra.mxu0 0.0
    %5184 = vmatprep.subr.mxu0 0.0
    %5185 = vmatpush1.msra.mxu0 0.0
    %5186 = vmatprep.subr.mxu0 0.0
    %5187 = vmatpush1.msra.mxu0 0.0
    %5188 = vmatprep.subr.mxu0 0.0
    %5189 = vmatpush1.msra.mxu0 0.0
    %5190 = vmatprep.subr.mxu0 0.0
    %5191 = vmatpush1.msra.mxu0 0.0
    %5192 = vmatprep.subr.mxu0 0.0
    %5193 = vmatpush1.msra.mxu0 0.0
    %5194 = vmatprep.subr.mxu0 0.0
    %5195 = vmatpush1.msra.mxu0 0.0
    %5196 = vmatprep.subr.mxu0 0.0
    %5197 = vmatpush1.msra.mxu0 0.0
    %5198 = vmatprep.subr.mxu0 0.0
    %5199 = vmatpush1.msra.mxu0 0.0
    %5200 = vmatprep.subr.mxu0 0.0
    %5201 = vmatpush1.msra.mxu0 0.0
    %5202 = vmatprep.subr.mxu0 0.0
    %5203 = vmatpush1.msra.mxu0 0.0
    %5204 = vmatprep.subr.mxu0 0.0
    %5205 = vmatpush1.msra.mxu0 0.0
    %5206 = vmatprep.subr.mxu0 0.0
    %5207 = vmatpush1.msra.mxu0 0.0
    %5208 = vmatprep.subr.mxu0 0.0
    %5209 = vmatpush1.msra.mxu0 0.0
    %5210 = vmatprep.subr.mxu0 0.0
    %5211 = vmatpush1.msra.mxu0 0.0
    %5212 = vmatprep.subr.mxu0 0.0
    %5213 = vmatpush1.msra.mxu0 0.0
    %5214 = vmatprep.subr.mxu0 0.0
    %5215 = vmatpush1.msra.mxu0 0.0
    %5216 = vmatprep.subr.mxu0 0.0
    %5217 = vmatpush1.msra.mxu0 0.0
    %5218 = vmatprep.subr.mxu0 0.0
    %5219 = vmatpush1.msra.mxu0 0.0
    %5220 = vmatprep.subr.mxu0 0.0
    %5221 = vmatpush1.msra.mxu0 0.0
    %5222 = vmatprep.subr.mxu0 0.0
    %5223 = vmatpush1.msra.mxu0 0.0
    %5224 = vmatprep.subr.mxu0 0.0
    %5225 = vmatpush1.msra.mxu0 0.0
    %5226 = vmatprep.subr.mxu0 0.0
    %5227 = vmatpush1.msra.mxu0 0.0
    %5228 = vmatprep.mubr.f32.mxu0 0.0
    %5229 = vmatmul.mubr.f32.gmra.mrb[0].mxu0 %v5159
    %v5230 = vpop.f32.mrb[0].mxu0
    %v5231 = vadd.f32 %v5156, %v5230
    %v5232 = vpop.f32.mrb[0].mxu0
    %5233 = vmatprep.mubr.f32.mxu0 0.0
    %5234 = vmatmul.mubr.f32.gmra.mrb[0].mxu0 %v5162
    %v5235 = vpop.f32.mrb[0].mxu0
    %v5236 = vadd.f32 %v5156, %v5235
    %v5237 = vpop.f32.mrb[0].mxu0
    %5238 = vdwg.mxu0
    %v5239 = vadd.f32 %v3697, %v5231
    %v5240 = vadd.f32 %v3698, %v5236
    %v5241 = vld [vmem:[%s5 + $0x13] sm:$0x1]
    %v5242 = vld [vmem:[%s5 + $0x14] sm:$0x1]
    %v5243 = vsel %vm55, %v5239, 0.0
    %5244 = vadd.xlane.f32.xlu0 %v5243
    %v5245 = vpop.xlane.xlu0 %5244
    %v5246 = vsel %vm55, %v5240, 0.0
    %5247 = vadd.xlane.f32.xlu0 %v5246
    %v5248 = vpop.xlane.xlu0 %5247
    %v5249 = vmul.f32 %v5239, %v5239
    %v5250 = vmul.f32 %v5240, %v5240
    %v5251 = vsel %vm55, %v5249, 0.0
    %5252 = vadd.xlane.f32.xlu0 %v5251
    %v5253 = vpop.xlane.xlu0 %5252
    %v5254 = vsel %vm55, %v5250, 0.0
    %5255 = vadd.xlane.f32.xlu0 %v5254
    %v5256 = vpop.xlane.xlu0 %5255
    %v5257 = vmul.f32 %v5245, 0.03125
    %v5258 = vmul.f32 %v5248, 0.03125
    %v5259 = vmul.f32 %v5257, %v5245
    %v5260 = vmul.f32 %v5258, %v5248
    %v5261 = vsub.f32 %v5253, %v5259
    %v5262 = vsub.f32 %v5256, %v5260
    %v5263 = vmul.f32 %v5261, 0.032258064
    %v5264 = vmul.f32 %v5262, 0.032258064
    %v5265 = vmax.f32 %v5263, 0.0
    %v5266 = vmax.f32 %v5264, 0.0
    %v5267 = vrsqrt.pop %v5265
    %v5268 = vmul.f32 %v5265, %v5267
    %vm5269 = vcmp.eq.f32.partialorder %v5265, inf
    %v5270 = vsel %vm5269, %v5265, %v5268
    %vm5271 = vcmp.eq.f32.partialorder %v5265, 0.0
    %v5272 = vand.u32 %v5265, 2147483648
    %v5273 = vsel %vm5271, %v5272, %v5270
    %v5274 = vrsqrt.pop %v5266
    %v5275 = vmul.f32 %v5266, %v5274
    %vm5276 = vcmp.eq.f32.partialorder %v5266, inf
    %v5277 = vsel %vm5276, %v5266, %v5275
    %vm5278 = vcmp.eq.f32.partialorder %v5266, 0.0
    %v5279 = vand.u32 %v5266, 2147483648
    %v5280 = vsel %vm5278, %v5279, %v5277
    %v5281 = vsub.f32 %v5239, %v5257
    %v5282 = vsub.f32 %v5240, %v5258
    %v5283 = vadd.f32 %v5273, 1e-12
    %v5284 = vadd.f32 %v5280, 1e-12
    %v5285 = vrcp.pop %v5283
    %v5286 = vmul.f32 %v5281, %v5285
    %v5287 = vrcp.pop %v5284
    %v5288 = vmul.f32 %v5282, %v5287
    %v5290 = vlaneseq
    %v5291 = vshrl.u32 %v5290, 7
    %v5292 = vsub.s32 0, %v5291
    %v5293 = vrot.slane %v5241, %v5292
    %v5295 = vmul.f32 %v5293, %v5286
    %v5296 = vmul.f32 %v5293, %v5288
    %v5298 = vlaneseq
    %v5299 = vshrl.u32 %v5298, 7
    %v5300 = vsub.s32 0, %v5299
    %v5301 = vrot.slane %v5242, %v5300
    %v5303 = vadd.f32 %v5295, %v5301
    %v5304 = vadd.f32 %v5296, %v5301
    %v5305 = vld [vmem:[#allocation2 + $0x40] sm:$0xff]
    %v5306 = vld [vmem:[#allocation2 + $0xb8] sm:$0xff]
    %v5307 = vld [vmem:[#allocation2 + $0x130] sm:$0xff]
    %v5308 = vld [vmem:[#allocation2 + $0x1a8] sm:$0xff]
    %v5309 = vld [vmem:[%s5 + $0xf] sm:$0x1]
    %v5311 = vlaneseq
    %v5312 = vshrl.u32 %v5311, 7
    %v5313 = vsub.s32 0, %v5312
    %v5314 = vrot.slane %v5309, %v5313
    %v5317 = vsel %vm55, %v5303, 0
    %v5320 = vsel %vm55, %v5304, 0
    %5322 = vmatprep.subr.mxu0 0.0
    %5323 = vmatpush1.msra.mxu0 %v5305
    %5324 = vmatprep.subr.mxu0 0.0
    %5325 = vmatpush1.msra.mxu0 %v5306
    %5326 = vmatprep.subr.mxu0 0.0
    %5327 = vmatpush1.msra.mxu0 %v5307
    %5328 = vmatprep.subr.mxu0 0.0
    %5329 = vmatpush1.msra.mxu0 %v5308
    %5330 = vmatprep.subr.mxu0 0.0
    %5331 = vmatpush1.msra.mxu0 0.0
    %5332 = vmatprep.subr.mxu0 0.0
    %5333 = vmatpush1.msra.mxu0 0.0
    %5334 = vmatprep.subr.mxu0 0.0
    %5335 = vmatpush1.msra.mxu0 0.0
    %5336 = vmatprep.subr.mxu0 0.0
    %5337 = vmatpush1.msra.mxu0 0.0
    %5338 = vmatprep.subr.mxu0 0.0
    %5339 = vmatpush1.msra.mxu0 0.0
    %5340 = vmatprep.subr.mxu0 0.0
    %5341 = vmatpush1.msra.mxu0 0.0
    %5342 = vmatprep.subr.mxu0 0.0
    %5343 = vmatpush1.msra.mxu0 0.0
    %5344 = vmatprep.subr.mxu0 0.0
    %5345 = vmatpush1.msra.mxu0 0.0
    %5346 = vmatprep.subr.mxu0 0.0
    %5347 = vmatpush1.msra.mxu0 0.0
    %5348 = vmatprep.subr.mxu0 0.0
    %5349 = vmatpush1.msra.mxu0 0.0
    %5350 = vmatprep.subr.mxu0 0.0
    %5351 = vmatpush1.msra.mxu0 0.0
    %5352 = vmatprep.subr.mxu0 0.0
    %5353 = vmatpush1.msra.mxu0 0.0
    %5354 = vmatprep.subr.mxu0 0.0
    %5355 = vmatpush1.msra.mxu0 0.0
    %5356 = vmatprep.subr.mxu0 0.0
    %5357 = vmatpush1.msra.mxu0 0.0
    %5358 = vmatprep.subr.mxu0 0.0
    %5359 = vmatpush1.msra.mxu0 0.0
    %5360 = vmatprep.subr.mxu0 0.0
    %5361 = vmatpush1.msra.mxu0 0.0
    %5362 = vmatprep.subr.mxu0 0.0
    %5363 = vmatpush1.msra.mxu0 0.0
    %5364 = vmatprep.subr.mxu0 0.0
    %5365 = vmatpush1.msra.mxu0 0.0
    %5366 = vmatprep.subr.mxu0 0.0
    %5367 = vmatpush1.msra.mxu0 0.0
    %5368 = vmatprep.subr.mxu0 0.0
    %5369 = vmatpush1.msra.mxu0 0.0
    %5370 = vmatprep.subr.mxu0 0.0
    %5371 = vmatpush1.msra.mxu0 0.0
    %5372 = vmatprep.subr.mxu0 0.0
    %5373 = vmatpush1.msra.mxu0 0.0
    %5374 = vmatprep.subr.mxu0 0.0
    %5375 = vmatpush1.msra.mxu0 0.0
    %5376 = vmatprep.subr.mxu0 0.0
    %5377 = vmatpush1.msra.mxu0 0.0
    %5378 = vmatprep.subr.mxu0 0.0
    %5379 = vmatpush1.msra.mxu0 0.0
    %5380 = vmatprep.subr.mxu0 0.0
    %5381 = vmatpush1.msra.mxu0 0.0
    %5382 = vmatprep.subr.mxu0 0.0
    %5383 = vmatpush1.msra.mxu0 0.0
    %5384 = vmatprep.subr.mxu0 0.0
    %5385 = vmatpush1.msra.mxu0 0.0
    %5386 = vmatprep.mubr.f32.mxu0 0.0
    %5387 = vmatmul.mubr.f32.gmra.mrb[0].mxu0 %v5317
    %v5388 = vpop.f32.mrb[0].mxu0
    %v5389 = vadd.f32 %v5314, %v5388
    %v5390 = vpop.f32.mrb[0].mxu0
    %5391 = vmatprep.mubr.f32.mxu0 0.0
    %5392 = vmatmul.mubr.f32.gmra.mrb[0].mxu0 %v5320
    %v5393 = vpop.f32.mrb[0].mxu0
    %v5394 = vadd.f32 %v5314, %v5393
    %v5395 = vpop.f32.mrb[0].mxu0
    %5396 = vdwg.mxu0
    %5399 = vrot.lane.b32.xlu0 %v5389, 120
    %v5400 = vpop.permute.xlu0 %5399
    %5401 = vrot.lane.b32.xlu0 %v5394, 120
    %v5402 = vpop.permute.xlu0 %5401
    %5403 = vrot.lane.b32.xlu0 %v5389, 112
    %v5404 = vpop.permute.xlu0 %5403
    %5405 = vrot.lane.b32.xlu0 %v5394, 112
    %v5406 = vpop.permute.xlu0 %5405
    %5407 = vrot.lane.b32.xlu0 %v5389, 104
    %v5408 = vpop.permute.xlu0 %5407
    %5409 = vrot.lane.b32.xlu0 %v5394, 104
    %v5410 = vpop.permute.xlu0 %5409
    %5411 = vrot.lane.b32.xlu0 %v221, 64
    %v5412 = vpop.permute.xlu0 %5411
    %v5413 = vsel %vm342, %v5389, 0
    %v5415 = vsel %vm342, %v5412, 0
    %5417 = vmatprep.subr.mxu0 0.0
    %5418 = vmatpush1.xpose.msra.mxu0 %v5415
    %5419 = vmatprep.subr.mxu0 0.0
    %5420 = vmatpush1.xpose.msra.mxu0 0.0
    %5421 = vmatprep.subr.mxu0 0.0
    %5422 = vmatpush1.xpose.msra.mxu0 0.0
    %5423 = vmatprep.subr.mxu0 0.0
    %5424 = vmatpush1.xpose.msra.mxu0 0.0
    %5425 = vmatprep.subr.mxu0 0.0
    %5426 = vmatpush1.xpose.msra.mxu0 0.0
    %5427 = vmatprep.subr.mxu0 0.0
    %5428 = vmatpush1.xpose.msra.mxu0 0.0
    %5429 = vmatprep.subr.mxu0 0.0
    %5430 = vmatpush1.xpose.msra.mxu0 0.0
    %5431 = vmatprep.subr.mxu0 0.0
    %5432 = vmatpush1.xpose.msra.mxu0 0.0
    %5433 = vmatprep.subr.mxu0 0.0
    %5434 = vmatpush1.xpose.msra.mxu0 0.0
    %5435 = vmatprep.subr.mxu0 0.0
    %5436 = vmatpush1.xpose.msra.mxu0 0.0
    %5437 = vmatprep.subr.mxu0 0.0
    %5438 = vmatpush1.xpose.msra.mxu0 0.0
    %5439 = vmatprep.subr.mxu0 0.0
    %5440 = vmatpush1.xpose.msra.mxu0 0.0
    %5441 = vmatprep.subr.mxu0 0.0
    %5442 = vmatpush1.xpose.msra.mxu0 0.0
    %5443 = vmatprep.subr.mxu0 0.0
    %5444 = vmatpush1.xpose.msra.mxu0 0.0
    %5445 = vmatprep.subr.mxu0 0.0
    %5446 = vmatpush1.xpose.msra.mxu0 0.0
    %5447 = vmatprep.subr.mxu0 0.0
    %5448 = vmatpush1.xpose.msra.mxu0 0.0
    %5449 = vmatprep.subr.mxu0 0.0
    %5450 = vmatpush1.xpose.msra.mxu0 0.0
    %5451 = vmatprep.subr.mxu0 0.0
    %5452 = vmatpush1.xpose.msra.mxu0 0.0
    %5453 = vmatprep.subr.mxu0 0.0
    %5454 = vmatpush1.xpose.msra.mxu0 0.0
    %5455 = vmatprep.subr.mxu0 0.0
    %5456 = vmatpush1.xpose.msra.mxu0 0.0
    %5457 = vmatprep.subr.mxu0 0.0
    %5458 = vmatpush1.xpose.msra.mxu0 0.0
    %5459 = vmatprep.subr.mxu0 0.0
    %5460 = vmatpush1.xpose.msra.mxu0 0.0
    %5461 = vmatprep.subr.mxu0 0.0
    %5462 = vmatpush1.xpose.msra.mxu0 0.0
    %5463 = vmatprep.subr.mxu0 0.0
    %5464 = vmatpush1.xpose.msra.mxu0 0.0
    %5465 = vmatprep.subr.mxu0 0.0
    %5466 = vmatpush1.xpose.msra.mxu0 0.0
    %5467 = vmatprep.subr.mxu0 0.0
    %5468 = vmatpush1.xpose.msra.mxu0 0.0
    %5469 = vmatprep.subr.mxu0 0.0
    %5470 = vmatpush1.xpose.msra.mxu0 0.0
    %5471 = vmatprep.subr.mxu0 0.0
    %5472 = vmatpush1.xpose.msra.mxu0 0.0
    %5473 = vmatprep.subr.mxu0 0.0
    %5474 = vmatpush1.xpose.msra.mxu0 0.0
    %5475 = vmatprep.subr.mxu0 0.0
    %5476 = vmatpush1.xpose.msra.mxu0 0.0
    %5477 = vmatprep.subr.mxu0 0.0
    %5478 = vmatpush1.xpose.msra.mxu0 0.0
    %5479 = vmatprep.subr.mxu0 0.0
    %5480 = vmatpush1.xpose.msra.mxu0 0.0
    %5481 = vmatprep.mubr.f32.mxu0 0.0
    %5482 = vmatmul.mubr.f32.gmra.mrb[0].mxu0 %v5413
    %v5483 = vpop.f32.mrb[0].mxu0
    %v5484 = vadd.f32 0.0, %v5483
    %v5485 = vpop.f32.mrb[0].mxu0
    %5486 = vdwg.mxu0
    %5487 = vrot.lane.b32.xlu0 %v226, 64
    %v5488 = vpop.permute.xlu0 %5487
    %v5489 = vsel %vm342, %v5394, 0
    %v5491 = vsel %vm342, %v5488, 0
    %5493 = vmatprep.subr.mxu0 0.0
    %5494 = vmatpush1.xpose.msra.mxu0 %v5491
    %5495 = vmatprep.subr.mxu0 0.0
    %5496 = vmatpush1.xpose.msra.mxu0 0.0
    %5497 = vmatprep.subr.mxu0 0.0
    %5498 = vmatpush1.xpose.msra.mxu0 0.0
    %5499 = vmatprep.subr.mxu0 0.0
    %5500 = vmatpush1.xpose.msra.mxu0 0.0
    %5501 = vmatprep.subr.mxu0 0.0
    %5502 = vmatpush1.xpose.msra.mxu0 0.0
    %5503 = vmatprep.subr.mxu0 0.0
    %5504 = vmatpush1.xpose.msra.mxu0 0.0
    %5505 = vmatprep.subr.mxu0 0.0
    %5506 = vmatpush1.xpose.msra.mxu0 0.0
    %5507 = vmatprep.subr.mxu0 0.0
    %5508 = vmatpush1.xpose.msra.mxu0 0.0
    %5509 = vmatprep.subr.mxu0 0.0
    %5510 = vmatpush1.xpose.msra.mxu0 0.0
    %5511 = vmatprep.subr.mxu0 0.0
    %5512 = vmatpush1.xpose.msra.mxu0 0.0
    %5513 = vmatprep.subr.mxu0 0.0
    %5514 = vmatpush1.xpose.msra.mxu0 0.0
    %5515 = vmatprep.subr.mxu0 0.0
    %5516 = vmatpush1.xpose.msra.mxu0 0.0
    %5517 = vmatprep.subr.mxu0 0.0
    %5518 = vmatpush1.xpose.msra.mxu0 0.0
    %5519 = vmatprep.subr.mxu0 0.0
    %5520 = vmatpush1.xpose.msra.mxu0 0.0
    %5521 = vmatprep.subr.mxu0 0.0
    %5522 = vmatpush1.xpose.msra.mxu0 0.0
    %5523 = vmatprep.subr.mxu0 0.0
    %5524 = vmatpush1.xpose.msra.mxu0 0.0
    %5525 = vmatprep.subr.mxu0 0.0
    %5526 = vmatpush1.xpose.msra.mxu0 0.0
    %5527 = vmatprep.subr.mxu0 0.0
    %5528 = vmatpush1.xpose.msra.mxu0 0.0
    %5529 = vmatprep.subr.mxu0 0.0
    %5530 = vmatpush1.xpose.msra.mxu0 0.0
    %5531 = vmatprep.subr.mxu0 0.0
    %5532 = vmatpush1.xpose.msra.mxu0 0.0
    %5533 = vmatprep.subr.mxu0 0.0
    %5534 = vmatpush1.xpose.msra.mxu0 0.0
    %5535 = vmatprep.subr.mxu0 0.0
    %5536 = vmatpush1.xpose.msra.mxu0 0.0
    %5537 = vmatprep.subr.mxu0 0.0
    %5538 = vmatpush1.xpose.msra.mxu0 0.0
    %5539 = vmatprep.subr.mxu0 0.0
    %5540 = vmatpush1.xpose.msra.mxu0 0.0
    %5541 = vmatprep.subr.mxu0 0.0
    %5542 = vmatpush1.xpose.msra.mxu0 0.0
    %5543 = vmatprep.subr.mxu0 0.0
    %5544 = vmatpush1.xpose.msra.mxu0 0.0
    %5545 = vmatprep.subr.mxu0 0.0
    %5546 = vmatpush1.xpose.msra.mxu0 0.0
    %5547 = vmatprep.subr.mxu0 0.0
    %5548 = vmatpush1.xpose.msra.mxu0 0.0
    %5549 = vmatprep.subr.mxu0 0.0
    %5550 = vmatpush1.xpose.msra.mxu0 0.0
    %5551 = vmatprep.subr.mxu0 0.0
    %5552 = vmatpush1.xpose.msra.mxu0 0.0
    %5553 = vmatprep.subr.mxu0 0.0
    %5554 = vmatpush1.xpose.msra.mxu0 0.0
    %5555 = vmatprep.subr.mxu0 0.0
    %5556 = vmatpush1.xpose.msra.mxu0 0.0
    %5557 = vmatprep.mubr.f32.mxu0 0.0
    %5558 = vmatmul.mubr.f32.gmra.mrb[0].mxu0 %v5489
    %v5559 = vpop.f32.mrb[0].mxu0
    %v5560 = vadd.f32 0.0, %v5559
    %v5561 = vpop.f32.mrb[0].mxu0
    %5562 = vdwg.mxu0
    %5563 = vrot.lane.b32.xlu0 %v1952, 64
    %v5564 = vpop.permute.xlu0 %5563
    %v5565 = vsel %vm342, %v5400, 0
    %v5567 = vsel %vm342, %v5564, 0
    %5569 = vmatprep.subr.mxu0 0.0
    %5570 = vmatpush1.xpose.msra.mxu0 %v5567
    %5571 = vmatprep.subr.mxu0 0.0
    %5572 = vmatpush1.xpose.msra.mxu0 0.0
    %5573 = vmatprep.subr.mxu0 0.0
    %5574 = vmatpush1.xpose.msra.mxu0 0.0
    %5575 = vmatprep.subr.mxu0 0.0
    %5576 = vmatpush1.xpose.msra.mxu0 0.0
    %5577 = vmatprep.subr.mxu0 0.0
    %5578 = vmatpush1.xpose.msra.mxu0 0.0
    %5579 = vmatprep.subr.mxu0 0.0
    %5580 = vmatpush1.xpose.msra.mxu0 0.0
    %5581 = vmatprep.subr.mxu0 0.0
    %5582 = vmatpush1.xpose.msra.mxu0 0.0
    %5583 = vmatprep.subr.mxu0 0.0
    %5584 = vmatpush1.xpose.msra.mxu0 0.0
    %5585 = vmatprep.subr.mxu0 0.0
    %5586 = vmatpush1.xpose.msra.mxu0 0.0
    %5587 = vmatprep.subr.mxu0 0.0
    %5588 = vmatpush1.xpose.msra.mxu0 0.0
    %5589 = vmatprep.subr.mxu0 0.0
    %5590 = vmatpush1.xpose.msra.mxu0 0.0
    %5591 = vmatprep.subr.mxu0 0.0
    %5592 = vmatpush1.xpose.msra.mxu0 0.0
    %5593 = vmatprep.subr.mxu0 0.0
    %5594 = vmatpush1.xpose.msra.mxu0 0.0
    %5595 = vmatprep.subr.mxu0 0.0
    %5596 = vmatpush1.xpose.msra.mxu0 0.0
    %5597 = vmatprep.subr.mxu0 0.0
    %5598 = vmatpush1.xpose.msra.mxu0 0.0
    %5599 = vmatprep.subr.mxu0 0.0
    %5600 = vmatpush1.xpose.msra.mxu0 0.0
    %5601 = vmatprep.subr.mxu0 0.0
    %5602 = vmatpush1.xpose.msra.mxu0 0.0
    %5603 = vmatprep.subr.mxu0 0.0
    %5604 = vmatpush1.xpose.msra.mxu0 0.0
    %5605 = vmatprep.subr.mxu0 0.0
    %5606 = vmatpush1.xpose.msra.mxu0 0.0
    %5607 = vmatprep.subr.mxu0 0.0
    %5608 = vmatpush1.xpose.msra.mxu0 0.0
    %5609 = vmatprep.subr.mxu0 0.0
    %5610 = vmatpush1.xpose.msra.mxu0 0.0
    %5611 = vmatprep.subr.mxu0 0.0
    %5612 = vmatpush1.xpose.msra.mxu0 0.0
    %5613 = vmatprep.subr.mxu0 0.0
    %5614 = vmatpush1.xpose.msra.mxu0 0.0
    %5615 = vmatprep.subr.mxu0 0.0
    %5616 = vmatpush1.xpose.msra.mxu0 0.0
    %5617 = vmatprep.subr.mxu0 0.0
    %5618 = vmatpush1.xpose.msra.mxu0 0.0
    %5619 = vmatprep.subr.mxu0 0.0
    %5620 = vmatpush1.xpose.msra.mxu0 0.0
    %5621 = vmatprep.subr.mxu0 0.0
    %5622 = vmatpush1.xpose.msra.mxu0 0.0
    %5623 = vmatprep.subr.mxu0 0.0
    %5624 = vmatpush1.xpose.msra.mxu0 0.0
    %5625 = vmatprep.subr.mxu0 0.0
    %5626 = vmatpush1.xpose.msra.mxu0 0.0
    %5627 = vmatprep.subr.mxu0 0.0
    %5628 = vmatpush1.xpose.msra.mxu0 0.0
    %5629 = vmatprep.subr.mxu0 0.0
    %5630 = vmatpush1.xpose.msra.mxu0 0.0
    %5631 = vmatprep.subr.mxu0 0.0
    %5632 = vmatpush1.xpose.msra.mxu0 0.0
    %5633 = vmatprep.mubr.f32.mxu0 0.0
    %5634 = vmatmul.mubr.f32.gmra.mrb[0].mxu0 %v5565
    %v5635 = vpop.f32.mrb[0].mxu0
    %v5636 = vadd.f32 0.0, %v5635
    %v5637 = vpop.f32.mrb[0].mxu0
    %5638 = vdwg.mxu0
    %5639 = vrot.lane.b32.xlu0 %v1954, 64
    %v5640 = vpop.permute.xlu0 %5639
    %v5641 = vsel %vm342, %v5402, 0
    %v5643 = vsel %vm342, %v5640, 0
    %5645 = vmatprep.subr.mxu0 0.0
    %5646 = vmatpush1.xpose.msra.mxu0 %v5643
    %5647 = vmatprep.subr.mxu0 0.0
    %5648 = vmatpush1.xpose.msra.mxu0 0.0
    %5649 = vmatprep.subr.mxu0 0.0
    %5650 = vmatpush1.xpose.msra.mxu0 0.0
    %5651 = vmatprep.subr.mxu0 0.0
    %5652 = vmatpush1.xpose.msra.mxu0 0.0
    %5653 = vmatprep.subr.mxu0 0.0
    %5654 = vmatpush1.xpose.msra.mxu0 0.0
    %5655 = vmatprep.subr.mxu0 0.0
    %5656 = vmatpush1.xpose.msra.mxu0 0.0
    %5657 = vmatprep.subr.mxu0 0.0
    %5658 = vmatpush1.xpose.msra.mxu0 0.0
    %5659 = vmatprep.subr.mxu0 0.0
    %5660 = vmatpush1.xpose.msra.mxu0 0.0
    %5661 = vmatprep.subr.mxu0 0.0
    %5662 = vmatpush1.xpose.msra.mxu0 0.0
    %5663 = vmatprep.subr.mxu0 0.0
    %5664 = vmatpush1.xpose.msra.mxu0 0.0
    %5665 = vmatprep.subr.mxu0 0.0
    %5666 = vmatpush1.xpose.msra.mxu0 0.0
    %5667 = vmatprep.subr.mxu0 0.0
    %5668 = vmatpush1.xpose.msra.mxu0 0.0
    %5669 = vmatprep.subr.mxu0 0.0
    %5670 = vmatpush1.xpose.msra.mxu0 0.0
    %5671 = vmatprep.subr.mxu0 0.0
    %5672 = vmatpush1.xpose.msra.mxu0 0.0
    %5673 = vmatprep.subr.mxu0 0.0
    %5674 = vmatpush1.xpose.msra.mxu0 0.0
    %5675 = vmatprep.subr.mxu0 0.0
    %5676 = vmatpush1.xpose.msra.mxu0 0.0
    %5677 = vmatprep.subr.mxu0 0.0
    %5678 = vmatpush1.xpose.msra.mxu0 0.0
    %5679 = vmatprep.subr.mxu0 0.0
    %5680 = vmatpush1.xpose.msra.mxu0 0.0
    %5681 = vmatprep.subr.mxu0 0.0
    %5682 = vmatpush1.xpose.msra.mxu0 0.0
    %5683 = vmatprep.subr.mxu0 0.0
    %5684 = vmatpush1.xpose.msra.mxu0 0.0
    %5685 = vmatprep.subr.mxu0 0.0
    %5686 = vmatpush1.xpose.msra.mxu0 0.0
    %5687 = vmatprep.subr.mxu0 0.0
    %5688 = vmatpush1.xpose.msra.mxu0 0.0
    %5689 = vmatprep.subr.mxu0 0.0
    %5690 = vmatpush1.xpose.msra.mxu0 0.0
    %5691 = vmatprep.subr.mxu0 0.0
    %5692 = vmatpush1.xpose.msra.mxu0 0.0
    %5693 = vmatprep.subr.mxu0 0.0
    %5694 = vmatpush1.xpose.msra.mxu0 0.0
    %5695 = vmatprep.subr.mxu0 0.0
    %5696 = vmatpush1.xpose.msra.mxu0 0.0
    %5697 = vmatprep.subr.mxu0 0.0
    %5698 = vmatpush1.xpose.msra.mxu0 0.0
    %5699 = vmatprep.subr.mxu0 0.0
    %5700 = vmatpush1.xpose.msra.mxu0 0.0
    %5701 = vmatprep.subr.mxu0 0.0
    %5702 = vmatpush1.xpose.msra.mxu0 0.0
    %5703 = vmatprep.subr.mxu0 0.0
    %5704 = vmatpush1.xpose.msra.mxu0 0.0
    %5705 = vmatprep.subr.mxu0 0.0
    %5706 = vmatpush1.xpose.msra.mxu0 0.0
    %5707 = vmatprep.subr.mxu0 0.0
    %5708 = vmatpush1.xpose.msra.mxu0 0.0
    %5709 = vmatprep.mubr.f32.mxu0 0.0
    %5710 = vmatmul.mubr.f32.gmra.mrb[0].mxu0 %v5641
    %v5711 = vpop.f32.mrb[0].mxu0
    %v5712 = vadd.f32 0.0, %v5711
    %v5713 = vpop.f32.mrb[0].mxu0
    %5714 = vdwg.mxu0
    %5715 = vrot.lane.b32.xlu0 %v1956, 64
    %v5716 = vpop.permute.xlu0 %5715
    %v5717 = vsel %vm342, %v5404, 0
    %v5719 = vsel %vm342, %v5716, 0
    %5721 = vmatprep.subr.mxu0 0.0
    %5722 = vmatpush1.xpose.msra.mxu0 %v5719
    %5723 = vmatprep.subr.mxu0 0.0
    %5724 = vmatpush1.xpose.msra.mxu0 0.0
    %5725 = vmatprep.subr.mxu0 0.0
    %5726 = vmatpush1.xpose.msra.mxu0 0.0
    %5727 = vmatprep.subr.mxu0 0.0
    %5728 = vmatpush1.xpose.msra.mxu0 0.0
    %5729 = vmatprep.subr.mxu0 0.0
    %5730 = vmatpush1.xpose.msra.mxu0 0.0
    %5731 = vmatprep.subr.mxu0 0.0
    %5732 = vmatpush1.xpose.msra.mxu0 0.0
    %5733 = vmatprep.subr.mxu0 0.0
    %5734 = vmatpush1.xpose.msra.mxu0 0.0
    %5735 = vmatprep.subr.mxu0 0.0
    %5736 = vmatpush1.xpose.msra.mxu0 0.0
    %5737 = vmatprep.subr.mxu0 0.0
    %5738 = vmatpush1.xpose.msra.mxu0 0.0
    %5739 = vmatprep.subr.mxu0 0.0
    %5740 = vmatpush1.xpose.msra.mxu0 0.0
    %5741 = vmatprep.subr.mxu0 0.0
    %5742 = vmatpush1.xpose.msra.mxu0 0.0
    %5743 = vmatprep.subr.mxu0 0.0
    %5744 = vmatpush1.xpose.msra.mxu0 0.0
    %5745 = vmatprep.subr.mxu0 0.0
    %5746 = vmatpush1.xpose.msra.mxu0 0.0
    %5747 = vmatprep.subr.mxu0 0.0
    %5748 = vmatpush1.xpose.msra.mxu0 0.0
    %5749 = vmatprep.subr.mxu0 0.0
    %5750 = vmatpush1.xpose.msra.mxu0 0.0
    %5751 = vmatprep.subr.mxu0 0.0
    %5752 = vmatpush1.xpose.msra.mxu0 0.0
    %5753 = vmatprep.subr.mxu0 0.0
    %5754 = vmatpush1.xpose.msra.mxu0 0.0
    %5755 = vmatprep.subr.mxu0 0.0
    %5756 = vmatpush1.xpose.msra.mxu0 0.0
    %5757 = vmatprep.subr.mxu0 0.0
    %5758 = vmatpush1.xpose.msra.mxu0 0.0
    %5759 = vmatprep.subr.mxu0 0.0
    %5760 = vmatpush1.xpose.msra.mxu0 0.0
    %5761 = vmatprep.subr.mxu0 0.0
    %5762 = vmatpush1.xpose.msra.mxu0 0.0
    %5763 = vmatprep.subr.mxu0 0.0
    %5764 = vmatpush1.xpose.msra.mxu0 0.0
    %5765 = vmatprep.subr.mxu0 0.0
    %5766 = vmatpush1.xpose.msra.mxu0 0.0
    %5767 = vmatprep.subr.mxu0 0.0
    %5768 = vmatpush1.xpose.msra.mxu0 0.0
    %5769 = vmatprep.subr.mxu0 0.0
    %5770 = vmatpush1.xpose.msra.mxu0 0.0
    %5771 = vmatprep.subr.mxu0 0.0
    %5772 = vmatpush1.xpose.msra.mxu0 0.0
    %5773 = vmatprep.subr.mxu0 0.0
    %5774 = vmatpush1.xpose.msra.mxu0 0.0
    %5775 = vmatprep.subr.mxu0 0.0
    %5776 = vmatpush1.xpose.msra.mxu0 0.0
    %5777 = vmatprep.subr.mxu0 0.0
    %5778 = vmatpush1.xpose.msra.mxu0 0.0
    %5779 = vmatprep.subr.mxu0 0.0
    %5780 = vmatpush1.xpose.msra.mxu0 0.0
    %5781 = vmatprep.subr.mxu0 0.0
    %5782 = vmatpush1.xpose.msra.mxu0 0.0
    %5783 = vmatprep.subr.mxu0 0.0
    %5784 = vmatpush1.xpose.msra.mxu0 0.0
    %5785 = vmatprep.mubr.f32.mxu0 0.0
    %5786 = vmatmul.mubr.f32.gmra.mrb[0].mxu0 %v5717
    %v5787 = vpop.f32.mrb[0].mxu0
    %v5788 = vadd.f32 0.0, %v5787
    %v5789 = vpop.f32.mrb[0].mxu0
    %5790 = vdwg.mxu0
    %5791 = vrot.lane.b32.xlu0 %v1958, 64
    %v5792 = vpop.permute.xlu0 %5791
    %v5793 = vsel %vm342, %v5406, 0
    %v5795 = vsel %vm342, %v5792, 0
    %5797 = vmatprep.subr.mxu0 0.0
    %5798 = vmatpush1.xpose.msra.mxu0 %v5795
    %5799 = vmatprep.subr.mxu0 0.0
    %5800 = vmatpush1.xpose.msra.mxu0 0.0
    %5801 = vmatprep.subr.mxu0 0.0
    %5802 = vmatpush1.xpose.msra.mxu0 0.0
    %5803 = vmatprep.subr.mxu0 0.0
    %5804 = vmatpush1.xpose.msra.mxu0 0.0
    %5805 = vmatprep.subr.mxu0 0.0
    %5806 = vmatpush1.xpose.msra.mxu0 0.0
    %5807 = vmatprep.subr.mxu0 0.0
    %5808 = vmatpush1.xpose.msra.mxu0 0.0
    %5809 = vmatprep.subr.mxu0 0.0
    %5810 = vmatpush1.xpose.msra.mxu0 0.0
    %5811 = vmatprep.subr.mxu0 0.0
    %5812 = vmatpush1.xpose.msra.mxu0 0.0
    %5813 = vmatprep.subr.mxu0 0.0
    %5814 = vmatpush1.xpose.msra.mxu0 0.0
    %5815 = vmatprep.subr.mxu0 0.0
    %5816 = vmatpush1.xpose.msra.mxu0 0.0
    %5817 = vmatprep.subr.mxu0 0.0
    %5818 = vmatpush1.xpose.msra.mxu0 0.0
    %5819 = vmatprep.subr.mxu0 0.0
    %5820 = vmatpush1.xpose.msra.mxu0 0.0
    %5821 = vmatprep.subr.mxu0 0.0
    %5822 = vmatpush1.xpose.msra.mxu0 0.0
    %5823 = vmatprep.subr.mxu0 0.0
    %5824 = vmatpush1.xpose.msra.mxu0 0.0
    %5825 = vmatprep.subr.mxu0 0.0
    %5826 = vmatpush1.xpose.msra.mxu0 0.0
    %5827 = vmatprep.subr.mxu0 0.0
    %5828 = vmatpush1.xpose.msra.mxu0 0.0
    %5829 = vmatprep.subr.mxu0 0.0
    %5830 = vmatpush1.xpose.msra.mxu0 0.0
    %5831 = vmatprep.subr.mxu0 0.0
    %5832 = vmatpush1.xpose.msra.mxu0 0.0
    %5833 = vmatprep.subr.mxu0 0.0
    %5834 = vmatpush1.xpose.msra.mxu0 0.0
    %5835 = vmatprep.subr.mxu0 0.0
    %5836 = vmatpush1.xpose.msra.mxu0 0.0
    %5837 = vmatprep.subr.mxu0 0.0
    %5838 = vmatpush1.xpose.msra.mxu0 0.0
    %5839 = vmatprep.subr.mxu0 0.0
    %5840 = vmatpush1.xpose.msra.mxu0 0.0
    %5841 = vmatprep.subr.mxu0 0.0
    %5842 = vmatpush1.xpose.msra.mxu0 0.0
    %5843 = vmatprep.subr.mxu0 0.0
    %5844 = vmatpush1.xpose.msra.mxu0 0.0
    %5845 = vmatprep.subr.mxu0 0.0
    %5846 = vmatpush1.xpose.msra.mxu0 0.0
    %5847 = vmatprep.subr.mxu0 0.0
    %5848 = vmatpush1.xpose.msra.mxu0 0.0
    %5849 = vmatprep.subr.mxu0 0.0
    %5850 = vmatpush1.xpose.msra.mxu0 0.0
    %5851 = vmatprep.subr.mxu0 0.0
    %5852 = vmatpush1.xpose.msra.mxu0 0.0
    %5853 = vmatprep.subr.mxu0 0.0
    %5854 = vmatpush1.xpose.msra.mxu0 0.0
    %5855 = vmatprep.subr.mxu0 0.0
    %5856 = vmatpush1.xpose.msra.mxu0 0.0
    %5857 = vmatprep.subr.mxu0 0.0
    %5858 = vmatpush1.xpose.msra.mxu0 0.0
    %5859 = vmatprep.subr.mxu0 0.0
    %5860 = vmatpush1.xpose.msra.mxu0 0.0
    %5861 = vmatprep.mubr.f32.mxu0 0.0
    %5862 = vmatmul.mubr.f32.gmra.mrb[0].mxu0 %v5793
    %v5863 = vpop.f32.mrb[0].mxu0
    %v5864 = vadd.f32 0.0, %v5863
    %v5865 = vpop.f32.mrb[0].mxu0
    %5866 = vdwg.mxu0
    %5867 = vrot.lane.b32.xlu0 %v1960, 64
    %v5868 = vpop.permute.xlu0 %5867
    %v5869 = vsel %vm342, %v5408, 0
    %v5871 = vsel %vm342, %v5868, 0
    %5873 = vmatprep.subr.mxu0 0.0
    %5874 = vmatpush1.xpose.msra.mxu0 %v5871
    %5875 = vmatprep.subr.mxu0 0.0
    %5876 = vmatpush1.xpose.msra.mxu0 0.0
    %5877 = vmatprep.subr.mxu0 0.0
    %5878 = vmatpush1.xpose.msra.mxu0 0.0
    %5879 = vmatprep.subr.mxu0 0.0
    %5880 = vmatpush1.xpose.msra.mxu0 0.0
    %5881 = vmatprep.subr.mxu0 0.0
    %5882 = vmatpush1.xpose.msra.mxu0 0.0
    %5883 = vmatprep.subr.mxu0 0.0
    %5884 = vmatpush1.xpose.msra.mxu0 0.0
    %5885 = vmatprep.subr.mxu0 0.0
    %5886 = vmatpush1.xpose.msra.mxu0 0.0
    %5887 = vmatprep.subr.mxu0 0.0
    %5888 = vmatpush1.xpose.msra.mxu0 0.0
    %5889 = vmatprep.subr.mxu0 0.0
    %5890 = vmatpush1.xpose.msra.mxu0 0.0
    %5891 = vmatprep.subr.mxu0 0.0
    %5892 = vmatpush1.xpose.msra.mxu0 0.0
    %5893 = vmatprep.subr.mxu0 0.0
    %5894 = vmatpush1.xpose.msra.mxu0 0.0
    %5895 = vmatprep.subr.mxu0 0.0
    %5896 = vmatpush1.xpose.msra.mxu0 0.0
    %5897 = vmatprep.subr.mxu0 0.0
    %5898 = vmatpush1.xpose.msra.mxu0 0.0
    %5899 = vmatprep.subr.mxu0 0.0
    %5900 = vmatpush1.xpose.msra.mxu0 0.0
    %5901 = vmatprep.subr.mxu0 0.0
    %5902 = vmatpush1.xpose.msra.mxu0 0.0
    %5903 = vmatprep.subr.mxu0 0.0
    %5904 = vmatpush1.xpose.msra.mxu0 0.0
    %5905 = vmatprep.subr.mxu0 0.0
    %5906 = vmatpush1.xpose.msra.mxu0 0.0
    %5907 = vmatprep.subr.mxu0 0.0
    %5908 = vmatpush1.xpose.msra.mxu0 0.0
    %5909 = vmatprep.subr.mxu0 0.0
    %5910 = vmatpush1.xpose.msra.mxu0 0.0
    %5911 = vmatprep.subr.mxu0 0.0
    %5912 = vmatpush1.xpose.msra.mxu0 0.0
    %5913 = vmatprep.subr.mxu0 0.0
    %5914 = vmatpush1.xpose.msra.mxu0 0.0
    %5915 = vmatprep.subr.mxu0 0.0
    %5916 = vmatpush1.xpose.msra.mxu0 0.0
    %5917 = vmatprep.subr.mxu0 0.0
    %5918 = vmatpush1.xpose.msra.mxu0 0.0
    %5919 = vmatprep.subr.mxu0 0.0
    %5920 = vmatpush1.xpose.msra.mxu0 0.0
    %5921 = vmatprep.subr.mxu0 0.0
    %5922 = vmatpush1.xpose.msra.mxu0 0.0
    %5923 = vmatprep.subr.mxu0 0.0
    %5924 = vmatpush1.xpose.msra.mxu0 0.0
    %5925 = vmatprep.subr.mxu0 0.0
    %5926 = vmatpush1.xpose.msra.mxu0 0.0
    %5927 = vmatprep.subr.mxu0 0.0
    %5928 = vmatpush1.xpose.msra.mxu0 0.0
    %5929 = vmatprep.subr.mxu0 0.0
    %5930 = vmatpush1.xpose.msra.mxu0 0.0
    %5931 = vmatprep.subr.mxu0 0.0
    %5932 = vmatpush1.xpose.msra.mxu0 0.0
    %5933 = vmatprep.subr.mxu0 0.0
    %5934 = vmatpush1.xpose.msra.mxu0 0.0
    %5935 = vmatprep.subr.mxu0 0.0
    %5936 = vmatpush1.xpose.msra.mxu0 0.0
    %5937 = vmatprep.mubr.f32.mxu0 0.0
    %5938 = vmatmul.mubr.f32.gmra.mrb[0].mxu0 %v5869
    %v5939 = vpop.f32.mrb[0].mxu0
    %v5940 = vadd.f32 0.0, %v5939
    %v5941 = vpop.f32.mrb[0].mxu0
    %5942 = vdwg.mxu0
    %5943 = vrot.lane.b32.xlu0 %v1962, 64
    %v5944 = vpop.permute.xlu0 %5943
    %v5945 = vsel %vm342, %v5410, 0
    %v5947 = vsel %vm342, %v5944, 0
    %5949 = vmatprep.subr.mxu0 0.0
    %5950 = vmatpush1.xpose.msra.mxu0 %v5947
    %5951 = vmatprep.subr.mxu0 0.0
    %5952 = vmatpush1.xpose.msra.mxu0 0.0
    %5953 = vmatprep.subr.mxu0 0.0
    %5954 = vmatpush1.xpose.msra.mxu0 0.0
    %5955 = vmatprep.subr.mxu0 0.0
    %5956 = vmatpush1.xpose.msra.mxu0 0.0
    %5957 = vmatprep.subr.mxu0 0.0
    %5958 = vmatpush1.xpose.msra.mxu0 0.0
    %5959 = vmatprep.subr.mxu0 0.0
    %5960 = vmatpush1.xpose.msra.mxu0 0.0
    %5961 = vmatprep.subr.mxu0 0.0
    %5962 = vmatpush1.xpose.msra.mxu0 0.0
    %5963 = vmatprep.subr.mxu0 0.0
    %5964 = vmatpush1.xpose.msra.mxu0 0.0
    %5965 = vmatprep.subr.mxu0 0.0
    %5966 = vmatpush1.xpose.msra.mxu0 0.0
    %5967 = vmatprep.subr.mxu0 0.0
    %5968 = vmatpush1.xpose.msra.mxu0 0.0
    %5969 = vmatprep.subr.mxu0 0.0
    %5970 = vmatpush1.xpose.msra.mxu0 0.0
    %5971 = vmatprep.subr.mxu0 0.0
    %5972 = vmatpush1.xpose.msra.mxu0 0.0
    %5973 = vmatprep.subr.mxu0 0.0
    %5974 = vmatpush1.xpose.msra.mxu0 0.0
    %5975 = vmatprep.subr.mxu0 0.0
    %5976 = vmatpush1.xpose.msra.mxu0 0.0
    %5977 = vmatprep.subr.mxu0 0.0
    %5978 = vmatpush1.xpose.msra.mxu0 0.0
    %5979 = vmatprep.subr.mxu0 0.0
    %5980 = vmatpush1.xpose.msra.mxu0 0.0
    %5981 = vmatprep.subr.mxu0 0.0
    %5982 = vmatpush1.xpose.msra.mxu0 0.0
    %5983 = vmatprep.subr.mxu0 0.0
    %5984 = vmatpush1.xpose.msra.mxu0 0.0
    %5985 = vmatprep.subr.mxu0 0.0
    %5986 = vmatpush1.xpose.msra.mxu0 0.0
    %5987 = vmatprep.subr.mxu0 0.0
    %5988 = vmatpush1.xpose.msra.mxu0 0.0
    %5989 = vmatprep.subr.mxu0 0.0
    %5990 = vmatpush1.xpose.msra.mxu0 0.0
    %5991 = vmatprep.subr.mxu0 0.0
    %5992 = vmatpush1.xpose.msra.mxu0 0.0
    %5993 = vmatprep.subr.mxu0 0.0
    %5994 = vmatpush1.xpose.msra.mxu0 0.0
    %5995 = vmatprep.subr.mxu0 0.0
    %5996 = vmatpush1.xpose.msra.mxu0 0.0
    %5997 = vmatprep.subr.mxu0 0.0
    %5998 = vmatpush1.xpose.msra.mxu0 0.0
    %5999 = vmatprep.subr.mxu0 0.0
    %6000 = vmatpush1.xpose.msra.mxu0 0.0
    %6001 = vmatprep.subr.mxu0 0.0
    %6002 = vmatpush1.xpose.msra.mxu0 0.0
    %6003 = vmatprep.subr.mxu0 0.0
    %6004 = vmatpush1.xpose.msra.mxu0 0.0
    %6005 = vmatprep.subr.mxu0 0.0
    %6006 = vmatpush1.xpose.msra.mxu0 0.0
    %6007 = vmatprep.subr.mxu0 0.0
    %6008 = vmatpush1.xpose.msra.mxu0 0.0
    %6009 = vmatprep.subr.mxu0 0.0
    %6010 = vmatpush1.xpose.msra.mxu0 0.0
    %6011 = vmatprep.subr.mxu0 0.0
    %6012 = vmatpush1.xpose.msra.mxu0 0.0
    %6013 = vmatprep.mubr.f32.mxu0 0.0
    %6014 = vmatmul.mubr.f32.gmra.mrb[0].mxu0 %v5945
    %v6015 = vpop.f32.mrb[0].mxu0
    %v6016 = vadd.f32 0.0, %v6015
    %v6017 = vpop.f32.mrb[0].mxu0
    %6018 = vdwg.mxu0
    %v6019 = vmul.f32 %v5484, 0.35355338
    %v6020 = vmul.f32 %v5560, 0.35355338
    %v6021 = vmul.f32 %v5636, 0.35355338
    %v6022 = vmul.f32 %v5712, 0.35355338
    %v6023 = vmul.f32 %v5788, 0.35355338
    %v6024 = vmul.f32 %v5864, 0.35355338
    %v6025 = vmul.f32 %v5940, 0.35355338
    %v6026 = vmul.f32 %v6016, 0.35355338
    %v6027 = vsel %vm342, %v6019, -inf
    %6028 = vmax.xlane.f32.xlu0 %v6027
    %v6029 = vpop.xlane.xlu0 %6028
    %v6030 = vsel %vm342, %v6020, -inf
    %6031 = vmax.xlane.f32.xlu0 %v6030
    %v6032 = vpop.xlane.xlu0 %6031
    %v6033 = vsel %vm342, %v6021, -inf
    %6034 = vmax.xlane.f32.xlu0 %v6033
    %v6035 = vpop.xlane.xlu0 %6034
    %v6036 = vsel %vm342, %v6022, -inf
    %6037 = vmax.xlane.f32.xlu0 %v6036
    %v6038 = vpop.xlane.xlu0 %6037
    %v6039 = vsel %vm342, %v6023, -inf
    %6040 = vmax.xlane.f32.xlu0 %v6039
    %v6041 = vpop.xlane.xlu0 %6040
    %v6042 = vsel %vm342, %v6024, -inf
    %6043 = vmax.xlane.f32.xlu0 %v6042
    %v6044 = vpop.xlane.xlu0 %6043
    %v6045 = vsel %vm342, %v6025, -inf
    %6046 = vmax.xlane.f32.xlu0 %v6045
    %v6047 = vpop.xlane.xlu0 %6046
    %v6048 = vsel %vm342, %v6026, -inf
    %6049 = vmax.xlane.f32.xlu0 %v6048
    %v6050 = vpop.xlane.xlu0 %6049
    %v6051 = vsub.f32 %v6019, %v6029
    %v6052 = vsub.f32 %v6020, %v6032
    %v6053 = vsub.f32 %v6021, %v6035
    %v6054 = vsub.f32 %v6022, %v6038
    %v6055 = vsub.f32 %v6023, %v6041
    %v6056 = vsub.f32 %v6024, %v6044
    %v6057 = vsub.f32 %v6025, %v6047
    %v6058 = vsub.f32 %v6026, %v6050
    %v6059 = vmul.f32 %v6051, 1.442695
    %v6060 = vpow.pop %v6059
    %v6061 = vmul.f32 %v6052, 1.442695
    %v6062 = vpow.pop %v6061
    %v6063 = vmul.f32 %v6053, 1.442695
    %v6064 = vpow.pop %v6063
    %v6065 = vmul.f32 %v6054, 1.442695
    %v6066 = vpow.pop %v6065
    %v6067 = vmul.f32 %v6055, 1.442695
    %v6068 = vpow.pop %v6067
    %v6069 = vmul.f32 %v6056, 1.442695
    %v6070 = vpow.pop %v6069
    %v6071 = vmul.f32 %v6057, 1.442695
    %v6072 = vpow.pop %v6071
    %v6073 = vmul.f32 %v6058, 1.442695
    %v6074 = vpow.pop %v6073
    %v6075 = vsel %vm342, %v6060, 0.0
    %6076 = vadd.xlane.f32.xlu0 %v6075
    %v6077 = vpop.xlane.xlu0 %6076
    %v6078 = vsel %vm342, %v6062, 0.0
    %6079 = vadd.xlane.f32.xlu0 %v6078
    %v6080 = vpop.xlane.xlu0 %6079
    %v6081 = vsel %vm342, %v6064, 0.0
    %6082 = vadd.xlane.f32.xlu0 %v6081
    %v6083 = vpop.xlane.xlu0 %6082
    %v6084 = vsel %vm342, %v6066, 0.0
    %6085 = vadd.xlane.f32.xlu0 %v6084
    %v6086 = vpop.xlane.xlu0 %6085
    %v6087 = vsel %vm342, %v6068, 0.0
    %6088 = vadd.xlane.f32.xlu0 %v6087
    %v6089 = vpop.xlane.xlu0 %6088
    %v6090 = vsel %vm342, %v6070, 0.0
    %6091 = vadd.xlane.f32.xlu0 %v6090
    %v6092 = vpop.xlane.xlu0 %6091
    %v6093 = vsel %vm342, %v6072, 0.0
    %6094 = vadd.xlane.f32.xlu0 %v6093
    %v6095 = vpop.xlane.xlu0 %6094
    %v6096 = vsel %vm342, %v6074, 0.0
    %6097 = vadd.xlane.f32.xlu0 %v6096
    %v6098 = vpop.xlane.xlu0 %6097
    %v6099 = vrcp.pop %v6077
    %v6100 = vmul.f32 %v6060, %v6099
    %v6101 = vrcp.pop %v6080
    %v6102 = vmul.f32 %v6062, %v6101
    %v6103 = vrcp.pop %v6083
    %v6104 = vmul.f32 %v6064, %v6103
    %v6105 = vrcp.pop %v6086
    %v6106 = vmul.f32 %v6066, %v6105
    %v6107 = vrcp.pop %v6089
    %v6108 = vmul.f32 %v6068, %v6107
    %v6109 = vrcp.pop %v6092
    %v6110 = vmul.f32 %v6070, %v6109
    %v6111 = vrcp.pop %v6095
    %v6112 = vmul.f32 %v6072, %v6111
    %v6113 = vrcp.pop %v6098
    %v6114 = vmul.f32 %v6074, %v6113
    %v6115 = vsel %vm342, %v6100, 0.0
    %v6116 = vsel %vm342, %v6104, 0.0
    %v6117 = vadd.f32 %v6115, %v6116
    %v6118 = vsel %vm342, %v6108, 0.0
    %v6119 = vadd.f32 %v6117, %v6118
    %v6120 = vsel %vm342, %v6112, 0.0
    %v6121 = vadd.f32 %v6119, %v6120
    %v6122 = vsel %vm342, %v6102, 0.0
    %v6123 = vsel %vm342, %v6106, 0.0
    %v6124 = vadd.f32 %v6122, %v6123
    %v6125 = vsel %vm342, %v6110, 0.0
    %v6126 = vadd.f32 %v6124, %v6125
    %v6127 = vsel %vm342, %v6114, 0.0
    %v6128 = vadd.f32 %v6126, %v6127
    %v6129 = vrcp.pop 4.0
    %v6130 = vmul.f32 %v6121, %v6129
    %v6131 = vmul.f32 %v6128, %v6129
    %6132 = vst.msk [vmem:[#allocation5] sm:$0xff] %vm342, %v6130
    %6133 = vst.msk [vmem:[#allocation5 + $0x8] sm:$0xff] %vm342, %v6131
    %v6134 = vsel %vm342, %v6130, -inf
    %v6135 = vrot.slane %v6134, 4
    %v6136 = vmax.f32 %v6134, %v6135
    %v6137 = vrot.slane %v6136, 2
    %v6138 = vmax.f32 %v6136, %v6137
    %v6139 = vrot.slane %v6138, 1
    %v6140 = vmax.f32 %v6138, %v6139
    %v6141 = vsel %vm342, %v6131, -inf
    %v6142 = vrot.slane %v6141, 4
    %v6143 = vmax.f32 %v6141, %v6142
    %v6144 = vrot.slane %v6143, 2
    %v6145 = vmax.f32 %v6143, %v6144
    %v6146 = vrot.slane %v6145, 1
    %v6147 = vmax.f32 %v6145, %v6146
    %6148 = vmax.xlane.f32.xlu0 %v6134
    %v6149 = vpop.xlane.xlu0 %6148
    %6150 = vmax.xlane.f32.xlu0 %v6141
    %v6151 = vpop.xlane.xlu0 %6150
    %vm6154 = vcmask 1041409
    %v6155 = vsel %vm6154, %v6147, %v6140
    %v6159 = vlaneseq
    %v6160 = vand.u32 %v6159, 127
    %v6161 = vadd.s32 %v6160, 4294967288
    %v6162 = vlaneseq
    %v6163 = vshrl.u32 %v6162, 7
    %v6164 = vsub.s32 %v6161, %v6163
    %v6165 = vrot.slane %v6149, %v6164
    %v6166 = vlaneseq
    %v6167 = vshrl.u32 %v6166, 7
    %v6168 = vsub.s32 %v6161, %v6167
    %v6169 = vrot.slane %v6151, %v6168
    %v6170 = vsel %vm6154, %v6169, %v6165
    %v6172 = vsel %vm342, %v6155, %v6170
    %v6173 = vld [vmem:[#allocation2 + $0x60] sm:$0xff]
    %v6174 = vld [vmem:[#allocation2 + $0x68] sm:$0xff]
    %v6175 = vld [vmem:[#allocation2 + $0xd8] sm:$0xff]
    %v6176 = vld [vmem:[#allocation2 + $0xe0] sm:$0xff]
    %v6177 = vld [vmem:[%s5 + $0x1a] sm:$0x3]
    %v6179 = vlaneseq
    %v6180 = vshrl.u32 %v6179, 7
    %v6181 = vsub.s32 0, %v6180
    %v6182 = vrot.slane %v6177, %v6181
    %v6183 = vlaneseq
    %v6184 = vshrl.u32 %v6183, 7
    %v6185 = vsub.s32 1, %v6184
    %v6186 = vrot.slane %v6177, %v6185
    %v6190 = vsel %vm1679, %v6172, 0
    %6192 = vmatprep.subr.mxu0 %v6174
    %6193 = vmatpush1.msra.mxu0 %v6173
    %6194 = vmatprep.subr.mxu0 %v6176
    %6195 = vmatpush1.msra.mxu0 %v6175
    %6196 = vmatprep.subr.mxu0 0.0
    %6197 = vmatpush1.msra.mxu0 0.0
    %6198 = vmatprep.subr.mxu0 0.0
    %6199 = vmatpush1.msra.mxu0 0.0
    %6200 = vmatprep.subr.mxu0 0.0
    %6201 = vmatpush1.msra.mxu0 0.0
    %6202 = vmatprep.subr.mxu0 0.0
    %6203 = vmatpush1.msra.mxu0 0.0
    %6204 = vmatprep.subr.mxu0 0.0
    %6205 = vmatpush1.msra.mxu0 0.0
    %6206 = vmatprep.subr.mxu0 0.0
    %6207 = vmatpush1.msra.mxu0 0.0
    %6208 = vmatprep.subr.mxu0 0.0
    %6209 = vmatpush1.msra.mxu0 0.0
    %6210 = vmatprep.subr.mxu0 0.0
    %6211 = vmatpush1.msra.mxu0 0.0
    %6212 = vmatprep.subr.mxu0 0.0
    %6213 = vmatpush1.msra.mxu0 0.0
    %6214 = vmatprep.subr.mxu0 0.0
    %6215 = vmatpush1.msra.mxu0 0.0
    %6216 = vmatprep.subr.mxu0 0.0
    %6217 = vmatpush1.msra.mxu0 0.0
    %6218 = vmatprep.subr.mxu0 0.0
    %6219 = vmatpush1.msra.mxu0 0.0
    %6220 = vmatprep.subr.mxu0 0.0
    %6221 = vmatpush1.msra.mxu0 0.0
    %6222 = vmatprep.subr.mxu0 0.0
    %6223 = vmatpush1.msra.mxu0 0.0
    %6224 = vmatprep.subr.mxu0 0.0
    %6225 = vmatpush1.msra.mxu0 0.0
    %6226 = vmatprep.subr.mxu0 0.0
    %6227 = vmatpush1.msra.mxu0 0.0
    %6228 = vmatprep.subr.mxu0 0.0
    %6229 = vmatpush1.msra.mxu0 0.0
    %6230 = vmatprep.subr.mxu0 0.0
    %6231 = vmatpush1.msra.mxu0 0.0
    %6232 = vmatprep.subr.mxu0 0.0
    %6233 = vmatpush1.msra.mxu0 0.0
    %6234 = vmatprep.subr.mxu0 0.0
    %6235 = vmatpush1.msra.mxu0 0.0
    %6236 = vmatprep.subr.mxu0 0.0
    %6237 = vmatpush1.msra.mxu0 0.0
    %6238 = vmatprep.subr.mxu0 0.0
    %6239 = vmatpush1.msra.mxu0 0.0
    %6240 = vmatprep.subr.mxu0 0.0
    %6241 = vmatpush1.msra.mxu0 0.0
    %6242 = vmatprep.subr.mxu0 0.0
    %6243 = vmatpush1.msra.mxu0 0.0
    %6244 = vmatprep.subr.mxu0 0.0
    %6245 = vmatpush1.msra.mxu0 0.0
    %6246 = vmatprep.subr.mxu0 0.0
    %6247 = vmatpush1.msra.mxu0 0.0
    %6248 = vmatprep.subr.mxu0 0.0
    %6249 = vmatpush1.msra.mxu0 0.0
    %6250 = vmatprep.subr.mxu0 0.0
    %6251 = vmatpush1.msra.mxu0 0.0
    %6252 = vmatprep.subr.mxu0 0.0
    %6253 = vmatpush1.msra.mxu0 0.0
    %6254 = vmatprep.subr.mxu0 0.0
    %6255 = vmatpush1.msra.mxu0 0.0
    %6256 = vmatprep.mubr.f32.mxu0 0.0
    %6257 = vmatmul.mubr.f32.gmra.mrb[0].mxu0 %v6190
    %v6258 = vpop.f32.mrb[0].mxu0
    %v6259 = vadd.f32 %v6182, %v6258
    %v6260 = vpop.f32.mrb[0].mxu0
    %v6261 = vadd.f32 %v6186, %v6260
    %6262 = vdwg.mxu0
    %v6263 = vmax.f32 %v6259, 0.0
    %v6264 = vmax.f32 %v6261, 0.0
    %v6265 = vld [vmem:[%s4] sm:$0xff]
    %v6266 = vld [vmem:[%s4 + $0x8] sm:$0xff]
    %v6267 = vld [vmem:[%s4 + $0x10] sm:$0xff]
    %v6268 = vld [vmem:[%s4 + $0x18] sm:$0xff]
    %v6269 = vld [vmem:[%s4 + $0x20] sm:$0xff]
    %v6270 = vld [vmem:[%s4 + $0x28] sm:$0xff]
    %v6271 = vld [vmem:[%s4 + $0x30] sm:$0xff]
    %v6272 = vld [vmem:[%s4 + $0x38] sm:$0xff]
    %v6273 = vld [vmem:[%s4 + $0x40] sm:$0xff]
    %v6274 = vld [vmem:[%s4 + $0x48] sm:$0xff]
    %v6275 = vld [vmem:[%s4 + $0x50] sm:$0xff]
    %v6276 = vld [vmem:[%s4 + $0x58] sm:$0xff]
    %v6277 = vld [vmem:[%s4 + $0x60] sm:$0xff]
    %v6278 = vld [vmem:[%s4 + $0x68] sm:$0xff]
    %v6279 = vld [vmem:[%s4 + $0x70] sm:$0xff]
    %v6280 = vld [vmem:[%s4 + $0x78] sm:$0xff]
    %v6281 = vld [vmem:[%s4 + $0x80] sm:$0xff]
    %v6282 = vld [vmem:[%s4 + $0x88] sm:$0xff]
    %v6283 = vld [vmem:[%s4 + $0x90] sm:$0xff]
    %v6284 = vld [vmem:[%s4 + $0x98] sm:$0xff]
    %v6285 = vld [vmem:[%s4 + $0xa0] sm:$0xff]
    %v6286 = vld [vmem:[%s4 + $0xa8] sm:$0xff]
    %v6287 = vld [vmem:[%s4 + $0xb0] sm:$0xff]
    %v6288 = vld [vmem:[%s4 + $0xb8] sm:$0xff]
    %v6289 = vld [vmem:[%s4 + $0xc0] sm:$0xff]
    %v6290 = vld [vmem:[%s4 + $0xc8] sm:$0xff]
    %v6291 = vld [vmem:[%s4 + $0xd0] sm:$0xff]
    %v6292 = vld [vmem:[%s4 + $0xd8] sm:$0xff]
    %v6293 = vld [vmem:[%s4 + $0xe0] sm:$0xff]
    %v6294 = vld [vmem:[%s4 + $0xe8] sm:$0xff]
    %v6295 = vld [vmem:[%s4 + $0xf0] sm:$0xff]
    %v6296 = vld [vmem:[%s4 + $0xf8] sm:$0xff]
    %v6297 = vld [vmem:[%s5 + $0x1c] sm:$0x1]
    %v6299 = vlaneseq
    %v6300 = vshrl.u32 %v6299, 7
    %v6301 = vsub.s32 0, %v6300
    %v6302 = vrot.slane %v6297, %v6301
    %6304 = vmatprep.subr.mxu0 0.0
    %6305 = vmatpush1.msra.mxu0 %v6265
    %6306 = vmatprep.subr.mxu0 0.0
    %6307 = vmatpush1.msra.mxu0 %v6266
    %6308 = vmatprep.subr.mxu0 0.0
    %6309 = vmatpush1.msra.mxu0 %v6267
    %6310 = vmatprep.subr.mxu0 0.0
    %6311 = vmatpush1.msra.mxu0 %v6268
    %6312 = vmatprep.subr.mxu0 0.0
    %6313 = vmatpush1.msra.mxu0 %v6269
    %6314 = vmatprep.subr.mxu0 0.0
    %6315 = vmatpush1.msra.mxu0 %v6270
    %6316 = vmatprep.subr.mxu0 0.0
    %6317 = vmatpush1.msra.mxu0 %v6271
    %6318 = vmatprep.subr.mxu0 0.0
    %6319 = vmatpush1.msra.mxu0 %v6272
    %6320 = vmatprep.subr.mxu0 0.0
    %6321 = vmatpush1.msra.mxu0 %v6273
    %6322 = vmatprep.subr.mxu0 0.0
    %6323 = vmatpush1.msra.mxu0 %v6274
    %6324 = vmatprep.subr.mxu0 0.0
    %6325 = vmatpush1.msra.mxu0 %v6275
    %6326 = vmatprep.subr.mxu0 0.0
    %6327 = vmatpush1.msra.mxu0 %v6276
    %6328 = vmatprep.subr.mxu0 0.0
    %6329 = vmatpush1.msra.mxu0 %v6277
    %6330 = vmatprep.subr.mxu0 0.0
    %6331 = vmatpush1.msra.mxu0 %v6278
    %6332 = vmatprep.subr.mxu0 0.0
    %6333 = vmatpush1.msra.mxu0 %v6279
    %6334 = vmatprep.subr.mxu0 0.0
    %6335 = vmatpush1.msra.mxu0 %v6280
    %6336 = vmatprep.subr.mxu0 0.0
    %6337 = vmatpush1.msra.mxu0 %v6281
    %6338 = vmatprep.subr.mxu0 0.0
    %6339 = vmatpush1.msra.mxu0 %v6282
    %6340 = vmatprep.subr.mxu0 0.0
    %6341 = vmatpush1.msra.mxu0 %v6283
    %6342 = vmatprep.subr.mxu0 0.0
    %6343 = vmatpush1.msra.mxu0 %v6284
    %6344 = vmatprep.subr.mxu0 0.0
    %6345 = vmatpush1.msra.mxu0 %v6285
    %6346 = vmatprep.subr.mxu0 0.0
    %6347 = vmatpush1.msra.mxu0 %v6286
    %6348 = vmatprep.subr.mxu0 0.0
    %6349 = vmatpush1.msra.mxu0 %v6287
    %6350 = vmatprep.subr.mxu0 0.0
    %6351 = vmatpush1.msra.mxu0 %v6288
    %6352 = vmatprep.subr.mxu0 0.0
    %6353 = vmatpush1.msra.mxu0 %v6289
    %6354 = vmatprep.subr.mxu0 0.0
    %6355 = vmatpush1.msra.mxu0 %v6290
    %6356 = vmatprep.subr.mxu0 0.0
    %6357 = vmatpush1.msra.mxu0 %v6291
    %6358 = vmatprep.subr.mxu0 0.0
    %6359 = vmatpush1.msra.mxu0 %v6292
    %6360 = vmatprep.subr.mxu0 0.0
    %6361 = vmatpush1.msra.mxu0 %v6293
    %6362 = vmatprep.subr.mxu0 0.0
    %6363 = vmatpush1.msra.mxu0 %v6294
    %6364 = vmatprep.subr.mxu0 0.0
    %6365 = vmatpush1.msra.mxu0 %v6295
    %6366 = vmatprep.subr.mxu0 0.0
    %6367 = vmatpush1.msra.mxu0 %v6296
    %6368 = vmatprep.mubr.f32.mxu0 %v6264
    %6369 = vmatmul.mubr.f32.gmra.mrb[0].mxu0 %v6263
    %v6370 = vpop.f32.mrb[0].mxu0
    %v6371 = vadd.f32 %v6302, %v6370
    %v6372 = vpop.f32.mrb[0].mxu0
    %6373 = vdwg.mxu0
    %v6374 = vmax.f32 %v6371, 0.0
    %v6375 = vld [vmem:[%s3 + $0x10] sm:$0xff]
    %v6376 = vld [vmem:[%s3 + $0x28] sm:$0xff]
    %v6377 = vld [vmem:[%s3 + $0x40] sm:$0xff]
    %v6378 = vld [vmem:[%s3 + $0x58] sm:$0xff]
    %v6379 = vld [vmem:[%s3 + $0x70] sm:$0xff]
    %v6380 = vld [vmem:[%s3 + $0x88] sm:$0xff]
    %v6381 = vld [vmem:[%s3 + $0xa0] sm:$0xff]
    %v6382 = vld [vmem:[%s3 + $0xb8] sm:$0xff]
    %v6383 = vld [vmem:[%s5 + $0x1d] sm:$0x1]
    %v6385 = vlaneseq
    %v6386 = vshrl.u32 %v6385, 7
    %v6387 = vsub.s32 0, %v6386
    %v6388 = vrot.slane %v6383, %v6387
    %v6391 = vsel %vm3551, %v6374, 0
    %6393 = vmatprep.subr.mxu0 0.0
    %6394 = vmatpush1.msra.mxu0 %v6375
    %6395 = vmatprep.subr.mxu0 0.0
    %6396 = vmatpush1.msra.mxu0 %v6376
    %6397 = vmatprep.subr.mxu0 0.0
    %6398 = vmatpush1.msra.mxu0 %v6377
    %6399 = vmatprep.subr.mxu0 0.0
    %6400 = vmatpush1.msra.mxu0 %v6378
    %6401 = vmatprep.subr.mxu0 0.0
    %6402 = vmatpush1.msra.mxu0 %v6379
    %6403 = vmatprep.subr.mxu0 0.0
    %6404 = vmatpush1.msra.mxu0 %v6380
    %6405 = vmatprep.subr.mxu0 0.0
    %6406 = vmatpush1.msra.mxu0 %v6381
    %6407 = vmatprep.subr.mxu0 0.0
    %6408 = vmatpush1.msra.mxu0 %v6382
    %6409 = vmatprep.subr.mxu0 0.0
    %6410 = vmatpush1.msra.mxu0 0.0
    %6411 = vmatprep.subr.mxu0 0.0
    %6412 = vmatpush1.msra.mxu0 0.0
    %6413 = vmatprep.subr.mxu0 0.0
    %6414 = vmatpush1.msra.mxu0 0.0
    %6415 = vmatprep.subr.mxu0 0.0
    %6416 = vmatpush1.msra.mxu0 0.0
    %6417 = vmatprep.subr.mxu0 0.0
    %6418 = vmatpush1.msra.mxu0 0.0
    %6419 = vmatprep.subr.mxu0 0.0
    %6420 = vmatpush1.msra.mxu0 0.0
    %6421 = vmatprep.subr.mxu0 0.0
    %6422 = vmatpush1.msra.mxu0 0.0
    %6423 = vmatprep.subr.mxu0 0.0
    %6424 = vmatpush1.msra.mxu0 0.0
    %6425 = vmatprep.subr.mxu0 0.0
    %6426 = vmatpush1.msra.mxu0 0.0
    %6427 = vmatprep.subr.mxu0 0.0
    %6428 = vmatpush1.msra.mxu0 0.0
    %6429 = vmatprep.subr.mxu0 0.0
    %6430 = vmatpush1.msra.mxu0 0.0
    %6431 = vmatprep.subr.mxu0 0.0
    %6432 = vmatpush1.msra.mxu0 0.0
    %6433 = vmatprep.subr.mxu0 0.0
    %6434 = vmatpush1.msra.mxu0 0.0
    %6435 = vmatprep.subr.mxu0 0.0
    %6436 = vmatpush1.msra.mxu0 0.0
    %6437 = vmatprep.subr.mxu0 0.0
    %6438 = vmatpush1.msra.mxu0 0.0
    %6439 = vmatprep.subr.mxu0 0.0
    %6440 = vmatpush1.msra.mxu0 0.0
    %6441 = vmatprep.subr.mxu0 0.0
    %6442 = vmatpush1.msra.mxu0 0.0
    %6443 = vmatprep.subr.mxu0 0.0
    %6444 = vmatpush1.msra.mxu0 0.0
    %6445 = vmatprep.subr.mxu0 0.0
    %6446 = vmatpush1.msra.mxu0 0.0
    %6447 = vmatprep.subr.mxu0 0.0
    %6448 = vmatpush1.msra.mxu0 0.0
    %6449 = vmatprep.subr.mxu0 0.0
    %6450 = vmatpush1.msra.mxu0 0.0
    %6451 = vmatprep.subr.mxu0 0.0
    %6452 = vmatpush1.msra.mxu0 0.0
    %6453 = vmatprep.subr.mxu0 0.0
    %6454 = vmatpush1.msra.mxu0 0.0
    %6455 = vmatprep.subr.mxu0 0.0
    %6456 = vmatpush1.msra.mxu0 0.0
    %6457 = vmatprep.mubr.f32.mxu0 0.0
    %6458 = vmatmul.mubr.f32.gmra.mrb[0].mxu0 %v6391
    %v6459 = vpop.f32.mrb[0].mxu0
    %v6460 = vadd.f32 %v6388, %v6459
    %v6461 = vpop.f32.mrb[0].mxu0
    %6462 = vdwg.mxu0
    %v6463 = vmax.f32 %v6460, 0.0
    %v6464 = vld [vmem:[#allocation2 + $0x70] sm:$0xff]
    %v6465 = vld [vmem:[#allocation2 + $0xe8] sm:$0xff]
    %v6466 = vld [vmem:[#allocation2 + $0x160] sm:$0xff]
    %v6467 = vld [vmem:[#allocation2 + $0x1d8] sm:$0xff]
    %v6468 = vld [vmem:[%s5 + $0x1e] sm:$0x1]
    %v6470 = vlaneseq
    %v6471 = vshrl.u32 %v6470, 7
    %v6472 = vsub.s32 0, %v6471
    %v6473 = vrot.slane %v6468, %v6472
    %v6476 = vsel %vm55, %v6463, 0
    %6478 = vmatprep.subr.mxu0 0.0
    %6479 = vmatpush1.msra.mxu0 %v6464
    %6480 = vmatprep.subr.mxu0 0.0
    %6481 = vmatpush1.msra.mxu0 %v6465
    %6482 = vmatprep.subr.mxu0 0.0
    %6483 = vmatpush1.msra.mxu0 %v6466
    %6484 = vmatprep.subr.mxu0 0.0
    %6485 = vmatpush1.msra.mxu0 %v6467
    %6486 = vmatprep.subr.mxu0 0.0
    %6487 = vmatpush1.msra.mxu0 0.0
    %6488 = vmatprep.subr.mxu0 0.0
    %6489 = vmatpush1.msra.mxu0 0.0
    %6490 = vmatprep.subr.mxu0 0.0
    %6491 = vmatpush1.msra.mxu0 0.0
    %6492 = vmatprep.subr.mxu0 0.0
    %6493 = vmatpush1.msra.mxu0 0.0
    %6494 = vmatprep.subr.mxu0 0.0
    %6495 = vmatpush1.msra.mxu0 0.0
    %6496 = vmatprep.subr.mxu0 0.0
    %6497 = vmatpush1.msra.mxu0 0.0
    %6498 = vmatprep.subr.mxu0 0.0
    %6499 = vmatpush1.msra.mxu0 0.0
    %6500 = vmatprep.subr.mxu0 0.0
    %6501 = vmatpush1.msra.mxu0 0.0
    %6502 = vmatprep.subr.mxu0 0.0
    %6503 = vmatpush1.msra.mxu0 0.0
    %6504 = vmatprep.subr.mxu0 0.0
    %6505 = vmatpush1.msra.mxu0 0.0
    %6506 = vmatprep.subr.mxu0 0.0
    %6507 = vmatpush1.msra.mxu0 0.0
    %6508 = vmatprep.subr.mxu0 0.0
    %6509 = vmatpush1.msra.mxu0 0.0
    %6510 = vmatprep.subr.mxu0 0.0
    %6511 = vmatpush1.msra.mxu0 0.0
    %6512 = vmatprep.subr.mxu0 0.0
    %6513 = vmatpush1.msra.mxu0 0.0
    %6514 = vmatprep.subr.mxu0 0.0
    %6515 = vmatpush1.msra.mxu0 0.0
    %6516 = vmatprep.subr.mxu0 0.0
    %6517 = vmatpush1.msra.mxu0 0.0
    %6518 = vmatprep.subr.mxu0 0.0
    %6519 = vmatpush1.msra.mxu0 0.0
    %6520 = vmatprep.subr.mxu0 0.0
    %6521 = vmatpush1.msra.mxu0 0.0
    %6522 = vmatprep.subr.mxu0 0.0
    %6523 = vmatpush1.msra.mxu0 0.0
    %6524 = vmatprep.subr.mxu0 0.0
    %6525 = vmatpush1.msra.mxu0 0.0
    %6526 = vmatprep.subr.mxu0 0.0
    %6527 = vmatpush1.msra.mxu0 0.0
    %6528 = vmatprep.subr.mxu0 0.0
    %6529 = vmatpush1.msra.mxu0 0.0
    %6530 = vmatprep.subr.mxu0 0.0
    %6531 = vmatpush1.msra.mxu0 0.0
    %6532 = vmatprep.subr.mxu0 0.0
    %6533 = vmatpush1.msra.mxu0 0.0
    %6534 = vmatprep.subr.mxu0 0.0
    %6535 = vmatpush1.msra.mxu0 0.0
    %6536 = vmatprep.subr.mxu0 0.0
    %6537 = vmatpush1.msra.mxu0 0.0
    %6538 = vmatprep.subr.mxu0 0.0
    %6539 = vmatpush1.msra.mxu0 0.0
    %6540 = vmatprep.subr.mxu0 0.0
    %6541 = vmatpush1.msra.mxu0 0.0
    %6542 = vmatprep.mubr.f32.mxu0 0.0
    %6543 = vmatmul.mubr.f32.gmra.mrb[0].mxu0 %v6476
    %v6544 = vpop.f32.mrb[0].mxu0
    %v6545 = vadd.f32 %v6473, %v6544
    %v6546 = vpop.f32.mrb[0].mxu0
    %6547 = vdwg.mxu0
    %v6550 = vunpack.c.l.s4 1966171168
    %v6551 = vunpack.c.0.s8 %v6550
    %v6552 = vlaneseq
    %v6553 = vshrl.u32 %v6552, 7
    %v6554 = vsub.s32 %v6551, %v6553
    %v6555 = vrot.slane %v6545, %v6554
    %v6556 = vcombine.high %v6555, %v6555
    %v6558 = vunpack.c.l.s4 1966171168
    %v6559 = vunpack.c.0.s8 %v6558
    %v6560 = vlaneseq
    %v6561 = vshrl.u32 %v6560, 7
    %v6562 = vsub.s32 %v6559, %v6561
    %v6563 = vrot.slane %v6555, %v6562
    %v6565 = vunpack.c.l.s4 1966171168
    %v6566 = vunpack.c.0.s8 %v6565
    %v6567 = vlaneseq
    %v6568 = vshrl.u32 %v6567, 7
    %v6569 = vsub.s32 %v6566, %v6568
    %v6570 = vrot.slane %v6556, %v6569
    %vm6573 = vcmask 0
    %6574 = vst.msk [vmem:[%s6] sm:$0x1] %vm6573, %v6563
    %6575 = vst.msk [vmem:[%s6 + $0x1] sm:$0x1] %vm6573, %v6570
    // Predicated region
    $region30: #{tpu_custom_call.1} parent=1 // pred_check
      _
    $region31: #{tpu_custom_call.1} parent=1 // pred_check_branch
      %6577 = sbr.rel (0) target = $region33
    $region32: #{tpu_custom_call.1} parent=1 // pred_region
      _
    $region33: #{tpu_custom_call.1} parent=1 // pred_fallthru
      _
    // Predicated region
    $region34: #{tpu_custom_call.1} parent=1 // pred_check
      _
    $region35: #{tpu_custom_call.1} parent=1 // pred_check_branch
      %6579 = sbr.rel (0) target = $region37
    $region36: #{tpu_custom_call.1} parent=1 // pred_region
      %s6581 = ssub.s32 256, 256
      %6582 = vsyncadd [#allocation4], %s6581
      %s6583 = sshll.u32 [#allocation5], 4
      %s6584 = int_to_ptr.vmem [resolvable:$true] %s6583
      %6589 = dma.vmem_to_hbm [thread:$0]  %s6584, 256, %s7, [#allocation4], 128, 128, 8
    $region37: #{tpu_custom_call.1} parent=1 // pred_fallthru
      _
    // Predicated region
    $region38: #{tpu_custom_call.1} parent=1 // pred_check
      _
    $region39: #{tpu_custom_call.1} parent=1 // pred_check_branch
      %6591 = sbr.rel (0) target = $region41
    $region40: #{tpu_custom_call.1} parent=1 // pred_region
      _
    $region41: #{tpu_custom_call.1} parent=1 // pred_fallthru
      _
    // Predicated region
    $region42: #{tpu_custom_call.1} parent=1 // pred_check
      _
    $region43: #{tpu_custom_call.1} parent=1 // pred_check_branch
      %6593 = sbr.rel (0) target = $region45
    $region44: #{tpu_custom_call.1} parent=1 // pred_region
      %6594 = dma.done [#allocation4], 256
    $region45: #{tpu_custom_call.1} parent=1 // pred_fallthru
      _
    %6595 = vsyncpa [#allocation3], 1
    %6596 = vsyncpa [#allocation4], 1

</llo_original>
